<compile_context>
chip_gen: v7x
topology: tpu7x:2x2x1
jax: 0.10.0
libtpu: 0.0.40
codegen_flags: <defaults>
</compile_context>

<pallas_src>
import jax
import jax.numpy as jnp
from jax.experimental import pallas as pl
from jax.experimental.pallas import tpu as pltpu

FLAT_IN = 4 * 24 * 72      # 6912
FLAT_OUT = 256
HIDDEN = 128
OUTPUT = 24
SEQ = 12
N_CHUNK = 3                # 6912 / 3 = 2304 (multiple of 128)
K_CHUNK = FLAT_IN // N_CHUNK


# ---------------------------------------------------------------------------
# Fused kernel: flatten Linear(+ReLU) -> 2-layer LSTM (12 steps, skewed) -> fc
# ---------------------------------------------------------------------------
def _fused_kernel(x_ref, w1_ref, b1_ref,
                  wih0_ref, b0_ref,
                  wrec_ref, bl1_ref,
                  wfc_ref, bfc_ref,
                  out_ref, feat_ref):
    H = HIDDEN
    BP = out_ref.shape[0]                       # padded batch (multiple of 8)
    k = pl.program_id(0)

    # ---- flatten_input, K-chunked: accumulate x_chunk @ W1_chunk into feat.
    @pl.when(k == 0)
    def _():
        # Fold the bias into the accumulator init.
        feat_ref[...] = jnp.broadcast_to(b1_ref[...], feat_ref.shape)

    feat_ref[...] += jnp.dot(x_ref[...], w1_ref[...],
                             preferred_element_type=jnp.float32)

    # ---- on the last chunk: ReLU, LSTM recurrence, fc.
    @pl.when(k == pl.num_programs(0) - 1)
    def _():
        feat = jnp.maximum(feat_ref[...], 0.0)                 # (SEQ*BP, 256)

        # Layer-0 input projection for ALL time steps as one matmul.
        # (Gate columns are pre-scaled so i/f/o arrive as preact/2.)
        xproj0 = (jnp.dot(feat, wih0_ref[...],
                          preferred_element_type=jnp.float32)
                  + b0_ref[...])                               # (SEQ*BP, 4H)

        wrec = wrec_ref[...]                                   # (2H, 8H)
        bl1 = jnp.broadcast_to(bl1_ref[...], (BP, 4 * H))      # hoisted

        def cell(g, c_prev):
            # i/f/o columns of g are preact/2 (folded into weights), so
            # sigmoid(x) = 0.5 + 0.5*tanh(x/2): ONE tanh covers all 4 gates.
            t = jnp.tanh(g)
            i = 0.5 * t[:, 0 * H:1 * H] + 0.5
            f = 0.5 * t[:, 1 * H:2 * H] + 0.5
            gg = t[:, 2 * H:3 * H]
            o = 0.5 * t[:, 3 * H:4 * H] + 0.5
            c_new = f * c_prev + i * gg
            h_new = o * jnp.tanh(c_new)
            return h_new, c_new

        zeros = jnp.zeros((BP, H), jnp.float32)
        h0, c0 = zeros, zeros       # layer-0 state at step t-1
        h1d, c1 = zeros, zeros      # layer-1 h at step t-2, c at step t-2

        # Skewed, fully unrolled recurrence: one matmul per step produces
        # g0(t) (left 4H cols) and g1(t-1) (right 4H cols).
        for t in range(SEQ):
            if t == 0:
                h0, c0 = cell(xproj0[0:BP, :], c0)             # layer 0, step 0
            else:
                a = jnp.dot(jnp.concatenate([h0, h1d], axis=1), wrec,
                            preferred_element_type=jnp.float32)   # (BP, 8H)
                g0 = xproj0[t * BP:(t + 1) * BP, :] + a[:, :4 * H]
                h0_new, c0 = cell(g0, c0)                      # layer 0, step t
                h1d, c1 = cell(a[:, 4 * H:] + bl1, c1)         # layer 1, step t-1
                h0 = h0_new

        # Epilogue: layer-1 cell for the final step SEQ-1.
        a1 = jnp.dot(jnp.concatenate([h0, h1d], axis=1), wrec[:, 4 * H:],
                     preferred_element_type=jnp.float32)
        h1, _ = cell(a1 + bl1, c1)

        # Final fc (128 -> 24) on the last top-layer hidden state.
        out_ref[...] = (jnp.dot(h1, wfc_ref[...],
                                preferred_element_type=jnp.float32)
                        + bfc_ref[...]).astype(out_ref.dtype)


# ---------------------------------------------------------------------------
# One-time weight preprocessing (kept OUT of the per-call forward path)
# ---------------------------------------------------------------------------
def prepare_params(p):
    H = HIDDEN
    # 0.5 pre-scale of the i/f/o gate columns (PyTorch gate order i, f, g, o)
    # so sigmoid(x) = 0.5 + 0.5*tanh(x/2) needs no extra scaling in-kernel.
    s = jnp.concatenate([jnp.full((2 * H,), 0.5, jnp.float32),
                         jnp.ones((H,), jnp.float32),
                         jnp.full((H,), 0.5, jnp.float32)])
    wih0t = p["wih0"].T * s
    whh0t = p["whh0"].T * s
    wih1t = p["wih1"].T * s
    whh1t = p["whh1"].T * s
    # Block recurrent weight [[W_hh0, W_ih1], [0, W_hh1]]  (2H, 8H).
    wrec = jnp.zeros((2 * H, 8 * H), jnp.float32)
    wrec = wrec.at[:H, :4 * H].set(whh0t)
    wrec = wrec.at[:H, 4 * H:].set(wih1t)
    wrec = wrec.at[H:, 4 * H:].set(whh1t)
    return {
        "w1t": p["w1"].T.astype(jnp.bfloat16),            # (6912, 256) bf16
        "b1": p["b1"][None, :],                            # (1, 256)
        "wih0t": wih0t,                                    # (256, 4H) scaled
        "b0": ((p["bih0"] + p["bhh0"]) * s)[None, :],      # (1, 4H) scaled
        "wrec": wrec,                                      # (2H, 8H)
        "bl1": ((p["bih1"] + p["bhh1"]) * s)[None, :],     # (1, 4H) scaled
        "wfct": p["wfc"].T,                                # (128, 24)
        "bfc": p["bfc"][None, :],                          # (1, 24)
    }


# ---------------------------------------------------------------------------
# Forward wrapper
# ---------------------------------------------------------------------------
def lstm_model_forward(x, pp):
    B = x.shape[0]
    BP = max(8, ((B + 7) // 8) * 8)    # pad batch to a full sublane tile
    # view(B,4,12,-1) -> TIME-MAJOR permute (12,B,4,-1) -> (SEQ, B, 6912):
    # row (t, b) matches PyTorch's permute(0,2,1,3).reshape(B,12,-1)[b, t].
    xv = jnp.transpose(x.reshape(B, 4, SEQ, -1), (2, 0, 1, 3)).reshape(
        SEQ, B, FLAT_IN).astype(jnp.bfloat16)
    x_pad = jnp.pad(xv, ((0, 0), (0, BP - B), (0, 0))).reshape(
        SEQ * BP, FLAT_IN)

    out = pl.pallas_call(
        _fused_kernel,
        out_shape=jax.ShapeDtypeStruct((BP, OUTPUT), jnp.float32),
        grid_spec=pltpu.PrefetchScalarGridSpec(
            num_scalar_prefetch=0,
            grid=(N_CHUNK,),
            in_specs=[
                pl.BlockSpec((SEQ * BP, K_CHUNK), lambda k: (0, k)),      # x (K-chunked)
                pl.BlockSpec((K_CHUNK, FLAT_OUT), lambda k: (k, 0)),      # W1^T (K-chunked)
                pl.BlockSpec((1, FLAT_OUT), lambda k: (0, 0)),            # b1
                pl.BlockSpec((FLAT_OUT, 4 * HIDDEN), lambda k: (0, 0)),   # W_ih0^T
                pl.BlockSpec((1, 4 * HIDDEN), lambda k: (0, 0)),          # b layer0
                pl.BlockSpec((2 * HIDDEN, 8 * HIDDEN), lambda k: (0, 0)),  # block recurrent
                pl.BlockSpec((1, 4 * HIDDEN), lambda k: (0, 0)),          # b layer1
                pl.BlockSpec((HIDDEN, OUTPUT), lambda k: (0, 0)),         # W_fc^T
                pl.BlockSpec((1, OUTPUT), lambda k: (0, 0)),              # b_fc
            ],
            out_specs=pl.BlockSpec((BP, OUTPUT), lambda k: (0, 0)),
            scratch_shapes=[pltpu.VMEM((SEQ * BP, FLAT_OUT), jnp.float32)],
        ),
        compiler_params=pltpu.CompilerParams(
            dimension_semantics=("arbitrary",),
            vmem_limit_bytes=32 * 1024 * 1024),
    )(x_pad, pp["w1t"], pp["b1"], pp["wih0t"], pp["b0"],
      pp["wrec"], pp["bl1"], pp["wfct"], pp["bfc"])
    return out[:B]


# ---------------------------------------------------------------------------
# Parameters (deterministic, PyTorch-style uniform init)
# ---------------------------------------------------------------------------
def init_params(key):
    ks = jax.random.split(key, 12)

    def u(k, shape, bound):
        return jax.random.uniform(k, shape, jnp.float32, -bound, bound)

    p = {}
    b1 = 1.0 / (FLAT_IN ** 0.5)
    p["w1"] = u(ks[0], (FLAT_OUT, FLAT_IN), b1)
    p["b1"] = u(ks[1], (FLAT_OUT,), b1)
    bh = 1.0 / (HIDDEN ** 0.5)
    p["wih0"] = u(ks[2], (4 * HIDDEN, FLAT_OUT), bh)
    p["whh0"] = u(ks[3], (4 * HIDDEN, HIDDEN), bh)
    p["bih0"] = u(ks[4], (4 * HIDDEN,), bh)
    p["bhh0"] = u(ks[5], (4 * HIDDEN,), bh)
    p["wih1"] = u(ks[6], (4 * HIDDEN, HIDDEN), bh)
    p["whh1"] = u(ks[7], (4 * HIDDEN, HIDDEN), bh)
    p["bih1"] = u(ks[8], (4 * HIDDEN,), bh)
    p["bhh1"] = u(ks[9], (4 * HIDDEN,), bh)
    p["wfc"] = u(ks[10], (OUTPUT, HIDDEN), bh)
    p["bfc"] = u(ks[11], (OUTPUT,), bh)
    return p


# ---------------------------------------------------------------------------
# Pure-JAX reference for correctness checking
# ---------------------------------------------------------------------------
def reference(x, p):
    B = x.shape[0]
    xv = jnp.transpose(x.reshape(B, 4, SEQ, -1), (0, 2, 1, 3)).reshape(B, SEQ, -1)
    h = jax.nn.relu(xv @ p["w1"].T + p["b1"])

    def lstm_layer(seq, wih, whh, bih, bhh):
        H = HIDDEN

        def step(carry, x_t):
            h_prev, c_prev = carry
            g = x_t @ wih.T + bih + h_prev @ whh.T + bhh
            i = jax.nn.sigmoid(g[:, :H])
            f = jax.nn.sigmoid(g[:, H:2 * H])
            gg = jnp.tanh(g[:, 2 * H:3 * H])
            o = jax.nn.sigmoid(g[:, 3 * H:])
            c = f * c_prev + i * gg
            hh = o * jnp.tanh(c)
            return (hh, c), hh

        init = (jnp.zeros((B, H), jnp.float32), jnp.zeros((B, H), jnp.float32))
        _, ys = jax.lax.scan(step, init, jnp.transpose(seq, (1, 0, 2)))
        return jnp.transpose(ys, (1, 0, 2))

    out0 = lstm_layer(h, p["wih0"], p["whh0"], p["bih0"], p["bhh0"])
    out1 = lstm_layer(out0, p["wih1"], p["whh1"], p["bih1"], p["bhh1"])
    return out1[:, -1, :] @ p["wfc"].T + p["bfc"]


if __name__ == "__main__":
    key = jax.random.PRNGKey(0)
    kx, kp = jax.random.split(key)
    # (B, 4, 288, 72): 4*288*72 = 4*12*24*72 elements per sample, as the
    # module's view(B,4,12,-1) / Linear(4*24*72, 256) implies.
    x = jax.random.normal(kx, (2, 4, 288, 72), jnp.float32)
    params = init_params(kp)
    prepped = jax.block_until_ready(prepare_params(params))   # one-time prep

    fwd = jax.jit(lstm_model_forward)
    out = jax.block_until_ready(fwd(x, prepped))
    ref = jax.block_until_ready(reference(x, params))

    assert out.shape == (2, OUTPUT), out.shape
    max_err = float(jnp.max(jnp.abs(out - ref)))
    assert jnp.allclose(out, ref, atol=2e-2, rtol=2e-2), max_err
    print("KERNEL_OK")
</pallas_src>

<mosaic_0001>
module attributes {stable_mosaic.version = 11 : i64} {
  func.func @_fused_kernel(%arg0: i32, %arg1: memref<96x2304xbf16, #tpu.memory_space<vmem>>, %arg2: memref<2304x256xbf16, #tpu.memory_space<vmem>>, %arg3: memref<1x256xf32, #tpu.memory_space<vmem>>, %arg4: memref<256x512xf32, #tpu.memory_space<vmem>>, %arg5: memref<1x512xf32, #tpu.memory_space<vmem>>, %arg6: memref<256x1024xf32, #tpu.memory_space<vmem>>, %arg7: memref<1x512xf32, #tpu.memory_space<vmem>>, %arg8: memref<128x24xf32, #tpu.memory_space<vmem>>, %arg9: memref<1x24xf32, #tpu.memory_space<vmem>>, %arg10: memref<8x24xf32, #tpu.memory_space<vmem>>, %arg11: memref<96x256xf32, #tpu.memory_space<vmem>>) attributes {dimension_semantics = [#tpu.dimension_semantics<arbitrary>], iteration_bounds = array<i64: 3>, scalar_prefetch = 0 : i64, scratch_operands = 1 : i64, tpu.core_type = #tpu.core_type<tc>, window_params = [{transform_indices = @transform_0, window_bounds = array<i64: 96, 2304>}, {transform_indices = @transform_1, window_bounds = array<i64: 2304, 256>}, {pipeline_mode = #tpu.pipeline_mode<synchronous>, transform_indices = @transform_2, window_bounds = array<i64: 1, 256>}, {pipeline_mode = #tpu.pipeline_mode<synchronous>, transform_indices = @transform_3, window_bounds = array<i64: 256, 512>}, {pipeline_mode = #tpu.pipeline_mode<synchronous>, transform_indices = @transform_4, window_bounds = array<i64: 1, 512>}, {pipeline_mode = #tpu.pipeline_mode<synchronous>, transform_indices = @transform_5, window_bounds = array<i64: 256, 1024>}, {pipeline_mode = #tpu.pipeline_mode<synchronous>, transform_indices = @transform_6, window_bounds = array<i64: 1, 512>}, {pipeline_mode = #tpu.pipeline_mode<synchronous>, transform_indices = @transform_7, window_bounds = array<i64: 128, 24>}, {pipeline_mode = #tpu.pipeline_mode<synchronous>, transform_indices = @transform_8, window_bounds = array<i64: 1, 24>}, {pipeline_mode = #tpu.pipeline_mode<synchronous>, transform_indices = @transform_9, window_bounds = array<i64: 8, 24>}]} {
    %c0_i32 = arith.constant 0 : i32
    %0 = arith.cmpi eq, %arg0, %c0_i32 : i32
    %1 = arith.extui %0 : i1 to i32
    %c0_i32_0 = arith.constant 0 : i32
    %2 = arith.cmpi ne, %1, %c0_i32_0 : i32
    scf.if %2 {
      %c0_9 = arith.constant 0 : index
      %c0_10 = arith.constant 0 : index
      %12 = vector.load %arg3[%c0_9, %c0_10] : memref<1x256xf32, #tpu.memory_space<vmem>>, vector<1x256xf32>
      %13 = vector.shape_cast %12 : vector<1x256xf32> to vector<1x256xf32>
      %14 = vector.broadcast %13 : vector<1x256xf32> to vector<96x256xf32>
      %c0_11 = arith.constant 0 : index
      %c0_12 = arith.constant 0 : index
      %15 = vector.load %arg11[%c0_11, %c0_12] : memref<96x256xf32, #tpu.memory_space<vmem>>, vector<96x256xf32>
      tpu.vector_store %arg11[%c0_11, %c0_12], %14 {strides = array<i32>} : memref<96x256xf32, #tpu.memory_space<vmem>>, vector<96x256xf32>,
    } else {
    }
    %c0 = arith.constant 0 : index
    %c0_1 = arith.constant 0 : index
    %3 = vector.load %arg11[%c0, %c0_1] : memref<96x256xf32, #tpu.memory_space<vmem>>, vector<96x256xf32>
    %c0_2 = arith.constant 0 : index
    %c0_3 = arith.constant 0 : index
    %4 = vector.load %arg1[%c0_2, %c0_3] : memref<96x2304xbf16, #tpu.memory_space<vmem>>, vector<96x2304xbf16>
    %c0_4 = arith.constant 0 : index
    %c0_5 = arith.constant 0 : index
    %5 = vector.load %arg2[%c0_4, %c0_5] : memref<2304x256xbf16, #tpu.memory_space<vmem>>, vector<2304x256xbf16>
    %cst = arith.constant dense<0.000000e+00> : vector<96x256xf32>
    %6 = tpu.matmul %4, %5, %cst {dimension_numbers = #tpu.dot_dimension_numbers<[1], [0], [0], [1], [0, 0, 1, 1], [], []>} : vector<96x2304xbf16>, vector<2304x256xbf16>, vector<96x256xf32> -> vector<96x256xf32>
    %7 = arith.addf %3, %6 : vector<96x256xf32>
    %c0_6 = arith.constant 0 : index
    %c0_7 = arith.constant 0 : index
    %8 = vector.load %arg11[%c0_6, %c0_7] : memref<96x256xf32, #tpu.memory_space<vmem>>, vector<96x256xf32>
    tpu.vector_store %arg11[%c0_6, %c0_7], %7 {strides = array<i32>} : memref<96x256xf32, #tpu.memory_space<vmem>>, vector<96x256xf32>,
    %c2_i32 = arith.constant 2 : i32
    %9 = arith.cmpi eq, %arg0, %c2_i32 : i32
    %10 = arith.extui %9 : i1 to i32
    %c0_i32_8 = arith.constant 0 : i32
    %11 = arith.cmpi ne, %10, %c0_i32_8 : i32
    scf.if %11 {
      %c0_9 = arith.constant 0 : index
      %c0_10 = arith.constant 0 : index
      %12 = vector.load %arg11[%c0_9, %c0_10] : memref<96x256xf32, #tpu.memory_space<vmem>>, vector<96x256xf32>
      %cst_11 = arith.constant 0.000000e+00 : f32
      %13 = vector.broadcast %cst_11 : f32 to vector<96x256xf32>
      %14 = arith.maximumf %12, %13 : vector<96x256xf32>
      %c0_12 = arith.constant 0 : index
      %c0_13 = arith.constant 0 : index
      %15 = vector.load %arg4[%c0_12, %c0_13] : memref<256x512xf32, #tpu.memory_space<vmem>>, vector<256x512xf32>
      %cst_14 = arith.constant dense<0.000000e+00> : vector<96x512xf32>
      %16 = tpu.matmul %14, %15, %cst_14 {dimension_numbers = #tpu.dot_dimension_numbers<[1], [0], [0], [1], [0, 0, 1, 1], [], []>} : vector<96x256xf32>, vector<256x512xf32>, vector<96x512xf32> -> vector<96x512xf32>
      %c0_15 = arith.constant 0 : index
      %c0_16 = arith.constant 0 : index
      %17 = vector.load %arg5[%c0_15, %c0_16] : memref<1x512xf32, #tpu.memory_space<vmem>>, vector<1x512xf32>
      %18 = vector.broadcast %17 : vector<1x512xf32> to vector<96x512xf32>
      %19 = arith.addf %16, %18 : vector<96x512xf32>
      %c0_17 = arith.constant 0 : index
      %c0_18 = arith.constant 0 : index
      %20 = vector.load %arg6[%c0_17, %c0_18] : memref<256x1024xf32, #tpu.memory_space<vmem>>, vector<256x1024xf32>
      %c0_19 = arith.constant 0 : index
      %c0_20 = arith.constant 0 : index
      %21 = vector.load %arg7[%c0_19, %c0_20] : memref<1x512xf32, #tpu.memory_space<vmem>>, vector<1x512xf32>
      %22 = vector.shape_cast %21 : vector<1x512xf32> to vector<1x512xf32>
      %23 = vector.broadcast %22 : vector<1x512xf32> to vector<8x512xf32>
      %cst_21 = arith.constant 0.000000e+00 : f32
      %24 = vector.broadcast %cst_21 : f32 to vector<8x128xf32>
      %25 = vector.extract_strided_slice %19 {offsets = [0, 0], sizes = [8, 512], strides = [1, 1]} : vector<96x512xf32> to vector<8x512xf32>
      %26 = math.tanh %25 : vector<8x512xf32>
      %27 = vector.extract_strided_slice %26 {offsets = [0, 0], sizes = [8, 128], strides = [1, 1]} : vector<8x512xf32> to vector<8x128xf32>
      %cst_22 = arith.constant 5.000000e-01 : f32
      %28 = vector.broadcast %cst_22 : f32 to vector<8x128xf32>
      %29 = arith.mulf %28, %27 : vector<8x128xf32>
      %cst_23 = arith.constant 5.000000e-01 : f32
      %30 = vector.broadcast %cst_23 : f32 to vector<8x128xf32>
      %31 = arith.addf %29, %30 : vector<8x128xf32>
      %32 = vector.extract_strided_slice %26 {offsets = [0, 128], sizes = [8, 128], strides = [1, 1]} : vector<8x512xf32> to vector<8x128xf32>
      %cst_24 = arith.constant 5.000000e-01 : f32
      %33 = vector.broadcast %cst_24 : f32 to vector<8x128xf32>
      %34 = arith.mulf %33, %32 : vector<8x128xf32>
      %cst_25 = arith.constant 5.000000e-01 : f32
      %35 = vector.broadcast %cst_25 : f32 to vector<8x128xf32>
      %36 = arith.addf %34, %35 : vector<8x128xf32>
      %37 = vector.extract_strided_slice %26 {offsets = [0, 256], sizes = [8, 128], strides = [1, 1]} : vector<8x512xf32> to vector<8x128xf32>
      %38 = vector.extract_strided_slice %26 {offsets = [0, 384], sizes = [8, 128], strides = [1, 1]} : vector<8x512xf32> to vector<8x128xf32>
      %cst_26 = arith.constant 5.000000e-01 : f32
      %39 = vector.broadcast %cst_26 : f32 to vector<8x128xf32>
      %40 = arith.mulf %39, %38 : vector<8x128xf32>
      %cst_27 = arith.constant 5.000000e-01 : f32
      %41 = vector.broadcast %cst_27 : f32 to vector<8x128xf32>
      %42 = arith.addf %40, %41 : vector<8x128xf32>
      %43 = arith.mulf %36, %24 : vector<8x128xf32>
      %44 = arith.mulf %31, %37 : vector<8x128xf32>
      %45 = arith.addf %43, %44 : vector<8x128xf32>
      %46 = math.tanh %45 : vector<8x128xf32>
      %47 = arith.mulf %42, %46 : vector<8x128xf32>
      %48 = tpu.concatenate %47, %24 in 1 : vector<8x128xf32>, vector<8x128xf32> -> vector<8x256xf32>
      %cst_28 = arith.constant dense<0.000000e+00> : vector<8x1024xf32>
      %49 = tpu.matmul %48, %20, %cst_28 {dimension_numbers = #tpu.dot_dimension_numbers<[1], [0], [0], [1], [0, 0, 1, 1], [], []>} : vector<8x256xf32>, vector<256x1024xf32>, vector<8x1024xf32> -> vector<8x1024xf32>
      %50 = vector.extract_strided_slice %19 {offsets = [8, 0], sizes = [8, 512], strides = [1, 1]} : vector<96x512xf32> to vector<8x512xf32>
      %51 = vector.extract_strided_slice %49 {offsets = [0, 0], sizes = [8, 512], strides = [1, 1]} : vector<8x1024xf32> to vector<8x512xf32>
      %52 = arith.addf %50, %51 : vector<8x512xf32>
      %53 = math.tanh %52 : vector<8x512xf32>
      %54 = vector.extract_strided_slice %53 {offsets = [0, 0], sizes = [8, 128], strides = [1, 1]} : vector<8x512xf32> to vector<8x128xf32>
      %cst_29 = arith.constant 5.000000e-01 : f32
      %55 = vector.broadcast %cst_29 : f32 to vector<8x128xf32>
      %56 = arith.mulf %55, %54 : vector<8x128xf32>
      %cst_30 = arith.constant 5.000000e-01 : f32
      %57 = vector.broadcast %cst_30 : f32 to vector<8x128xf32>
      %58 = arith.addf %56, %57 : vector<8x128xf32>
      %59 = vector.extract_strided_slice %53 {offsets = [0, 128], sizes = [8, 128], strides = [1, 1]} : vector<8x512xf32> to vector<8x128xf32>
      %cst_31 = arith.constant 5.000000e-01 : f32
      %60 = vector.broadcast %cst_31 : f32 to vector<8x128xf32>
      %61 = arith.mulf %60, %59 : vector<8x128xf32>
      %cst_32 = arith.constant 5.000000e-01 : f32
      %62 = vector.broadcast %cst_32 : f32 to vector<8x128xf32>
      %63 = arith.addf %61, %62 : vector<8x128xf32>
      %64 = vector.extract_strided_slice %53 {offsets = [0, 256], sizes = [8, 128], strides = [1, 1]} : vector<8x512xf32> to vector<8x128xf32>
      %65 = vector.extract_strided_slice %53 {offsets = [0, 384], sizes = [8, 128], strides = [1, 1]} : vector<8x512xf32> to vector<8x128xf32>
      %cst_33 = arith.constant 5.000000e-01 : f32
      %66 = vector.broadcast %cst_33 : f32 to vector<8x128xf32>
      %67 = arith.mulf %66, %65 : vector<8x128xf32>
      %cst_34 = arith.constant 5.000000e-01 : f32
      %68 = vector.broadcast %cst_34 : f32 to vector<8x128xf32>
      %69 = arith.addf %67, %68 : vector<8x128xf32>
      %70 = arith.mulf %63, %45 : vector<8x128xf32>
      %71 = arith.mulf %58, %64 : vector<8x128xf32>
      %72 = arith.addf %70, %71 : vector<8x128xf32>
      %73 = math.tanh %72 : vector<8x128xf32>
      %74 = arith.mulf %69, %73 : vector<8x128xf32>
      %75 = vector.extract_strided_slice %49 {offsets = [0, 512], sizes = [8, 512], strides = [1, 1]} : vector<8x1024xf32> to vector<8x512xf32>
      %76 = arith.addf %75, %23 : vector<8x512xf32>
      %77 = math.tanh %76 : vector<8x512xf32>
      %78 = vector.extract_strided_slice %77 {offsets = [0, 0], sizes = [8, 128], strides = [1, 1]} : vector<8x512xf32> to vector<8x128xf32>
      %cst_35 = arith.constant 5.000000e-01 : f32
      %79 = vector.broadcast %cst_35 : f32 to vector<8x128xf32>
      %80 = arith.mulf %79, %78 : vector<8x128xf32>
      %cst_36 = arith.constant 5.000000e-01 : f32
      %81 = vector.broadcast %cst_36 : f32 to vector<8x128xf32>
      %82 = arith.addf %80, %81 : vector<8x128xf32>
      %83 = vector.extract_strided_slice %77 {offsets = [0, 128], sizes = [8, 128], strides = [1, 1]} : vector<8x512xf32> to vector<8x128xf32>
      %cst_37 = arith.constant 5.000000e-01 : f32
      %84 = vector.broadcast %cst_37 : f32 to vector<8x128xf32>
      %85 = arith.mulf %84, %83 : vector<8x128xf32>
      %cst_38 = arith.constant 5.000000e-01 : f32
      %86 = vector.broadcast %cst_38 : f32 to vector<8x128xf32>
      %87 = arith.addf %85, %86 : vector<8x128xf32>
      %88 = vector.extract_strided_slice %77 {offsets = [0, 256], sizes = [8, 128], strides = [1, 1]} : vector<8x512xf32> to vector<8x128xf32>
      %89 = vector.extract_strided_slice %77 {offsets = [0, 384], sizes = [8, 128], strides = [1, 1]} : vector<8x512xf32> to vector<8x128xf32>
      %cst_39 = arith.constant 5.000000e-01 : f32
      %90 = vector.broadcast %cst_39 : f32 to vector<8x128xf32>
      %91 = arith.mulf %90, %89 : vector<8x128xf32>
      %cst_40 = arith.constant 5.000000e-01 : f32
      %92 = vector.broadcast %cst_40 : f32 to vector<8x128xf32>
      %93 = arith.addf %91, %92 : vector<8x128xf32>
      %94 = arith.mulf %87, %24 : vector<8x128xf32>
      %95 = arith.mulf %82, %88 : vector<8x128xf32>
      %96 = arith.addf %94, %95 : vector<8x128xf32>
      %97 = math.tanh %96 : vector<8x128xf32>
      %98 = arith.mulf %93, %97 : vector<8x128xf32>
      %99 = tpu.concatenate %74, %98 in 1 : vector<8x128xf32>, vector<8x128xf32> -> vector<8x256xf32>
      %cst_41 = arith.constant dense<0.000000e+00> : vector<8x1024xf32>
      %100 = tpu.matmul %99, %20, %cst_41 {dimension_numbers = #tpu.dot_dimension_numbers<[1], [0], [0], [1], [0, 0, 1, 1], [], []>} : vector<8x256xf32>, vector<256x1024xf32>, vector<8x1024xf32> -> vector<8x1024xf32>
      %101 = vector.extract_strided_slice %19 {offsets = [16, 0], sizes = [8, 512], strides = [1, 1]} : vector<96x512xf32> to vector<8x512xf32>
      %102 = vector.extract_strided_slice %100 {offsets = [0, 0], sizes = [8, 512], strides = [1, 1]} : vector<8x1024xf32> to vector<8x512xf32>
      %103 = arith.addf %101, %102 : vector<8x512xf32>
      %104 = math.tanh %103 : vector<8x512xf32>
      %105 = vector.extract_strided_slice %104 {offsets = [0, 0], sizes = [8, 128], strides = [1, 1]} : vector<8x512xf32> to vector<8x128xf32>
      %cst_42 = arith.constant 5.000000e-01 : f32
      %106 = vector.broadcast %cst_42 : f32 to vector<8x128xf32>
      %107 = arith.mulf %106, %105 : vector<8x128xf32>
      %cst_43 = arith.constant 5.000000e-01 : f32
      %108 = vector.broadcast %cst_43 : f32 to vector<8x128xf32>
      %109 = arith.addf %107, %108 : vector<8x128xf32>
      %110 = vector.extract_strided_slice %104 {offsets = [0, 128], sizes = [8, 128], strides = [1, 1]} : vector<8x512xf32> to vector<8x128xf32>
      %cst_44 = arith.constant 5.000000e-01 : f32
      %111 = vector.broadcast %cst_44 : f32 to vector<8x128xf32>
      %112 = arith.mulf %111, %110 : vector<8x128xf32>
      %cst_45 = arith.constant 5.000000e-01 : f32
      %113 = vector.broadcast %cst_45 : f32 to vector<8x128xf32>
      %114 = arith.addf %112, %113 : vector<8x128xf32>
      %115 = vector.extract_strided_slice %104 {offsets = [0, 256], sizes = [8, 128], strides = [1, 1]} : vector<8x512xf32> to vector<8x128xf32>
      %116 = vector.extract_strided_slice %104 {offsets = [0, 384], sizes = [8, 128], strides = [1, 1]} : vector<8x512xf32> to vector<8x128xf32>
      %cst_46 = arith.constant 5.000000e-01 : f32
      %117 = vector.broadcast %cst_46 : f32 to vector<8x128xf32>
      %118 = arith.mulf %117, %116 : vector<8x128xf32>
      %cst_47 = arith.constant 5.000000e-01 : f32
      %119 = vector.broadcast %cst_47 : f32 to vector<8x128xf32>
      %120 = arith.addf %118, %119 : vector<8x128xf32>
      %121 = arith.mulf %114, %72 : vector<8x128xf32>
      %122 = arith.mulf %109, %115 : vector<8x128xf32>
      %123 = arith.addf %121, %122 : vector<8x128xf32>
      %124 = math.tanh %123 : vector<8x128xf32>
      %125 = arith.mulf %120, %124 : vector<8x128xf32>
      %126 = vector.extract_strided_slice %100 {offsets = [0, 512], sizes = [8, 512], strides = [1, 1]} : vector<8x1024xf32> to vector<8x512xf32>
      %127 = arith.addf %126, %23 : vector<8x512xf32>
      %128 = math.tanh %127 : vector<8x512xf32>
      %129 = vector.extract_strided_slice %128 {offsets = [0, 0], sizes = [8, 128], strides = [1, 1]} : vector<8x512xf32> to vector<8x128xf32>
      %cst_48 = arith.constant 5.000000e-01 : f32
      %130 = vector.broadcast %cst_48 : f32 to vector<8x128xf32>
      %131 = arith.mulf %130, %129 : vector<8x128xf32>
      %cst_49 = arith.constant 5.000000e-01 : f32
      %132 = vector.broadcast %cst_49 : f32 to vector<8x128xf32>
      %133 = arith.addf %131, %132 : vector<8x128xf32>
      %134 = vector.extract_strided_slice %128 {offsets = [0, 128], sizes = [8, 128], strides = [1, 1]} : vector<8x512xf32> to vector<8x128xf32>
      %cst_50 = arith.constant 5.000000e-01 : f32
      %135 = vector.broadcast %cst_50 : f32 to vector<8x128xf32>
      %136 = arith.mulf %135, %134 : vector<8x128xf32>
      %cst_51 = arith.constant 5.000000e-01 : f32
      %137 = vector.broadcast %cst_51 : f32 to vector<8x128xf32>
      %138 = arith.addf %136, %137 : vector<8x128xf32>
      %139 = vector.extract_strided_slice %128 {offsets = [0, 256], sizes = [8, 128], strides = [1, 1]} : vector<8x512xf32> to vector<8x128xf32>
      %140 = vector.extract_strided_slice %128 {offsets = [0, 384], sizes = [8, 128], strides = [1, 1]} : vector<8x512xf32> to vector<8x128xf32>
      %cst_52 = arith.constant 5.000000e-01 : f32
      %141 = vector.broadcast %cst_52 : f32 to vector<8x128xf32>
      %142 = arith.mulf %141, %140 : vector<8x128xf32>
      %cst_53 = arith.constant 5.000000e-01 : f32
      %143 = vector.broadcast %cst_53 : f32 to vector<8x128xf32>
      %144 = arith.addf %142, %143 : vector<8x128xf32>
      %145 = arith.mulf %138, %96 : vector<8x128xf32>
      %146 = arith.mulf %133, %139 : vector<8x128xf32>
      %147 = arith.addf %145, %146 : vector<8x128xf32>
      %148 = math.tanh %147 : vector<8x128xf32>
      %149 = arith.mulf %144, %148 : vector<8x128xf32>
      %150 = tpu.concatenate %125, %149 in 1 : vector<8x128xf32>, vector<8x128xf32> -> vector<8x256xf32>
      %cst_54 = arith.constant dense<0.000000e+00> : vector<8x1024xf32>
      %151 = tpu.matmul %150, %20, %cst_54 {dimension_numbers = #tpu.dot_dimension_numbers<[1], [0], [0], [1], [0, 0, 1, 1], [], []>} : vector<8x256xf32>, vector<256x1024xf32>, vector<8x1024xf32> -> vector<8x1024xf32>
      %152 = vector.extract_strided_slice %19 {offsets = [24, 0], sizes = [8, 512], strides = [1, 1]} : vector<96x512xf32> to vector<8x512xf32>
      %153 = vector.extract_strided_slice %151 {offsets = [0, 0], sizes = [8, 512], strides = [1, 1]} : vector<8x1024xf32> to vector<8x512xf32>
      %154 = arith.addf %152, %153 : vector<8x512xf32>
      %155 = math.tanh %154 : vector<8x512xf32>
      %156 = vector.extract_strided_slice %155 {offsets = [0, 0], sizes = [8, 128], strides = [1, 1]} : vector<8x512xf32> to vector<8x128xf32>
      %cst_55 = arith.constant 5.000000e-01 : f32
      %157 = vector.broadcast %cst_55 : f32 to vector<8x128xf32>
      %158 = arith.mulf %157, %156 : vector<8x128xf32>
      %cst_56 = arith.constant 5.000000e-01 : f32
      %159 = vector.broadcast %cst_56 : f32 to vector<8x128xf32>
      %160 = arith.addf %158, %159 : vector<8x128xf32>
      %161 = vector.extract_strided_slice %155 {offsets = [0, 128], sizes = [8, 128], strides = [1, 1]} : vector<8x512xf32> to vector<8x128xf32>
      %cst_57 = arith.constant 5.000000e-01 : f32
      %162 = vector.broadcast %cst_57 : f32 to vector<8x128xf32>
      %163 = arith.mulf %162, %161 : vector<8x128xf32>
      %cst_58 = arith.constant 5.000000e-01 : f32
      %164 = vector.broadcast %cst_58 : f32 to vector<8x128xf32>
      %165 = arith.addf %163, %164 : vector<8x128xf32>
      %166 = vector.extract_strided_slice %155 {offsets = [0, 256], sizes = [8, 128], strides = [1, 1]} : vector<8x512xf32> to vector<8x128xf32>
      %167 = vector.extract_strided_slice %155 {offsets = [0, 384], sizes = [8, 128], strides = [1, 1]} : vector<8x512xf32> to vector<8x128xf32>
      %cst_59 = arith.constant 5.000000e-01 : f32
      %168 = vector.broadcast %cst_59 : f32 to vector<8x128xf32>
      %169 = arith.mulf %168, %167 : vector<8x128xf32>
      %cst_60 = arith.constant 5.000000e-01 : f32
      %170 = vector.broadcast %cst_60 : f32 to vector<8x128xf32>
      %171 = arith.addf %169, %170 : vector<8x128xf32>
      %172 = arith.mulf %165, %123 : vector<8x128xf32>
      %173 = arith.mulf %160, %166 : vector<8x128xf32>
      %174 = arith.addf %172, %173 : vector<8x128xf32>
      %175 = math.tanh %174 : vector<8x128xf32>
      %176 = arith.mulf %171, %175 : vector<8x128xf32>
      %177 = vector.extract_strided_slice %151 {offsets = [0, 512], sizes = [8, 512], strides = [1, 1]} : vector<8x1024xf32> to vector<8x512xf32>
      %178 = arith.addf %177, %23 : vector<8x512xf32>
      %179 = math.tanh %178 : vector<8x512xf32>
      %180 = vector.extract_strided_slice %179 {offsets = [0, 0], sizes = [8, 128], strides = [1, 1]} : vector<8x512xf32> to vector<8x128xf32>
      %cst_61 = arith.constant 5.000000e-01 : f32
      %181 = vector.broadcast %cst_61 : f32 to vector<8x128xf32>
      %182 = arith.mulf %181, %180 : vector<8x128xf32>
      %cst_62 = arith.constant 5.000000e-01 : f32
      %183 = vector.broadcast %cst_62 : f32 to vector<8x128xf32>
      %184 = arith.addf %182, %183 : vector<8x128xf32>
      %185 = vector.extract_strided_slice %179 {offsets = [0, 128], sizes = [8, 128], strides = [1, 1]} : vector<8x512xf32> to vector<8x128xf32>
      %cst_63 = arith.constant 5.000000e-01 : f32
      %186 = vector.broadcast %cst_63 : f32 to vector<8x128xf32>
      %187 = arith.mulf %186, %185 : vector<8x128xf32>
      %cst_64 = arith.constant 5.000000e-01 : f32
      %188 = vector.broadcast %cst_64 : f32 to vector<8x128xf32>
      %189 = arith.addf %187, %188 : vector<8x128xf32>
      %190 = vector.extract_strided_slice %179 {offsets = [0, 256], sizes = [8, 128], strides = [1, 1]} : vector<8x512xf32> to vector<8x128xf32>
      %191 = vector.extract_strided_slice %179 {offsets = [0, 384], sizes = [8, 128], strides = [1, 1]} : vector<8x512xf32> to vector<8x128xf32>
      %cst_65 = arith.constant 5.000000e-01 : f32
      %192 = vector.broadcast %cst_65 : f32 to vector<8x128xf32>
      %193 = arith.mulf %192, %191 : vector<8x128xf32>
      %cst_66 = arith.constant 5.000000e-01 : f32
      %194 = vector.broadcast %cst_66 : f32 to vector<8x128xf32>
      %195 = arith.addf %193, %194 : vector<8x128xf32>
      %196 = arith.mulf %189, %147 : vector<8x128xf32>
      %197 = arith.mulf %184, %190 : vector<8x128xf32>
      %198 = arith.addf %196, %197 : vector<8x128xf32>
      %199 = math.tanh %198 : vector<8x128xf32>
      %200 = arith.mulf %195, %199 : vector<8x128xf32>
      %201 = tpu.concatenate %176, %200 in 1 : vector<8x128xf32>, vector<8x128xf32> -> vector<8x256xf32>
      %cst_67 = arith.constant dense<0.000000e+00> : vector<8x1024xf32>
      %202 = tpu.matmul %201, %20, %cst_67 {dimension_numbers = #tpu.dot_dimension_numbers<[1], [0], [0], [1], [0, 0, 1, 1], [], []>} : vector<8x256xf32>, vector<256x1024xf32>, vector<8x1024xf32> -> vector<8x1024xf32>
      %203 = vector.extract_strided_slice %19 {offsets = [32, 0], sizes = [8, 512], strides = [1, 1]} : vector<96x512xf32> to vector<8x512xf32>
      %204 = vector.extract_strided_slice %202 {offsets = [0, 0], sizes = [8, 512], strides = [1, 1]} : vector<8x1024xf32> to vector<8x512xf32>
      %205 = arith.addf %203, %204 : vector<8x512xf32>
      %206 = math.tanh %205 : vector<8x512xf32>
      %207 = vector.extract_strided_slice %206 {offsets = [0, 0], sizes = [8, 128], strides = [1, 1]} : vector<8x512xf32> to vector<8x128xf32>
      %cst_68 = arith.constant 5.000000e-01 : f32
      %208 = vector.broadcast %cst_68 : f32 to vector<8x128xf32>
      %209 = arith.mulf %208, %207 : vector<8x128xf32>
      %cst_69 = arith.constant 5.000000e-01 : f32
      %210 = vector.broadcast %cst_69 : f32 to vector<8x128xf32>
      %211 = arith.addf %209, %210 : vector<8x128xf32>
      %212 = vector.extract_strided_slice %206 {offsets = [0, 128], sizes = [8, 128], strides = [1, 1]} : vector<8x512xf32> to vector<8x128xf32>
      %cst_70 = arith.constant 5.000000e-01 : f32
      %213 = vector.broadcast %cst_70 : f32 to vector<8x128xf32>
      %214 = arith.mulf %213, %212 : vector<8x128xf32>
      %cst_71 = arith.constant 5.000000e-01 : f32
      %215 = vector.broadcast %cst_71 : f32 to vector<8x128xf32>
      %216 = arith.addf %214, %215 : vector<8x128xf32>
      %217 = vector.extract_strided_slice %206 {offsets = [0, 256], sizes = [8, 128], strides = [1, 1]} : vector<8x512xf32> to vector<8x128xf32>
      %218 = vector.extract_strided_slice %206 {offsets = [0, 384], sizes = [8, 128], strides = [1, 1]} : vector<8x512xf32> to vector<8x128xf32>
      %cst_72 = arith.constant 5.000000e-01 : f32
      %219 = vector.broadcast %cst_72 : f32 to vector<8x128xf32>
      %220 = arith.mulf %219, %218 : vector<8x128xf32>
      %cst_73 = arith.constant 5.000000e-01 : f32
      %221 = vector.broadcast %cst_73 : f32 to vector<8x128xf32>
      %222 = arith.addf %220, %221 : vector<8x128xf32>
      %223 = arith.mulf %216, %174 : vector<8x128xf32>
      %224 = arith.mulf %211, %217 : vector<8x128xf32>
      %225 = arith.addf %223, %224 : vector<8x128xf32>
      %226 = math.tanh %225 : vector<8x128xf32>
      %227 = arith.mulf %222, %226 : vector<8x128xf32>
      %228 = vector.extract_strided_slice %202 {offsets = [0, 512], sizes = [8, 512], strides = [1, 1]} : vector<8x1024xf32> to vector<8x512xf32>
      %229 = arith.addf %228, %23 : vector<8x512xf32>
      %230 = math.tanh %229 : vector<8x512xf32>
      %231 = vector.extract_strided_slice %230 {offsets = [0, 0], sizes = [8, 128], strides = [1, 1]} : vector<8x512xf32> to vector<8x128xf32>
      %cst_74 = arith.constant 5.000000e-01 : f32
      %232 = vector.broadcast %cst_74 : f32 to vector<8x128xf32>
      %233 = arith.mulf %232, %231 : vector<8x128xf32>
      %cst_75 = arith.constant 5.000000e-01 : f32
      %234 = vector.broadcast %cst_75 : f32 to vector<8x128xf32>
      %235 = arith.addf %233, %234 : vector<8x128xf32>
      %236 = vector.extract_strided_slice %230 {offsets = [0, 128], sizes = [8, 128], strides = [1, 1]} : vector<8x512xf32> to vector<8x128xf32>
      %cst_76 = arith.constant 5.000000e-01 : f32
      %237 = vector.broadcast %cst_76 : f32 to vector<8x128xf32>
      %238 = arith.mulf %237, %236 : vector<8x128xf32>
      %cst_77 = arith.constant 5.000000e-01 : f32
      %239 = vector.broadcast %cst_77 : f32 to vector<8x128xf32>
      %240 = arith.addf %238, %239 : vector<8x128xf32>
      %241 = vector.extract_strided_slice %230 {offsets = [0, 256], sizes = [8, 128], strides = [1, 1]} : vector<8x512xf32> to vector<8x128xf32>
      %242 = vector.extract_strided_slice %230 {offsets = [0, 384], sizes = [8, 128], strides = [1, 1]} : vector<8x512xf32> to vector<8x128xf32>
      %cst_78 = arith.constant 5.000000e-01 : f32
      %243 = vector.broadcast %cst_78 : f32 to vector<8x128xf32>
      %244 = arith.mulf %243, %242 : vector<8x128xf32>
      %cst_79 = arith.constant 5.000000e-01 : f32
      %245 = vector.broadcast %cst_79 : f32 to vector<8x128xf32>
      %246 = arith.addf %244, %245 : vector<8x128xf32>
      %247 = arith.mulf %240, %198 : vector<8x128xf32>
      %248 = arith.mulf %235, %241 : vector<8x128xf32>
      %249 = arith.addf %247, %248 : vector<8x128xf32>
      %250 = math.tanh %249 : vector<8x128xf32>
      %251 = arith.mulf %246, %250 : vector<8x128xf32>
      %252 = tpu.concatenate %227, %251 in 1 : vector<8x128xf32>, vector<8x128xf32> -> vector<8x256xf32>
      %cst_80 = arith.constant dense<0.000000e+00> : vector<8x1024xf32>
      %253 = tpu.matmul %252, %20, %cst_80 {dimension_numbers = #tpu.dot_dimension_numbers<[1], [0], [0], [1], [0, 0, 1, 1], [], []>} : vector<8x256xf32>, vector<256x1024xf32>, vector<8x1024xf32> -> vector<8x1024xf32>
      %254 = vector.extract_strided_slice %19 {offsets = [40, 0], sizes = [8, 512], strides = [1, 1]} : vector<96x512xf32> to vector<8x512xf32>
      %255 = vector.extract_strided_slice %253 {offsets = [0, 0], sizes = [8, 512], strides = [1, 1]} : vector<8x1024xf32> to vector<8x512xf32>
      %256 = arith.addf %254, %255 : vector<8x512xf32>
      %257 = math.tanh %256 : vector<8x512xf32>
      %258 = vector.extract_strided_slice %257 {offsets = [0, 0], sizes = [8, 128], strides = [1, 1]} : vector<8x512xf32> to vector<8x128xf32>
      %cst_81 = arith.constant 5.000000e-01 : f32
      %259 = vector.broadcast %cst_81 : f32 to vector<8x128xf32>
      %260 = arith.mulf %259, %258 : vector<8x128xf32>
      %cst_82 = arith.constant 5.000000e-01 : f32
      %261 = vector.broadcast %cst_82 : f32 to vector<8x128xf32>
      %262 = arith.addf %260, %261 : vector<8x128xf32>
      %263 = vector.extract_strided_slice %257 {offsets = [0, 128], sizes = [8, 128], strides = [1, 1]} : vector<8x512xf32> to vector<8x128xf32>
      %cst_83 = arith.constant 5.000000e-01 : f32
      %264 = vector.broadcast %cst_83 : f32 to vector<8x128xf32>
      %265 = arith.mulf %264, %263 : vector<8x128xf32>
      %cst_84 = arith.constant 5.000000e-01 : f32
      %266 = vector.broadcast %cst_84 : f32 to vector<8x128xf32>
      %267 = arith.addf %265, %266 : vector<8x128xf32>
      %268 = vector.extract_strided_slice %257 {offsets = [0, 256], sizes = [8, 128], strides = [1, 1]} : vector<8x512xf32> to vector<8x128xf32>
      %269 = vector.extract_strided_slice %257 {offsets = [0, 384], sizes = [8, 128], strides = [1, 1]} : vector<8x512xf32> to vector<8x128xf32>
      %cst_85 = arith.constant 5.000000e-01 : f32
      %270 = vector.broadcast %cst_85 : f32 to vector<8x128xf32>
      %271 = arith.mulf %270, %269 : vector<8x128xf32>
      %cst_86 = arith.constant 5.000000e-01 : f32
      %272 = vector.broadcast %cst_86 : f32 to vector<8x128xf32>
      %273 = arith.addf %271, %272 : vector<8x128xf32>
      %274 = arith.mulf %267, %225 : vector<8x128xf32>
      %275 = arith.mulf %262, %268 : vector<8x128xf32>
      %276 = arith.addf %274, %275 : vector<8x128xf32>
      %277 = math.tanh %276 : vector<8x128xf32>
      %278 = arith.mulf %273, %277 : vector<8x128xf32>
      %279 = vector.extract_strided_slice %253 {offsets = [0, 512], sizes = [8, 512], strides = [1, 1]} : vector<8x1024xf32> to vector<8x512xf32>
      %280 = arith.addf %279, %23 : vector<8x512xf32>
      %281 = math.tanh %280 : vector<8x512xf32>
      %282 = vector.extract_strided_slice %281 {offsets = [0, 0], sizes = [8, 128], strides = [1, 1]} : vector<8x512xf32> to vector<8x128xf32>
      %cst_87 = arith.constant 5.000000e-01 : f32
      %283 = vector.broadcast %cst_87 : f32 to vector<8x128xf32>
      %284 = arith.mulf %283, %282 : vector<8x128xf32>
      %cst_88 = arith.constant 5.000000e-01 : f32
      %285 = vector.broadcast %cst_88 : f32 to vector<8x128xf32>
      %286 = arith.addf %284, %285 : vector<8x128xf32>
      %287 = vector.extract_strided_slice %281 {offsets = [0, 128], sizes = [8, 128], strides = [1, 1]} : vector<8x512xf32> to vector<8x128xf32>
      %cst_89 = arith.constant 5.000000e-01 : f32
      %288 = vector.broadcast %cst_89 : f32 to vector<8x128xf32>
      %289 = arith.mulf %288, %287 : vector<8x128xf32>
      %cst_90 = arith.constant 5.000000e-01 : f32
      %290 = vector.broadcast %cst_90 : f32 to vector<8x128xf32>
      %291 = arith.addf %289, %290 : vector<8x128xf32>
      %292 = vector.extract_strided_slice %281 {offsets = [0, 256], sizes = [8, 128], strides = [1, 1]} : vector<8x512xf32> to vector<8x128xf32>
      %293 = vector.extract_strided_slice %281 {offsets = [0, 384], sizes = [8, 128], strides = [1, 1]} : vector<8x512xf32> to vector<8x128xf32>
      %cst_91 = arith.constant 5.000000e-01 : f32
      %294 = vector.broadcast %cst_91 : f32 to vector<8x128xf32>
      %295 = arith.mulf %294, %293 : vector<8x128xf32>
      %cst_92 = arith.constant 5.000000e-01 : f32
      %296 = vector.broadcast %cst_92 : f32 to vector<8x128xf32>
      %297 = arith.addf %295, %296 : vector<8x128xf32>
      %298 = arith.mulf %291, %249 : vector<8x128xf32>
      %299 = arith.mulf %286, %292 : vector<8x128xf32>
      %300 = arith.addf %298, %299 : vector<8x128xf32>
      %301 = math.tanh %300 : vector<8x128xf32>
      %302 = arith.mulf %297, %301 : vector<8x128xf32>
      %303 = tpu.concatenate %278, %302 in 1 : vector<8x128xf32>, vector<8x128xf32> -> vector<8x256xf32>
      %cst_93 = arith.constant dense<0.000000e+00> : vector<8x1024xf32>
      %304 = tpu.matmul %303, %20, %cst_93 {dimension_numbers = #tpu.dot_dimension_numbers<[1], [0], [0], [1], [0, 0, 1, 1], [], []>} : vector<8x256xf32>, vector<256x1024xf32>, vector<8x1024xf32> -> vector<8x1024xf32>
      %305 = vector.extract_strided_slice %19 {offsets = [48, 0], sizes = [8, 512], strides = [1, 1]} : vector<96x512xf32> to vector<8x512xf32>
      %306 = vector.extract_strided_slice %304 {offsets = [0, 0], sizes = [8, 512], strides = [1, 1]} : vector<8x1024xf32> to vector<8x512xf32>
      %307 = arith.addf %305, %306 : vector<8x512xf32>
      %308 = math.tanh %307 : vector<8x512xf32>
      %309 = vector.extract_strided_slice %308 {offsets = [0, 0], sizes = [8, 128], strides = [1, 1]} : vector<8x512xf32> to vector<8x128xf32>
      %cst_94 = arith.constant 5.000000e-01 : f32
      %310 = vector.broadcast %cst_94 : f32 to vector<8x128xf32>
      %311 = arith.mulf %310, %309 : vector<8x128xf32>
      %cst_95 = arith.constant 5.000000e-01 : f32
      %312 = vector.broadcast %cst_95 : f32 to vector<8x128xf32>
      %313 = arith.addf %311, %312 : vector<8x128xf32>
      %314 = vector.extract_strided_slice %308 {offsets = [0, 128], sizes = [8, 128], strides = [1, 1]} : vector<8x512xf32> to vector<8x128xf32>
      %cst_96 = arith.constant 5.000000e-01 : f32
      %315 = vector.broadcast %cst_96 : f32 to vector<8x128xf32>
      %316 = arith.mulf %315, %314 : vector<8x128xf32>
      %cst_97 = arith.constant 5.000000e-01 : f32
      %317 = vector.broadcast %cst_97 : f32 to vector<8x128xf32>
      %318 = arith.addf %316, %317 : vector<8x128xf32>
      %319 = vector.extract_strided_slice %308 {offsets = [0, 256], sizes = [8, 128], strides = [1, 1]} : vector<8x512xf32> to vector<8x128xf32>
      %320 = vector.extract_strided_slice %308 {offsets = [0, 384], sizes = [8, 128], strides = [1, 1]} : vector<8x512xf32> to vector<8x128xf32>
      %cst_98 = arith.constant 5.000000e-01 : f32
      %321 = vector.broadcast %cst_98 : f32 to vector<8x128xf32>
      %322 = arith.mulf %321, %320 : vector<8x128xf32>
      %cst_99 = arith.constant 5.000000e-01 : f32
      %323 = vector.broadcast %cst_99 : f32 to vector<8x128xf32>
      %324 = arith.addf %322, %323 : vector<8x128xf32>
      %325 = arith.mulf %318, %276 : vector<8x128xf32>
      %326 = arith.mulf %313, %319 : vector<8x128xf32>
      %327 = arith.addf %325, %326 : vector<8x128xf32>
      %328 = math.tanh %327 : vector<8x128xf32>
      %329 = arith.mulf %324, %328 : vector<8x128xf32>
      %330 = vector.extract_strided_slice %304 {offsets = [0, 512], sizes = [8, 512], strides = [1, 1]} : vector<8x1024xf32> to vector<8x512xf32>
      %331 = arith.addf %330, %23 : vector<8x512xf32>
      %332 = math.tanh %331 : vector<8x512xf32>
      %333 = vector.extract_strided_slice %332 {offsets = [0, 0], sizes = [8, 128], strides = [1, 1]} : vector<8x512xf32> to vector<8x128xf32>
      %cst_100 = arith.constant 5.000000e-01 : f32
      %334 = vector.broadcast %cst_100 : f32 to vector<8x128xf32>
      %335 = arith.mulf %334, %333 : vector<8x128xf32>
      %cst_101 = arith.constant 5.000000e-01 : f32
      %336 = vector.broadcast %cst_101 : f32 to vector<8x128xf32>
      %337 = arith.addf %335, %336 : vector<8x128xf32>
      %338 = vector.extract_strided_slice %332 {offsets = [0, 128], sizes = [8, 128], strides = [1, 1]} : vector<8x512xf32> to vector<8x128xf32>
      %cst_102 = arith.constant 5.000000e-01 : f32
      %339 = vector.broadcast %cst_102 : f32 to vector<8x128xf32>
      %340 = arith.mulf %339, %338 : vector<8x128xf32>
      %cst_103 = arith.constant 5.000000e-01 : f32
      %341 = vector.broadcast %cst_103 : f32 to vector<8x128xf32>
      %342 = arith.addf %340, %341 : vector<8x128xf32>
      %343 = vector.extract_strided_slice %332 {offsets = [0, 256], sizes = [8, 128], strides = [1, 1]} : vector<8x512xf32> to vector<8x128xf32>
      %344 = vector.extract_strided_slice %332 {offsets = [0, 384], sizes = [8, 128], strides = [1, 1]} : vector<8x512xf32> to vector<8x128xf32>
      %cst_104 = arith.constant 5.000000e-01 : f32
      %345 = vector.broadcast %cst_104 : f32 to vector<8x128xf32>
      %346 = arith.mulf %345, %344 : vector<8x128xf32>
      %cst_105 = arith.constant 5.000000e-01 : f32
      %347 = vector.broadcast %cst_105 : f32 to vector<8x128xf32>
      %348 = arith.addf %346, %347 : vector<8x128xf32>
      %349 = arith.mulf %342, %300 : vector<8x128xf32>
      %350 = arith.mulf %337, %343 : vector<8x128xf32>
      %351 = arith.addf %349, %350 : vector<8x128xf32>
      %352 = math.tanh %351 : vector<8x128xf32>
      %353 = arith.mulf %348, %352 : vector<8x128xf32>
      %354 = tpu.concatenate %329, %353 in 1 : vector<8x128xf32>, vector<8x128xf32> -> vector<8x256xf32>
      %cst_106 = arith.constant dense<0.000000e+00> : vector<8x1024xf32>
      %355 = tpu.matmul %354, %20, %cst_106 {dimension_numbers = #tpu.dot_dimension_numbers<[1], [0], [0], [1], [0, 0, 1, 1], [], []>} : vector<8x256xf32>, vector<256x1024xf32>, vector<8x1024xf32> -> vector<8x1024xf32>
      %356 = vector.extract_strided_slice %19 {offsets = [56, 0], sizes = [8, 512], strides = [1, 1]} : vector<96x512xf32> to vector<8x512xf32>
      %357 = vector.extract_strided_slice %355 {offsets = [0, 0], sizes = [8, 512], strides = [1, 1]} : vector<8x1024xf32> to vector<8x512xf32>
      %358 = arith.addf %356, %357 : vector<8x512xf32>
      %359 = math.tanh %358 : vector<8x512xf32>
      %360 = vector.extract_strided_slice %359 {offsets = [0, 0], sizes = [8, 128], strides = [1, 1]} : vector<8x512xf32> to vector<8x128xf32>
      %cst_107 = arith.constant 5.000000e-01 : f32
      %361 = vector.broadcast %cst_107 : f32 to vector<8x128xf32>
      %362 = arith.mulf %361, %360 : vector<8x128xf32>
      %cst_108 = arith.constant 5.000000e-01 : f32
      %363 = vector.broadcast %cst_108 : f32 to vector<8x128xf32>
      %364 = arith.addf %362, %363 : vector<8x128xf32>
      %365 = vector.extract_strided_slice %359 {offsets = [0, 128], sizes = [8, 128], strides = [1, 1]} : vector<8x512xf32> to vector<8x128xf32>
      %cst_109 = arith.constant 5.000000e-01 : f32
      %366 = vector.broadcast %cst_109 : f32 to vector<8x128xf32>
      %367 = arith.mulf %366, %365 : vector<8x128xf32>
      %cst_110 = arith.constant 5.000000e-01 : f32
      %368 = vector.broadcast %cst_110 : f32 to vector<8x128xf32>
      %369 = arith.addf %367, %368 : vector<8x128xf32>
      %370 = vector.extract_strided_slice %359 {offsets = [0, 256], sizes = [8, 128], strides = [1, 1]} : vector<8x512xf32> to vector<8x128xf32>
      %371 = vector.extract_strided_slice %359 {offsets = [0, 384], sizes = [8, 128], strides = [1, 1]} : vector<8x512xf32> to vector<8x128xf32>
      %cst_111 = arith.constant 5.000000e-01 : f32
      %372 = vector.broadcast %cst_111 : f32 to vector<8x128xf32>
      %373 = arith.mulf %372, %371 : vector<8x128xf32>
      %cst_112 = arith.constant 5.000000e-01 : f32
      %374 = vector.broadcast %cst_112 : f32 to vector<8x128xf32>
      %375 = arith.addf %373, %374 : vector<8x128xf32>
      %376 = arith.mulf %369, %327 : vector<8x128xf32>
      %377 = arith.mulf %364, %370 : vector<8x128xf32>
      %378 = arith.addf %376, %377 : vector<8x128xf32>
      %379 = math.tanh %378 : vector<8x128xf32>
      %380 = arith.mulf %375, %379 : vector<8x128xf32>
      %381 = vector.extract_strided_slice %355 {offsets = [0, 512], sizes = [8, 512], strides = [1, 1]} : vector<8x1024xf32> to vector<8x512xf32>
      %382 = arith.addf %381, %23 : vector<8x512xf32>
      %383 = math.tanh %382 : vector<8x512xf32>
      %384 = vector.extract_strided_slice %383 {offsets = [0, 0], sizes = [8, 128], strides = [1, 1]} : vector<8x512xf32> to vector<8x128xf32>
      %cst_113 = arith.constant 5.000000e-01 : f32
      %385 = vector.broadcast %cst_113 : f32 to vector<8x128xf32>
      %386 = arith.mulf %385, %384 : vector<8x128xf32>
      %cst_114 = arith.constant 5.000000e-01 : f32
      %387 = vector.broadcast %cst_114 : f32 to vector<8x128xf32>
      %388 = arith.addf %386, %387 : vector<8x128xf32>
      %389 = vector.extract_strided_slice %383 {offsets = [0, 128], sizes = [8, 128], strides = [1, 1]} : vector<8x512xf32> to vector<8x128xf32>
      %cst_115 = arith.constant 5.000000e-01 : f32
      %390 = vector.broadcast %cst_115 : f32 to vector<8x128xf32>
      %391 = arith.mulf %390, %389 : vector<8x128xf32>
      %cst_116 = arith.constant 5.000000e-01 : f32
      %392 = vector.broadcast %cst_116 : f32 to vector<8x128xf32>
      %393 = arith.addf %391, %392 : vector<8x128xf32>
      %394 = vector.extract_strided_slice %383 {offsets = [0, 256], sizes = [8, 128], strides = [1, 1]} : vector<8x512xf32> to vector<8x128xf32>
      %395 = vector.extract_strided_slice %383 {offsets = [0, 384], sizes = [8, 128], strides = [1, 1]} : vector<8x512xf32> to vector<8x128xf32>
      %cst_117 = arith.constant 5.000000e-01 : f32
      %396 = vector.broadcast %cst_117 : f32 to vector<8x128xf32>
      %397 = arith.mulf %396, %395 : vector<8x128xf32>
      %cst_118 = arith.constant 5.000000e-01 : f32
      %398 = vector.broadcast %cst_118 : f32 to vector<8x128xf32>
      %399 = arith.addf %397, %398 : vector<8x128xf32>
      %400 = arith.mulf %393, %351 : vector<8x128xf32>
      %401 = arith.mulf %388, %394 : vector<8x128xf32>
      %402 = arith.addf %400, %401 : vector<8x128xf32>
      %403 = math.tanh %402 : vector<8x128xf32>
      %404 = arith.mulf %399, %403 : vector<8x128xf32>
      %405 = tpu.concatenate %380, %404 in 1 : vector<8x128xf32>, vector<8x128xf32> -> vector<8x256xf32>
      %cst_119 = arith.constant dense<0.000000e+00> : vector<8x1024xf32>
      %406 = tpu.matmul %405, %20, %cst_119 {dimension_numbers = #tpu.dot_dimension_numbers<[1], [0], [0], [1], [0, 0, 1, 1], [], []>} : vector<8x256xf32>, vector<256x1024xf32>, vector<8x1024xf32> -> vector<8x1024xf32>
      %407 = vector.extract_strided_slice %19 {offsets = [64, 0], sizes = [8, 512], strides = [1, 1]} : vector<96x512xf32> to vector<8x512xf32>
      %408 = vector.extract_strided_slice %406 {offsets = [0, 0], sizes = [8, 512], strides = [1, 1]} : vector<8x1024xf32> to vector<8x512xf32>
      %409 = arith.addf %407, %408 : vector<8x512xf32>
      %410 = math.tanh %409 : vector<8x512xf32>
      %411 = vector.extract_strided_slice %410 {offsets = [0, 0], sizes = [8, 128], strides = [1, 1]} : vector<8x512xf32> to vector<8x128xf32>
      %cst_120 = arith.constant 5.000000e-01 : f32
      %412 = vector.broadcast %cst_120 : f32 to vector<8x128xf32>
      %413 = arith.mulf %412, %411 : vector<8x128xf32>
      %cst_121 = arith.constant 5.000000e-01 : f32
      %414 = vector.broadcast %cst_121 : f32 to vector<8x128xf32>
      %415 = arith.addf %413, %414 : vector<8x128xf32>
      %416 = vector.extract_strided_slice %410 {offsets = [0, 128], sizes = [8, 128], strides = [1, 1]} : vector<8x512xf32> to vector<8x128xf32>
      %cst_122 = arith.constant 5.000000e-01 : f32
      %417 = vector.broadcast %cst_122 : f32 to vector<8x128xf32>
      %418 = arith.mulf %417, %416 : vector<8x128xf32>
      %cst_123 = arith.constant 5.000000e-01 : f32
      %419 = vector.broadcast %cst_123 : f32 to vector<8x128xf32>
      %420 = arith.addf %418, %419 : vector<8x128xf32>
      %421 = vector.extract_strided_slice %410 {offsets = [0, 256], sizes = [8, 128], strides = [1, 1]} : vector<8x512xf32> to vector<8x128xf32>
      %422 = vector.extract_strided_slice %410 {offsets = [0, 384], sizes = [8, 128], strides = [1, 1]} : vector<8x512xf32> to vector<8x128xf32>
      %cst_124 = arith.constant 5.000000e-01 : f32
      %423 = vector.broadcast %cst_124 : f32 to vector<8x128xf32>
      %424 = arith.mulf %423, %422 : vector<8x128xf32>
      %cst_125 = arith.constant 5.000000e-01 : f32
      %425 = vector.broadcast %cst_125 : f32 to vector<8x128xf32>
      %426 = arith.addf %424, %425 : vector<8x128xf32>
      %427 = arith.mulf %420, %378 : vector<8x128xf32>
      %428 = arith.mulf %415, %421 : vector<8x128xf32>
      %429 = arith.addf %427, %428 : vector<8x128xf32>
      %430 = math.tanh %429 : vector<8x128xf32>
      %431 = arith.mulf %426, %430 : vector<8x128xf32>
      %432 = vector.extract_strided_slice %406 {offsets = [0, 512], sizes = [8, 512], strides = [1, 1]} : vector<8x1024xf32> to vector<8x512xf32>
      %433 = arith.addf %432, %23 : vector<8x512xf32>
      %434 = math.tanh %433 : vector<8x512xf32>
      %435 = vector.extract_strided_slice %434 {offsets = [0, 0], sizes = [8, 128], strides = [1, 1]} : vector<8x512xf32> to vector<8x128xf32>
      %cst_126 = arith.constant 5.000000e-01 : f32
      %436 = vector.broadcast %cst_126 : f32 to vector<8x128xf32>
      %437 = arith.mulf %436, %435 : vector<8x128xf32>
      %cst_127 = arith.constant 5.000000e-01 : f32
      %438 = vector.broadcast %cst_127 : f32 to vector<8x128xf32>
      %439 = arith.addf %437, %438 : vector<8x128xf32>
      %440 = vector.extract_strided_slice %434 {offsets = [0, 128], sizes = [8, 128], strides = [1, 1]} : vector<8x512xf32> to vector<8x128xf32>
      %cst_128 = arith.constant 5.000000e-01 : f32
      %441 = vector.broadcast %cst_128 : f32 to vector<8x128xf32>
      %442 = arith.mulf %441, %440 : vector<8x128xf32>
      %cst_129 = arith.constant 5.000000e-01 : f32
      %443 = vector.broadcast %cst_129 : f32 to vector<8x128xf32>
      %444 = arith.addf %442, %443 : vector<8x128xf32>
      %445 = vector.extract_strided_slice %434 {offsets = [0, 256], sizes = [8, 128], strides = [1, 1]} : vector<8x512xf32> to vector<8x128xf32>
      %446 = vector.extract_strided_slice %434 {offsets = [0, 384], sizes = [8, 128], strides = [1, 1]} : vector<8x512xf32> to vector<8x128xf32>
      %cst_130 = arith.constant 5.000000e-01 : f32
      %447 = vector.broadcast %cst_130 : f32 to vector<8x128xf32>
      %448 = arith.mulf %447, %446 : vector<8x128xf32>
      %cst_131 = arith.constant 5.000000e-01 : f32
      %449 = vector.broadcast %cst_131 : f32 to vector<8x128xf32>
      %450 = arith.addf %448, %449 : vector<8x128xf32>
      %451 = arith.mulf %444, %402 : vector<8x128xf32>
      %452 = arith.mulf %439, %445 : vector<8x128xf32>
      %453 = arith.addf %451, %452 : vector<8x128xf32>
      %454 = math.tanh %453 : vector<8x128xf32>
      %455 = arith.mulf %450, %454 : vector<8x128xf32>
      %456 = tpu.concatenate %431, %455 in 1 : vector<8x128xf32>, vector<8x128xf32> -> vector<8x256xf32>
      %cst_132 = arith.constant dense<0.000000e+00> : vector<8x1024xf32>
      %457 = tpu.matmul %456, %20, %cst_132 {dimension_numbers = #tpu.dot_dimension_numbers<[1], [0], [0], [1], [0, 0, 1, 1], [], []>} : vector<8x256xf32>, vector<256x1024xf32>, vector<8x1024xf32> -> vector<8x1024xf32>
      %458 = vector.extract_strided_slice %19 {offsets = [72, 0], sizes = [8, 512], strides = [1, 1]} : vector<96x512xf32> to vector<8x512xf32>
      %459 = vector.extract_strided_slice %457 {offsets = [0, 0], sizes = [8, 512], strides = [1, 1]} : vector<8x1024xf32> to vector<8x512xf32>
      %460 = arith.addf %458, %459 : vector<8x512xf32>
      %461 = math.tanh %460 : vector<8x512xf32>
      %462 = vector.extract_strided_slice %461 {offsets = [0, 0], sizes = [8, 128], strides = [1, 1]} : vector<8x512xf32> to vector<8x128xf32>
      %cst_133 = arith.constant 5.000000e-01 : f32
      %463 = vector.broadcast %cst_133 : f32 to vector<8x128xf32>
      %464 = arith.mulf %463, %462 : vector<8x128xf32>
      %cst_134 = arith.constant 5.000000e-01 : f32
      %465 = vector.broadcast %cst_134 : f32 to vector<8x128xf32>
      %466 = arith.addf %464, %465 : vector<8x128xf32>
      %467 = vector.extract_strided_slice %461 {offsets = [0, 128], sizes = [8, 128], strides = [1, 1]} : vector<8x512xf32> to vector<8x128xf32>
      %cst_135 = arith.constant 5.000000e-01 : f32
      %468 = vector.broadcast %cst_135 : f32 to vector<8x128xf32>
      %469 = arith.mulf %468, %467 : vector<8x128xf32>
      %cst_136 = arith.constant 5.000000e-01 : f32
      %470 = vector.broadcast %cst_136 : f32 to vector<8x128xf32>
      %471 = arith.addf %469, %470 : vector<8x128xf32>
      %472 = vector.extract_strided_slice %461 {offsets = [0, 256], sizes = [8, 128], strides = [1, 1]} : vector<8x512xf32> to vector<8x128xf32>
      %473 = vector.extract_strided_slice %461 {offsets = [0, 384], sizes = [8, 128], strides = [1, 1]} : vector<8x512xf32> to vector<8x128xf32>
      %cst_137 = arith.constant 5.000000e-01 : f32
      %474 = vector.broadcast %cst_137 : f32 to vector<8x128xf32>
      %475 = arith.mulf %474, %473 : vector<8x128xf32>
      %cst_138 = arith.constant 5.000000e-01 : f32
      %476 = vector.broadcast %cst_138 : f32 to vector<8x128xf32>
      %477 = arith.addf %475, %476 : vector<8x128xf32>
      %478 = arith.mulf %471, %429 : vector<8x128xf32>
      %479 = arith.mulf %466, %472 : vector<8x128xf32>
      %480 = arith.addf %478, %479 : vector<8x128xf32>
      %481 = math.tanh %480 : vector<8x128xf32>
      %482 = arith.mulf %477, %481 : vector<8x128xf32>
      %483 = vector.extract_strided_slice %457 {offsets = [0, 512], sizes = [8, 512], strides = [1, 1]} : vector<8x1024xf32> to vector<8x512xf32>
      %484 = arith.addf %483, %23 : vector<8x512xf32>
      %485 = math.tanh %484 : vector<8x512xf32>
      %486 = vector.extract_strided_slice %485 {offsets = [0, 0], sizes = [8, 128], strides = [1, 1]} : vector<8x512xf32> to vector<8x128xf32>
      %cst_139 = arith.constant 5.000000e-01 : f32
      %487 = vector.broadcast %cst_139 : f32 to vector<8x128xf32>
      %488 = arith.mulf %487, %486 : vector<8x128xf32>
      %cst_140 = arith.constant 5.000000e-01 : f32
      %489 = vector.broadcast %cst_140 : f32 to vector<8x128xf32>
      %490 = arith.addf %488, %489 : vector<8x128xf32>
      %491 = vector.extract_strided_slice %485 {offsets = [0, 128], sizes = [8, 128], strides = [1, 1]} : vector<8x512xf32> to vector<8x128xf32>
      %cst_141 = arith.constant 5.000000e-01 : f32
      %492 = vector.broadcast %cst_141 : f32 to vector<8x128xf32>
      %493 = arith.mulf %492, %491 : vector<8x128xf32>
      %cst_142 = arith.constant 5.000000e-01 : f32
      %494 = vector.broadcast %cst_142 : f32 to vector<8x128xf32>
      %495 = arith.addf %493, %494 : vector<8x128xf32>
      %496 = vector.extract_strided_slice %485 {offsets = [0, 256], sizes = [8, 128], strides = [1, 1]} : vector<8x512xf32> to vector<8x128xf32>
      %497 = vector.extract_strided_slice %485 {offsets = [0, 384], sizes = [8, 128], strides = [1, 1]} : vector<8x512xf32> to vector<8x128xf32>
      %cst_143 = arith.constant 5.000000e-01 : f32
      %498 = vector.broadcast %cst_143 : f32 to vector<8x128xf32>
      %499 = arith.mulf %498, %497 : vector<8x128xf32>
      %cst_144 = arith.constant 5.000000e-01 : f32
      %500 = vector.broadcast %cst_144 : f32 to vector<8x128xf32>
      %501 = arith.addf %499, %500 : vector<8x128xf32>
      %502 = arith.mulf %495, %453 : vector<8x128xf32>
      %503 = arith.mulf %490, %496 : vector<8x128xf32>
      %504 = arith.addf %502, %503 : vector<8x128xf32>
      %505 = math.tanh %504 : vector<8x128xf32>
      %506 = arith.mulf %501, %505 : vector<8x128xf32>
      %507 = tpu.concatenate %482, %506 in 1 : vector<8x128xf32>, vector<8x128xf32> -> vector<8x256xf32>
      %cst_145 = arith.constant dense<0.000000e+00> : vector<8x1024xf32>
      %508 = tpu.matmul %507, %20, %cst_145 {dimension_numbers = #tpu.dot_dimension_numbers<[1], [0], [0], [1], [0, 0, 1, 1], [], []>} : vector<8x256xf32>, vector<256x1024xf32>, vector<8x1024xf32> -> vector<8x1024xf32>
      %509 = vector.extract_strided_slice %19 {offsets = [80, 0], sizes = [8, 512], strides = [1, 1]} : vector<96x512xf32> to vector<8x512xf32>
      %510 = vector.extract_strided_slice %508 {offsets = [0, 0], sizes = [8, 512], strides = [1, 1]} : vector<8x1024xf32> to vector<8x512xf32>
      %511 = arith.addf %509, %510 : vector<8x512xf32>
      %512 = math.tanh %511 : vector<8x512xf32>
      %513 = vector.extract_strided_slice %512 {offsets = [0, 0], sizes = [8, 128], strides = [1, 1]} : vector<8x512xf32> to vector<8x128xf32>
      %cst_146 = arith.constant 5.000000e-01 : f32
      %514 = vector.broadcast %cst_146 : f32 to vector<8x128xf32>
      %515 = arith.mulf %514, %513 : vector<8x128xf32>
      %cst_147 = arith.constant 5.000000e-01 : f32
      %516 = vector.broadcast %cst_147 : f32 to vector<8x128xf32>
      %517 = arith.addf %515, %516 : vector<8x128xf32>
      %518 = vector.extract_strided_slice %512 {offsets = [0, 128], sizes = [8, 128], strides = [1, 1]} : vector<8x512xf32> to vector<8x128xf32>
      %cst_148 = arith.constant 5.000000e-01 : f32
      %519 = vector.broadcast %cst_148 : f32 to vector<8x128xf32>
      %520 = arith.mulf %519, %518 : vector<8x128xf32>
      %cst_149 = arith.constant 5.000000e-01 : f32
      %521 = vector.broadcast %cst_149 : f32 to vector<8x128xf32>
      %522 = arith.addf %520, %521 : vector<8x128xf32>
      %523 = vector.extract_strided_slice %512 {offsets = [0, 256], sizes = [8, 128], strides = [1, 1]} : vector<8x512xf32> to vector<8x128xf32>
      %524 = vector.extract_strided_slice %512 {offsets = [0, 384], sizes = [8, 128], strides = [1, 1]} : vector<8x512xf32> to vector<8x128xf32>
      %cst_150 = arith.constant 5.000000e-01 : f32
      %525 = vector.broadcast %cst_150 : f32 to vector<8x128xf32>
      %526 = arith.mulf %525, %524 : vector<8x128xf32>
      %cst_151 = arith.constant 5.000000e-01 : f32
      %527 = vector.broadcast %cst_151 : f32 to vector<8x128xf32>
      %528 = arith.addf %526, %527 : vector<8x128xf32>
      %529 = arith.mulf %522, %480 : vector<8x128xf32>
      %530 = arith.mulf %517, %523 : vector<8x128xf32>
      %531 = arith.addf %529, %530 : vector<8x128xf32>
      %532 = math.tanh %531 : vector<8x128xf32>
      %533 = arith.mulf %528, %532 : vector<8x128xf32>
      %534 = vector.extract_strided_slice %508 {offsets = [0, 512], sizes = [8, 512], strides = [1, 1]} : vector<8x1024xf32> to vector<8x512xf32>
      %535 = arith.addf %534, %23 : vector<8x512xf32>
      %536 = math.tanh %535 : vector<8x512xf32>
      %537 = vector.extract_strided_slice %536 {offsets = [0, 0], sizes = [8, 128], strides = [1, 1]} : vector<8x512xf32> to vector<8x128xf32>
      %cst_152 = arith.constant 5.000000e-01 : f32
      %538 = vector.broadcast %cst_152 : f32 to vector<8x128xf32>
      %539 = arith.mulf %538, %537 : vector<8x128xf32>
      %cst_153 = arith.constant 5.000000e-01 : f32
      %540 = vector.broadcast %cst_153 : f32 to vector<8x128xf32>
      %541 = arith.addf %539, %540 : vector<8x128xf32>
      %542 = vector.extract_strided_slice %536 {offsets = [0, 128], sizes = [8, 128], strides = [1, 1]} : vector<8x512xf32> to vector<8x128xf32>
      %cst_154 = arith.constant 5.000000e-01 : f32
      %543 = vector.broadcast %cst_154 : f32 to vector<8x128xf32>
      %544 = arith.mulf %543, %542 : vector<8x128xf32>
      %cst_155 = arith.constant 5.000000e-01 : f32
      %545 = vector.broadcast %cst_155 : f32 to vector<8x128xf32>
      %546 = arith.addf %544, %545 : vector<8x128xf32>
      %547 = vector.extract_strided_slice %536 {offsets = [0, 256], sizes = [8, 128], strides = [1, 1]} : vector<8x512xf32> to vector<8x128xf32>
      %548 = vector.extract_strided_slice %536 {offsets = [0, 384], sizes = [8, 128], strides = [1, 1]} : vector<8x512xf32> to vector<8x128xf32>
      %cst_156 = arith.constant 5.000000e-01 : f32
      %549 = vector.broadcast %cst_156 : f32 to vector<8x128xf32>
      %550 = arith.mulf %549, %548 : vector<8x128xf32>
      %cst_157 = arith.constant 5.000000e-01 : f32
      %551 = vector.broadcast %cst_157 : f32 to vector<8x128xf32>
      %552 = arith.addf %550, %551 : vector<8x128xf32>
      %553 = arith.mulf %546, %504 : vector<8x128xf32>
      %554 = arith.mulf %541, %547 : vector<8x128xf32>
      %555 = arith.addf %553, %554 : vector<8x128xf32>
      %556 = math.tanh %555 : vector<8x128xf32>
      %557 = arith.mulf %552, %556 : vector<8x128xf32>
      %558 = tpu.concatenate %533, %557 in 1 : vector<8x128xf32>, vector<8x128xf32> -> vector<8x256xf32>
      %cst_158 = arith.constant dense<0.000000e+00> : vector<8x1024xf32>
      %559 = tpu.matmul %558, %20, %cst_158 {dimension_numbers = #tpu.dot_dimension_numbers<[1], [0], [0], [1], [0, 0, 1, 1], [], []>} : vector<8x256xf32>, vector<256x1024xf32>, vector<8x1024xf32> -> vector<8x1024xf32>
      %560 = vector.extract_strided_slice %19 {offsets = [88, 0], sizes = [8, 512], strides = [1, 1]} : vector<96x512xf32> to vector<8x512xf32>
      %561 = vector.extract_strided_slice %559 {offsets = [0, 0], sizes = [8, 512], strides = [1, 1]} : vector<8x1024xf32> to vector<8x512xf32>
      %562 = arith.addf %560, %561 : vector<8x512xf32>
      %563 = math.tanh %562 : vector<8x512xf32>
      %564 = vector.extract_strided_slice %563 {offsets = [0, 0], sizes = [8, 128], strides = [1, 1]} : vector<8x512xf32> to vector<8x128xf32>
      %cst_159 = arith.constant 5.000000e-01 : f32
      %565 = vector.broadcast %cst_159 : f32 to vector<8x128xf32>
      %566 = arith.mulf %565, %564 : vector<8x128xf32>
      %cst_160 = arith.constant 5.000000e-01 : f32
      %567 = vector.broadcast %cst_160 : f32 to vector<8x128xf32>
      %568 = arith.addf %566, %567 : vector<8x128xf32>
      %569 = vector.extract_strided_slice %563 {offsets = [0, 128], sizes = [8, 128], strides = [1, 1]} : vector<8x512xf32> to vector<8x128xf32>
      %cst_161 = arith.constant 5.000000e-01 : f32
      %570 = vector.broadcast %cst_161 : f32 to vector<8x128xf32>
      %571 = arith.mulf %570, %569 : vector<8x128xf32>
      %cst_162 = arith.constant 5.000000e-01 : f32
      %572 = vector.broadcast %cst_162 : f32 to vector<8x128xf32>
      %573 = arith.addf %571, %572 : vector<8x128xf32>
      %574 = vector.extract_strided_slice %563 {offsets = [0, 256], sizes = [8, 128], strides = [1, 1]} : vector<8x512xf32> to vector<8x128xf32>
      %575 = vector.extract_strided_slice %563 {offsets = [0, 384], sizes = [8, 128], strides = [1, 1]} : vector<8x512xf32> to vector<8x128xf32>
      %cst_163 = arith.constant 5.000000e-01 : f32
      %576 = vector.broadcast %cst_163 : f32 to vector<8x128xf32>
      %577 = arith.mulf %576, %575 : vector<8x128xf32>
      %cst_164 = arith.constant 5.000000e-01 : f32
      %578 = vector.broadcast %cst_164 : f32 to vector<8x128xf32>
      %579 = arith.addf %577, %578 : vector<8x128xf32>
      %580 = arith.mulf %573, %531 : vector<8x128xf32>
      %581 = arith.mulf %568, %574 : vector<8x128xf32>
      %582 = arith.addf %580, %581 : vector<8x128xf32>
      %583 = math.tanh %582 : vector<8x128xf32>
      %584 = arith.mulf %579, %583 : vector<8x128xf32>
      %585 = vector.extract_strided_slice %559 {offsets = [0, 512], sizes = [8, 512], strides = [1, 1]} : vector<8x1024xf32> to vector<8x512xf32>
      %586 = arith.addf %585, %23 : vector<8x512xf32>
      %587 = math.tanh %586 : vector<8x512xf32>
      %588 = vector.extract_strided_slice %587 {offsets = [0, 0], sizes = [8, 128], strides = [1, 1]} : vector<8x512xf32> to vector<8x128xf32>
      %cst_165 = arith.constant 5.000000e-01 : f32
      %589 = vector.broadcast %cst_165 : f32 to vector<8x128xf32>
      %590 = arith.mulf %589, %588 : vector<8x128xf32>
      %cst_166 = arith.constant 5.000000e-01 : f32
      %591 = vector.broadcast %cst_166 : f32 to vector<8x128xf32>
      %592 = arith.addf %590, %591 : vector<8x128xf32>
      %593 = vector.extract_strided_slice %587 {offsets = [0, 128], sizes = [8, 128], strides = [1, 1]} : vector<8x512xf32> to vector<8x128xf32>
      %cst_167 = arith.constant 5.000000e-01 : f32
      %594 = vector.broadcast %cst_167 : f32 to vector<8x128xf32>
      %595 = arith.mulf %594, %593 : vector<8x128xf32>
      %cst_168 = arith.constant 5.000000e-01 : f32
      %596 = vector.broadcast %cst_168 : f32 to vector<8x128xf32>
      %597 = arith.addf %595, %596 : vector<8x128xf32>
      %598 = vector.extract_strided_slice %587 {offsets = [0, 256], sizes = [8, 128], strides = [1, 1]} : vector<8x512xf32> to vector<8x128xf32>
      %599 = vector.extract_strided_slice %587 {offsets = [0, 384], sizes = [8, 128], strides = [1, 1]} : vector<8x512xf32> to vector<8x128xf32>
      %cst_169 = arith.constant 5.000000e-01 : f32
      %600 = vector.broadcast %cst_169 : f32 to vector<8x128xf32>
      %601 = arith.mulf %600, %599 : vector<8x128xf32>
      %cst_170 = arith.constant 5.000000e-01 : f32
      %602 = vector.broadcast %cst_170 : f32 to vector<8x128xf32>
      %603 = arith.addf %601, %602 : vector<8x128xf32>
      %604 = arith.mulf %597, %555 : vector<8x128xf32>
      %605 = arith.mulf %592, %598 : vector<8x128xf32>
      %606 = arith.addf %604, %605 : vector<8x128xf32>
      %607 = math.tanh %606 : vector<8x128xf32>
      %608 = arith.mulf %603, %607 : vector<8x128xf32>
      %609 = tpu.concatenate %584, %608 in 1 : vector<8x128xf32>, vector<8x128xf32> -> vector<8x256xf32>
      %610 = vector.extract_strided_slice %20 {offsets = [0, 512], sizes = [256, 512], strides = [1, 1]} : vector<256x1024xf32> to vector<256x512xf32>
      %cst_171 = arith.constant dense<0.000000e+00> : vector<8x512xf32>
      %611 = tpu.matmul %609, %610, %cst_171 {dimension_numbers = #tpu.dot_dimension_numbers<[1], [0], [0], [1], [0, 0, 1, 1], [], []>} : vector<8x256xf32>, vector<256x512xf32>, vector<8x512xf32> -> vector<8x512xf32>
      %612 = arith.addf %611, %23 : vector<8x512xf32>
      %613 = math.tanh %612 : vector<8x512xf32>
      %614 = vector.extract_strided_slice %613 {offsets = [0, 0], sizes = [8, 128], strides = [1, 1]} : vector<8x512xf32> to vector<8x128xf32>
      %cst_172 = arith.constant 5.000000e-01 : f32
      %615 = vector.broadcast %cst_172 : f32 to vector<8x128xf32>
      %616 = arith.mulf %615, %614 : vector<8x128xf32>
      %cst_173 = arith.constant 5.000000e-01 : f32
      %617 = vector.broadcast %cst_173 : f32 to vector<8x128xf32>
      %618 = arith.addf %616, %617 : vector<8x128xf32>
      %619 = vector.extract_strided_slice %613 {offsets = [0, 128], sizes = [8, 128], strides = [1, 1]} : vector<8x512xf32> to vector<8x128xf32>
      %cst_174 = arith.constant 5.000000e-01 : f32
      %620 = vector.broadcast %cst_174 : f32 to vector<8x128xf32>
      %621 = arith.mulf %620, %619 : vector<8x128xf32>
      %cst_175 = arith.constant 5.000000e-01 : f32
      %622 = vector.broadcast %cst_175 : f32 to vector<8x128xf32>
      %623 = arith.addf %621, %622 : vector<8x128xf32>
      %624 = vector.extract_strided_slice %613 {offsets = [0, 256], sizes = [8, 128], strides = [1, 1]} : vector<8x512xf32> to vector<8x128xf32>
      %625 = vector.extract_strided_slice %613 {offsets = [0, 384], sizes = [8, 128], strides = [1, 1]} : vector<8x512xf32> to vector<8x128xf32>
      %cst_176 = arith.constant 5.000000e-01 : f32
      %626 = vector.broadcast %cst_176 : f32 to vector<8x128xf32>
      %627 = arith.mulf %626, %625 : vector<8x128xf32>
      %cst_177 = arith.constant 5.000000e-01 : f32
      %628 = vector.broadcast %cst_177 : f32 to vector<8x128xf32>
      %629 = arith.addf %627, %628 : vector<8x128xf32>
      %630 = arith.mulf %623, %606 : vector<8x128xf32>
      %631 = arith.mulf %618, %624 : vector<8x128xf32>
      %632 = arith.addf %630, %631 : vector<8x128xf32>
      %633 = math.tanh %632 : vector<8x128xf32>
      %634 = arith.mulf %629, %633 : vector<8x128xf32>
      %c0_178 = arith.constant 0 : index
      %c0_179 = arith.constant 0 : index
      %635 = vector.load %arg8[%c0_178, %c0_179] : memref<128x24xf32, #tpu.memory_space<vmem>>, vector<128x24xf32>
      %cst_180 = arith.constant dense<0.000000e+00> : vector<8x24xf32>
      %636 = tpu.matmul %634, %635, %cst_180 {dimension_numbers = #tpu.dot_dimension_numbers<[1], [0], [0], [1], [0, 0, 1, 1], [], []>} : vector<8x128xf32>, vector<128x24xf32>, vector<8x24xf32> -> vector<8x24xf32>
      %c0_181 = arith.constant 0 : index
      %c0_182 = arith.constant 0 : index
      %637 = vector.load %arg9[%c0_181, %c0_182] : memref<1x24xf32, #tpu.memory_space<vmem>>, vector<1x24xf32>
      %638 = vector.broadcast %637 : vector<1x24xf32> to vector<8x24xf32>
      %639 = arith.addf %636, %638 : vector<8x24xf32>
      %c0_183 = arith.constant 0 : index
      %c0_184 = arith.constant 0 : index
      %640 = vector.load %arg10[%c0_183, %c0_184] : memref<8x24xf32, #tpu.memory_space<vmem>>, vector<8x24xf32>
      tpu.vector_store %arg10[%c0_183, %c0_184], %639 {strides = array<i32>} : memref<8x24xf32, #tpu.memory_space<vmem>>, vector<8x24xf32>,
    } else {
    }
    return
  }
  func.func @transform_0(%arg0: i32) -> (i32, i32) {
    %c0_i32 = arith.constant 0 : i32
    %c0_i32_0 = arith.constant 0 : i32
    return %c0_i32, %arg0 : i32, i32
  }
  func.func @transform_1(%arg0: i32) -> (i32, i32) {
    %c0_i32 = arith.constant 0 : i32
    %c0_i32_0 = arith.constant 0 : i32
    return %arg0, %c0_i32 : i32, i32
  }
  func.func @transform_2(%arg0: i32) -> (i32, i32) {
    %c0_i32 = arith.constant 0 : i32
    %c0_i32_0 = arith.constant 0 : i32
    %c0_i32_1 = arith.constant 0 : i32
    return %c0_i32, %c0_i32_0 : i32, i32
  }
  func.func @transform_3(%arg0: i32) -> (i32, i32) {
    %c0_i32 = arith.constant 0 : i32
    %c0_i32_0 = arith.constant 0 : i32
    %c0_i32_1 = arith.constant 0 : i32
    return %c0_i32, %c0_i32_0 : i32, i32
  }
  func.func @transform_4(%arg0: i32) -> (i32, i32) {
    %c0_i32 = arith.constant 0 : i32
    %c0_i32_0 = arith.constant 0 : i32
    %c0_i32_1 = arith.constant 0 : i32
    return %c0_i32, %c0_i32_0 : i32, i32
  }
  func.func @transform_5(%arg0: i32) -> (i32, i32) {
    %c0_i32 = arith.constant 0 : i32
    %c0_i32_0 = arith.constant 0 : i32
    %c0_i32_1 = arith.constant 0 : i32
    return %c0_i32, %c0_i32_0 : i32, i32
  }
  func.func @transform_6(%arg0: i32) -> (i32, i32) {
    %c0_i32 = arith.constant 0 : i32
    %c0_i32_0 = arith.constant 0 : i32
    %c0_i32_1 = arith.constant 0 : i32
    return %c0_i32, %c0_i32_0 : i32, i32
  }
  func.func @transform_7(%arg0: i32) -> (i32, i32) {
    %c0_i32 = arith.constant 0 : i32
    %c0_i32_0 = arith.constant 0 : i32
    %c0_i32_1 = arith.constant 0 : i32
    return %c0_i32, %c0_i32_0 : i32, i32
  }
  func.func @transform_8(%arg0: i32) -> (i32, i32) {
    %c0_i32 = arith.constant 0 : i32
    %c0_i32_0 = arith.constant 0 : i32
    %c0_i32_1 = arith.constant 0 : i32
    return %c0_i32, %c0_i32_0 : i32, i32
  }
  func.func @transform_9(%arg0: i32) -> (i32, i32) {
    %c0_i32 = arith.constant 0 : i32
    %c0_i32_0 = arith.constant 0 : i32
    %c0_i32_1 = arith.constant 0 : i32
    return %c0_i32, %c0_i32_0 : i32, i32
  }
}

</mosaic_0001>

<llo_original>
// kernel: lstm_model_forward.1
$region0: #{lstm_model_forward.1}
  #allocation0 [shape = 'u32[]', space=smem, size = 0x4, offset = 0x4, fixed_abs, tag = 'smem constant byte address 0x4 - core index']
  #allocation1 [shape = 'u32[144,128]{1,0:T(1,128)}', space=vmem, size = 0x12000, scoped, tag = 'internal scratch']
  #allocation2 [shape = 'f32[96,256]{1,0:T(8,128)}', space=vmem, size = 0x18000, scoped, tag = 'scratch operand']
  %s0 = inlined_call_operand.vmem [shape: bf16[96,6912], index: 0, kind: input, shape index: {}]
  %s1 = inlined_call_operand.vmem [shape: bf16[6912,256], index: 1, kind: input, shape index: {}]
  %s2 = inlined_call_operand.vmem [shape: f32[1,256], index: 2, kind: input, shape index: {}]
  %s3 = inlined_call_operand.vmem [shape: f32[256,512], index: 3, kind: input, shape index: {}]
  %s4 = inlined_call_operand.vmem [shape: f32[1,512], index: 4, kind: input, shape index: {}]
  %s5 = inlined_call_operand.vmem [shape: f32[256,1024], index: 5, kind: input, shape index: {}]
  %s6 = inlined_call_operand.vmem [shape: f32[1,512], index: 6, kind: input, shape index: {}]
  %s7 = inlined_call_operand.vmem [shape: f32[128,24], index: 7, kind: input, shape index: {}]
  %s8 = inlined_call_operand.vmem [shape: f32[1,24], index: 8, kind: input, shape index: {}]
  %s9 = inlined_call_operand.vmem [shape: f32[8,24], index: 9, kind: output, shape index: {}]
  %s10 = sld [smem:[#allocation0]]
  $region100: #{lstm_model_forward.1} parent=0
    _
  %s12 = ssub.s32 1, %s10
  %s13 = scalar_select 0, %s12, %s10
  $region1: #{lstm_model_forward.1} parent=0
    #allocation3 [shape = 'u8[884736]{0}', space=vmem, size = 0xd8000, scoped, tag = 'input window, operand 0']
    loop: start=0, step=1, limit=5
    $region2: #{lstm_model_forward.1} parent=1 // loop_pre_header
      _
    $region3: #{lstm_model_forward.1} parent=1 // loop_header
      %s15 = sphi 0, %s19
      %p16 = scmp.ge.s32.totalorder %s15, 5
      %s25 = sphi 0, %s27
      %s28 = sphi 0, %s25
      %s29 = sphi 0, %s28
      %s45 = sphi 0, %s29
      %s51 = sphi 0, %s53
      %s54 = sphi 0, %s51
      %s55 = sphi 0, %s54
      %s71 = sphi 0, %s55
      %s75 = sphi 0, %s75
      %s77 = sphi 0, %s75
      %s78 = sphi 0, %s77
      %s92 = sphi 0, %s78
      %s96 = sphi 0, %s96
      %s98 = sphi 0, %s96
      %s99 = sphi 0, %s98
      %s113 = sphi 0, %s99
      %s117 = sphi 0, %s117
      %s119 = sphi 0, %s117
      %s120 = sphi 0, %s119
      %s134 = sphi 0, %s120
      %s138 = sphi 0, %s138
      %s140 = sphi 0, %s138
      %s141 = sphi 0, %s140
      %s155 = sphi 0, %s141
      %s159 = sphi 0, %s159
      %s161 = sphi 0, %s159
      %s162 = sphi 0, %s161
      %s176 = sphi 0, %s162
      %s180 = sphi 0, %s180
      %s182 = sphi 0, %s180
      %s183 = sphi 0, %s182
      %s197 = sphi 0, %s183
      %s201 = sphi 0, %s201
      %s203 = sphi 0, %s201
      %s204 = sphi 0, %s203
      %s218 = sphi 0, %s204
      %s222 = sphi 0, %s222
      %s224 = sphi 0, %s222
      %s225 = sphi 0, %s224
      %s239 = sphi 0, %s225
    $region4: #{lstm_model_forward.1} parent=1 // loop_header_branch
      %18 = sbr.rel (%p16) target = $region8
    $region5: #{lstm_model_forward.1} parent=1 // loop_body
      %s20 = ssub.s32 %s15, 1
      %s21 = ssub.s32 %s15, 2
      %s22 = sadd.s32 %s15, 1
      %s23 = ssub.s32 %s15, %s22
      %p24 = scmp.eq.s32.totalorder %s23, 0
      %s26 = sadd.s32 %s25, 1
      %s27 = scalar_select %p24, %s25, %s26
      %p30 = pneg %p24
      %p31 = scmp.eq.s32.totalorder %s15, 2
      %p32 = por %p30, %p31
      %p33 = scmp.ne.s32.totalorder %s25, %s28
      %p34 = scmp.eq.s32.totalorder %s15, 0
      %p35 = por %p33, %p34
      %p36 = scmp.ne.s32.totalorder %s25, %s28
      %p37 = scmp.eq.s32.totalorder %s20, 2
      %p38 = por %p36, %p37
      %p39 = scmp.ne.s32.totalorder %s28, %s29
      %p40 = scmp.eq.s32.totalorder %s20, 0
      %p41 = por %p39, %p40
      %p42 = scmp.ne.s32.totalorder %s28, %s29
      %p43 = scmp.eq.s32.totalorder %s21, 2
      %p44 = por %p42, %p43
      %p46 = scmp.ne.s32.totalorder %s29, %s45
      %p47 = scmp.eq.s32.totalorder %s21, 0
      %p48 = por %p46, %p47
      %s49 = ssub.s32 %s15, %s22
      %p50 = scmp.eq.s32.totalorder %s49, 0
      %s52 = sadd.s32 %s51, 1
      %s53 = scalar_select %p50, %s51, %s52
      %p56 = pneg %p50
      %p57 = scmp.eq.s32.totalorder %s15, 2
      %p58 = por %p56, %p57
      %p59 = scmp.ne.s32.totalorder %s51, %s54
      %p60 = scmp.eq.s32.totalorder %s15, 0
      %p61 = por %p59, %p60
      %p62 = scmp.ne.s32.totalorder %s51, %s54
      %p63 = scmp.eq.s32.totalorder %s20, 2
      %p64 = por %p62, %p63
      %p65 = scmp.ne.s32.totalorder %s54, %s55
      %p66 = scmp.eq.s32.totalorder %s20, 0
      %p67 = por %p65, %p66
      %p68 = scmp.ne.s32.totalorder %s54, %s55
      %p69 = scmp.eq.s32.totalorder %s21, 2
      %p70 = por %p68, %p69
      %p72 = scmp.ne.s32.totalorder %s55, %s71
      %p73 = scmp.eq.s32.totalorder %s21, 0
      %p74 = por %p72, %p73
      %s76 = sadd.s32 %s75, 1
      %p79 = scmp.eq.s32.totalorder %s15, 2
      %p80 = scmp.ne.s32.totalorder %s75, %s77
      %p81 = scmp.eq.s32.totalorder %s15, 0
      %p82 = por %p80, %p81
      %p83 = scmp.ne.s32.totalorder %s75, %s77
      %p84 = scmp.eq.s32.totalorder %s20, 2
      %p85 = por %p83, %p84
      %p86 = scmp.ne.s32.totalorder %s77, %s78
      %p87 = scmp.eq.s32.totalorder %s20, 0
      %p88 = por %p86, %p87
      %p89 = scmp.ne.s32.totalorder %s77, %s78
      %p90 = scmp.eq.s32.totalorder %s21, 2
      %p91 = por %p89, %p90
      %p93 = scmp.ne.s32.totalorder %s78, %s92
      %p94 = scmp.eq.s32.totalorder %s21, 0
      %p95 = por %p93, %p94
      %s97 = sadd.s32 %s96, 1
      %p100 = scmp.eq.s32.totalorder %s15, 2
      %p101 = scmp.ne.s32.totalorder %s96, %s98
      %p102 = scmp.eq.s32.totalorder %s15, 0
      %p103 = por %p101, %p102
      %p104 = scmp.ne.s32.totalorder %s96, %s98
      %p105 = scmp.eq.s32.totalorder %s20, 2
      %p106 = por %p104, %p105
      %p107 = scmp.ne.s32.totalorder %s98, %s99
      %p108 = scmp.eq.s32.totalorder %s20, 0
      %p109 = por %p107, %p108
      %p110 = scmp.ne.s32.totalorder %s98, %s99
      %p111 = scmp.eq.s32.totalorder %s21, 2
      %p112 = por %p110, %p111
      %p114 = scmp.ne.s32.totalorder %s99, %s113
      %p115 = scmp.eq.s32.totalorder %s21, 0
      %p116 = por %p114, %p115
      %s118 = sadd.s32 %s117, 1
      %p121 = scmp.eq.s32.totalorder %s15, 2
      %p122 = scmp.ne.s32.totalorder %s117, %s119
      %p123 = scmp.eq.s32.totalorder %s15, 0
      %p124 = por %p122, %p123
      %p125 = scmp.ne.s32.totalorder %s117, %s119
      %p126 = scmp.eq.s32.totalorder %s20, 2
      %p127 = por %p125, %p126
      %p128 = scmp.ne.s32.totalorder %s119, %s120
      %p129 = scmp.eq.s32.totalorder %s20, 0
      %p130 = por %p128, %p129
      %p131 = scmp.ne.s32.totalorder %s119, %s120
      %p132 = scmp.eq.s32.totalorder %s21, 2
      %p133 = por %p131, %p132
      %p135 = scmp.ne.s32.totalorder %s120, %s134
      %p136 = scmp.eq.s32.totalorder %s21, 0
      %p137 = por %p135, %p136
      %s139 = sadd.s32 %s138, 1
      %p142 = scmp.eq.s32.totalorder %s15, 2
      %p143 = scmp.ne.s32.totalorder %s138, %s140
      %p144 = scmp.eq.s32.totalorder %s15, 0
      %p145 = por %p143, %p144
      %p146 = scmp.ne.s32.totalorder %s138, %s140
      %p147 = scmp.eq.s32.totalorder %s20, 2
      %p148 = por %p146, %p147
      %p149 = scmp.ne.s32.totalorder %s140, %s141
      %p150 = scmp.eq.s32.totalorder %s20, 0
      %p151 = por %p149, %p150
      %p152 = scmp.ne.s32.totalorder %s140, %s141
      %p153 = scmp.eq.s32.totalorder %s21, 2
      %p154 = por %p152, %p153
      %p156 = scmp.ne.s32.totalorder %s141, %s155
      %p157 = scmp.eq.s32.totalorder %s21, 0
      %p158 = por %p156, %p157
      %s160 = sadd.s32 %s159, 1
      %p163 = scmp.eq.s32.totalorder %s15, 2
      %p164 = scmp.ne.s32.totalorder %s159, %s161
      %p165 = scmp.eq.s32.totalorder %s15, 0
      %p166 = por %p164, %p165
      %p167 = scmp.ne.s32.totalorder %s159, %s161
      %p168 = scmp.eq.s32.totalorder %s20, 2
      %p169 = por %p167, %p168
      %p170 = scmp.ne.s32.totalorder %s161, %s162
      %p171 = scmp.eq.s32.totalorder %s20, 0
      %p172 = por %p170, %p171
      %p173 = scmp.ne.s32.totalorder %s161, %s162
      %p174 = scmp.eq.s32.totalorder %s21, 2
      %p175 = por %p173, %p174
      %p177 = scmp.ne.s32.totalorder %s162, %s176
      %p178 = scmp.eq.s32.totalorder %s21, 0
      %p179 = por %p177, %p178
      %s181 = sadd.s32 %s180, 1
      %p184 = scmp.eq.s32.totalorder %s15, 2
      %p185 = scmp.ne.s32.totalorder %s180, %s182
      %p186 = scmp.eq.s32.totalorder %s15, 0
      %p187 = por %p185, %p186
      %p188 = scmp.ne.s32.totalorder %s180, %s182
      %p189 = scmp.eq.s32.totalorder %s20, 2
      %p190 = por %p188, %p189
      %p191 = scmp.ne.s32.totalorder %s182, %s183
      %p192 = scmp.eq.s32.totalorder %s20, 0
      %p193 = por %p191, %p192
      %p194 = scmp.ne.s32.totalorder %s182, %s183
      %p195 = scmp.eq.s32.totalorder %s21, 2
      %p196 = por %p194, %p195
      %p198 = scmp.ne.s32.totalorder %s183, %s197
      %p199 = scmp.eq.s32.totalorder %s21, 0
      %p200 = por %p198, %p199
      %s202 = sadd.s32 %s201, 1
      %p205 = scmp.eq.s32.totalorder %s15, 2
      %p206 = scmp.ne.s32.totalorder %s201, %s203
      %p207 = scmp.eq.s32.totalorder %s15, 0
      %p208 = por %p206, %p207
      %p209 = scmp.ne.s32.totalorder %s201, %s203
      %p210 = scmp.eq.s32.totalorder %s20, 2
      %p211 = por %p209, %p210
      %p212 = scmp.ne.s32.totalorder %s203, %s204
      %p213 = scmp.eq.s32.totalorder %s20, 0
      %p214 = por %p212, %p213
      %p215 = scmp.ne.s32.totalorder %s203, %s204
      %p216 = scmp.eq.s32.totalorder %s21, 2
      %p217 = por %p215, %p216
      %p219 = scmp.ne.s32.totalorder %s204, %s218
      %p220 = scmp.eq.s32.totalorder %s21, 0
      %p221 = por %p219, %p220
      %s223 = sadd.s32 %s222, 1
      %p226 = scmp.eq.s32.totalorder %s15, 2
      %p227 = scmp.ne.s32.totalorder %s222, %s224
      %p228 = scmp.eq.s32.totalorder %s15, 0
      %p229 = por %p227, %p228
      %p230 = scmp.ne.s32.totalorder %s222, %s224
      %p231 = scmp.eq.s32.totalorder %s20, 2
      %p232 = por %p230, %p231
      %p233 = scmp.ne.s32.totalorder %s224, %s225
      %p234 = scmp.eq.s32.totalorder %s20, 0
      %p235 = por %p233, %p234
      %p236 = scmp.ne.s32.totalorder %s224, %s225
      %p237 = scmp.eq.s32.totalorder %s21, 2
      %p238 = por %p236, %p237
      %p240 = scmp.ne.s32.totalorder %s225, %s239
      %p241 = scmp.eq.s32.totalorder %s21, 0
      %p242 = por %p240, %p241
      %p243 = scmp.le.s32.totalorder 1, %s15
      %p244 = scmp.lt.s32.totalorder %s15, 4
      %p245 = pnand %p243, %p244
      %p246 = pneg %p245
      // Predicated region
      $region9: #{lstm_model_forward.1} parent=5 // pred_check
        _
      $region10: #{lstm_model_forward.1} parent=5 // pred_check_branch
        %248 = sbr.rel (%p245) target = $region12
      $region11: #{lstm_model_forward.1} parent=5 // pred_region
        %s249 = ssub.s32 %s15, 1
        // Predicated region
        $region13: #{lstm_model_forward.1} parent=11 // pred_check
          %p250 = pneg %p88
        $region14: #{lstm_model_forward.1} parent=11 // pred_check_branch
          %252 = sbr.rel (%p250) target = $region16
        $region15: #{lstm_model_forward.1} parent=11 // pred_region
          _
        $region16: #{lstm_model_forward.1} parent=11 // pred_fallthru
          _
        // Predicated region
        $region17: #{lstm_model_forward.1} parent=11 // pred_check
          %p253 = pneg %p109
        $region18: #{lstm_model_forward.1} parent=11 // pred_check_branch
          %255 = sbr.rel (%p253) target = $region20
        $region19: #{lstm_model_forward.1} parent=11 // pred_region
          _
        $region20: #{lstm_model_forward.1} parent=11 // pred_fallthru
          _
        // Predicated region
        $region21: #{lstm_model_forward.1} parent=11 // pred_check
          %p256 = pneg %p130
        $region22: #{lstm_model_forward.1} parent=11 // pred_check_branch
          %258 = sbr.rel (%p256) target = $region24
        $region23: #{lstm_model_forward.1} parent=11 // pred_region
          _
        $region24: #{lstm_model_forward.1} parent=11 // pred_fallthru
          _
        // Predicated region
        $region25: #{lstm_model_forward.1} parent=11 // pred_check
          %p259 = pneg %p151
        $region26: #{lstm_model_forward.1} parent=11 // pred_check_branch
          %261 = sbr.rel (%p259) target = $region28
        $region27: #{lstm_model_forward.1} parent=11 // pred_region
          _
        $region28: #{lstm_model_forward.1} parent=11 // pred_fallthru
          _
        // Predicated region
        $region29: #{lstm_model_forward.1} parent=11 // pred_check
          %p262 = pneg %p172
        $region30: #{lstm_model_forward.1} parent=11 // pred_check_branch
          %264 = sbr.rel (%p262) target = $region32
        $region31: #{lstm_model_forward.1} parent=11 // pred_region
          _
        $region32: #{lstm_model_forward.1} parent=11 // pred_fallthru
          _
        // Predicated region
        $region33: #{lstm_model_forward.1} parent=11 // pred_check
          %p265 = pneg %p193
        $region34: #{lstm_model_forward.1} parent=11 // pred_check_branch
          %267 = sbr.rel (%p265) target = $region36
        $region35: #{lstm_model_forward.1} parent=11 // pred_region
          _
        $region36: #{lstm_model_forward.1} parent=11 // pred_fallthru
          _
        // Predicated region
        $region37: #{lstm_model_forward.1} parent=11 // pred_check
          %p268 = pneg %p214
        $region38: #{lstm_model_forward.1} parent=11 // pred_check_branch
          %270 = sbr.rel (%p268) target = $region40
        $region39: #{lstm_model_forward.1} parent=11 // pred_region
          _
        $region40: #{lstm_model_forward.1} parent=11 // pred_fallthru
          _
      $region12: #{lstm_model_forward.1} parent=5 // pred_fallthru
        _
      %p271 = scmp.lt.s32.totalorder %s15, 3
      // Predicated region
      $region41: #{lstm_model_forward.1} parent=5 // pred_check
        %p272 = pneg %p271
      $region42: #{lstm_model_forward.1} parent=5 // pred_check_branch
        %274 = sbr.rel (%p272) target = $region44
      $region43: #{lstm_model_forward.1} parent=5 // pred_region
        // Predicated region
        $region45: #{lstm_model_forward.1} parent=43 // pred_check
          %p275 = pneg %p35
        $region46: #{lstm_model_forward.1} parent=43 // pred_check_branch
          %277 = sbr.rel (%p275) target = $region48
        $region47: #{lstm_model_forward.1} parent=43 // pred_region
          %s278 = sand.u32 %s25, 1
          %s279 = sand.u32 %s25, 1
          %s280 = smul.addr %s279, 864
          %s281 = scalar_lea.vmem [#allocation3], %s280
          %s282 = smul.u32 18, %s15
          %s283 = smul.addr %s282, 4
          %s284 = scalar_lea.vmem %s0, %s283
          // Predicated region
          $region49: #{lstm_model_forward.1} parent=47 // pred_check
            _
          $region50: #{lstm_model_forward.1} parent=47 // pred_check_branch
            %286 = sbr.rel (0) target = $region52
          $region51: #{lstm_model_forward.1} parent=47 // pred_region
            // Predicated region
            $region53: #{lstm_model_forward.1} parent=51 // pred_check
              _
            $region54: #{lstm_model_forward.1} parent=51 // pred_check_branch
              %288 = sbr.rel (0) target = $region56
            $region55: #{lstm_model_forward.1} parent=51 // pred_region
              loop: start=0, step=1, limit=1
              $region57: #{lstm_model_forward.1} parent=55 // loop_pre_header
                _
              $region58: #{lstm_model_forward.1} parent=55 // loop_header
                %s290 = sphi 0, %s294
                %p291 = scmp.ge.s32.totalorder %s290, 1
                %s295 = sphi %s284, %s284
                %s296 = sphi %s281, %s281
              $region59: #{lstm_model_forward.1} parent=55 // loop_header_branch
                %293 = sbr.rel (%p291) target = $region63
              $region60: #{lstm_model_forward.1} parent=55 // loop_body
                %v297 = vld [vmem:[%s295] sm:$0xff]
                %298 = vst [vmem:[%s296] sm:$0xff] %v297
                %v299 = vld [vmem:[%s295 + $0x8] sm:$0xff]
                %300 = vst [vmem:[%s296 + $0x8] sm:$0xff] %v299
                %v301 = vld [vmem:[%s295 + $0x10] sm:$0xff]
                %302 = vst [vmem:[%s296 + $0x10] sm:$0xff] %v301
                %v303 = vld [vmem:[%s295 + $0x18] sm:$0xff]
                %304 = vst [vmem:[%s296 + $0x18] sm:$0xff] %v303
                %v305 = vld [vmem:[%s295 + $0x20] sm:$0xff]
                %306 = vst [vmem:[%s296 + $0x20] sm:$0xff] %v305
                %v307 = vld [vmem:[%s295 + $0x28] sm:$0xff]
                %308 = vst [vmem:[%s296 + $0x28] sm:$0xff] %v307
                %v309 = vld [vmem:[%s295 + $0x30] sm:$0xff]
                %310 = vst [vmem:[%s296 + $0x30] sm:$0xff] %v309
                %v311 = vld [vmem:[%s295 + $0x38] sm:$0xff]
                %312 = vst [vmem:[%s296 + $0x38] sm:$0xff] %v311
                %v313 = vld [vmem:[%s295 + $0x40] sm:$0xff]
                %314 = vst [vmem:[%s296 + $0x40] sm:$0xff] %v313
                %v315 = vld [vmem:[%s295 + $0xd8] sm:$0xff]
                %316 = vst [vmem:[%s296 + $0x48] sm:$0xff] %v315
                %v317 = vld [vmem:[%s295 + $0xe0] sm:$0xff]
                %318 = vst [vmem:[%s296 + $0x50] sm:$0xff] %v317
                %v319 = vld [vmem:[%s295 + $0xe8] sm:$0xff]
                %320 = vst [vmem:[%s296 + $0x58] sm:$0xff] %v319
                %v321 = vld [vmem:[%s295 + $0xf0] sm:$0xff]
                %322 = vst [vmem:[%s296 + $0x60] sm:$0xff] %v321
                %v323 = vld [vmem:[%s295 + $0xf8] sm:$0xff]
                %324 = vst [vmem:[%s296 + $0x68] sm:$0xff] %v323
                %v325 = vld [vmem:[%s295 + $0x100] sm:$0xff]
                %326 = vst [vmem:[%s296 + $0x70] sm:$0xff] %v325
                %v327 = vld [vmem:[%s295 + $0x108] sm:$0xff]
                %328 = vst [vmem:[%s296 + $0x78] sm:$0xff] %v327
                %v329 = vld [vmem:[%s295 + $0x110] sm:$0xff]
                %330 = vst [vmem:[%s296 + $0x80] sm:$0xff] %v329
                %v331 = vld [vmem:[%s295 + $0x118] sm:$0xff]
                %332 = vst [vmem:[%s296 + $0x88] sm:$0xff] %v331
                %v333 = vld [vmem:[%s295 + $0x1b0] sm:$0xff]
                %334 = vst [vmem:[%s296 + $0x90] sm:$0xff] %v333
                %v335 = vld [vmem:[%s295 + $0x1b8] sm:$0xff]
                %336 = vst [vmem:[%s296 + $0x98] sm:$0xff] %v335
                %v337 = vld [vmem:[%s295 + $0x1c0] sm:$0xff]
                %338 = vst [vmem:[%s296 + $0xa0] sm:$0xff] %v337
                %v339 = vld [vmem:[%s295 + $0x1c8] sm:$0xff]
                %340 = vst [vmem:[%s296 + $0xa8] sm:$0xff] %v339
                %v341 = vld [vmem:[%s295 + $0x1d0] sm:$0xff]
                %342 = vst [vmem:[%s296 + $0xb0] sm:$0xff] %v341
                %v343 = vld [vmem:[%s295 + $0x1d8] sm:$0xff]
                %344 = vst [vmem:[%s296 + $0xb8] sm:$0xff] %v343
                %v345 = vld [vmem:[%s295 + $0x1e0] sm:$0xff]
                %346 = vst [vmem:[%s296 + $0xc0] sm:$0xff] %v345
                %v347 = vld [vmem:[%s295 + $0x1e8] sm:$0xff]
                %348 = vst [vmem:[%s296 + $0xc8] sm:$0xff] %v347
                %v349 = vld [vmem:[%s295 + $0x1f0] sm:$0xff]
                %350 = vst [vmem:[%s296 + $0xd0] sm:$0xff] %v349
                %v351 = vld [vmem:[%s295 + $0x288] sm:$0xff]
                %352 = vst [vmem:[%s296 + $0xd8] sm:$0xff] %v351
                %v353 = vld [vmem:[%s295 + $0x290] sm:$0xff]
                %354 = vst [vmem:[%s296 + $0xe0] sm:$0xff] %v353
                %v355 = vld [vmem:[%s295 + $0x298] sm:$0xff]
                %356 = vst [vmem:[%s296 + $0xe8] sm:$0xff] %v355
                %v357 = vld [vmem:[%s295 + $0x2a0] sm:$0xff]
                %358 = vst [vmem:[%s296 + $0xf0] sm:$0xff] %v357
                %v359 = vld [vmem:[%s295 + $0x2a8] sm:$0xff]
                %360 = vst [vmem:[%s296 + $0xf8] sm:$0xff] %v359
                %v361 = vld [vmem:[%s295 + $0x2b0] sm:$0xff]
                %362 = vst [vmem:[%s296 + $0x100] sm:$0xff] %v361
                %v363 = vld [vmem:[%s295 + $0x2b8] sm:$0xff]
                %364 = vst [vmem:[%s296 + $0x108] sm:$0xff] %v363
                %v365 = vld [vmem:[%s295 + $0x2c0] sm:$0xff]
                %366 = vst [vmem:[%s296 + $0x110] sm:$0xff] %v365
                %v367 = vld [vmem:[%s295 + $0x2c8] sm:$0xff]
                %368 = vst [vmem:[%s296 + $0x118] sm:$0xff] %v367
                %v369 = vld [vmem:[%s295 + $0x360] sm:$0xff]
                %370 = vst [vmem:[%s296 + $0x120] sm:$0xff] %v369
                %v371 = vld [vmem:[%s295 + $0x368] sm:$0xff]
                %372 = vst [vmem:[%s296 + $0x128] sm:$0xff] %v371
                %v373 = vld [vmem:[%s295 + $0x370] sm:$0xff]
                %374 = vst [vmem:[%s296 + $0x130] sm:$0xff] %v373
                %v375 = vld [vmem:[%s295 + $0x378] sm:$0xff]
                %376 = vst [vmem:[%s296 + $0x138] sm:$0xff] %v375
                %v377 = vld [vmem:[%s295 + $0x380] sm:$0xff]
                %378 = vst [vmem:[%s296 + $0x140] sm:$0xff] %v377
                %v379 = vld [vmem:[%s295 + $0x388] sm:$0xff]
                %380 = vst [vmem:[%s296 + $0x148] sm:$0xff] %v379
                %v381 = vld [vmem:[%s295 + $0x390] sm:$0xff]
                %382 = vst [vmem:[%s296 + $0x150] sm:$0xff] %v381
                %v383 = vld [vmem:[%s295 + $0x398] sm:$0xff]
                %384 = vst [vmem:[%s296 + $0x158] sm:$0xff] %v383
                %v385 = vld [vmem:[%s295 + $0x3a0] sm:$0xff]
                %386 = vst [vmem:[%s296 + $0x160] sm:$0xff] %v385
                %v387 = vld [vmem:[%s295 + $0x438] sm:$0xff]
                %388 = vst [vmem:[%s296 + $0x168] sm:$0xff] %v387
                %v389 = vld [vmem:[%s295 + $0x440] sm:$0xff]
                %390 = vst [vmem:[%s296 + $0x170] sm:$0xff] %v389
                %v391 = vld [vmem:[%s295 + $0x448] sm:$0xff]
                %392 = vst [vmem:[%s296 + $0x178] sm:$0xff] %v391
                %v393 = vld [vmem:[%s295 + $0x450] sm:$0xff]
                %394 = vst [vmem:[%s296 + $0x180] sm:$0xff] %v393
                %v395 = vld [vmem:[%s295 + $0x458] sm:$0xff]
                %396 = vst [vmem:[%s296 + $0x188] sm:$0xff] %v395
                %v397 = vld [vmem:[%s295 + $0x460] sm:$0xff]
                %398 = vst [vmem:[%s296 + $0x190] sm:$0xff] %v397
                %v399 = vld [vmem:[%s295 + $0x468] sm:$0xff]
                %400 = vst [vmem:[%s296 + $0x198] sm:$0xff] %v399
                %v401 = vld [vmem:[%s295 + $0x470] sm:$0xff]
                %402 = vst [vmem:[%s296 + $0x1a0] sm:$0xff] %v401
                %v403 = vld [vmem:[%s295 + $0x478] sm:$0xff]
                %404 = vst [vmem:[%s296 + $0x1a8] sm:$0xff] %v403
                %v405 = vld [vmem:[%s295 + $0x510] sm:$0xff]
                %406 = vst [vmem:[%s296 + $0x1b0] sm:$0xff] %v405
                %v407 = vld [vmem:[%s295 + $0x518] sm:$0xff]
                %408 = vst [vmem:[%s296 + $0x1b8] sm:$0xff] %v407
                %v409 = vld [vmem:[%s295 + $0x520] sm:$0xff]
                %410 = vst [vmem:[%s296 + $0x1c0] sm:$0xff] %v409
                %v411 = vld [vmem:[%s295 + $0x528] sm:$0xff]
                %412 = vst [vmem:[%s296 + $0x1c8] sm:$0xff] %v411
                %v413 = vld [vmem:[%s295 + $0x530] sm:$0xff]
                %414 = vst [vmem:[%s296 + $0x1d0] sm:$0xff] %v413
                %v415 = vld [vmem:[%s295 + $0x538] sm:$0xff]
                %416 = vst [vmem:[%s296 + $0x1d8] sm:$0xff] %v415
                %v417 = vld [vmem:[%s295 + $0x540] sm:$0xff]
                %418 = vst [vmem:[%s296 + $0x1e0] sm:$0xff] %v417
                %v419 = vld [vmem:[%s295 + $0x548] sm:$0xff]
                %420 = vst [vmem:[%s296 + $0x1e8] sm:$0xff] %v419
                %v421 = vld [vmem:[%s295 + $0x550] sm:$0xff]
                %422 = vst [vmem:[%s296 + $0x1f0] sm:$0xff] %v421
                %v423 = vld [vmem:[%s295 + $0x5e8] sm:$0xff]
                %424 = vst [vmem:[%s296 + $0x1f8] sm:$0xff] %v423
                %v425 = vld [vmem:[%s295 + $0x5f0] sm:$0xff]
                %426 = vst [vmem:[%s296 + $0x200] sm:$0xff] %v425
                %v427 = vld [vmem:[%s295 + $0x5f8] sm:$0xff]
                %428 = vst [vmem:[%s296 + $0x208] sm:$0xff] %v427
                %v429 = vld [vmem:[%s295 + $0x600] sm:$0xff]
                %430 = vst [vmem:[%s296 + $0x210] sm:$0xff] %v429
                %v431 = vld [vmem:[%s295 + $0x608] sm:$0xff]
                %432 = vst [vmem:[%s296 + $0x218] sm:$0xff] %v431
                %v433 = vld [vmem:[%s295 + $0x610] sm:$0xff]
                %434 = vst [vmem:[%s296 + $0x220] sm:$0xff] %v433
                %v435 = vld [vmem:[%s295 + $0x618] sm:$0xff]
                %436 = vst [vmem:[%s296 + $0x228] sm:$0xff] %v435
                %v437 = vld [vmem:[%s295 + $0x620] sm:$0xff]
                %438 = vst [vmem:[%s296 + $0x230] sm:$0xff] %v437
                %v439 = vld [vmem:[%s295 + $0x628] sm:$0xff]
                %440 = vst [vmem:[%s296 + $0x238] sm:$0xff] %v439
                %v441 = vld [vmem:[%s295 + $0x6c0] sm:$0xff]
                %442 = vst [vmem:[%s296 + $0x240] sm:$0xff] %v441
                %v443 = vld [vmem:[%s295 + $0x6c8] sm:$0xff]
                %444 = vst [vmem:[%s296 + $0x248] sm:$0xff] %v443
                %v445 = vld [vmem:[%s295 + $0x6d0] sm:$0xff]
                %446 = vst [vmem:[%s296 + $0x250] sm:$0xff] %v445
                %v447 = vld [vmem:[%s295 + $0x6d8] sm:$0xff]
                %448 = vst [vmem:[%s296 + $0x258] sm:$0xff] %v447
                %v449 = vld [vmem:[%s295 + $0x6e0] sm:$0xff]
                %450 = vst [vmem:[%s296 + $0x260] sm:$0xff] %v449
                %v451 = vld [vmem:[%s295 + $0x6e8] sm:$0xff]
                %452 = vst [vmem:[%s296 + $0x268] sm:$0xff] %v451
                %v453 = vld [vmem:[%s295 + $0x6f0] sm:$0xff]
                %454 = vst [vmem:[%s296 + $0x270] sm:$0xff] %v453
                %v455 = vld [vmem:[%s295 + $0x6f8] sm:$0xff]
                %456 = vst [vmem:[%s296 + $0x278] sm:$0xff] %v455
                %v457 = vld [vmem:[%s295 + $0x700] sm:$0xff]
                %458 = vst [vmem:[%s296 + $0x280] sm:$0xff] %v457
                %v459 = vld [vmem:[%s295 + $0x798] sm:$0xff]
                %460 = vst [vmem:[%s296 + $0x288] sm:$0xff] %v459
                %v461 = vld [vmem:[%s295 + $0x7a0] sm:$0xff]
                %462 = vst [vmem:[%s296 + $0x290] sm:$0xff] %v461
                %v463 = vld [vmem:[%s295 + $0x7a8] sm:$0xff]
                %464 = vst [vmem:[%s296 + $0x298] sm:$0xff] %v463
                %v465 = vld [vmem:[%s295 + $0x7b0] sm:$0xff]
                %466 = vst [vmem:[%s296 + $0x2a0] sm:$0xff] %v465
                %v467 = vld [vmem:[%s295 + $0x7b8] sm:$0xff]
                %468 = vst [vmem:[%s296 + $0x2a8] sm:$0xff] %v467
                %v469 = vld [vmem:[%s295 + $0x7c0] sm:$0xff]
                %470 = vst [vmem:[%s296 + $0x2b0] sm:$0xff] %v469
                %v471 = vld [vmem:[%s295 + $0x7c8] sm:$0xff]
                %472 = vst [vmem:[%s296 + $0x2b8] sm:$0xff] %v471
                %v473 = vld [vmem:[%s295 + $0x7d0] sm:$0xff]
                %474 = vst [vmem:[%s296 + $0x2c0] sm:$0xff] %v473
                %v475 = vld [vmem:[%s295 + $0x7d8] sm:$0xff]
                %476 = vst [vmem:[%s296 + $0x2c8] sm:$0xff] %v475
                %v477 = vld [vmem:[%s295 + $0x870] sm:$0xff]
                %478 = vst [vmem:[%s296 + $0x2d0] sm:$0xff] %v477
                %v479 = vld [vmem:[%s295 + $0x878] sm:$0xff]
                %480 = vst [vmem:[%s296 + $0x2d8] sm:$0xff] %v479
                %v481 = vld [vmem:[%s295 + $0x880] sm:$0xff]
                %482 = vst [vmem:[%s296 + $0x2e0] sm:$0xff] %v481
                %v483 = vld [vmem:[%s295 + $0x888] sm:$0xff]
                %484 = vst [vmem:[%s296 + $0x2e8] sm:$0xff] %v483
                %v485 = vld [vmem:[%s295 + $0x890] sm:$0xff]
                %486 = vst [vmem:[%s296 + $0x2f0] sm:$0xff] %v485
                %v487 = vld [vmem:[%s295 + $0x898] sm:$0xff]
                %488 = vst [vmem:[%s296 + $0x2f8] sm:$0xff] %v487
                %v489 = vld [vmem:[%s295 + $0x8a0] sm:$0xff]
                %490 = vst [vmem:[%s296 + $0x300] sm:$0xff] %v489
                %v491 = vld [vmem:[%s295 + $0x8a8] sm:$0xff]
                %492 = vst [vmem:[%s296 + $0x308] sm:$0xff] %v491
                %v493 = vld [vmem:[%s295 + $0x8b0] sm:$0xff]
                %494 = vst [vmem:[%s296 + $0x310] sm:$0xff] %v493
                %v495 = vld [vmem:[%s295 + $0x948] sm:$0xff]
                %496 = vst [vmem:[%s296 + $0x318] sm:$0xff] %v495
                %v497 = vld [vmem:[%s295 + $0x950] sm:$0xff]
                %498 = vst [vmem:[%s296 + $0x320] sm:$0xff] %v497
                %v499 = vld [vmem:[%s295 + $0x958] sm:$0xff]
                %500 = vst [vmem:[%s296 + $0x328] sm:$0xff] %v499
                %v501 = vld [vmem:[%s295 + $0x960] sm:$0xff]
                %502 = vst [vmem:[%s296 + $0x330] sm:$0xff] %v501
                %v503 = vld [vmem:[%s295 + $0x968] sm:$0xff]
                %504 = vst [vmem:[%s296 + $0x338] sm:$0xff] %v503
                %v505 = vld [vmem:[%s295 + $0x970] sm:$0xff]
                %506 = vst [vmem:[%s296 + $0x340] sm:$0xff] %v505
                %v507 = vld [vmem:[%s295 + $0x978] sm:$0xff]
                %508 = vst [vmem:[%s296 + $0x348] sm:$0xff] %v507
                %v509 = vld [vmem:[%s295 + $0x980] sm:$0xff]
                %510 = vst [vmem:[%s296 + $0x350] sm:$0xff] %v509
                %v511 = vld [vmem:[%s295 + $0x988] sm:$0xff]
                %512 = vst [vmem:[%s296 + $0x358] sm:$0xff] %v511
              $region61: #{lstm_model_forward.1} parent=55 // loop_footer
                %s294 = sadd.s32 1, %s290
              $region62: #{lstm_model_forward.1} parent=55 // loop_footer_branch
                %289 = sbr.rel target = $region58
              $region63: #{lstm_model_forward.1} parent=55 // loop_exit
                _
            $region56: #{lstm_model_forward.1} parent=51 // pred_fallthru
              _
            // Predicated region
            $region64: #{lstm_model_forward.1} parent=51 // pred_check
              _
            $region65: #{lstm_model_forward.1} parent=51 // pred_check_branch
              %514 = sbr.rel target = $region67
            $region66: #{lstm_model_forward.1} parent=51 // pred_region
              _
            $region67: #{lstm_model_forward.1} parent=51 // pred_fallthru
              _
          $region52: #{lstm_model_forward.1} parent=47 // pred_fallthru
            _
          %515 = vnop
        $region48: #{lstm_model_forward.1} parent=43 // pred_fallthru
          _
        // Predicated region
        $region68: #{lstm_model_forward.1} parent=43 // pred_check
          %p516 = pneg %p61
        $region69: #{lstm_model_forward.1} parent=43 // pred_check_branch
          %518 = sbr.rel (%p516) target = $region71
        $region70: #{lstm_model_forward.1} parent=43 // pred_region
          %s519 = smul.u32 288, %s15
          %p520 = scmp.lt.s32.totalorder %s519, 863
          %s521 = scalar_select %p520, %s519, 863
          %s522 = smul.addr %s521, 2
          %s523 = smul.addr %s522, 4
          %s524 = scalar_lea.vmem %s1, %s523
          %s525 = smul.u32 288, %s15
        $region71: #{lstm_model_forward.1} parent=43 // pred_fallthru
          _
      $region44: #{lstm_model_forward.1} parent=5 // pred_fallthru
        _
      %p526 = scmp.le.s32.totalorder 1, %s15
      %p527 = scmp.lt.s32.totalorder %s15, 4
      %p528 = pnand %p526, %p527
      %p529 = pneg %p528
      // Predicated region
      $region72: #{lstm_model_forward.1} parent=5 // pred_check
        _
      $region73: #{lstm_model_forward.1} parent=5 // pred_check_branch
        %531 = sbr.rel (%p528) target = $region75
      $region74: #{lstm_model_forward.1} parent=5 // pred_region
        %s532 = ssub.s32 %s15, 1
        %s533 = sand.u32 %s28, 1
        %s534 = sand.u32 %s28, 1
        %s535 = smul.addr %s534, 864
        %s536 = scalar_lea.vmem [#allocation3], %s535
        // Predicated region
        $region76: #{lstm_model_forward.1} parent=74 // pred_check
          %p537 = pneg %p41
        $region77: #{lstm_model_forward.1} parent=74 // pred_check_branch
          %539 = sbr.rel (%p537) target = $region79
        $region78: #{lstm_model_forward.1} parent=74 // pred_region
          _
        $region79: #{lstm_model_forward.1} parent=74 // pred_fallthru
          _
        %s540 = sand.u32 %s28, 1
        %s541 = sand.u32 %s28, 1
        %s542 = smul.addr %s541, 864
        %s543 = scalar_lea.vmem [#allocation3], %s542
        %p544 = pneg %p41
        %p545 = pneg %p38
        %s546 = smul.u32 288, %s20
        %p547 = scmp.lt.s32.totalorder %s546, 863
        %s548 = scalar_select %p547, %s546, 863
        %s549 = smul.addr %s548, 2
        %s550 = smul.addr %s549, 4
        %s551 = scalar_lea.vmem %s1, %s550
        %p552 = pneg %p67
        %p553 = pneg %p64
        %p554 = pneg %p88
        %p555 = pneg %p85
        %p556 = pneg %p109
        %p557 = pneg %p106
        %p558 = pneg %p130
        %p559 = pneg %p127
        %p560 = pneg %p151
        %p561 = pneg %p148
        %p562 = pneg %p172
        %p563 = pneg %p169
        %p564 = pneg %p193
        %p565 = pneg %p190
        %p566 = pneg %p214
        %p567 = pneg %p211
        %p568 = pneg %p235
        %p569 = pneg %p232
        %s570 = smul.u32 18, %s20
        %s571 = smul.u32 288, %s20
        %p572 = scmp.lt.s32.totalorder %s571, 863
        %s573 = scalar_select %p572, %s571, 863
        %s574 = smul.addr %s573, 2
        %s575 = smul.addr %s574, 4
        %s576 = scalar_lea.vmem %s1, %s575
        %s577 = smul.u32 288, %s20
        %p578 = scmp.eq.s32.totalorder %s20, 0
        // Predicated region
        $region80: #{lstm_model_forward.1} parent=74 // pred_check
          %p579 = pneg %p578
        $region81: #{lstm_model_forward.1} parent=74 // pred_check_branch
          %581 = sbr.rel (%p579) target = $region83
        $region82: #{lstm_model_forward.1} parent=74 // pred_region
          %v582 = vld [vmem:[%s2] sm:$0x3]
          %v584 = vlaneseq
          %v585 = vshrl.u32 %v584, 7
          %v586 = vsub.s32 0, %v585
          %v587 = vrot.slane %v582, %v586
          %v588 = vlaneseq
          %v589 = vshrl.u32 %v588, 7
          %v590 = vsub.s32 1, %v589
          %v591 = vrot.slane %v582, %v590
          %594 = vst [vmem:[#allocation2] sm:$0xff] %v587
          %595 = vst [vmem:[#allocation2 + $0x8] sm:$0xff] %v591
          %596 = vst [vmem:[#allocation2 + $0x10] sm:$0xff] %v587
          %597 = vst [vmem:[#allocation2 + $0x18] sm:$0xff] %v591
          %598 = vst [vmem:[#allocation2 + $0x20] sm:$0xff] %v587
          %599 = vst [vmem:[#allocation2 + $0x28] sm:$0xff] %v591
          %600 = vst [vmem:[#allocation2 + $0x30] sm:$0xff] %v587
          %601 = vst [vmem:[#allocation2 + $0x38] sm:$0xff] %v591
          %602 = vst [vmem:[#allocation2 + $0x40] sm:$0xff] %v587
          %603 = vst [vmem:[#allocation2 + $0x48] sm:$0xff] %v591
          %604 = vst [vmem:[#allocation2 + $0x50] sm:$0xff] %v587
          %605 = vst [vmem:[#allocation2 + $0x58] sm:$0xff] %v591
          %606 = vst [vmem:[#allocation2 + $0x60] sm:$0xff] %v587
          %607 = vst [vmem:[#allocation2 + $0x68] sm:$0xff] %v591
          %608 = vst [vmem:[#allocation2 + $0x70] sm:$0xff] %v587
          %609 = vst [vmem:[#allocation2 + $0x78] sm:$0xff] %v591
          %610 = vst [vmem:[#allocation2 + $0x80] sm:$0xff] %v587
          %611 = vst [vmem:[#allocation2 + $0x88] sm:$0xff] %v591
          %612 = vst [vmem:[#allocation2 + $0x90] sm:$0xff] %v587
          %613 = vst [vmem:[#allocation2 + $0x98] sm:$0xff] %v591
          %614 = vst [vmem:[#allocation2 + $0xa0] sm:$0xff] %v587
          %615 = vst [vmem:[#allocation2 + $0xa8] sm:$0xff] %v591
          %616 = vst [vmem:[#allocation2 + $0xb0] sm:$0xff] %v587
          %617 = vst [vmem:[#allocation2 + $0xb8] sm:$0xff] %v591
        $region83: #{lstm_model_forward.1} parent=74 // pred_fallthru
          _
        %v618 = vld [vmem:[#allocation2] sm:$0xff]
        %v619 = vld [vmem:[#allocation2 + $0x8] sm:$0xff]
        %v620 = vld [vmem:[#allocation2 + $0x10] sm:$0xff]
        %v621 = vld [vmem:[#allocation2 + $0x18] sm:$0xff]
        %v622 = vld [vmem:[#allocation2 + $0x20] sm:$0xff]
        %v623 = vld [vmem:[#allocation2 + $0x28] sm:$0xff]
        %v624 = vld [vmem:[#allocation2 + $0x30] sm:$0xff]
        %v625 = vld [vmem:[#allocation2 + $0x38] sm:$0xff]
        %v626 = vld [vmem:[#allocation2 + $0x40] sm:$0xff]
        %v627 = vld [vmem:[#allocation2 + $0x48] sm:$0xff]
        %v628 = vld [vmem:[#allocation2 + $0x50] sm:$0xff]
        %v629 = vld [vmem:[#allocation2 + $0x58] sm:$0xff]
        %v630 = vld [vmem:[#allocation2 + $0x60] sm:$0xff]
        %v631 = vld [vmem:[#allocation2 + $0x68] sm:$0xff]
        %v632 = vld [vmem:[#allocation2 + $0x70] sm:$0xff]
        %v633 = vld [vmem:[#allocation2 + $0x78] sm:$0xff]
        %v634 = vld [vmem:[#allocation2 + $0x80] sm:$0xff]
        %v635 = vld [vmem:[#allocation2 + $0x88] sm:$0xff]
        %v636 = vld [vmem:[#allocation2 + $0x90] sm:$0xff]
        %v637 = vld [vmem:[#allocation2 + $0x98] sm:$0xff]
        %v638 = vld [vmem:[#allocation2 + $0xa0] sm:$0xff]
        %v639 = vld [vmem:[#allocation2 + $0xa8] sm:$0xff]
        %v640 = vld [vmem:[#allocation2 + $0xb0] sm:$0xff]
        %v641 = vld [vmem:[#allocation2 + $0xb8] sm:$0xff]
        %v642 = vld [vmem:[%s536] sm:$0xff]
        %v643 = vld [vmem:[%s536 + $0x8] sm:$0xff]
        %v644 = vld [vmem:[%s536 + $0x10] sm:$0xff]
        %v645 = vld [vmem:[%s536 + $0x18] sm:$0xff]
        %v646 = vld [vmem:[%s536 + $0x20] sm:$0xff]
        %v647 = vld [vmem:[%s536 + $0x28] sm:$0xff]
        %v648 = vld [vmem:[%s536 + $0x30] sm:$0xff]
        %v649 = vld [vmem:[%s536 + $0x38] sm:$0xff]
        %v650 = vld [vmem:[%s536 + $0x40] sm:$0xff]
        %v651 = vld [vmem:[%s536 + $0x48] sm:$0xff]
        %v652 = vld [vmem:[%s536 + $0x50] sm:$0xff]
        %v653 = vld [vmem:[%s536 + $0x58] sm:$0xff]
        %v654 = vld [vmem:[%s536 + $0x60] sm:$0xff]
        %v655 = vld [vmem:[%s536 + $0x68] sm:$0xff]
        %v656 = vld [vmem:[%s536 + $0x70] sm:$0xff]
        %v657 = vld [vmem:[%s536 + $0x78] sm:$0xff]
        %v658 = vld [vmem:[%s536 + $0x80] sm:$0xff]
        %v659 = vld [vmem:[%s536 + $0x88] sm:$0xff]
        %v660 = vld [vmem:[%s536 + $0x90] sm:$0xff]
        %v661 = vld [vmem:[%s536 + $0x98] sm:$0xff]
        %v662 = vld [vmem:[%s536 + $0xa0] sm:$0xff]
        %v663 = vld [vmem:[%s536 + $0xa8] sm:$0xff]
        %v664 = vld [vmem:[%s536 + $0xb0] sm:$0xff]
        %v665 = vld [vmem:[%s536 + $0xb8] sm:$0xff]
        %v666 = vld [vmem:[%s536 + $0xc0] sm:$0xff]
        %v667 = vld [vmem:[%s536 + $0xc8] sm:$0xff]
        %v668 = vld [vmem:[%s536 + $0xd0] sm:$0xff]
        %v669 = vld [vmem:[%s536 + $0xd8] sm:$0xff]
        %v670 = vld [vmem:[%s536 + $0xe0] sm:$0xff]
        %v671 = vld [vmem:[%s536 + $0xe8] sm:$0xff]
        %v672 = vld [vmem:[%s536 + $0xf0] sm:$0xff]
        %v673 = vld [vmem:[%s536 + $0xf8] sm:$0xff]
        %v674 = vld [vmem:[%s536 + $0x100] sm:$0xff]
        %v675 = vld [vmem:[%s536 + $0x108] sm:$0xff]
        %v676 = vld [vmem:[%s536 + $0x110] sm:$0xff]
        %v677 = vld [vmem:[%s536 + $0x118] sm:$0xff]
        %v678 = vld [vmem:[%s536 + $0x120] sm:$0xff]
        %v679 = vld [vmem:[%s536 + $0x128] sm:$0xff]
        %v680 = vld [vmem:[%s536 + $0x130] sm:$0xff]
        %v681 = vld [vmem:[%s536 + $0x138] sm:$0xff]
        %v682 = vld [vmem:[%s536 + $0x140] sm:$0xff]
        %v683 = vld [vmem:[%s536 + $0x148] sm:$0xff]
        %v684 = vld [vmem:[%s536 + $0x150] sm:$0xff]
        %v685 = vld [vmem:[%s536 + $0x158] sm:$0xff]
        %v686 = vld [vmem:[%s536 + $0x160] sm:$0xff]
        %v687 = vld [vmem:[%s536 + $0x168] sm:$0xff]
        %v688 = vld [vmem:[%s536 + $0x170] sm:$0xff]
        %v689 = vld [vmem:[%s536 + $0x178] sm:$0xff]
        %v690 = vld [vmem:[%s536 + $0x180] sm:$0xff]
        %v691 = vld [vmem:[%s536 + $0x188] sm:$0xff]
        %v692 = vld [vmem:[%s536 + $0x190] sm:$0xff]
        %v693 = vld [vmem:[%s536 + $0x198] sm:$0xff]
        %v694 = vld [vmem:[%s536 + $0x1a0] sm:$0xff]
        %v695 = vld [vmem:[%s536 + $0x1a8] sm:$0xff]
        %v696 = vld [vmem:[%s536 + $0x1b0] sm:$0xff]
        %v697 = vld [vmem:[%s536 + $0x1b8] sm:$0xff]
        %v698 = vld [vmem:[%s536 + $0x1c0] sm:$0xff]
        %v699 = vld [vmem:[%s536 + $0x1c8] sm:$0xff]
        %v700 = vld [vmem:[%s536 + $0x1d0] sm:$0xff]
        %v701 = vld [vmem:[%s536 + $0x1d8] sm:$0xff]
        %v702 = vld [vmem:[%s536 + $0x1e0] sm:$0xff]
        %v703 = vld [vmem:[%s536 + $0x1e8] sm:$0xff]
        %v704 = vld [vmem:[%s536 + $0x1f0] sm:$0xff]
        %v705 = vld [vmem:[%s536 + $0x1f8] sm:$0xff]
        %v706 = vld [vmem:[%s536 + $0x200] sm:$0xff]
        %v707 = vld [vmem:[%s536 + $0x208] sm:$0xff]
        %v708 = vld [vmem:[%s536 + $0x210] sm:$0xff]
        %v709 = vld [vmem:[%s536 + $0x218] sm:$0xff]
        %v710 = vld [vmem:[%s536 + $0x220] sm:$0xff]
        %v711 = vld [vmem:[%s536 + $0x228] sm:$0xff]
        %v712 = vld [vmem:[%s536 + $0x230] sm:$0xff]
        %v713 = vld [vmem:[%s536 + $0x238] sm:$0xff]
        %v714 = vld [vmem:[%s536 + $0x240] sm:$0xff]
        %v715 = vld [vmem:[%s536 + $0x248] sm:$0xff]
        %v716 = vld [vmem:[%s536 + $0x250] sm:$0xff]
        %v717 = vld [vmem:[%s536 + $0x258] sm:$0xff]
        %v718 = vld [vmem:[%s536 + $0x260] sm:$0xff]
        %v719 = vld [vmem:[%s536 + $0x268] sm:$0xff]
        %v720 = vld [vmem:[%s536 + $0x270] sm:$0xff]
        %v721 = vld [vmem:[%s536 + $0x278] sm:$0xff]
        %v722 = vld [vmem:[%s536 + $0x280] sm:$0xff]
        %v723 = vld [vmem:[%s536 + $0x288] sm:$0xff]
        %v724 = vld [vmem:[%s536 + $0x290] sm:$0xff]
        %v725 = vld [vmem:[%s536 + $0x298] sm:$0xff]
        %v726 = vld [vmem:[%s536 + $0x2a0] sm:$0xff]
        %v727 = vld [vmem:[%s536 + $0x2a8] sm:$0xff]
        %v728 = vld [vmem:[%s536 + $0x2b0] sm:$0xff]
        %v729 = vld [vmem:[%s536 + $0x2b8] sm:$0xff]
        %v730 = vld [vmem:[%s536 + $0x2c0] sm:$0xff]
        %v731 = vld [vmem:[%s536 + $0x2c8] sm:$0xff]
        %v732 = vld [vmem:[%s536 + $0x2d0] sm:$0xff]
        %v733 = vld [vmem:[%s536 + $0x2d8] sm:$0xff]
        %v734 = vld [vmem:[%s536 + $0x2e0] sm:$0xff]
        %v735 = vld [vmem:[%s536 + $0x2e8] sm:$0xff]
        %v736 = vld [vmem:[%s536 + $0x2f0] sm:$0xff]
        %v737 = vld [vmem:[%s536 + $0x2f8] sm:$0xff]
        %v738 = vld [vmem:[%s536 + $0x300] sm:$0xff]
        %v739 = vld [vmem:[%s536 + $0x308] sm:$0xff]
        %v740 = vld [vmem:[%s536 + $0x310] sm:$0xff]
        %v741 = vld [vmem:[%s536 + $0x318] sm:$0xff]
        %v742 = vld [vmem:[%s536 + $0x320] sm:$0xff]
        %v743 = vld [vmem:[%s536 + $0x328] sm:$0xff]
        %v744 = vld [vmem:[%s536 + $0x330] sm:$0xff]
        %v745 = vld [vmem:[%s536 + $0x338] sm:$0xff]
        %v746 = vld [vmem:[%s536 + $0x340] sm:$0xff]
        %v747 = vld [vmem:[%s536 + $0x348] sm:$0xff]
        %v748 = vld [vmem:[%s536 + $0x350] sm:$0xff]
        %v749 = vld [vmem:[%s536 + $0x358] sm:$0xff]
        %v750 = vld [vmem:[%s576] sm:$0xff]
        %v751 = vld [vmem:[%s576 + $0x8] sm:$0xff]
        %v752 = vld [vmem:[%s576 + $0x10] sm:$0xff]
        %v753 = vld [vmem:[%s576 + $0x18] sm:$0xff]
        %v754 = vld [vmem:[%s576 + $0x20] sm:$0xff]
        %v755 = vld [vmem:[%s576 + $0x28] sm:$0xff]
        %v756 = vld [vmem:[%s576 + $0x30] sm:$0xff]
        %v757 = vld [vmem:[%s576 + $0x38] sm:$0xff]
        %v758 = vld [vmem:[%s576 + $0x40] sm:$0xff]
        %v759 = vld [vmem:[%s576 + $0x48] sm:$0xff]
        %v760 = vld [vmem:[%s576 + $0x50] sm:$0xff]
        %v761 = vld [vmem:[%s576 + $0x58] sm:$0xff]
        %v762 = vld [vmem:[%s576 + $0x60] sm:$0xff]
        %v763 = vld [vmem:[%s576 + $0x68] sm:$0xff]
        %v764 = vld [vmem:[%s576 + $0x70] sm:$0xff]
        %v765 = vld [vmem:[%s576 + $0x78] sm:$0xff]
        %v766 = vld [vmem:[%s576 + $0x80] sm:$0xff]
        %v767 = vld [vmem:[%s576 + $0x88] sm:$0xff]
        %v768 = vld [vmem:[%s576 + $0x90] sm:$0xff]
        %v769 = vld [vmem:[%s576 + $0x98] sm:$0xff]
        %v770 = vld [vmem:[%s576 + $0xa0] sm:$0xff]
        %v771 = vld [vmem:[%s576 + $0xa8] sm:$0xff]
        %v772 = vld [vmem:[%s576 + $0xb0] sm:$0xff]
        %v773 = vld [vmem:[%s576 + $0xb8] sm:$0xff]
        %v774 = vld [vmem:[%s576 + $0xc0] sm:$0xff]
        %v775 = vld [vmem:[%s576 + $0xc8] sm:$0xff]
        %v776 = vld [vmem:[%s576 + $0xd0] sm:$0xff]
        %v777 = vld [vmem:[%s576 + $0xd8] sm:$0xff]
        %v778 = vld [vmem:[%s576 + $0xe0] sm:$0xff]
        %v779 = vld [vmem:[%s576 + $0xe8] sm:$0xff]
        %v780 = vld [vmem:[%s576 + $0xf0] sm:$0xff]
        %v781 = vld [vmem:[%s576 + $0xf8] sm:$0xff]
        %v782 = vld [vmem:[%s576 + $0x100] sm:$0xff]
        %v783 = vld [vmem:[%s576 + $0x108] sm:$0xff]
        %v784 = vld [vmem:[%s576 + $0x110] sm:$0xff]
        %v785 = vld [vmem:[%s576 + $0x118] sm:$0xff]
        %v786 = vld [vmem:[%s576 + $0x120] sm:$0xff]
        %v787 = vld [vmem:[%s576 + $0x128] sm:$0xff]
        %v788 = vld [vmem:[%s576 + $0x130] sm:$0xff]
        %v789 = vld [vmem:[%s576 + $0x138] sm:$0xff]
        %v790 = vld [vmem:[%s576 + $0x140] sm:$0xff]
        %v791 = vld [vmem:[%s576 + $0x148] sm:$0xff]
        %v792 = vld [vmem:[%s576 + $0x150] sm:$0xff]
        %v793 = vld [vmem:[%s576 + $0x158] sm:$0xff]
        %v794 = vld [vmem:[%s576 + $0x160] sm:$0xff]
        %v795 = vld [vmem:[%s576 + $0x168] sm:$0xff]
        %v796 = vld [vmem:[%s576 + $0x170] sm:$0xff]
        %v797 = vld [vmem:[%s576 + $0x178] sm:$0xff]
        %v798 = vld [vmem:[%s576 + $0x180] sm:$0xff]
        %v799 = vld [vmem:[%s576 + $0x188] sm:$0xff]
        %v800 = vld [vmem:[%s576 + $0x190] sm:$0xff]
        %v801 = vld [vmem:[%s576 + $0x198] sm:$0xff]
        %v802 = vld [vmem:[%s576 + $0x1a0] sm:$0xff]
        %v803 = vld [vmem:[%s576 + $0x1a8] sm:$0xff]
        %v804 = vld [vmem:[%s576 + $0x1b0] sm:$0xff]
        %v805 = vld [vmem:[%s576 + $0x1b8] sm:$0xff]
        %v806 = vld [vmem:[%s576 + $0x1c0] sm:$0xff]
        %v807 = vld [vmem:[%s576 + $0x1c8] sm:$0xff]
        %v808 = vld [vmem:[%s576 + $0x1d0] sm:$0xff]
        %v809 = vld [vmem:[%s576 + $0x1d8] sm:$0xff]
        %v810 = vld [vmem:[%s576 + $0x1e0] sm:$0xff]
        %v811 = vld [vmem:[%s576 + $0x1e8] sm:$0xff]
        %v812 = vld [vmem:[%s576 + $0x1f0] sm:$0xff]
        %v813 = vld [vmem:[%s576 + $0x1f8] sm:$0xff]
        %v814 = vld [vmem:[%s576 + $0x200] sm:$0xff]
        %v815 = vld [vmem:[%s576 + $0x208] sm:$0xff]
        %v816 = vld [vmem:[%s576 + $0x210] sm:$0xff]
        %v817 = vld [vmem:[%s576 + $0x218] sm:$0xff]
        %v818 = vld [vmem:[%s576 + $0x220] sm:$0xff]
        %v819 = vld [vmem:[%s576 + $0x228] sm:$0xff]
        %v820 = vld [vmem:[%s576 + $0x230] sm:$0xff]
        %v821 = vld [vmem:[%s576 + $0x238] sm:$0xff]
        %v822 = vld [vmem:[%s576 + $0x240] sm:$0xff]
        %v823 = vld [vmem:[%s576 + $0x248] sm:$0xff]
        %v824 = vld [vmem:[%s576 + $0x250] sm:$0xff]
        %v825 = vld [vmem:[%s576 + $0x258] sm:$0xff]
        %v826 = vld [vmem:[%s576 + $0x260] sm:$0xff]
        %v827 = vld [vmem:[%s576 + $0x268] sm:$0xff]
        %v828 = vld [vmem:[%s576 + $0x270] sm:$0xff]
        %v829 = vld [vmem:[%s576 + $0x278] sm:$0xff]
        %v830 = vld [vmem:[%s576 + $0x280] sm:$0xff]
        %v831 = vld [vmem:[%s576 + $0x288] sm:$0xff]
        %v832 = vld [vmem:[%s576 + $0x290] sm:$0xff]
        %v833 = vld [vmem:[%s576 + $0x298] sm:$0xff]
        %v834 = vld [vmem:[%s576 + $0x2a0] sm:$0xff]
        %v835 = vld [vmem:[%s576 + $0x2a8] sm:$0xff]
        %v836 = vld [vmem:[%s576 + $0x2b0] sm:$0xff]
        %v837 = vld [vmem:[%s576 + $0x2b8] sm:$0xff]
        %v838 = vld [vmem:[%s576 + $0x2c0] sm:$0xff]
        %v839 = vld [vmem:[%s576 + $0x2c8] sm:$0xff]
        %v840 = vld [vmem:[%s576 + $0x2d0] sm:$0xff]
        %v841 = vld [vmem:[%s576 + $0x2d8] sm:$0xff]
        %v842 = vld [vmem:[%s576 + $0x2e0] sm:$0xff]
        %v843 = vld [vmem:[%s576 + $0x2e8] sm:$0xff]
        %v844 = vld [vmem:[%s576 + $0x2f0] sm:$0xff]
        %v845 = vld [vmem:[%s576 + $0x2f8] sm:$0xff]
        %v846 = vld [vmem:[%s576 + $0x300] sm:$0xff]
        %v847 = vld [vmem:[%s576 + $0x308] sm:$0xff]
        %v848 = vld [vmem:[%s576 + $0x310] sm:$0xff]
        %v849 = vld [vmem:[%s576 + $0x318] sm:$0xff]
        %v850 = vld [vmem:[%s576 + $0x320] sm:$0xff]
        %v851 = vld [vmem:[%s576 + $0x328] sm:$0xff]
        %v852 = vld [vmem:[%s576 + $0x330] sm:$0xff]
        %v853 = vld [vmem:[%s576 + $0x338] sm:$0xff]
        %v854 = vld [vmem:[%s576 + $0x340] sm:$0xff]
        %v855 = vld [vmem:[%s576 + $0x348] sm:$0xff]
        %v856 = vld [vmem:[%s576 + $0x350] sm:$0xff]
        %v857 = vld [vmem:[%s576 + $0x358] sm:$0xff]
        %v858 = vld [vmem:[%s576 + $0x360] sm:$0xff]
        %v859 = vld [vmem:[%s576 + $0x368] sm:$0xff]
        %v860 = vld [vmem:[%s576 + $0x370] sm:$0xff]
        %v861 = vld [vmem:[%s576 + $0x378] sm:$0xff]
        %v862 = vld [vmem:[%s576 + $0x380] sm:$0xff]
        %v863 = vld [vmem:[%s576 + $0x388] sm:$0xff]
        %v864 = vld [vmem:[%s576 + $0x390] sm:$0xff]
        %v865 = vld [vmem:[%s576 + $0x398] sm:$0xff]
        %v866 = vld [vmem:[%s576 + $0x3a0] sm:$0xff]
        %v867 = vld [vmem:[%s576 + $0x3a8] sm:$0xff]
        %v868 = vld [vmem:[%s576 + $0x3b0] sm:$0xff]
        %v869 = vld [vmem:[%s576 + $0x3b8] sm:$0xff]
        %v870 = vld [vmem:[%s576 + $0x3c0] sm:$0xff]
        %v871 = vld [vmem:[%s576 + $0x3c8] sm:$0xff]
        %v872 = vld [vmem:[%s576 + $0x3d0] sm:$0xff]
        %v873 = vld [vmem:[%s576 + $0x3d8] sm:$0xff]
        %v874 = vld [vmem:[%s576 + $0x3e0] sm:$0xff]
        %v875 = vld [vmem:[%s576 + $0x3e8] sm:$0xff]
        %v876 = vld [vmem:[%s576 + $0x3f0] sm:$0xff]
        %v877 = vld [vmem:[%s576 + $0x3f8] sm:$0xff]
        %v878 = vld [vmem:[%s576 + $0x400] sm:$0xff]
        %v879 = vld [vmem:[%s576 + $0x408] sm:$0xff]
        %v880 = vld [vmem:[%s576 + $0x410] sm:$0xff]
        %v881 = vld [vmem:[%s576 + $0x418] sm:$0xff]
        %v882 = vld [vmem:[%s576 + $0x420] sm:$0xff]
        %v883 = vld [vmem:[%s576 + $0x428] sm:$0xff]
        %v884 = vld [vmem:[%s576 + $0x430] sm:$0xff]
        %v885 = vld [vmem:[%s576 + $0x438] sm:$0xff]
        %v886 = vld [vmem:[%s576 + $0x440] sm:$0xff]
        %v887 = vld [vmem:[%s576 + $0x448] sm:$0xff]
        %v888 = vld [vmem:[%s576 + $0x450] sm:$0xff]
        %v889 = vld [vmem:[%s576 + $0x458] sm:$0xff]
        %v890 = vld [vmem:[%s576 + $0x460] sm:$0xff]
        %v891 = vld [vmem:[%s576 + $0x468] sm:$0xff]
        %v892 = vld [vmem:[%s576 + $0x470] sm:$0xff]
        %v893 = vld [vmem:[%s576 + $0x478] sm:$0xff]
        %v894 = vld [vmem:[%s576 + $0x480] sm:$0xff]
        %v895 = vld [vmem:[%s576 + $0x488] sm:$0xff]
        %v896 = vld [vmem:[%s576 + $0x490] sm:$0xff]
        %v897 = vld [vmem:[%s576 + $0x498] sm:$0xff]
        %v898 = vld [vmem:[%s576 + $0x4a0] sm:$0xff]
        %v899 = vld [vmem:[%s576 + $0x4a8] sm:$0xff]
        %v900 = vld [vmem:[%s576 + $0x4b0] sm:$0xff]
        %v901 = vld [vmem:[%s576 + $0x4b8] sm:$0xff]
        %v902 = vld [vmem:[%s576 + $0x4c0] sm:$0xff]
        %v903 = vld [vmem:[%s576 + $0x4c8] sm:$0xff]
        %v904 = vld [vmem:[%s576 + $0x4d0] sm:$0xff]
        %v905 = vld [vmem:[%s576 + $0x4d8] sm:$0xff]
        %v906 = vld [vmem:[%s576 + $0x4e0] sm:$0xff]
        %v907 = vld [vmem:[%s576 + $0x4e8] sm:$0xff]
        %v908 = vld [vmem:[%s576 + $0x4f0] sm:$0xff]
        %v909 = vld [vmem:[%s576 + $0x4f8] sm:$0xff]
        %v910 = vld [vmem:[%s576 + $0x500] sm:$0xff]
        %v911 = vld [vmem:[%s576 + $0x508] sm:$0xff]
        %v912 = vld [vmem:[%s576 + $0x510] sm:$0xff]
        %v913 = vld [vmem:[%s576 + $0x518] sm:$0xff]
        %v914 = vld [vmem:[%s576 + $0x520] sm:$0xff]
        %v915 = vld [vmem:[%s576 + $0x528] sm:$0xff]
        %v916 = vld [vmem:[%s576 + $0x530] sm:$0xff]
        %v917 = vld [vmem:[%s576 + $0x538] sm:$0xff]
        %v918 = vld [vmem:[%s576 + $0x540] sm:$0xff]
        %v919 = vld [vmem:[%s576 + $0x548] sm:$0xff]
        %v920 = vld [vmem:[%s576 + $0x550] sm:$0xff]
        %v921 = vld [vmem:[%s576 + $0x558] sm:$0xff]
        %v922 = vld [vmem:[%s576 + $0x560] sm:$0xff]
        %v923 = vld [vmem:[%s576 + $0x568] sm:$0xff]
        %v924 = vld [vmem:[%s576 + $0x570] sm:$0xff]
        %v925 = vld [vmem:[%s576 + $0x578] sm:$0xff]
        %v926 = vld [vmem:[%s576 + $0x580] sm:$0xff]
        %v927 = vld [vmem:[%s576 + $0x588] sm:$0xff]
        %v928 = vld [vmem:[%s576 + $0x590] sm:$0xff]
        %v929 = vld [vmem:[%s576 + $0x598] sm:$0xff]
        %v930 = vld [vmem:[%s576 + $0x5a0] sm:$0xff]
        %v931 = vld [vmem:[%s576 + $0x5a8] sm:$0xff]
        %v932 = vld [vmem:[%s576 + $0x5b0] sm:$0xff]
        %v933 = vld [vmem:[%s576 + $0x5b8] sm:$0xff]
        %v934 = vld [vmem:[%s576 + $0x5c0] sm:$0xff]
        %v935 = vld [vmem:[%s576 + $0x5c8] sm:$0xff]
        %v936 = vld [vmem:[%s576 + $0x5d0] sm:$0xff]
        %v937 = vld [vmem:[%s576 + $0x5d8] sm:$0xff]
        %v938 = vld [vmem:[%s576 + $0x5e0] sm:$0xff]
        %v939 = vld [vmem:[%s576 + $0x5e8] sm:$0xff]
        %v940 = vld [vmem:[%s576 + $0x5f0] sm:$0xff]
        %v941 = vld [vmem:[%s576 + $0x5f8] sm:$0xff]
        %v942 = vld [vmem:[%s576 + $0x600] sm:$0xff]
        %v943 = vld [vmem:[%s576 + $0x608] sm:$0xff]
        %v944 = vld [vmem:[%s576 + $0x610] sm:$0xff]
        %v945 = vld [vmem:[%s576 + $0x618] sm:$0xff]
        %v946 = vld [vmem:[%s576 + $0x620] sm:$0xff]
        %v947 = vld [vmem:[%s576 + $0x628] sm:$0xff]
        %v948 = vld [vmem:[%s576 + $0x630] sm:$0xff]
        %v949 = vld [vmem:[%s576 + $0x638] sm:$0xff]
        %v950 = vld [vmem:[%s576 + $0x640] sm:$0xff]
        %v951 = vld [vmem:[%s576 + $0x648] sm:$0xff]
        %v952 = vld [vmem:[%s576 + $0x650] sm:$0xff]
        %v953 = vld [vmem:[%s576 + $0x658] sm:$0xff]
        %v954 = vld [vmem:[%s576 + $0x660] sm:$0xff]
        %v955 = vld [vmem:[%s576 + $0x668] sm:$0xff]
        %v956 = vld [vmem:[%s576 + $0x670] sm:$0xff]
        %v957 = vld [vmem:[%s576 + $0x678] sm:$0xff]
        %v958 = vld [vmem:[%s576 + $0x680] sm:$0xff]
        %v959 = vld [vmem:[%s576 + $0x688] sm:$0xff]
        %v960 = vld [vmem:[%s576 + $0x690] sm:$0xff]
        %v961 = vld [vmem:[%s576 + $0x698] sm:$0xff]
        %v962 = vld [vmem:[%s576 + $0x6a0] sm:$0xff]
        %v963 = vld [vmem:[%s576 + $0x6a8] sm:$0xff]
        %v964 = vld [vmem:[%s576 + $0x6b0] sm:$0xff]
        %v965 = vld [vmem:[%s576 + $0x6b8] sm:$0xff]
        %v966 = vld [vmem:[%s576 + $0x6c0] sm:$0xff]
        %v967 = vld [vmem:[%s576 + $0x6c8] sm:$0xff]
        %v968 = vld [vmem:[%s576 + $0x6d0] sm:$0xff]
        %v969 = vld [vmem:[%s576 + $0x6d8] sm:$0xff]
        %v970 = vld [vmem:[%s576 + $0x6e0] sm:$0xff]
        %v971 = vld [vmem:[%s576 + $0x6e8] sm:$0xff]
        %v972 = vld [vmem:[%s576 + $0x6f0] sm:$0xff]
        %v973 = vld [vmem:[%s576 + $0x6f8] sm:$0xff]
        %v974 = vld [vmem:[%s576 + $0x700] sm:$0xff]
        %v975 = vld [vmem:[%s576 + $0x708] sm:$0xff]
        %v976 = vld [vmem:[%s576 + $0x710] sm:$0xff]
        %v977 = vld [vmem:[%s576 + $0x718] sm:$0xff]
        %v978 = vld [vmem:[%s576 + $0x720] sm:$0xff]
        %v979 = vld [vmem:[%s576 + $0x728] sm:$0xff]
        %v980 = vld [vmem:[%s576 + $0x730] sm:$0xff]
        %v981 = vld [vmem:[%s576 + $0x738] sm:$0xff]
        %v982 = vld [vmem:[%s576 + $0x740] sm:$0xff]
        %v983 = vld [vmem:[%s576 + $0x748] sm:$0xff]
        %v984 = vld [vmem:[%s576 + $0x750] sm:$0xff]
        %v985 = vld [vmem:[%s576 + $0x758] sm:$0xff]
        %v986 = vld [vmem:[%s576 + $0x760] sm:$0xff]
        %v987 = vld [vmem:[%s576 + $0x768] sm:$0xff]
        %v988 = vld [vmem:[%s576 + $0x770] sm:$0xff]
        %v989 = vld [vmem:[%s576 + $0x778] sm:$0xff]
        %v990 = vld [vmem:[%s576 + $0x780] sm:$0xff]
        %v991 = vld [vmem:[%s576 + $0x788] sm:$0xff]
        %v992 = vld [vmem:[%s576 + $0x790] sm:$0xff]
        %v993 = vld [vmem:[%s576 + $0x798] sm:$0xff]
        %v994 = vld [vmem:[%s576 + $0x7a0] sm:$0xff]
        %v995 = vld [vmem:[%s576 + $0x7a8] sm:$0xff]
        %v996 = vld [vmem:[%s576 + $0x7b0] sm:$0xff]
        %v997 = vld [vmem:[%s576 + $0x7b8] sm:$0xff]
        %v998 = vld [vmem:[%s576 + $0x7c0] sm:$0xff]
        %v999 = vld [vmem:[%s576 + $0x7c8] sm:$0xff]
        %v1000 = vld [vmem:[%s576 + $0x7d0] sm:$0xff]
        %v1001 = vld [vmem:[%s576 + $0x7d8] sm:$0xff]
        %v1002 = vld [vmem:[%s576 + $0x7e0] sm:$0xff]
        %v1003 = vld [vmem:[%s576 + $0x7e8] sm:$0xff]
        %v1004 = vld [vmem:[%s576 + $0x7f0] sm:$0xff]
        %v1005 = vld [vmem:[%s576 + $0x7f8] sm:$0xff]
        %v1006 = vld [vmem:[%s576 + $0x800] sm:$0xff]
        %v1007 = vld [vmem:[%s576 + $0x808] sm:$0xff]
        %v1008 = vld [vmem:[%s576 + $0x810] sm:$0xff]
        %v1009 = vld [vmem:[%s576 + $0x818] sm:$0xff]
        %v1010 = vld [vmem:[%s576 + $0x820] sm:$0xff]
        %v1011 = vld [vmem:[%s576 + $0x828] sm:$0xff]
        %v1012 = vld [vmem:[%s576 + $0x830] sm:$0xff]
        %v1013 = vld [vmem:[%s576 + $0x838] sm:$0xff]
        %v1014 = vld [vmem:[%s576 + $0x840] sm:$0xff]
        %v1015 = vld [vmem:[%s576 + $0x848] sm:$0xff]
        %v1016 = vld [vmem:[%s576 + $0x850] sm:$0xff]
        %v1017 = vld [vmem:[%s576 + $0x858] sm:$0xff]
        %v1018 = vld [vmem:[%s576 + $0x860] sm:$0xff]
        %v1019 = vld [vmem:[%s576 + $0x868] sm:$0xff]
        %v1020 = vld [vmem:[%s576 + $0x870] sm:$0xff]
        %v1021 = vld [vmem:[%s576 + $0x878] sm:$0xff]
        %v1022 = vld [vmem:[%s576 + $0x880] sm:$0xff]
        %v1023 = vld [vmem:[%s576 + $0x888] sm:$0xff]
        %v1024 = vld [vmem:[%s576 + $0x890] sm:$0xff]
        %v1025 = vld [vmem:[%s576 + $0x898] sm:$0xff]
        %v1026 = vld [vmem:[%s576 + $0x8a0] sm:$0xff]
        %v1027 = vld [vmem:[%s576 + $0x8a8] sm:$0xff]
        %v1028 = vld [vmem:[%s576 + $0x8b0] sm:$0xff]
        %v1029 = vld [vmem:[%s576 + $0x8b8] sm:$0xff]
        %v1030 = vld [vmem:[%s576 + $0x8c0] sm:$0xff]
        %v1031 = vld [vmem:[%s576 + $0x8c8] sm:$0xff]
        %v1032 = vld [vmem:[%s576 + $0x8d0] sm:$0xff]
        %v1033 = vld [vmem:[%s576 + $0x8d8] sm:$0xff]
        %v1034 = vld [vmem:[%s576 + $0x8e0] sm:$0xff]
        %v1035 = vld [vmem:[%s576 + $0x8e8] sm:$0xff]
        %v1036 = vld [vmem:[%s576 + $0x8f0] sm:$0xff]
        %v1037 = vld [vmem:[%s576 + $0x8f8] sm:$0xff]
        %v1146 = vunpack.c.l.b16 %v642
        %v1147 = vunpack.c.h.b16 %v642
        %v1148 = vunpack.c.l.b16 %v643
        %v1149 = vunpack.c.h.b16 %v643
        %v1150 = vunpack.c.l.b16 %v644
        %v1151 = vunpack.c.h.b16 %v644
        %v1152 = vunpack.c.l.b16 %v645
        %v1153 = vunpack.c.h.b16 %v645
        %v1154 = vunpack.c.l.b16 %v646
        %v1155 = vunpack.c.h.b16 %v646
        %v1156 = vunpack.c.l.b16 %v647
        %v1157 = vunpack.c.h.b16 %v647
        %v1158 = vunpack.c.l.b16 %v648
        %v1159 = vunpack.c.h.b16 %v648
        %v1160 = vunpack.c.l.b16 %v649
        %v1161 = vunpack.c.h.b16 %v649
        %v1162 = vunpack.c.l.b16 %v650
        %v1163 = vunpack.c.h.b16 %v650
        %v1164 = vunpack.c.l.b16 %v651
        %v1165 = vunpack.c.h.b16 %v651
        %v1166 = vunpack.c.l.b16 %v652
        %v1167 = vunpack.c.h.b16 %v652
        %v1168 = vunpack.c.l.b16 %v653
        %v1169 = vunpack.c.h.b16 %v653
        %v1170 = vunpack.c.l.b16 %v654
        %v1171 = vunpack.c.h.b16 %v654
        %v1172 = vunpack.c.l.b16 %v655
        %v1173 = vunpack.c.h.b16 %v655
        %v1174 = vunpack.c.l.b16 %v656
        %v1175 = vunpack.c.h.b16 %v656
        %v1176 = vunpack.c.l.b16 %v657
        %v1177 = vunpack.c.h.b16 %v657
        %v1178 = vunpack.c.l.b16 %v658
        %v1179 = vunpack.c.h.b16 %v658
        %v1180 = vunpack.c.l.b16 %v659
        %v1181 = vunpack.c.h.b16 %v659
        %v1182 = vunpack.c.l.b16 %v660
        %v1183 = vunpack.c.h.b16 %v660
        %v1184 = vunpack.c.l.b16 %v661
        %v1185 = vunpack.c.h.b16 %v661
        %v1186 = vunpack.c.l.b16 %v662
        %v1187 = vunpack.c.h.b16 %v662
        %v1188 = vunpack.c.l.b16 %v663
        %v1189 = vunpack.c.h.b16 %v663
        %v1190 = vunpack.c.l.b16 %v664
        %v1191 = vunpack.c.h.b16 %v664
        %v1192 = vunpack.c.l.b16 %v665
        %v1193 = vunpack.c.h.b16 %v665
        %v1194 = vunpack.c.l.b16 %v666
        %v1195 = vunpack.c.h.b16 %v666
        %v1196 = vunpack.c.l.b16 %v667
        %v1197 = vunpack.c.h.b16 %v667
        %v1198 = vunpack.c.l.b16 %v668
        %v1199 = vunpack.c.h.b16 %v668
        %v1200 = vunpack.c.l.b16 %v669
        %v1201 = vunpack.c.h.b16 %v669
        %v1202 = vunpack.c.l.b16 %v670
        %v1203 = vunpack.c.h.b16 %v670
        %v1204 = vunpack.c.l.b16 %v671
        %v1205 = vunpack.c.h.b16 %v671
        %v1206 = vunpack.c.l.b16 %v672
        %v1207 = vunpack.c.h.b16 %v672
        %v1208 = vunpack.c.l.b16 %v673
        %v1209 = vunpack.c.h.b16 %v673
        %v1210 = vunpack.c.l.b16 %v674
        %v1211 = vunpack.c.h.b16 %v674
        %v1212 = vunpack.c.l.b16 %v675
        %v1213 = vunpack.c.h.b16 %v675
        %v1214 = vunpack.c.l.b16 %v676
        %v1215 = vunpack.c.h.b16 %v676
        %v1216 = vunpack.c.l.b16 %v677
        %v1217 = vunpack.c.h.b16 %v677
        %v1218 = vunpack.c.l.b16 %v678
        %v1219 = vunpack.c.h.b16 %v678
        %v1220 = vunpack.c.l.b16 %v679
        %v1221 = vunpack.c.h.b16 %v679
        %v1222 = vunpack.c.l.b16 %v680
        %v1223 = vunpack.c.h.b16 %v680
        %v1224 = vunpack.c.l.b16 %v681
        %v1225 = vunpack.c.h.b16 %v681
        %v1226 = vunpack.c.l.b16 %v682
        %v1227 = vunpack.c.h.b16 %v682
        %v1228 = vunpack.c.l.b16 %v683
        %v1229 = vunpack.c.h.b16 %v683
        %v1230 = vunpack.c.l.b16 %v684
        %v1231 = vunpack.c.h.b16 %v684
        %v1232 = vunpack.c.l.b16 %v685
        %v1233 = vunpack.c.h.b16 %v685
        %v1234 = vunpack.c.l.b16 %v686
        %v1235 = vunpack.c.h.b16 %v686
        %v1236 = vunpack.c.l.b16 %v687
        %v1237 = vunpack.c.h.b16 %v687
        %v1238 = vunpack.c.l.b16 %v688
        %v1239 = vunpack.c.h.b16 %v688
        %v1240 = vunpack.c.l.b16 %v689
        %v1241 = vunpack.c.h.b16 %v689
        %v1242 = vunpack.c.l.b16 %v690
        %v1243 = vunpack.c.h.b16 %v690
        %v1244 = vunpack.c.l.b16 %v691
        %v1245 = vunpack.c.h.b16 %v691
        %v1246 = vunpack.c.l.b16 %v692
        %v1247 = vunpack.c.h.b16 %v692
        %v1248 = vunpack.c.l.b16 %v693
        %v1249 = vunpack.c.h.b16 %v693
        %v1250 = vunpack.c.l.b16 %v694
        %v1251 = vunpack.c.h.b16 %v694
        %v1252 = vunpack.c.l.b16 %v695
        %v1253 = vunpack.c.h.b16 %v695
        %v1254 = vunpack.c.l.b16 %v696
        %v1255 = vunpack.c.h.b16 %v696
        %v1256 = vunpack.c.l.b16 %v697
        %v1257 = vunpack.c.h.b16 %v697
        %v1258 = vunpack.c.l.b16 %v698
        %v1259 = vunpack.c.h.b16 %v698
        %v1260 = vunpack.c.l.b16 %v699
        %v1261 = vunpack.c.h.b16 %v699
        %v1262 = vunpack.c.l.b16 %v700
        %v1263 = vunpack.c.h.b16 %v700
        %v1264 = vunpack.c.l.b16 %v701
        %v1265 = vunpack.c.h.b16 %v701
        %v1266 = vunpack.c.l.b16 %v702
        %v1267 = vunpack.c.h.b16 %v702
        %v1268 = vunpack.c.l.b16 %v703
        %v1269 = vunpack.c.h.b16 %v703
        %v1270 = vunpack.c.l.b16 %v704
        %v1271 = vunpack.c.h.b16 %v704
        %v1272 = vunpack.c.l.b16 %v705
        %v1273 = vunpack.c.h.b16 %v705
        %v1274 = vunpack.c.l.b16 %v706
        %v1275 = vunpack.c.h.b16 %v706
        %v1276 = vunpack.c.l.b16 %v707
        %v1277 = vunpack.c.h.b16 %v707
        %v1278 = vunpack.c.l.b16 %v708
        %v1279 = vunpack.c.h.b16 %v708
        %v1280 = vunpack.c.l.b16 %v709
        %v1281 = vunpack.c.h.b16 %v709
        %v1282 = vunpack.c.l.b16 %v710
        %v1283 = vunpack.c.h.b16 %v710
        %v1284 = vunpack.c.l.b16 %v711
        %v1285 = vunpack.c.h.b16 %v711
        %v1286 = vunpack.c.l.b16 %v712
        %v1287 = vunpack.c.h.b16 %v712
        %v1288 = vunpack.c.l.b16 %v713
        %v1289 = vunpack.c.h.b16 %v713
        %v1290 = vunpack.c.l.b16 %v714
        %v1291 = vunpack.c.h.b16 %v714
        %v1292 = vunpack.c.l.b16 %v715
        %v1293 = vunpack.c.h.b16 %v715
        %v1294 = vunpack.c.l.b16 %v716
        %v1295 = vunpack.c.h.b16 %v716
        %v1296 = vunpack.c.l.b16 %v717
        %v1297 = vunpack.c.h.b16 %v717
        %v1298 = vunpack.c.l.b16 %v718
        %v1299 = vunpack.c.h.b16 %v718
        %v1300 = vunpack.c.l.b16 %v719
        %v1301 = vunpack.c.h.b16 %v719
        %v1302 = vunpack.c.l.b16 %v720
        %v1303 = vunpack.c.h.b16 %v720
        %v1304 = vunpack.c.l.b16 %v721
        %v1305 = vunpack.c.h.b16 %v721
        %v1306 = vunpack.c.l.b16 %v722
        %v1307 = vunpack.c.h.b16 %v722
        %v1308 = vunpack.c.l.b16 %v723
        %v1309 = vunpack.c.h.b16 %v723
        %v1310 = vunpack.c.l.b16 %v724
        %v1311 = vunpack.c.h.b16 %v724
        %v1312 = vunpack.c.l.b16 %v725
        %v1313 = vunpack.c.h.b16 %v725
        %v1314 = vunpack.c.l.b16 %v726
        %v1315 = vunpack.c.h.b16 %v726
        %v1316 = vunpack.c.l.b16 %v727
        %v1317 = vunpack.c.h.b16 %v727
        %v1318 = vunpack.c.l.b16 %v728
        %v1319 = vunpack.c.h.b16 %v728
        %v1320 = vunpack.c.l.b16 %v729
        %v1321 = vunpack.c.h.b16 %v729
        %v1322 = vunpack.c.l.b16 %v730
        %v1323 = vunpack.c.h.b16 %v730
        %v1324 = vunpack.c.l.b16 %v731
        %v1325 = vunpack.c.h.b16 %v731
        %v1326 = vunpack.c.l.b16 %v732
        %v1327 = vunpack.c.h.b16 %v732
        %v1328 = vunpack.c.l.b16 %v733
        %v1329 = vunpack.c.h.b16 %v733
        %v1330 = vunpack.c.l.b16 %v734
        %v1331 = vunpack.c.h.b16 %v734
        %v1332 = vunpack.c.l.b16 %v735
        %v1333 = vunpack.c.h.b16 %v735
        %v1334 = vunpack.c.l.b16 %v736
        %v1335 = vunpack.c.h.b16 %v736
        %v1336 = vunpack.c.l.b16 %v737
        %v1337 = vunpack.c.h.b16 %v737
        %v1338 = vunpack.c.l.b16 %v738
        %v1339 = vunpack.c.h.b16 %v738
        %v1340 = vunpack.c.l.b16 %v739
        %v1341 = vunpack.c.h.b16 %v739
        %v1342 = vunpack.c.l.b16 %v740
        %v1343 = vunpack.c.h.b16 %v740
        %v1344 = vunpack.c.l.b16 %v741
        %v1345 = vunpack.c.h.b16 %v741
        %v1346 = vunpack.c.l.b16 %v742
        %v1347 = vunpack.c.h.b16 %v742
        %v1348 = vunpack.c.l.b16 %v743
        %v1349 = vunpack.c.h.b16 %v743
        %v1350 = vunpack.c.l.b16 %v744
        %v1351 = vunpack.c.h.b16 %v744
        %v1352 = vunpack.c.l.b16 %v745
        %v1353 = vunpack.c.h.b16 %v745
        %v1354 = vunpack.c.l.b16 %v746
        %v1355 = vunpack.c.h.b16 %v746
        %v1356 = vunpack.c.l.b16 %v747
        %v1357 = vunpack.c.h.b16 %v747
        %v1358 = vunpack.c.l.b16 %v748
        %v1359 = vunpack.c.h.b16 %v748
        %v1360 = vunpack.c.l.b16 %v749
        %v1361 = vunpack.c.h.b16 %v749
        %v1362 = vpack.c.b16 %v1164, %v1146
        %v1363 = vpack.c.b16 %v1165, %v1147
        %v1364 = vpack.c.b16 %v1166, %v1148
        %v1365 = vpack.c.b16 %v1167, %v1149
        %v1366 = vpack.c.b16 %v1168, %v1150
        %v1367 = vpack.c.b16 %v1169, %v1151
        %v1368 = vpack.c.b16 %v1170, %v1152
        %v1369 = vpack.c.b16 %v1171, %v1153
        %v1370 = vpack.c.b16 %v1172, %v1154
        %v1371 = vpack.c.b16 %v1173, %v1155
        %v1372 = vpack.c.b16 %v1174, %v1156
        %v1373 = vpack.c.b16 %v1175, %v1157
        %v1374 = vpack.c.b16 %v1176, %v1158
        %v1375 = vpack.c.b16 %v1177, %v1159
        %v1376 = vpack.c.b16 %v1178, %v1160
        %v1377 = vpack.c.b16 %v1179, %v1161
        %v1378 = vpack.c.b16 %v1180, %v1162
        %v1379 = vpack.c.b16 %v1181, %v1163
        %v1380 = vpack.c.b16 %v1200, %v1182
        %v1381 = vpack.c.b16 %v1201, %v1183
        %v1382 = vpack.c.b16 %v1202, %v1184
        %v1383 = vpack.c.b16 %v1203, %v1185
        %v1384 = vpack.c.b16 %v1204, %v1186
        %v1385 = vpack.c.b16 %v1205, %v1187
        %v1386 = vpack.c.b16 %v1206, %v1188
        %v1387 = vpack.c.b16 %v1207, %v1189
        %v1388 = vpack.c.b16 %v1208, %v1190
        %v1389 = vpack.c.b16 %v1209, %v1191
        %v1390 = vpack.c.b16 %v1210, %v1192
        %v1391 = vpack.c.b16 %v1211, %v1193
        %v1392 = vpack.c.b16 %v1212, %v1194
        %v1393 = vpack.c.b16 %v1213, %v1195
        %v1394 = vpack.c.b16 %v1214, %v1196
        %v1395 = vpack.c.b16 %v1215, %v1197
        %v1396 = vpack.c.b16 %v1216, %v1198
        %v1397 = vpack.c.b16 %v1217, %v1199
        %v1398 = vpack.c.b16 %v1236, %v1218
        %v1399 = vpack.c.b16 %v1237, %v1219
        %v1400 = vpack.c.b16 %v1238, %v1220
        %v1401 = vpack.c.b16 %v1239, %v1221
        %v1402 = vpack.c.b16 %v1240, %v1222
        %v1403 = vpack.c.b16 %v1241, %v1223
        %v1404 = vpack.c.b16 %v1242, %v1224
        %v1405 = vpack.c.b16 %v1243, %v1225
        %v1406 = vpack.c.b16 %v1244, %v1226
        %v1407 = vpack.c.b16 %v1245, %v1227
        %v1408 = vpack.c.b16 %v1246, %v1228
        %v1409 = vpack.c.b16 %v1247, %v1229
        %v1410 = vpack.c.b16 %v1248, %v1230
        %v1411 = vpack.c.b16 %v1249, %v1231
        %v1412 = vpack.c.b16 %v1250, %v1232
        %v1413 = vpack.c.b16 %v1251, %v1233
        %v1414 = vpack.c.b16 %v1252, %v1234
        %v1415 = vpack.c.b16 %v1253, %v1235
        %v1416 = vpack.c.b16 %v1272, %v1254
        %v1417 = vpack.c.b16 %v1273, %v1255
        %v1418 = vpack.c.b16 %v1274, %v1256
        %v1419 = vpack.c.b16 %v1275, %v1257
        %v1420 = vpack.c.b16 %v1276, %v1258
        %v1421 = vpack.c.b16 %v1277, %v1259
        %v1422 = vpack.c.b16 %v1278, %v1260
        %v1423 = vpack.c.b16 %v1279, %v1261
        %v1424 = vpack.c.b16 %v1280, %v1262
        %v1425 = vpack.c.b16 %v1281, %v1263
        %v1426 = vpack.c.b16 %v1282, %v1264
        %v1427 = vpack.c.b16 %v1283, %v1265
        %v1428 = vpack.c.b16 %v1284, %v1266
        %v1429 = vpack.c.b16 %v1285, %v1267
        %v1430 = vpack.c.b16 %v1286, %v1268
        %v1431 = vpack.c.b16 %v1287, %v1269
        %v1432 = vpack.c.b16 %v1288, %v1270
        %v1433 = vpack.c.b16 %v1289, %v1271
        %v1434 = vpack.c.b16 %v1308, %v1290
        %v1435 = vpack.c.b16 %v1309, %v1291
        %v1436 = vpack.c.b16 %v1310, %v1292
        %v1437 = vpack.c.b16 %v1311, %v1293
        %v1438 = vpack.c.b16 %v1312, %v1294
        %v1439 = vpack.c.b16 %v1313, %v1295
        %v1440 = vpack.c.b16 %v1314, %v1296
        %v1441 = vpack.c.b16 %v1315, %v1297
        %v1442 = vpack.c.b16 %v1316, %v1298
        %v1443 = vpack.c.b16 %v1317, %v1299
        %v1444 = vpack.c.b16 %v1318, %v1300
        %v1445 = vpack.c.b16 %v1319, %v1301
        %v1446 = vpack.c.b16 %v1320, %v1302
        %v1447 = vpack.c.b16 %v1321, %v1303
        %v1448 = vpack.c.b16 %v1322, %v1304
        %v1449 = vpack.c.b16 %v1323, %v1305
        %v1450 = vpack.c.b16 %v1324, %v1306
        %v1451 = vpack.c.b16 %v1325, %v1307
        %v1452 = vpack.c.b16 %v1344, %v1326
        %v1453 = vpack.c.b16 %v1345, %v1327
        %v1454 = vpack.c.b16 %v1346, %v1328
        %v1455 = vpack.c.b16 %v1347, %v1329
        %v1456 = vpack.c.b16 %v1348, %v1330
        %v1457 = vpack.c.b16 %v1349, %v1331
        %v1458 = vpack.c.b16 %v1350, %v1332
        %v1459 = vpack.c.b16 %v1351, %v1333
        %v1460 = vpack.c.b16 %v1352, %v1334
        %v1461 = vpack.c.b16 %v1353, %v1335
        %v1462 = vpack.c.b16 %v1354, %v1336
        %v1463 = vpack.c.b16 %v1355, %v1337
        %v1464 = vpack.c.b16 %v1356, %v1338
        %v1465 = vpack.c.b16 %v1357, %v1339
        %v1466 = vpack.c.b16 %v1358, %v1340
        %v1467 = vpack.c.b16 %v1359, %v1341
        %v1468 = vpack.c.b16 %v1360, %v1342
        %v1469 = vpack.c.b16 %v1361, %v1343
        %v1866 = vunpack.c.l.b16 %v750
        %v1867 = vunpack.c.h.b16 %v750
        %v1868 = vunpack.c.l.b16 %v751
        %v1869 = vunpack.c.h.b16 %v751
        %v1870 = vunpack.c.l.b16 %v752
        %v1871 = vunpack.c.h.b16 %v752
        %v1872 = vunpack.c.l.b16 %v753
        %v1873 = vunpack.c.h.b16 %v753
        %v1874 = vunpack.c.l.b16 %v754
        %v1875 = vunpack.c.h.b16 %v754
        %v1876 = vunpack.c.l.b16 %v755
        %v1877 = vunpack.c.h.b16 %v755
        %v1878 = vunpack.c.l.b16 %v756
        %v1879 = vunpack.c.h.b16 %v756
        %v1880 = vunpack.c.l.b16 %v757
        %v1881 = vunpack.c.h.b16 %v757
        %v1882 = vunpack.c.l.b16 %v758
        %v1883 = vunpack.c.h.b16 %v758
        %v1884 = vunpack.c.l.b16 %v759
        %v1885 = vunpack.c.h.b16 %v759
        %v1886 = vunpack.c.l.b16 %v760
        %v1887 = vunpack.c.h.b16 %v760
        %v1888 = vunpack.c.l.b16 %v761
        %v1889 = vunpack.c.h.b16 %v761
        %v1890 = vunpack.c.l.b16 %v762
        %v1891 = vunpack.c.h.b16 %v762
        %v1892 = vunpack.c.l.b16 %v763
        %v1893 = vunpack.c.h.b16 %v763
        %v1894 = vunpack.c.l.b16 %v764
        %v1895 = vunpack.c.h.b16 %v764
        %v1896 = vunpack.c.l.b16 %v765
        %v1897 = vunpack.c.h.b16 %v765
        %v1898 = vunpack.c.l.b16 %v766
        %v1899 = vunpack.c.h.b16 %v766
        %v1900 = vunpack.c.l.b16 %v767
        %v1901 = vunpack.c.h.b16 %v767
        %v1902 = vunpack.c.l.b16 %v768
        %v1903 = vunpack.c.h.b16 %v768
        %v1904 = vunpack.c.l.b16 %v769
        %v1905 = vunpack.c.h.b16 %v769
        %v1906 = vunpack.c.l.b16 %v770
        %v1907 = vunpack.c.h.b16 %v770
        %v1908 = vunpack.c.l.b16 %v771
        %v1909 = vunpack.c.h.b16 %v771
        %v1910 = vunpack.c.l.b16 %v772
        %v1911 = vunpack.c.h.b16 %v772
        %v1912 = vunpack.c.l.b16 %v773
        %v1913 = vunpack.c.h.b16 %v773
        %v1914 = vunpack.c.l.b16 %v774
        %v1915 = vunpack.c.h.b16 %v774
        %v1916 = vunpack.c.l.b16 %v775
        %v1917 = vunpack.c.h.b16 %v775
        %v1918 = vunpack.c.l.b16 %v776
        %v1919 = vunpack.c.h.b16 %v776
        %v1920 = vunpack.c.l.b16 %v777
        %v1921 = vunpack.c.h.b16 %v777
        %v1922 = vunpack.c.l.b16 %v778
        %v1923 = vunpack.c.h.b16 %v778
        %v1924 = vunpack.c.l.b16 %v779
        %v1925 = vunpack.c.h.b16 %v779
        %v1926 = vunpack.c.l.b16 %v780
        %v1927 = vunpack.c.h.b16 %v780
        %v1928 = vunpack.c.l.b16 %v781
        %v1929 = vunpack.c.h.b16 %v781
        %v1930 = vunpack.c.l.b16 %v782
        %v1931 = vunpack.c.h.b16 %v782
        %v1932 = vunpack.c.l.b16 %v783
        %v1933 = vunpack.c.h.b16 %v783
        %v1934 = vunpack.c.l.b16 %v784
        %v1935 = vunpack.c.h.b16 %v784
        %v1936 = vunpack.c.l.b16 %v785
        %v1937 = vunpack.c.h.b16 %v785
        %v1938 = vunpack.c.l.b16 %v786
        %v1939 = vunpack.c.h.b16 %v786
        %v1940 = vunpack.c.l.b16 %v787
        %v1941 = vunpack.c.h.b16 %v787
        %v1942 = vunpack.c.l.b16 %v788
        %v1943 = vunpack.c.h.b16 %v788
        %v1944 = vunpack.c.l.b16 %v789
        %v1945 = vunpack.c.h.b16 %v789
        %v1946 = vunpack.c.l.b16 %v790
        %v1947 = vunpack.c.h.b16 %v790
        %v1948 = vunpack.c.l.b16 %v791
        %v1949 = vunpack.c.h.b16 %v791
        %v1950 = vunpack.c.l.b16 %v792
        %v1951 = vunpack.c.h.b16 %v792
        %v1952 = vunpack.c.l.b16 %v793
        %v1953 = vunpack.c.h.b16 %v793
        %v1954 = vunpack.c.l.b16 %v794
        %v1955 = vunpack.c.h.b16 %v794
        %v1956 = vunpack.c.l.b16 %v795
        %v1957 = vunpack.c.h.b16 %v795
        %v1958 = vunpack.c.l.b16 %v796
        %v1959 = vunpack.c.h.b16 %v796
        %v1960 = vunpack.c.l.b16 %v797
        %v1961 = vunpack.c.h.b16 %v797
        %v1962 = vunpack.c.l.b16 %v798
        %v1963 = vunpack.c.h.b16 %v798
        %v1964 = vunpack.c.l.b16 %v799
        %v1965 = vunpack.c.h.b16 %v799
        %v1966 = vunpack.c.l.b16 %v800
        %v1967 = vunpack.c.h.b16 %v800
        %v1968 = vunpack.c.l.b16 %v801
        %v1969 = vunpack.c.h.b16 %v801
        %v1970 = vunpack.c.l.b16 %v802
        %v1971 = vunpack.c.h.b16 %v802
        %v1972 = vunpack.c.l.b16 %v803
        %v1973 = vunpack.c.h.b16 %v803
        %v1974 = vunpack.c.l.b16 %v804
        %v1975 = vunpack.c.h.b16 %v804
        %v1976 = vunpack.c.l.b16 %v805
        %v1977 = vunpack.c.h.b16 %v805
        %v1978 = vunpack.c.l.b16 %v806
        %v1979 = vunpack.c.h.b16 %v806
        %v1980 = vunpack.c.l.b16 %v807
        %v1981 = vunpack.c.h.b16 %v807
        %v1982 = vunpack.c.l.b16 %v808
        %v1983 = vunpack.c.h.b16 %v808
        %v1984 = vunpack.c.l.b16 %v809
        %v1985 = vunpack.c.h.b16 %v809
        %v1986 = vunpack.c.l.b16 %v810
        %v1987 = vunpack.c.h.b16 %v810
        %v1988 = vunpack.c.l.b16 %v811
        %v1989 = vunpack.c.h.b16 %v811
        %v1990 = vunpack.c.l.b16 %v812
        %v1991 = vunpack.c.h.b16 %v812
        %v1992 = vunpack.c.l.b16 %v813
        %v1993 = vunpack.c.h.b16 %v813
        %v1994 = vunpack.c.l.b16 %v814
        %v1995 = vunpack.c.h.b16 %v814
        %v1996 = vunpack.c.l.b16 %v815
        %v1997 = vunpack.c.h.b16 %v815
        %v1998 = vunpack.c.l.b16 %v816
        %v1999 = vunpack.c.h.b16 %v816
        %v2000 = vunpack.c.l.b16 %v817
        %v2001 = vunpack.c.h.b16 %v817
        %v2002 = vunpack.c.l.b16 %v818
        %v2003 = vunpack.c.h.b16 %v818
        %v2004 = vunpack.c.l.b16 %v819
        %v2005 = vunpack.c.h.b16 %v819
        %v2006 = vunpack.c.l.b16 %v820
        %v2007 = vunpack.c.h.b16 %v820
        %v2008 = vunpack.c.l.b16 %v821
        %v2009 = vunpack.c.h.b16 %v821
        %v2010 = vunpack.c.l.b16 %v822
        %v2011 = vunpack.c.h.b16 %v822
        %v2012 = vunpack.c.l.b16 %v823
        %v2013 = vunpack.c.h.b16 %v823
        %v2014 = vunpack.c.l.b16 %v824
        %v2015 = vunpack.c.h.b16 %v824
        %v2016 = vunpack.c.l.b16 %v825
        %v2017 = vunpack.c.h.b16 %v825
        %v2018 = vunpack.c.l.b16 %v826
        %v2019 = vunpack.c.h.b16 %v826
        %v2020 = vunpack.c.l.b16 %v827
        %v2021 = vunpack.c.h.b16 %v827
        %v2022 = vunpack.c.l.b16 %v828
        %v2023 = vunpack.c.h.b16 %v828
        %v2024 = vunpack.c.l.b16 %v829
        %v2025 = vunpack.c.h.b16 %v829
        %v2026 = vunpack.c.l.b16 %v830
        %v2027 = vunpack.c.h.b16 %v830
        %v2028 = vunpack.c.l.b16 %v831
        %v2029 = vunpack.c.h.b16 %v831
        %v2030 = vunpack.c.l.b16 %v832
        %v2031 = vunpack.c.h.b16 %v832
        %v2032 = vunpack.c.l.b16 %v833
        %v2033 = vunpack.c.h.b16 %v833
        %v2034 = vunpack.c.l.b16 %v834
        %v2035 = vunpack.c.h.b16 %v834
        %v2036 = vunpack.c.l.b16 %v835
        %v2037 = vunpack.c.h.b16 %v835
        %v2038 = vunpack.c.l.b16 %v836
        %v2039 = vunpack.c.h.b16 %v836
        %v2040 = vunpack.c.l.b16 %v837
        %v2041 = vunpack.c.h.b16 %v837
        %v2042 = vunpack.c.l.b16 %v838
        %v2043 = vunpack.c.h.b16 %v838
        %v2044 = vunpack.c.l.b16 %v839
        %v2045 = vunpack.c.h.b16 %v839
        %v2046 = vunpack.c.l.b16 %v840
        %v2047 = vunpack.c.h.b16 %v840
        %v2048 = vunpack.c.l.b16 %v841
        %v2049 = vunpack.c.h.b16 %v841
        %v2050 = vunpack.c.l.b16 %v842
        %v2051 = vunpack.c.h.b16 %v842
        %v2052 = vunpack.c.l.b16 %v843
        %v2053 = vunpack.c.h.b16 %v843
        %v2054 = vunpack.c.l.b16 %v844
        %v2055 = vunpack.c.h.b16 %v844
        %v2056 = vunpack.c.l.b16 %v845
        %v2057 = vunpack.c.h.b16 %v845
        %v2058 = vunpack.c.l.b16 %v846
        %v2059 = vunpack.c.h.b16 %v846
        %v2060 = vunpack.c.l.b16 %v847
        %v2061 = vunpack.c.h.b16 %v847
        %v2062 = vunpack.c.l.b16 %v848
        %v2063 = vunpack.c.h.b16 %v848
        %v2064 = vunpack.c.l.b16 %v849
        %v2065 = vunpack.c.h.b16 %v849
        %v2066 = vunpack.c.l.b16 %v850
        %v2067 = vunpack.c.h.b16 %v850
        %v2068 = vunpack.c.l.b16 %v851
        %v2069 = vunpack.c.h.b16 %v851
        %v2070 = vunpack.c.l.b16 %v852
        %v2071 = vunpack.c.h.b16 %v852
        %v2072 = vunpack.c.l.b16 %v853
        %v2073 = vunpack.c.h.b16 %v853
        %v2074 = vunpack.c.l.b16 %v854
        %v2075 = vunpack.c.h.b16 %v854
        %v2076 = vunpack.c.l.b16 %v855
        %v2077 = vunpack.c.h.b16 %v855
        %v2078 = vunpack.c.l.b16 %v856
        %v2079 = vunpack.c.h.b16 %v856
        %v2080 = vunpack.c.l.b16 %v857
        %v2081 = vunpack.c.h.b16 %v857
        %v2082 = vunpack.c.l.b16 %v858
        %v2083 = vunpack.c.h.b16 %v858
        %v2084 = vunpack.c.l.b16 %v859
        %v2085 = vunpack.c.h.b16 %v859
        %v2086 = vunpack.c.l.b16 %v860
        %v2087 = vunpack.c.h.b16 %v860
        %v2088 = vunpack.c.l.b16 %v861
        %v2089 = vunpack.c.h.b16 %v861
        %v2090 = vunpack.c.l.b16 %v862
        %v2091 = vunpack.c.h.b16 %v862
        %v2092 = vunpack.c.l.b16 %v863
        %v2093 = vunpack.c.h.b16 %v863
        %v2094 = vunpack.c.l.b16 %v864
        %v2095 = vunpack.c.h.b16 %v864
        %v2096 = vunpack.c.l.b16 %v865
        %v2097 = vunpack.c.h.b16 %v865
        %v2098 = vunpack.c.l.b16 %v866
        %v2099 = vunpack.c.h.b16 %v866
        %v2100 = vunpack.c.l.b16 %v867
        %v2101 = vunpack.c.h.b16 %v867
        %v2102 = vunpack.c.l.b16 %v868
        %v2103 = vunpack.c.h.b16 %v868
        %v2104 = vunpack.c.l.b16 %v869
        %v2105 = vunpack.c.h.b16 %v869
        %v2106 = vunpack.c.l.b16 %v870
        %v2107 = vunpack.c.h.b16 %v870
        %v2108 = vunpack.c.l.b16 %v871
        %v2109 = vunpack.c.h.b16 %v871
        %v2110 = vunpack.c.l.b16 %v872
        %v2111 = vunpack.c.h.b16 %v872
        %v2112 = vunpack.c.l.b16 %v873
        %v2113 = vunpack.c.h.b16 %v873
        %v2114 = vunpack.c.l.b16 %v874
        %v2115 = vunpack.c.h.b16 %v874
        %v2116 = vunpack.c.l.b16 %v875
        %v2117 = vunpack.c.h.b16 %v875
        %v2118 = vunpack.c.l.b16 %v876
        %v2119 = vunpack.c.h.b16 %v876
        %v2120 = vunpack.c.l.b16 %v877
        %v2121 = vunpack.c.h.b16 %v877
        %v2122 = vunpack.c.l.b16 %v878
        %v2123 = vunpack.c.h.b16 %v878
        %v2124 = vunpack.c.l.b16 %v879
        %v2125 = vunpack.c.h.b16 %v879
        %v2126 = vunpack.c.l.b16 %v880
        %v2127 = vunpack.c.h.b16 %v880
        %v2128 = vunpack.c.l.b16 %v881
        %v2129 = vunpack.c.h.b16 %v881
        %v2130 = vunpack.c.l.b16 %v882
        %v2131 = vunpack.c.h.b16 %v882
        %v2132 = vunpack.c.l.b16 %v883
        %v2133 = vunpack.c.h.b16 %v883
        %v2134 = vunpack.c.l.b16 %v884
        %v2135 = vunpack.c.h.b16 %v884
        %v2136 = vunpack.c.l.b16 %v885
        %v2137 = vunpack.c.h.b16 %v885
        %v2138 = vunpack.c.l.b16 %v886
        %v2139 = vunpack.c.h.b16 %v886
        %v2140 = vunpack.c.l.b16 %v887
        %v2141 = vunpack.c.h.b16 %v887
        %v2142 = vunpack.c.l.b16 %v888
        %v2143 = vunpack.c.h.b16 %v888
        %v2144 = vunpack.c.l.b16 %v889
        %v2145 = vunpack.c.h.b16 %v889
        %v2146 = vunpack.c.l.b16 %v890
        %v2147 = vunpack.c.h.b16 %v890
        %v2148 = vunpack.c.l.b16 %v891
        %v2149 = vunpack.c.h.b16 %v891
        %v2150 = vunpack.c.l.b16 %v892
        %v2151 = vunpack.c.h.b16 %v892
        %v2152 = vunpack.c.l.b16 %v893
        %v2153 = vunpack.c.h.b16 %v893
        %v2154 = vunpack.c.l.b16 %v894
        %v2155 = vunpack.c.h.b16 %v894
        %v2156 = vunpack.c.l.b16 %v895
        %v2157 = vunpack.c.h.b16 %v895
        %v2158 = vunpack.c.l.b16 %v896
        %v2159 = vunpack.c.h.b16 %v896
        %v2160 = vunpack.c.l.b16 %v897
        %v2161 = vunpack.c.h.b16 %v897
        %v2162 = vunpack.c.l.b16 %v898
        %v2163 = vunpack.c.h.b16 %v898
        %v2164 = vunpack.c.l.b16 %v899
        %v2165 = vunpack.c.h.b16 %v899
        %v2166 = vunpack.c.l.b16 %v900
        %v2167 = vunpack.c.h.b16 %v900
        %v2168 = vunpack.c.l.b16 %v901
        %v2169 = vunpack.c.h.b16 %v901
        %v2170 = vunpack.c.l.b16 %v902
        %v2171 = vunpack.c.h.b16 %v902
        %v2172 = vunpack.c.l.b16 %v903
        %v2173 = vunpack.c.h.b16 %v903
        %v2174 = vunpack.c.l.b16 %v904
        %v2175 = vunpack.c.h.b16 %v904
        %v2176 = vunpack.c.l.b16 %v905
        %v2177 = vunpack.c.h.b16 %v905
        %v2178 = vunpack.c.l.b16 %v906
        %v2179 = vunpack.c.h.b16 %v906
        %v2180 = vunpack.c.l.b16 %v907
        %v2181 = vunpack.c.h.b16 %v907
        %v2182 = vunpack.c.l.b16 %v908
        %v2183 = vunpack.c.h.b16 %v908
        %v2184 = vunpack.c.l.b16 %v909
        %v2185 = vunpack.c.h.b16 %v909
        %v2186 = vunpack.c.l.b16 %v910
        %v2187 = vunpack.c.h.b16 %v910
        %v2188 = vunpack.c.l.b16 %v911
        %v2189 = vunpack.c.h.b16 %v911
        %v2190 = vunpack.c.l.b16 %v912
        %v2191 = vunpack.c.h.b16 %v912
        %v2192 = vunpack.c.l.b16 %v913
        %v2193 = vunpack.c.h.b16 %v913
        %v2194 = vunpack.c.l.b16 %v914
        %v2195 = vunpack.c.h.b16 %v914
        %v2196 = vunpack.c.l.b16 %v915
        %v2197 = vunpack.c.h.b16 %v915
        %v2198 = vunpack.c.l.b16 %v916
        %v2199 = vunpack.c.h.b16 %v916
        %v2200 = vunpack.c.l.b16 %v917
        %v2201 = vunpack.c.h.b16 %v917
        %v2202 = vunpack.c.l.b16 %v918
        %v2203 = vunpack.c.h.b16 %v918
        %v2204 = vunpack.c.l.b16 %v919
        %v2205 = vunpack.c.h.b16 %v919
        %v2206 = vunpack.c.l.b16 %v920
        %v2207 = vunpack.c.h.b16 %v920
        %v2208 = vunpack.c.l.b16 %v921
        %v2209 = vunpack.c.h.b16 %v921
        %v2210 = vunpack.c.l.b16 %v922
        %v2211 = vunpack.c.h.b16 %v922
        %v2212 = vunpack.c.l.b16 %v923
        %v2213 = vunpack.c.h.b16 %v923
        %v2214 = vunpack.c.l.b16 %v924
        %v2215 = vunpack.c.h.b16 %v924
        %v2216 = vunpack.c.l.b16 %v925
        %v2217 = vunpack.c.h.b16 %v925
        %v2218 = vunpack.c.l.b16 %v926
        %v2219 = vunpack.c.h.b16 %v926
        %v2220 = vunpack.c.l.b16 %v927
        %v2221 = vunpack.c.h.b16 %v927
        %v2222 = vunpack.c.l.b16 %v928
        %v2223 = vunpack.c.h.b16 %v928
        %v2224 = vunpack.c.l.b16 %v929
        %v2225 = vunpack.c.h.b16 %v929
        %v2226 = vunpack.c.l.b16 %v930
        %v2227 = vunpack.c.h.b16 %v930
        %v2228 = vunpack.c.l.b16 %v931
        %v2229 = vunpack.c.h.b16 %v931
        %v2230 = vunpack.c.l.b16 %v932
        %v2231 = vunpack.c.h.b16 %v932
        %v2232 = vunpack.c.l.b16 %v933
        %v2233 = vunpack.c.h.b16 %v933
        %v2234 = vunpack.c.l.b16 %v934
        %v2235 = vunpack.c.h.b16 %v934
        %v2236 = vunpack.c.l.b16 %v935
        %v2237 = vunpack.c.h.b16 %v935
        %v2238 = vunpack.c.l.b16 %v936
        %v2239 = vunpack.c.h.b16 %v936
        %v2240 = vunpack.c.l.b16 %v937
        %v2241 = vunpack.c.h.b16 %v937
        %v2242 = vunpack.c.l.b16 %v938
        %v2243 = vunpack.c.h.b16 %v938
        %v2244 = vunpack.c.l.b16 %v939
        %v2245 = vunpack.c.h.b16 %v939
        %v2246 = vunpack.c.l.b16 %v940
        %v2247 = vunpack.c.h.b16 %v940
        %v2248 = vunpack.c.l.b16 %v941
        %v2249 = vunpack.c.h.b16 %v941
        %v2250 = vunpack.c.l.b16 %v942
        %v2251 = vunpack.c.h.b16 %v942
        %v2252 = vunpack.c.l.b16 %v943
        %v2253 = vunpack.c.h.b16 %v943
        %v2254 = vunpack.c.l.b16 %v944
        %v2255 = vunpack.c.h.b16 %v944
        %v2256 = vunpack.c.l.b16 %v945
        %v2257 = vunpack.c.h.b16 %v945
        %v2258 = vunpack.c.l.b16 %v946
        %v2259 = vunpack.c.h.b16 %v946
        %v2260 = vunpack.c.l.b16 %v947
        %v2261 = vunpack.c.h.b16 %v947
        %v2262 = vunpack.c.l.b16 %v948
        %v2263 = vunpack.c.h.b16 %v948
        %v2264 = vunpack.c.l.b16 %v949
        %v2265 = vunpack.c.h.b16 %v949
        %v2266 = vunpack.c.l.b16 %v950
        %v2267 = vunpack.c.h.b16 %v950
        %v2268 = vunpack.c.l.b16 %v951
        %v2269 = vunpack.c.h.b16 %v951
        %v2270 = vunpack.c.l.b16 %v952
        %v2271 = vunpack.c.h.b16 %v952
        %v2272 = vunpack.c.l.b16 %v953
        %v2273 = vunpack.c.h.b16 %v953
        %v2274 = vunpack.c.l.b16 %v954
        %v2275 = vunpack.c.h.b16 %v954
        %v2276 = vunpack.c.l.b16 %v955
        %v2277 = vunpack.c.h.b16 %v955
        %v2278 = vunpack.c.l.b16 %v956
        %v2279 = vunpack.c.h.b16 %v956
        %v2280 = vunpack.c.l.b16 %v957
        %v2281 = vunpack.c.h.b16 %v957
        %v2282 = vunpack.c.l.b16 %v958
        %v2283 = vunpack.c.h.b16 %v958
        %v2284 = vunpack.c.l.b16 %v959
        %v2285 = vunpack.c.h.b16 %v959
        %v2286 = vunpack.c.l.b16 %v960
        %v2287 = vunpack.c.h.b16 %v960
        %v2288 = vunpack.c.l.b16 %v961
        %v2289 = vunpack.c.h.b16 %v961
        %v2290 = vunpack.c.l.b16 %v962
        %v2291 = vunpack.c.h.b16 %v962
        %v2292 = vunpack.c.l.b16 %v963
        %v2293 = vunpack.c.h.b16 %v963
        %v2294 = vunpack.c.l.b16 %v964
        %v2295 = vunpack.c.h.b16 %v964
        %v2296 = vunpack.c.l.b16 %v965
        %v2297 = vunpack.c.h.b16 %v965
        %v2298 = vunpack.c.l.b16 %v966
        %v2299 = vunpack.c.h.b16 %v966
        %v2300 = vunpack.c.l.b16 %v967
        %v2301 = vunpack.c.h.b16 %v967
        %v2302 = vunpack.c.l.b16 %v968
        %v2303 = vunpack.c.h.b16 %v968
        %v2304 = vunpack.c.l.b16 %v969
        %v2305 = vunpack.c.h.b16 %v969
        %v2306 = vunpack.c.l.b16 %v970
        %v2307 = vunpack.c.h.b16 %v970
        %v2308 = vunpack.c.l.b16 %v971
        %v2309 = vunpack.c.h.b16 %v971
        %v2310 = vunpack.c.l.b16 %v972
        %v2311 = vunpack.c.h.b16 %v972
        %v2312 = vunpack.c.l.b16 %v973
        %v2313 = vunpack.c.h.b16 %v973
        %v2314 = vunpack.c.l.b16 %v974
        %v2315 = vunpack.c.h.b16 %v974
        %v2316 = vunpack.c.l.b16 %v975
        %v2317 = vunpack.c.h.b16 %v975
        %v2318 = vunpack.c.l.b16 %v976
        %v2319 = vunpack.c.h.b16 %v976
        %v2320 = vunpack.c.l.b16 %v977
        %v2321 = vunpack.c.h.b16 %v977
        %v2322 = vunpack.c.l.b16 %v978
        %v2323 = vunpack.c.h.b16 %v978
        %v2324 = vunpack.c.l.b16 %v979
        %v2325 = vunpack.c.h.b16 %v979
        %v2326 = vunpack.c.l.b16 %v980
        %v2327 = vunpack.c.h.b16 %v980
        %v2328 = vunpack.c.l.b16 %v981
        %v2329 = vunpack.c.h.b16 %v981
        %v2330 = vunpack.c.l.b16 %v982
        %v2331 = vunpack.c.h.b16 %v982
        %v2332 = vunpack.c.l.b16 %v983
        %v2333 = vunpack.c.h.b16 %v983
        %v2334 = vunpack.c.l.b16 %v984
        %v2335 = vunpack.c.h.b16 %v984
        %v2336 = vunpack.c.l.b16 %v985
        %v2337 = vunpack.c.h.b16 %v985
        %v2338 = vunpack.c.l.b16 %v986
        %v2339 = vunpack.c.h.b16 %v986
        %v2340 = vunpack.c.l.b16 %v987
        %v2341 = vunpack.c.h.b16 %v987
        %v2342 = vunpack.c.l.b16 %v988
        %v2343 = vunpack.c.h.b16 %v988
        %v2344 = vunpack.c.l.b16 %v989
        %v2345 = vunpack.c.h.b16 %v989
        %v2346 = vunpack.c.l.b16 %v990
        %v2347 = vunpack.c.h.b16 %v990
        %v2348 = vunpack.c.l.b16 %v991
        %v2349 = vunpack.c.h.b16 %v991
        %v2350 = vunpack.c.l.b16 %v992
        %v2351 = vunpack.c.h.b16 %v992
        %v2352 = vunpack.c.l.b16 %v993
        %v2353 = vunpack.c.h.b16 %v993
        %v2354 = vunpack.c.l.b16 %v994
        %v2355 = vunpack.c.h.b16 %v994
        %v2356 = vunpack.c.l.b16 %v995
        %v2357 = vunpack.c.h.b16 %v995
        %v2358 = vunpack.c.l.b16 %v996
        %v2359 = vunpack.c.h.b16 %v996
        %v2360 = vunpack.c.l.b16 %v997
        %v2361 = vunpack.c.h.b16 %v997
        %v2362 = vunpack.c.l.b16 %v998
        %v2363 = vunpack.c.h.b16 %v998
        %v2364 = vunpack.c.l.b16 %v999
        %v2365 = vunpack.c.h.b16 %v999
        %v2366 = vunpack.c.l.b16 %v1000
        %v2367 = vunpack.c.h.b16 %v1000
        %v2368 = vunpack.c.l.b16 %v1001
        %v2369 = vunpack.c.h.b16 %v1001
        %v2370 = vunpack.c.l.b16 %v1002
        %v2371 = vunpack.c.h.b16 %v1002
        %v2372 = vunpack.c.l.b16 %v1003
        %v2373 = vunpack.c.h.b16 %v1003
        %v2374 = vunpack.c.l.b16 %v1004
        %v2375 = vunpack.c.h.b16 %v1004
        %v2376 = vunpack.c.l.b16 %v1005
        %v2377 = vunpack.c.h.b16 %v1005
        %v2378 = vunpack.c.l.b16 %v1006
        %v2379 = vunpack.c.h.b16 %v1006
        %v2380 = vunpack.c.l.b16 %v1007
        %v2381 = vunpack.c.h.b16 %v1007
        %v2382 = vunpack.c.l.b16 %v1008
        %v2383 = vunpack.c.h.b16 %v1008
        %v2384 = vunpack.c.l.b16 %v1009
        %v2385 = vunpack.c.h.b16 %v1009
        %v2386 = vunpack.c.l.b16 %v1010
        %v2387 = vunpack.c.h.b16 %v1010
        %v2388 = vunpack.c.l.b16 %v1011
        %v2389 = vunpack.c.h.b16 %v1011
        %v2390 = vunpack.c.l.b16 %v1012
        %v2391 = vunpack.c.h.b16 %v1012
        %v2392 = vunpack.c.l.b16 %v1013
        %v2393 = vunpack.c.h.b16 %v1013
        %v2394 = vunpack.c.l.b16 %v1014
        %v2395 = vunpack.c.h.b16 %v1014
        %v2396 = vunpack.c.l.b16 %v1015
        %v2397 = vunpack.c.h.b16 %v1015
        %v2398 = vunpack.c.l.b16 %v1016
        %v2399 = vunpack.c.h.b16 %v1016
        %v2400 = vunpack.c.l.b16 %v1017
        %v2401 = vunpack.c.h.b16 %v1017
        %v2402 = vunpack.c.l.b16 %v1018
        %v2403 = vunpack.c.h.b16 %v1018
        %v2404 = vunpack.c.l.b16 %v1019
        %v2405 = vunpack.c.h.b16 %v1019
        %v2406 = vunpack.c.l.b16 %v1020
        %v2407 = vunpack.c.h.b16 %v1020
        %v2408 = vunpack.c.l.b16 %v1021
        %v2409 = vunpack.c.h.b16 %v1021
        %v2410 = vunpack.c.l.b16 %v1022
        %v2411 = vunpack.c.h.b16 %v1022
        %v2412 = vunpack.c.l.b16 %v1023
        %v2413 = vunpack.c.h.b16 %v1023
        %v2414 = vunpack.c.l.b16 %v1024
        %v2415 = vunpack.c.h.b16 %v1024
        %v2416 = vunpack.c.l.b16 %v1025
        %v2417 = vunpack.c.h.b16 %v1025
        %v2418 = vunpack.c.l.b16 %v1026
        %v2419 = vunpack.c.h.b16 %v1026
        %v2420 = vunpack.c.l.b16 %v1027
        %v2421 = vunpack.c.h.b16 %v1027
        %v2422 = vunpack.c.l.b16 %v1028
        %v2423 = vunpack.c.h.b16 %v1028
        %v2424 = vunpack.c.l.b16 %v1029
        %v2425 = vunpack.c.h.b16 %v1029
        %v2426 = vunpack.c.l.b16 %v1030
        %v2427 = vunpack.c.h.b16 %v1030
        %v2428 = vunpack.c.l.b16 %v1031
        %v2429 = vunpack.c.h.b16 %v1031
        %v2430 = vunpack.c.l.b16 %v1032
        %v2431 = vunpack.c.h.b16 %v1032
        %v2432 = vunpack.c.l.b16 %v1033
        %v2433 = vunpack.c.h.b16 %v1033
        %v2434 = vunpack.c.l.b16 %v1034
        %v2435 = vunpack.c.h.b16 %v1034
        %v2436 = vunpack.c.l.b16 %v1035
        %v2437 = vunpack.c.h.b16 %v1035
        %v2438 = vunpack.c.l.b16 %v1036
        %v2439 = vunpack.c.h.b16 %v1036
        %v2440 = vunpack.c.l.b16 %v1037
        %v2441 = vunpack.c.h.b16 %v1037
        %v2442 = vpack.c.b16 %v1868, %v1866
        %v2443 = vpack.c.b16 %v1869, %v1867
        %v2444 = vpack.c.b16 %v1872, %v1870
        %v2445 = vpack.c.b16 %v1873, %v1871
        %v2446 = vpack.c.b16 %v1876, %v1874
        %v2447 = vpack.c.b16 %v1877, %v1875
        %v2448 = vpack.c.b16 %v1880, %v1878
        %v2449 = vpack.c.b16 %v1881, %v1879
        %v2450 = vpack.c.b16 %v1884, %v1882
        %v2451 = vpack.c.b16 %v1885, %v1883
        %v2452 = vpack.c.b16 %v1888, %v1886
        %v2453 = vpack.c.b16 %v1889, %v1887
        %v2454 = vpack.c.b16 %v1892, %v1890
        %v2455 = vpack.c.b16 %v1893, %v1891
        %v2456 = vpack.c.b16 %v1896, %v1894
        %v2457 = vpack.c.b16 %v1897, %v1895
        %v2458 = vpack.c.b16 %v1900, %v1898
        %v2459 = vpack.c.b16 %v1901, %v1899
        %v2460 = vpack.c.b16 %v1904, %v1902
        %v2461 = vpack.c.b16 %v1905, %v1903
        %v2462 = vpack.c.b16 %v1908, %v1906
        %v2463 = vpack.c.b16 %v1909, %v1907
        %v2464 = vpack.c.b16 %v1912, %v1910
        %v2465 = vpack.c.b16 %v1913, %v1911
        %v2466 = vpack.c.b16 %v1916, %v1914
        %v2467 = vpack.c.b16 %v1917, %v1915
        %v2468 = vpack.c.b16 %v1920, %v1918
        %v2469 = vpack.c.b16 %v1921, %v1919
        %v2470 = vpack.c.b16 %v1924, %v1922
        %v2471 = vpack.c.b16 %v1925, %v1923
        %v2472 = vpack.c.b16 %v1928, %v1926
        %v2473 = vpack.c.b16 %v1929, %v1927
        %v2474 = vpack.c.b16 %v1932, %v1930
        %v2475 = vpack.c.b16 %v1933, %v1931
        %v2476 = vpack.c.b16 %v1936, %v1934
        %v2477 = vpack.c.b16 %v1937, %v1935
        %v2478 = vpack.c.b16 %v1940, %v1938
        %v2479 = vpack.c.b16 %v1941, %v1939
        %v2480 = vpack.c.b16 %v1944, %v1942
        %v2481 = vpack.c.b16 %v1945, %v1943
        %v2482 = vpack.c.b16 %v1948, %v1946
        %v2483 = vpack.c.b16 %v1949, %v1947
        %v2484 = vpack.c.b16 %v1952, %v1950
        %v2485 = vpack.c.b16 %v1953, %v1951
        %v2486 = vpack.c.b16 %v1956, %v1954
        %v2487 = vpack.c.b16 %v1957, %v1955
        %v2488 = vpack.c.b16 %v1960, %v1958
        %v2489 = vpack.c.b16 %v1961, %v1959
        %v2490 = vpack.c.b16 %v1964, %v1962
        %v2491 = vpack.c.b16 %v1965, %v1963
        %v2492 = vpack.c.b16 %v1968, %v1966
        %v2493 = vpack.c.b16 %v1969, %v1967
        %v2494 = vpack.c.b16 %v1972, %v1970
        %v2495 = vpack.c.b16 %v1973, %v1971
        %v2496 = vpack.c.b16 %v1976, %v1974
        %v2497 = vpack.c.b16 %v1977, %v1975
        %v2498 = vpack.c.b16 %v1980, %v1978
        %v2499 = vpack.c.b16 %v1981, %v1979
        %v2500 = vpack.c.b16 %v1984, %v1982
        %v2501 = vpack.c.b16 %v1985, %v1983
        %v2502 = vpack.c.b16 %v1988, %v1986
        %v2503 = vpack.c.b16 %v1989, %v1987
        %v2504 = vpack.c.b16 %v1992, %v1990
        %v2505 = vpack.c.b16 %v1993, %v1991
        %v2506 = vpack.c.b16 %v1996, %v1994
        %v2507 = vpack.c.b16 %v1997, %v1995
        %v2508 = vpack.c.b16 %v2000, %v1998
        %v2509 = vpack.c.b16 %v2001, %v1999
        %v2510 = vpack.c.b16 %v2004, %v2002
        %v2511 = vpack.c.b16 %v2005, %v2003
        %v2512 = vpack.c.b16 %v2008, %v2006
        %v2513 = vpack.c.b16 %v2009, %v2007
        %v2514 = vpack.c.b16 %v2012, %v2010
        %v2515 = vpack.c.b16 %v2013, %v2011
        %v2516 = vpack.c.b16 %v2016, %v2014
        %v2517 = vpack.c.b16 %v2017, %v2015
        %v2518 = vpack.c.b16 %v2020, %v2018
        %v2519 = vpack.c.b16 %v2021, %v2019
        %v2520 = vpack.c.b16 %v2024, %v2022
        %v2521 = vpack.c.b16 %v2025, %v2023
        %v2522 = vpack.c.b16 %v2028, %v2026
        %v2523 = vpack.c.b16 %v2029, %v2027
        %v2524 = vpack.c.b16 %v2032, %v2030
        %v2525 = vpack.c.b16 %v2033, %v2031
        %v2526 = vpack.c.b16 %v2036, %v2034
        %v2527 = vpack.c.b16 %v2037, %v2035
        %v2528 = vpack.c.b16 %v2040, %v2038
        %v2529 = vpack.c.b16 %v2041, %v2039
        %v2530 = vpack.c.b16 %v2044, %v2042
        %v2531 = vpack.c.b16 %v2045, %v2043
        %v2532 = vpack.c.b16 %v2048, %v2046
        %v2533 = vpack.c.b16 %v2049, %v2047
        %v2534 = vpack.c.b16 %v2052, %v2050
        %v2535 = vpack.c.b16 %v2053, %v2051
        %v2536 = vpack.c.b16 %v2056, %v2054
        %v2537 = vpack.c.b16 %v2057, %v2055
        %v2538 = vpack.c.b16 %v2060, %v2058
        %v2539 = vpack.c.b16 %v2061, %v2059
        %v2540 = vpack.c.b16 %v2064, %v2062
        %v2541 = vpack.c.b16 %v2065, %v2063
        %v2542 = vpack.c.b16 %v2068, %v2066
        %v2543 = vpack.c.b16 %v2069, %v2067
        %v2544 = vpack.c.b16 %v2072, %v2070
        %v2545 = vpack.c.b16 %v2073, %v2071
        %v2546 = vpack.c.b16 %v2076, %v2074
        %v2547 = vpack.c.b16 %v2077, %v2075
        %v2548 = vpack.c.b16 %v2080, %v2078
        %v2549 = vpack.c.b16 %v2081, %v2079
        %v2550 = vpack.c.b16 %v2084, %v2082
        %v2551 = vpack.c.b16 %v2085, %v2083
        %v2552 = vpack.c.b16 %v2088, %v2086
        %v2553 = vpack.c.b16 %v2089, %v2087
        %v2554 = vpack.c.b16 %v2092, %v2090
        %v2555 = vpack.c.b16 %v2093, %v2091
        %v2556 = vpack.c.b16 %v2096, %v2094
        %v2557 = vpack.c.b16 %v2097, %v2095
        %v2558 = vpack.c.b16 %v2100, %v2098
        %v2559 = vpack.c.b16 %v2101, %v2099
        %v2560 = vpack.c.b16 %v2104, %v2102
        %v2561 = vpack.c.b16 %v2105, %v2103
        %v2562 = vpack.c.b16 %v2108, %v2106
        %v2563 = vpack.c.b16 %v2109, %v2107
        %v2564 = vpack.c.b16 %v2112, %v2110
        %v2565 = vpack.c.b16 %v2113, %v2111
        %v2566 = vpack.c.b16 %v2116, %v2114
        %v2567 = vpack.c.b16 %v2117, %v2115
        %v2568 = vpack.c.b16 %v2120, %v2118
        %v2569 = vpack.c.b16 %v2121, %v2119
        %v2570 = vpack.c.b16 %v2124, %v2122
        %v2571 = vpack.c.b16 %v2125, %v2123
        %v2572 = vpack.c.b16 %v2128, %v2126
        %v2573 = vpack.c.b16 %v2129, %v2127
        %v2574 = vpack.c.b16 %v2132, %v2130
        %v2575 = vpack.c.b16 %v2133, %v2131
        %v2576 = vpack.c.b16 %v2136, %v2134
        %v2577 = vpack.c.b16 %v2137, %v2135
        %v2578 = vpack.c.b16 %v2140, %v2138
        %v2579 = vpack.c.b16 %v2141, %v2139
        %v2580 = vpack.c.b16 %v2144, %v2142
        %v2581 = vpack.c.b16 %v2145, %v2143
        %v2582 = vpack.c.b16 %v2148, %v2146
        %v2583 = vpack.c.b16 %v2149, %v2147
        %v2584 = vpack.c.b16 %v2152, %v2150
        %v2585 = vpack.c.b16 %v2153, %v2151
        %v2586 = vpack.c.b16 %v2156, %v2154
        %v2587 = vpack.c.b16 %v2157, %v2155
        %v2588 = vpack.c.b16 %v2160, %v2158
        %v2589 = vpack.c.b16 %v2161, %v2159
        %v2590 = vpack.c.b16 %v2164, %v2162
        %v2591 = vpack.c.b16 %v2165, %v2163
        %v2592 = vpack.c.b16 %v2168, %v2166
        %v2593 = vpack.c.b16 %v2169, %v2167
        %v2594 = vpack.c.b16 %v2172, %v2170
        %v2595 = vpack.c.b16 %v2173, %v2171
        %v2596 = vpack.c.b16 %v2176, %v2174
        %v2597 = vpack.c.b16 %v2177, %v2175
        %v2598 = vpack.c.b16 %v2180, %v2178
        %v2599 = vpack.c.b16 %v2181, %v2179
        %v2600 = vpack.c.b16 %v2184, %v2182
        %v2601 = vpack.c.b16 %v2185, %v2183
        %v2602 = vpack.c.b16 %v2188, %v2186
        %v2603 = vpack.c.b16 %v2189, %v2187
        %v2604 = vpack.c.b16 %v2192, %v2190
        %v2605 = vpack.c.b16 %v2193, %v2191
        %v2606 = vpack.c.b16 %v2196, %v2194
        %v2607 = vpack.c.b16 %v2197, %v2195
        %v2608 = vpack.c.b16 %v2200, %v2198
        %v2609 = vpack.c.b16 %v2201, %v2199
        %v2610 = vpack.c.b16 %v2204, %v2202
        %v2611 = vpack.c.b16 %v2205, %v2203
        %v2612 = vpack.c.b16 %v2208, %v2206
        %v2613 = vpack.c.b16 %v2209, %v2207
        %v2614 = vpack.c.b16 %v2212, %v2210
        %v2615 = vpack.c.b16 %v2213, %v2211
        %v2616 = vpack.c.b16 %v2216, %v2214
        %v2617 = vpack.c.b16 %v2217, %v2215
        %v2618 = vpack.c.b16 %v2220, %v2218
        %v2619 = vpack.c.b16 %v2221, %v2219
        %v2620 = vpack.c.b16 %v2224, %v2222
        %v2621 = vpack.c.b16 %v2225, %v2223
        %v2622 = vpack.c.b16 %v2228, %v2226
        %v2623 = vpack.c.b16 %v2229, %v2227
        %v2624 = vpack.c.b16 %v2232, %v2230
        %v2625 = vpack.c.b16 %v2233, %v2231
        %v2626 = vpack.c.b16 %v2236, %v2234
        %v2627 = vpack.c.b16 %v2237, %v2235
        %v2628 = vpack.c.b16 %v2240, %v2238
        %v2629 = vpack.c.b16 %v2241, %v2239
        %v2630 = vpack.c.b16 %v2244, %v2242
        %v2631 = vpack.c.b16 %v2245, %v2243
        %v2632 = vpack.c.b16 %v2248, %v2246
        %v2633 = vpack.c.b16 %v2249, %v2247
        %v2634 = vpack.c.b16 %v2252, %v2250
        %v2635 = vpack.c.b16 %v2253, %v2251
        %v2636 = vpack.c.b16 %v2256, %v2254
        %v2637 = vpack.c.b16 %v2257, %v2255
        %v2638 = vpack.c.b16 %v2260, %v2258
        %v2639 = vpack.c.b16 %v2261, %v2259
        %v2640 = vpack.c.b16 %v2264, %v2262
        %v2641 = vpack.c.b16 %v2265, %v2263
        %v2642 = vpack.c.b16 %v2268, %v2266
        %v2643 = vpack.c.b16 %v2269, %v2267
        %v2644 = vpack.c.b16 %v2272, %v2270
        %v2645 = vpack.c.b16 %v2273, %v2271
        %v2646 = vpack.c.b16 %v2276, %v2274
        %v2647 = vpack.c.b16 %v2277, %v2275
        %v2648 = vpack.c.b16 %v2280, %v2278
        %v2649 = vpack.c.b16 %v2281, %v2279
        %v2650 = vpack.c.b16 %v2284, %v2282
        %v2651 = vpack.c.b16 %v2285, %v2283
        %v2652 = vpack.c.b16 %v2288, %v2286
        %v2653 = vpack.c.b16 %v2289, %v2287
        %v2654 = vpack.c.b16 %v2292, %v2290
        %v2655 = vpack.c.b16 %v2293, %v2291
        %v2656 = vpack.c.b16 %v2296, %v2294
        %v2657 = vpack.c.b16 %v2297, %v2295
        %v2658 = vpack.c.b16 %v2300, %v2298
        %v2659 = vpack.c.b16 %v2301, %v2299
        %v2660 = vpack.c.b16 %v2304, %v2302
        %v2661 = vpack.c.b16 %v2305, %v2303
        %v2662 = vpack.c.b16 %v2308, %v2306
        %v2663 = vpack.c.b16 %v2309, %v2307
        %v2664 = vpack.c.b16 %v2312, %v2310
        %v2665 = vpack.c.b16 %v2313, %v2311
        %v2666 = vpack.c.b16 %v2316, %v2314
        %v2667 = vpack.c.b16 %v2317, %v2315
        %v2668 = vpack.c.b16 %v2320, %v2318
        %v2669 = vpack.c.b16 %v2321, %v2319
        %v2670 = vpack.c.b16 %v2324, %v2322
        %v2671 = vpack.c.b16 %v2325, %v2323
        %v2672 = vpack.c.b16 %v2328, %v2326
        %v2673 = vpack.c.b16 %v2329, %v2327
        %v2674 = vpack.c.b16 %v2332, %v2330
        %v2675 = vpack.c.b16 %v2333, %v2331
        %v2676 = vpack.c.b16 %v2336, %v2334
        %v2677 = vpack.c.b16 %v2337, %v2335
        %v2678 = vpack.c.b16 %v2340, %v2338
        %v2679 = vpack.c.b16 %v2341, %v2339
        %v2680 = vpack.c.b16 %v2344, %v2342
        %v2681 = vpack.c.b16 %v2345, %v2343
        %v2682 = vpack.c.b16 %v2348, %v2346
        %v2683 = vpack.c.b16 %v2349, %v2347
        %v2684 = vpack.c.b16 %v2352, %v2350
        %v2685 = vpack.c.b16 %v2353, %v2351
        %v2686 = vpack.c.b16 %v2356, %v2354
        %v2687 = vpack.c.b16 %v2357, %v2355
        %v2688 = vpack.c.b16 %v2360, %v2358
        %v2689 = vpack.c.b16 %v2361, %v2359
        %v2690 = vpack.c.b16 %v2364, %v2362
        %v2691 = vpack.c.b16 %v2365, %v2363
        %v2692 = vpack.c.b16 %v2368, %v2366
        %v2693 = vpack.c.b16 %v2369, %v2367
        %v2694 = vpack.c.b16 %v2372, %v2370
        %v2695 = vpack.c.b16 %v2373, %v2371
        %v2696 = vpack.c.b16 %v2376, %v2374
        %v2697 = vpack.c.b16 %v2377, %v2375
        %v2698 = vpack.c.b16 %v2380, %v2378
        %v2699 = vpack.c.b16 %v2381, %v2379
        %v2700 = vpack.c.b16 %v2384, %v2382
        %v2701 = vpack.c.b16 %v2385, %v2383
        %v2702 = vpack.c.b16 %v2388, %v2386
        %v2703 = vpack.c.b16 %v2389, %v2387
        %v2704 = vpack.c.b16 %v2392, %v2390
        %v2705 = vpack.c.b16 %v2393, %v2391
        %v2706 = vpack.c.b16 %v2396, %v2394
        %v2707 = vpack.c.b16 %v2397, %v2395
        %v2708 = vpack.c.b16 %v2400, %v2398
        %v2709 = vpack.c.b16 %v2401, %v2399
        %v2710 = vpack.c.b16 %v2404, %v2402
        %v2711 = vpack.c.b16 %v2405, %v2403
        %v2712 = vpack.c.b16 %v2408, %v2406
        %v2713 = vpack.c.b16 %v2409, %v2407
        %v2714 = vpack.c.b16 %v2412, %v2410
        %v2715 = vpack.c.b16 %v2413, %v2411
        %v2716 = vpack.c.b16 %v2416, %v2414
        %v2717 = vpack.c.b16 %v2417, %v2415
        %v2718 = vpack.c.b16 %v2420, %v2418
        %v2719 = vpack.c.b16 %v2421, %v2419
        %v2720 = vpack.c.b16 %v2424, %v2422
        %v2721 = vpack.c.b16 %v2425, %v2423
        %v2722 = vpack.c.b16 %v2428, %v2426
        %v2723 = vpack.c.b16 %v2429, %v2427
        %v2724 = vpack.c.b16 %v2432, %v2430
        %v2725 = vpack.c.b16 %v2433, %v2431
        %v2726 = vpack.c.b16 %v2436, %v2434
        %v2727 = vpack.c.b16 %v2437, %v2435
        %v2728 = vpack.c.b16 %v2440, %v2438
        %v2729 = vpack.c.b16 %v2441, %v2439
        %3018 = vmatprep.subr.bf16.mxu0 %v2443
        %3019 = vmatpush1.bf16.msra.mxu0 %v2442
        %3020 = vmatprep.subr.bf16.mxu0 %v2445
        %3021 = vmatpush1.bf16.msra.mxu0 %v2444
        %3022 = vmatprep.subr.bf16.mxu0 %v2447
        %3023 = vmatpush1.bf16.msra.mxu0 %v2446
        %3024 = vmatprep.subr.bf16.mxu0 %v2449
        %3025 = vmatpush1.bf16.msra.mxu0 %v2448
        %3026 = vmatprep.subr.bf16.mxu0 %v2451
        %3027 = vmatpush1.bf16.msra.mxu0 %v2450
        %3028 = vmatprep.subr.bf16.mxu0 %v2453
        %3029 = vmatpush1.bf16.msra.mxu0 %v2452
        %3030 = vmatprep.subr.bf16.mxu0 %v2455
        %3031 = vmatpush1.bf16.msra.mxu0 %v2454
        %3032 = vmatprep.subr.bf16.mxu0 %v2457
        %3033 = vmatpush1.bf16.msra.mxu0 %v2456
        %3034 = vmatprep.subr.bf16.mxu0 %v2459
        %3035 = vmatpush1.bf16.msra.mxu0 %v2458
        %3036 = vmatprep.subr.bf16.mxu0 %v2461
        %3037 = vmatpush1.bf16.msra.mxu0 %v2460
        %3038 = vmatprep.subr.bf16.mxu0 %v2463
        %3039 = vmatpush1.bf16.msra.mxu0 %v2462
        %3040 = vmatprep.subr.bf16.mxu0 %v2465
        %3041 = vmatpush1.bf16.msra.mxu0 %v2464
        %3042 = vmatprep.subr.bf16.mxu0 %v2467
        %3043 = vmatpush1.bf16.msra.mxu0 %v2466
        %3044 = vmatprep.subr.bf16.mxu0 %v2469
        %3045 = vmatpush1.bf16.msra.mxu0 %v2468
        %3046 = vmatprep.subr.bf16.mxu0 %v2471
        %3047 = vmatpush1.bf16.msra.mxu0 %v2470
        %3048 = vmatprep.subr.bf16.mxu0 %v2473
        %3049 = vmatpush1.bf16.msra.mxu0 %v2472
        %3050 = vmatprep.mubr.bf16.mxu0 %v1363
        %3051 = vmatmul.mubr.bf16.gmra.mrb[0].mxu0 %v1362
        %v3052 = vpop.f32.mrb[0].mxu0
        %v3053 = vadd.f32 0.0, %v3052
        %v3054 = vpop.f32.mrb[0].mxu0
        %v3055 = vadd.f32 0.0, %v3054
        %v3056 = vpop.f32.mrb[0].mxu0
        %v3057 = vadd.f32 0.0, %v3056
        %v3058 = vpop.f32.mrb[0].mxu0
        %v3059 = vadd.f32 0.0, %v3058
        %3060 = vmatprep.mubr.bf16.mxu0 %v1381
        %3061 = vmatmul.mubr.bf16.gmra.mrb[0].mxu0 %v1380
        %v3062 = vpop.f32.mrb[0].mxu0
        %v3063 = vadd.f32 0.0, %v3062
        %v3064 = vpop.f32.mrb[0].mxu0
        %v3065 = vadd.f32 0.0, %v3064
        %v3066 = vpop.f32.mrb[0].mxu0
        %v3067 = vadd.f32 0.0, %v3066
        %v3068 = vpop.f32.mrb[0].mxu0
        %v3069 = vadd.f32 0.0, %v3068
        %3070 = vmatprep.mubr.bf16.mxu0 %v1399
        %3071 = vmatmul.mubr.bf16.gmra.mrb[0].mxu0 %v1398
        %v3072 = vpop.f32.mrb[0].mxu0
        %v3073 = vadd.f32 0.0, %v3072
        %v3074 = vpop.f32.mrb[0].mxu0
        %v3075 = vadd.f32 0.0, %v3074
        %v3076 = vpop.f32.mrb[0].mxu0
        %v3077 = vadd.f32 0.0, %v3076
        %v3078 = vpop.f32.mrb[0].mxu0
        %v3079 = vadd.f32 0.0, %v3078
        %3080 = vmatprep.mubr.bf16.mxu0 %v1417
        %3081 = vmatmul.mubr.bf16.gmra.mrb[0].mxu0 %v1416
        %v3082 = vpop.f32.mrb[0].mxu0
        %v3083 = vadd.f32 0.0, %v3082
        %v3084 = vpop.f32.mrb[0].mxu0
        %v3085 = vadd.f32 0.0, %v3084
        %v3086 = vpop.f32.mrb[0].mxu0
        %v3087 = vadd.f32 0.0, %v3086
        %v3088 = vpop.f32.mrb[0].mxu0
        %v3089 = vadd.f32 0.0, %v3088
        %3090 = vmatprep.mubr.bf16.mxu0 %v1435
        %3091 = vmatmul.mubr.bf16.gmra.mrb[0].mxu0 %v1434
        %v3092 = vpop.f32.mrb[0].mxu0
        %v3093 = vadd.f32 0.0, %v3092
        %v3094 = vpop.f32.mrb[0].mxu0
        %v3095 = vadd.f32 0.0, %v3094
        %v3096 = vpop.f32.mrb[0].mxu0
        %v3097 = vadd.f32 0.0, %v3096
        %v3098 = vpop.f32.mrb[0].mxu0
        %v3099 = vadd.f32 0.0, %v3098
        %3100 = vmatprep.mubr.bf16.mxu0 %v1453
        %3101 = vmatmul.mubr.bf16.gmra.mrb[0].mxu0 %v1452
        %v3102 = vpop.f32.mrb[0].mxu0
        %v3103 = vadd.f32 0.0, %v3102
        %v3104 = vpop.f32.mrb[0].mxu0
        %v3105 = vadd.f32 0.0, %v3104
        %v3106 = vpop.f32.mrb[0].mxu0
        %v3107 = vadd.f32 0.0, %v3106
        %v3108 = vpop.f32.mrb[0].mxu0
        %v3109 = vadd.f32 0.0, %v3108
        %3110 = vdwg.mxu0
        %3111 = vmatprep.subr.bf16.mxu0 %v2475
        %3112 = vmatpush1.bf16.msra.mxu0 %v2474
        %3113 = vmatprep.subr.bf16.mxu0 %v2477
        %3114 = vmatpush1.bf16.msra.mxu0 %v2476
        %3115 = vmatprep.subr.bf16.mxu0 %v2479
        %3116 = vmatpush1.bf16.msra.mxu0 %v2478
        %3117 = vmatprep.subr.bf16.mxu0 %v2481
        %3118 = vmatpush1.bf16.msra.mxu0 %v2480
        %3119 = vmatprep.subr.bf16.mxu0 %v2483
        %3120 = vmatpush1.bf16.msra.mxu0 %v2482
        %3121 = vmatprep.subr.bf16.mxu0 %v2485
        %3122 = vmatpush1.bf16.msra.mxu0 %v2484
        %3123 = vmatprep.subr.bf16.mxu0 %v2487
        %3124 = vmatpush1.bf16.msra.mxu0 %v2486
        %3125 = vmatprep.subr.bf16.mxu0 %v2489
        %3126 = vmatpush1.bf16.msra.mxu0 %v2488
        %3127 = vmatprep.subr.bf16.mxu0 %v2491
        %3128 = vmatpush1.bf16.msra.mxu0 %v2490
        %3129 = vmatprep.subr.bf16.mxu0 %v2493
        %3130 = vmatpush1.bf16.msra.mxu0 %v2492
        %3131 = vmatprep.subr.bf16.mxu0 %v2495
        %3132 = vmatpush1.bf16.msra.mxu0 %v2494
        %3133 = vmatprep.subr.bf16.mxu0 %v2497
        %3134 = vmatpush1.bf16.msra.mxu0 %v2496
        %3135 = vmatprep.subr.bf16.mxu0 %v2499
        %3136 = vmatpush1.bf16.msra.mxu0 %v2498
        %3137 = vmatprep.subr.bf16.mxu0 %v2501
        %3138 = vmatpush1.bf16.msra.mxu0 %v2500
        %3139 = vmatprep.subr.bf16.mxu0 %v2503
        %3140 = vmatpush1.bf16.msra.mxu0 %v2502
        %3141 = vmatprep.subr.bf16.mxu0 %v2505
        %3142 = vmatpush1.bf16.msra.mxu0 %v2504
        %3143 = vmatprep.mubr.bf16.mxu0 %v1365
        %3144 = vmatmul.mubr.bf16.gmra.mrb[0].mxu0 %v1364
        %v3145 = vpop.f32.mrb[0].mxu0
        %v3146 = vadd.f32 %v3053, %v3145
        %v3147 = vpop.f32.mrb[0].mxu0
        %v3148 = vadd.f32 %v3055, %v3147
        %v3149 = vpop.f32.mrb[0].mxu0
        %v3150 = vadd.f32 %v3057, %v3149
        %v3151 = vpop.f32.mrb[0].mxu0
        %v3152 = vadd.f32 %v3059, %v3151
        %3153 = vmatprep.mubr.bf16.mxu0 %v1383
        %3154 = vmatmul.mubr.bf16.gmra.mrb[0].mxu0 %v1382
        %v3155 = vpop.f32.mrb[0].mxu0
        %v3156 = vadd.f32 %v3063, %v3155
        %v3157 = vpop.f32.mrb[0].mxu0
        %v3158 = vadd.f32 %v3065, %v3157
        %v3159 = vpop.f32.mrb[0].mxu0
        %v3160 = vadd.f32 %v3067, %v3159
        %v3161 = vpop.f32.mrb[0].mxu0
        %v3162 = vadd.f32 %v3069, %v3161
        %3163 = vmatprep.mubr.bf16.mxu0 %v1401
        %3164 = vmatmul.mubr.bf16.gmra.mrb[0].mxu0 %v1400
        %v3165 = vpop.f32.mrb[0].mxu0
        %v3166 = vadd.f32 %v3073, %v3165
        %v3167 = vpop.f32.mrb[0].mxu0
        %v3168 = vadd.f32 %v3075, %v3167
        %v3169 = vpop.f32.mrb[0].mxu0
        %v3170 = vadd.f32 %v3077, %v3169
        %v3171 = vpop.f32.mrb[0].mxu0
        %v3172 = vadd.f32 %v3079, %v3171
        %3173 = vmatprep.mubr.bf16.mxu0 %v1419
        %3174 = vmatmul.mubr.bf16.gmra.mrb[0].mxu0 %v1418
        %v3175 = vpop.f32.mrb[0].mxu0
        %v3176 = vadd.f32 %v3083, %v3175
        %v3177 = vpop.f32.mrb[0].mxu0
        %v3178 = vadd.f32 %v3085, %v3177
        %v3179 = vpop.f32.mrb[0].mxu0
        %v3180 = vadd.f32 %v3087, %v3179
        %v3181 = vpop.f32.mrb[0].mxu0
        %v3182 = vadd.f32 %v3089, %v3181
        %3183 = vmatprep.mubr.bf16.mxu0 %v1437
        %3184 = vmatmul.mubr.bf16.gmra.mrb[0].mxu0 %v1436
        %v3185 = vpop.f32.mrb[0].mxu0
        %v3186 = vadd.f32 %v3093, %v3185
        %v3187 = vpop.f32.mrb[0].mxu0
        %v3188 = vadd.f32 %v3095, %v3187
        %v3189 = vpop.f32.mrb[0].mxu0
        %v3190 = vadd.f32 %v3097, %v3189
        %v3191 = vpop.f32.mrb[0].mxu0
        %v3192 = vadd.f32 %v3099, %v3191
        %3193 = vmatprep.mubr.bf16.mxu0 %v1455
        %3194 = vmatmul.mubr.bf16.gmra.mrb[0].mxu0 %v1454
        %v3195 = vpop.f32.mrb[0].mxu0
        %v3196 = vadd.f32 %v3103, %v3195
        %v3197 = vpop.f32.mrb[0].mxu0
        %v3198 = vadd.f32 %v3105, %v3197
        %v3199 = vpop.f32.mrb[0].mxu0
        %v3200 = vadd.f32 %v3107, %v3199
        %v3201 = vpop.f32.mrb[0].mxu0
        %v3202 = vadd.f32 %v3109, %v3201
        %3203 = vdwg.mxu0
        %3204 = vmatprep.subr.bf16.mxu0 %v2507
        %3205 = vmatpush1.bf16.msra.mxu0 %v2506
        %3206 = vmatprep.subr.bf16.mxu0 %v2509
        %3207 = vmatpush1.bf16.msra.mxu0 %v2508
        %3208 = vmatprep.subr.bf16.mxu0 %v2511
        %3209 = vmatpush1.bf16.msra.mxu0 %v2510
        %3210 = vmatprep.subr.bf16.mxu0 %v2513
        %3211 = vmatpush1.bf16.msra.mxu0 %v2512
        %3212 = vmatprep.subr.bf16.mxu0 %v2515
        %3213 = vmatpush1.bf16.msra.mxu0 %v2514
        %3214 = vmatprep.subr.bf16.mxu0 %v2517
        %3215 = vmatpush1.bf16.msra.mxu0 %v2516
        %3216 = vmatprep.subr.bf16.mxu0 %v2519
        %3217 = vmatpush1.bf16.msra.mxu0 %v2518
        %3218 = vmatprep.subr.bf16.mxu0 %v2521
        %3219 = vmatpush1.bf16.msra.mxu0 %v2520
        %3220 = vmatprep.subr.bf16.mxu0 %v2523
        %3221 = vmatpush1.bf16.msra.mxu0 %v2522
        %3222 = vmatprep.subr.bf16.mxu0 %v2525
        %3223 = vmatpush1.bf16.msra.mxu0 %v2524
        %3224 = vmatprep.subr.bf16.mxu0 %v2527
        %3225 = vmatpush1.bf16.msra.mxu0 %v2526
        %3226 = vmatprep.subr.bf16.mxu0 %v2529
        %3227 = vmatpush1.bf16.msra.mxu0 %v2528
        %3228 = vmatprep.subr.bf16.mxu0 %v2531
        %3229 = vmatpush1.bf16.msra.mxu0 %v2530
        %3230 = vmatprep.subr.bf16.mxu0 %v2533
        %3231 = vmatpush1.bf16.msra.mxu0 %v2532
        %3232 = vmatprep.subr.bf16.mxu0 %v2535
        %3233 = vmatpush1.bf16.msra.mxu0 %v2534
        %3234 = vmatprep.subr.bf16.mxu0 %v2537
        %3235 = vmatpush1.bf16.msra.mxu0 %v2536
        %3236 = vmatprep.mubr.bf16.mxu0 %v1367
        %3237 = vmatmul.mubr.bf16.gmra.mrb[0].mxu0 %v1366
        %v3238 = vpop.f32.mrb[0].mxu0
        %v3239 = vadd.f32 %v3146, %v3238
        %v3240 = vpop.f32.mrb[0].mxu0
        %v3241 = vadd.f32 %v3148, %v3240
        %v3242 = vpop.f32.mrb[0].mxu0
        %v3243 = vadd.f32 %v3150, %v3242
        %v3244 = vpop.f32.mrb[0].mxu0
        %v3245 = vadd.f32 %v3152, %v3244
        %3246 = vmatprep.mubr.bf16.mxu0 %v1385
        %3247 = vmatmul.mubr.bf16.gmra.mrb[0].mxu0 %v1384
        %v3248 = vpop.f32.mrb[0].mxu0
        %v3249 = vadd.f32 %v3156, %v3248
        %v3250 = vpop.f32.mrb[0].mxu0
        %v3251 = vadd.f32 %v3158, %v3250
        %v3252 = vpop.f32.mrb[0].mxu0
        %v3253 = vadd.f32 %v3160, %v3252
        %v3254 = vpop.f32.mrb[0].mxu0
        %v3255 = vadd.f32 %v3162, %v3254
        %3256 = vmatprep.mubr.bf16.mxu0 %v1403
        %3257 = vmatmul.mubr.bf16.gmra.mrb[0].mxu0 %v1402
        %v3258 = vpop.f32.mrb[0].mxu0
        %v3259 = vadd.f32 %v3166, %v3258
        %v3260 = vpop.f32.mrb[0].mxu0
        %v3261 = vadd.f32 %v3168, %v3260
        %v3262 = vpop.f32.mrb[0].mxu0
        %v3263 = vadd.f32 %v3170, %v3262
        %v3264 = vpop.f32.mrb[0].mxu0
        %v3265 = vadd.f32 %v3172, %v3264
        %3266 = vmatprep.mubr.bf16.mxu0 %v1421
        %3267 = vmatmul.mubr.bf16.gmra.mrb[0].mxu0 %v1420
        %v3268 = vpop.f32.mrb[0].mxu0
        %v3269 = vadd.f32 %v3176, %v3268
        %v3270 = vpop.f32.mrb[0].mxu0
        %v3271 = vadd.f32 %v3178, %v3270
        %v3272 = vpop.f32.mrb[0].mxu0
        %v3273 = vadd.f32 %v3180, %v3272
        %v3274 = vpop.f32.mrb[0].mxu0
        %v3275 = vadd.f32 %v3182, %v3274
        %3276 = vmatprep.mubr.bf16.mxu0 %v1439
        %3277 = vmatmul.mubr.bf16.gmra.mrb[0].mxu0 %v1438
        %v3278 = vpop.f32.mrb[0].mxu0
        %v3279 = vadd.f32 %v3186, %v3278
        %v3280 = vpop.f32.mrb[0].mxu0
        %v3281 = vadd.f32 %v3188, %v3280
        %v3282 = vpop.f32.mrb[0].mxu0
        %v3283 = vadd.f32 %v3190, %v3282
        %v3284 = vpop.f32.mrb[0].mxu0
        %v3285 = vadd.f32 %v3192, %v3284
        %3286 = vmatprep.mubr.bf16.mxu0 %v1457
        %3287 = vmatmul.mubr.bf16.gmra.mrb[0].mxu0 %v1456
        %v3288 = vpop.f32.mrb[0].mxu0
        %v3289 = vadd.f32 %v3196, %v3288
        %v3290 = vpop.f32.mrb[0].mxu0
        %v3291 = vadd.f32 %v3198, %v3290
        %v3292 = vpop.f32.mrb[0].mxu0
        %v3293 = vadd.f32 %v3200, %v3292
        %v3294 = vpop.f32.mrb[0].mxu0
        %v3295 = vadd.f32 %v3202, %v3294
        %3296 = vdwg.mxu0
        %3297 = vmatprep.subr.bf16.mxu0 %v2539
        %3298 = vmatpush1.bf16.msra.mxu0 %v2538
        %3299 = vmatprep.subr.bf16.mxu0 %v2541
        %3300 = vmatpush1.bf16.msra.mxu0 %v2540
        %3301 = vmatprep.subr.bf16.mxu0 %v2543
        %3302 = vmatpush1.bf16.msra.mxu0 %v2542
        %3303 = vmatprep.subr.bf16.mxu0 %v2545
        %3304 = vmatpush1.bf16.msra.mxu0 %v2544
        %3305 = vmatprep.subr.bf16.mxu0 %v2547
        %3306 = vmatpush1.bf16.msra.mxu0 %v2546
        %3307 = vmatprep.subr.bf16.mxu0 %v2549
        %3308 = vmatpush1.bf16.msra.mxu0 %v2548
        %3309 = vmatprep.subr.bf16.mxu0 %v2551
        %3310 = vmatpush1.bf16.msra.mxu0 %v2550
        %3311 = vmatprep.subr.bf16.mxu0 %v2553
        %3312 = vmatpush1.bf16.msra.mxu0 %v2552
        %3313 = vmatprep.subr.bf16.mxu0 %v2555
        %3314 = vmatpush1.bf16.msra.mxu0 %v2554
        %3315 = vmatprep.subr.bf16.mxu0 %v2557
        %3316 = vmatpush1.bf16.msra.mxu0 %v2556
        %3317 = vmatprep.subr.bf16.mxu0 %v2559
        %3318 = vmatpush1.bf16.msra.mxu0 %v2558
        %3319 = vmatprep.subr.bf16.mxu0 %v2561
        %3320 = vmatpush1.bf16.msra.mxu0 %v2560
        %3321 = vmatprep.subr.bf16.mxu0 %v2563
        %3322 = vmatpush1.bf16.msra.mxu0 %v2562
        %3323 = vmatprep.subr.bf16.mxu0 %v2565
        %3324 = vmatpush1.bf16.msra.mxu0 %v2564
        %3325 = vmatprep.subr.bf16.mxu0 %v2567
        %3326 = vmatpush1.bf16.msra.mxu0 %v2566
        %3327 = vmatprep.subr.bf16.mxu0 %v2569
        %3328 = vmatpush1.bf16.msra.mxu0 %v2568
        %3329 = vmatprep.mubr.bf16.mxu0 %v1369
        %3330 = vmatmul.mubr.bf16.gmra.mrb[0].mxu0 %v1368
        %v3331 = vpop.f32.mrb[0].mxu0
        %v3332 = vadd.f32 %v3239, %v3331
        %v3333 = vpop.f32.mrb[0].mxu0
        %v3334 = vadd.f32 %v3241, %v3333
        %v3335 = vpop.f32.mrb[0].mxu0
        %v3336 = vadd.f32 %v3243, %v3335
        %v3337 = vpop.f32.mrb[0].mxu0
        %v3338 = vadd.f32 %v3245, %v3337
        %3339 = vmatprep.mubr.bf16.mxu0 %v1387
        %3340 = vmatmul.mubr.bf16.gmra.mrb[0].mxu0 %v1386
        %v3341 = vpop.f32.mrb[0].mxu0
        %v3342 = vadd.f32 %v3249, %v3341
        %v3343 = vpop.f32.mrb[0].mxu0
        %v3344 = vadd.f32 %v3251, %v3343
        %v3345 = vpop.f32.mrb[0].mxu0
        %v3346 = vadd.f32 %v3253, %v3345
        %v3347 = vpop.f32.mrb[0].mxu0
        %v3348 = vadd.f32 %v3255, %v3347
        %3349 = vmatprep.mubr.bf16.mxu0 %v1405
        %3350 = vmatmul.mubr.bf16.gmra.mrb[0].mxu0 %v1404
        %v3351 = vpop.f32.mrb[0].mxu0
        %v3352 = vadd.f32 %v3259, %v3351
        %v3353 = vpop.f32.mrb[0].mxu0
        %v3354 = vadd.f32 %v3261, %v3353
        %v3355 = vpop.f32.mrb[0].mxu0
        %v3356 = vadd.f32 %v3263, %v3355
        %v3357 = vpop.f32.mrb[0].mxu0
        %v3358 = vadd.f32 %v3265, %v3357
        %3359 = vmatprep.mubr.bf16.mxu0 %v1423
        %3360 = vmatmul.mubr.bf16.gmra.mrb[0].mxu0 %v1422
        %v3361 = vpop.f32.mrb[0].mxu0
        %v3362 = vadd.f32 %v3269, %v3361
        %v3363 = vpop.f32.mrb[0].mxu0
        %v3364 = vadd.f32 %v3271, %v3363
        %v3365 = vpop.f32.mrb[0].mxu0
        %v3366 = vadd.f32 %v3273, %v3365
        %v3367 = vpop.f32.mrb[0].mxu0
        %v3368 = vadd.f32 %v3275, %v3367
        %3369 = vmatprep.mubr.bf16.mxu0 %v1441
        %3370 = vmatmul.mubr.bf16.gmra.mrb[0].mxu0 %v1440
        %v3371 = vpop.f32.mrb[0].mxu0
        %v3372 = vadd.f32 %v3279, %v3371
        %v3373 = vpop.f32.mrb[0].mxu0
        %v3374 = vadd.f32 %v3281, %v3373
        %v3375 = vpop.f32.mrb[0].mxu0
        %v3376 = vadd.f32 %v3283, %v3375
        %v3377 = vpop.f32.mrb[0].mxu0
        %v3378 = vadd.f32 %v3285, %v3377
        %3379 = vmatprep.mubr.bf16.mxu0 %v1459
        %3380 = vmatmul.mubr.bf16.gmra.mrb[0].mxu0 %v1458
        %v3381 = vpop.f32.mrb[0].mxu0
        %v3382 = vadd.f32 %v3289, %v3381
        %v3383 = vpop.f32.mrb[0].mxu0
        %v3384 = vadd.f32 %v3291, %v3383
        %v3385 = vpop.f32.mrb[0].mxu0
        %v3386 = vadd.f32 %v3293, %v3385
        %v3387 = vpop.f32.mrb[0].mxu0
        %v3388 = vadd.f32 %v3295, %v3387
        %3389 = vdwg.mxu0
        %3390 = vmatprep.subr.bf16.mxu0 %v2571
        %3391 = vmatpush1.bf16.msra.mxu0 %v2570
        %3392 = vmatprep.subr.bf16.mxu0 %v2573
        %3393 = vmatpush1.bf16.msra.mxu0 %v2572
        %3394 = vmatprep.subr.bf16.mxu0 %v2575
        %3395 = vmatpush1.bf16.msra.mxu0 %v2574
        %3396 = vmatprep.subr.bf16.mxu0 %v2577
        %3397 = vmatpush1.bf16.msra.mxu0 %v2576
        %3398 = vmatprep.subr.bf16.mxu0 %v2579
        %3399 = vmatpush1.bf16.msra.mxu0 %v2578
        %3400 = vmatprep.subr.bf16.mxu0 %v2581
        %3401 = vmatpush1.bf16.msra.mxu0 %v2580
        %3402 = vmatprep.subr.bf16.mxu0 %v2583
        %3403 = vmatpush1.bf16.msra.mxu0 %v2582
        %3404 = vmatprep.subr.bf16.mxu0 %v2585
        %3405 = vmatpush1.bf16.msra.mxu0 %v2584
        %3406 = vmatprep.subr.bf16.mxu0 %v2587
        %3407 = vmatpush1.bf16.msra.mxu0 %v2586
        %3408 = vmatprep.subr.bf16.mxu0 %v2589
        %3409 = vmatpush1.bf16.msra.mxu0 %v2588
        %3410 = vmatprep.subr.bf16.mxu0 %v2591
        %3411 = vmatpush1.bf16.msra.mxu0 %v2590
        %3412 = vmatprep.subr.bf16.mxu0 %v2593
        %3413 = vmatpush1.bf16.msra.mxu0 %v2592
        %3414 = vmatprep.subr.bf16.mxu0 %v2595
        %3415 = vmatpush1.bf16.msra.mxu0 %v2594
        %3416 = vmatprep.subr.bf16.mxu0 %v2597
        %3417 = vmatpush1.bf16.msra.mxu0 %v2596
        %3418 = vmatprep.subr.bf16.mxu0 %v2599
        %3419 = vmatpush1.bf16.msra.mxu0 %v2598
        %3420 = vmatprep.subr.bf16.mxu0 %v2601
        %3421 = vmatpush1.bf16.msra.mxu0 %v2600
        %3422 = vmatprep.mubr.bf16.mxu0 %v1371
        %3423 = vmatmul.mubr.bf16.gmra.mrb[0].mxu0 %v1370
        %v3424 = vpop.f32.mrb[0].mxu0
        %v3425 = vadd.f32 %v3332, %v3424
        %v3426 = vpop.f32.mrb[0].mxu0
        %v3427 = vadd.f32 %v3334, %v3426
        %v3428 = vpop.f32.mrb[0].mxu0
        %v3429 = vadd.f32 %v3336, %v3428
        %v3430 = vpop.f32.mrb[0].mxu0
        %v3431 = vadd.f32 %v3338, %v3430
        %3432 = vmatprep.mubr.bf16.mxu0 %v1389
        %3433 = vmatmul.mubr.bf16.gmra.mrb[0].mxu0 %v1388
        %v3434 = vpop.f32.mrb[0].mxu0
        %v3435 = vadd.f32 %v3342, %v3434
        %v3436 = vpop.f32.mrb[0].mxu0
        %v3437 = vadd.f32 %v3344, %v3436
        %v3438 = vpop.f32.mrb[0].mxu0
        %v3439 = vadd.f32 %v3346, %v3438
        %v3440 = vpop.f32.mrb[0].mxu0
        %v3441 = vadd.f32 %v3348, %v3440
        %3442 = vmatprep.mubr.bf16.mxu0 %v1407
        %3443 = vmatmul.mubr.bf16.gmra.mrb[0].mxu0 %v1406
        %v3444 = vpop.f32.mrb[0].mxu0
        %v3445 = vadd.f32 %v3352, %v3444
        %v3446 = vpop.f32.mrb[0].mxu0
        %v3447 = vadd.f32 %v3354, %v3446
        %v3448 = vpop.f32.mrb[0].mxu0
        %v3449 = vadd.f32 %v3356, %v3448
        %v3450 = vpop.f32.mrb[0].mxu0
        %v3451 = vadd.f32 %v3358, %v3450
        %3452 = vmatprep.mubr.bf16.mxu0 %v1425
        %3453 = vmatmul.mubr.bf16.gmra.mrb[0].mxu0 %v1424
        %v3454 = vpop.f32.mrb[0].mxu0
        %v3455 = vadd.f32 %v3362, %v3454
        %v3456 = vpop.f32.mrb[0].mxu0
        %v3457 = vadd.f32 %v3364, %v3456
        %v3458 = vpop.f32.mrb[0].mxu0
        %v3459 = vadd.f32 %v3366, %v3458
        %v3460 = vpop.f32.mrb[0].mxu0
        %v3461 = vadd.f32 %v3368, %v3460
        %3462 = vmatprep.mubr.bf16.mxu0 %v1443
        %3463 = vmatmul.mubr.bf16.gmra.mrb[0].mxu0 %v1442
        %v3464 = vpop.f32.mrb[0].mxu0
        %v3465 = vadd.f32 %v3372, %v3464
        %v3466 = vpop.f32.mrb[0].mxu0
        %v3467 = vadd.f32 %v3374, %v3466
        %v3468 = vpop.f32.mrb[0].mxu0
        %v3469 = vadd.f32 %v3376, %v3468
        %v3470 = vpop.f32.mrb[0].mxu0
        %v3471 = vadd.f32 %v3378, %v3470
        %3472 = vmatprep.mubr.bf16.mxu0 %v1461
        %3473 = vmatmul.mubr.bf16.gmra.mrb[0].mxu0 %v1460
        %v3474 = vpop.f32.mrb[0].mxu0
        %v3475 = vadd.f32 %v3382, %v3474
        %v3476 = vpop.f32.mrb[0].mxu0
        %v3477 = vadd.f32 %v3384, %v3476
        %v3478 = vpop.f32.mrb[0].mxu0
        %v3479 = vadd.f32 %v3386, %v3478
        %v3480 = vpop.f32.mrb[0].mxu0
        %v3481 = vadd.f32 %v3388, %v3480
        %3482 = vdwg.mxu0
        %3483 = vmatprep.subr.bf16.mxu0 %v2603
        %3484 = vmatpush1.bf16.msra.mxu0 %v2602
        %3485 = vmatprep.subr.bf16.mxu0 %v2605
        %3486 = vmatpush1.bf16.msra.mxu0 %v2604
        %3487 = vmatprep.subr.bf16.mxu0 %v2607
        %3488 = vmatpush1.bf16.msra.mxu0 %v2606
        %3489 = vmatprep.subr.bf16.mxu0 %v2609
        %3490 = vmatpush1.bf16.msra.mxu0 %v2608
        %3491 = vmatprep.subr.bf16.mxu0 %v2611
        %3492 = vmatpush1.bf16.msra.mxu0 %v2610
        %3493 = vmatprep.subr.bf16.mxu0 %v2613
        %3494 = vmatpush1.bf16.msra.mxu0 %v2612
        %3495 = vmatprep.subr.bf16.mxu0 %v2615
        %3496 = vmatpush1.bf16.msra.mxu0 %v2614
        %3497 = vmatprep.subr.bf16.mxu0 %v2617
        %3498 = vmatpush1.bf16.msra.mxu0 %v2616
        %3499 = vmatprep.subr.bf16.mxu0 %v2619
        %3500 = vmatpush1.bf16.msra.mxu0 %v2618
        %3501 = vmatprep.subr.bf16.mxu0 %v2621
        %3502 = vmatpush1.bf16.msra.mxu0 %v2620
        %3503 = vmatprep.subr.bf16.mxu0 %v2623
        %3504 = vmatpush1.bf16.msra.mxu0 %v2622
        %3505 = vmatprep.subr.bf16.mxu0 %v2625
        %3506 = vmatpush1.bf16.msra.mxu0 %v2624
        %3507 = vmatprep.subr.bf16.mxu0 %v2627
        %3508 = vmatpush1.bf16.msra.mxu0 %v2626
        %3509 = vmatprep.subr.bf16.mxu0 %v2629
        %3510 = vmatpush1.bf16.msra.mxu0 %v2628
        %3511 = vmatprep.subr.bf16.mxu0 %v2631
        %3512 = vmatpush1.bf16.msra.mxu0 %v2630
        %3513 = vmatprep.subr.bf16.mxu0 %v2633
        %3514 = vmatpush1.bf16.msra.mxu0 %v2632
        %3515 = vmatprep.mubr.bf16.mxu0 %v1373
        %3516 = vmatmul.mubr.bf16.gmra.mrb[0].mxu0 %v1372
        %v3517 = vpop.f32.mrb[0].mxu0
        %v3518 = vadd.f32 %v3425, %v3517
        %v3519 = vpop.f32.mrb[0].mxu0
        %v3520 = vadd.f32 %v3427, %v3519
        %v3521 = vpop.f32.mrb[0].mxu0
        %v3522 = vadd.f32 %v3429, %v3521
        %v3523 = vpop.f32.mrb[0].mxu0
        %v3524 = vadd.f32 %v3431, %v3523
        %3525 = vmatprep.mubr.bf16.mxu0 %v1391
        %3526 = vmatmul.mubr.bf16.gmra.mrb[0].mxu0 %v1390
        %v3527 = vpop.f32.mrb[0].mxu0
        %v3528 = vadd.f32 %v3435, %v3527
        %v3529 = vpop.f32.mrb[0].mxu0
        %v3530 = vadd.f32 %v3437, %v3529
        %v3531 = vpop.f32.mrb[0].mxu0
        %v3532 = vadd.f32 %v3439, %v3531
        %v3533 = vpop.f32.mrb[0].mxu0
        %v3534 = vadd.f32 %v3441, %v3533
        %3535 = vmatprep.mubr.bf16.mxu0 %v1409
        %3536 = vmatmul.mubr.bf16.gmra.mrb[0].mxu0 %v1408
        %v3537 = vpop.f32.mrb[0].mxu0
        %v3538 = vadd.f32 %v3445, %v3537
        %v3539 = vpop.f32.mrb[0].mxu0
        %v3540 = vadd.f32 %v3447, %v3539
        %v3541 = vpop.f32.mrb[0].mxu0
        %v3542 = vadd.f32 %v3449, %v3541
        %v3543 = vpop.f32.mrb[0].mxu0
        %v3544 = vadd.f32 %v3451, %v3543
        %3545 = vmatprep.mubr.bf16.mxu0 %v1427
        %3546 = vmatmul.mubr.bf16.gmra.mrb[0].mxu0 %v1426
        %v3547 = vpop.f32.mrb[0].mxu0
        %v3548 = vadd.f32 %v3455, %v3547
        %v3549 = vpop.f32.mrb[0].mxu0
        %v3550 = vadd.f32 %v3457, %v3549
        %v3551 = vpop.f32.mrb[0].mxu0
        %v3552 = vadd.f32 %v3459, %v3551
        %v3553 = vpop.f32.mrb[0].mxu0
        %v3554 = vadd.f32 %v3461, %v3553
        %3555 = vmatprep.mubr.bf16.mxu0 %v1445
        %3556 = vmatmul.mubr.bf16.gmra.mrb[0].mxu0 %v1444
        %v3557 = vpop.f32.mrb[0].mxu0
        %v3558 = vadd.f32 %v3465, %v3557
        %v3559 = vpop.f32.mrb[0].mxu0
        %v3560 = vadd.f32 %v3467, %v3559
        %v3561 = vpop.f32.mrb[0].mxu0
        %v3562 = vadd.f32 %v3469, %v3561
        %v3563 = vpop.f32.mrb[0].mxu0
        %v3564 = vadd.f32 %v3471, %v3563
        %3565 = vmatprep.mubr.bf16.mxu0 %v1463
        %3566 = vmatmul.mubr.bf16.gmra.mrb[0].mxu0 %v1462
        %v3567 = vpop.f32.mrb[0].mxu0
        %v3568 = vadd.f32 %v3475, %v3567
        %v3569 = vpop.f32.mrb[0].mxu0
        %v3570 = vadd.f32 %v3477, %v3569
        %v3571 = vpop.f32.mrb[0].mxu0
        %v3572 = vadd.f32 %v3479, %v3571
        %v3573 = vpop.f32.mrb[0].mxu0
        %v3574 = vadd.f32 %v3481, %v3573
        %3575 = vdwg.mxu0
        %3576 = vmatprep.subr.bf16.mxu0 %v2635
        %3577 = vmatpush1.bf16.msra.mxu0 %v2634
        %3578 = vmatprep.subr.bf16.mxu0 %v2637
        %3579 = vmatpush1.bf16.msra.mxu0 %v2636
        %3580 = vmatprep.subr.bf16.mxu0 %v2639
        %3581 = vmatpush1.bf16.msra.mxu0 %v2638
        %3582 = vmatprep.subr.bf16.mxu0 %v2641
        %3583 = vmatpush1.bf16.msra.mxu0 %v2640
        %3584 = vmatprep.subr.bf16.mxu0 %v2643
        %3585 = vmatpush1.bf16.msra.mxu0 %v2642
        %3586 = vmatprep.subr.bf16.mxu0 %v2645
        %3587 = vmatpush1.bf16.msra.mxu0 %v2644
        %3588 = vmatprep.subr.bf16.mxu0 %v2647
        %3589 = vmatpush1.bf16.msra.mxu0 %v2646
        %3590 = vmatprep.subr.bf16.mxu0 %v2649
        %3591 = vmatpush1.bf16.msra.mxu0 %v2648
        %3592 = vmatprep.subr.bf16.mxu0 %v2651
        %3593 = vmatpush1.bf16.msra.mxu0 %v2650
        %3594 = vmatprep.subr.bf16.mxu0 %v2653
        %3595 = vmatpush1.bf16.msra.mxu0 %v2652
        %3596 = vmatprep.subr.bf16.mxu0 %v2655
        %3597 = vmatpush1.bf16.msra.mxu0 %v2654
        %3598 = vmatprep.subr.bf16.mxu0 %v2657
        %3599 = vmatpush1.bf16.msra.mxu0 %v2656
        %3600 = vmatprep.subr.bf16.mxu0 %v2659
        %3601 = vmatpush1.bf16.msra.mxu0 %v2658
        %3602 = vmatprep.subr.bf16.mxu0 %v2661
        %3603 = vmatpush1.bf16.msra.mxu0 %v2660
        %3604 = vmatprep.subr.bf16.mxu0 %v2663
        %3605 = vmatpush1.bf16.msra.mxu0 %v2662
        %3606 = vmatprep.subr.bf16.mxu0 %v2665
        %3607 = vmatpush1.bf16.msra.mxu0 %v2664
        %3608 = vmatprep.mubr.bf16.mxu0 %v1375
        %3609 = vmatmul.mubr.bf16.gmra.mrb[0].mxu0 %v1374
        %v3610 = vpop.f32.mrb[0].mxu0
        %v3611 = vadd.f32 %v3518, %v3610
        %v3612 = vpop.f32.mrb[0].mxu0
        %v3613 = vadd.f32 %v3520, %v3612
        %v3614 = vpop.f32.mrb[0].mxu0
        %v3615 = vadd.f32 %v3522, %v3614
        %v3616 = vpop.f32.mrb[0].mxu0
        %v3617 = vadd.f32 %v3524, %v3616
        %3618 = vmatprep.mubr.bf16.mxu0 %v1393
        %3619 = vmatmul.mubr.bf16.gmra.mrb[0].mxu0 %v1392
        %v3620 = vpop.f32.mrb[0].mxu0
        %v3621 = vadd.f32 %v3528, %v3620
        %v3622 = vpop.f32.mrb[0].mxu0
        %v3623 = vadd.f32 %v3530, %v3622
        %v3624 = vpop.f32.mrb[0].mxu0
        %v3625 = vadd.f32 %v3532, %v3624
        %v3626 = vpop.f32.mrb[0].mxu0
        %v3627 = vadd.f32 %v3534, %v3626
        %3628 = vmatprep.mubr.bf16.mxu0 %v1411
        %3629 = vmatmul.mubr.bf16.gmra.mrb[0].mxu0 %v1410
        %v3630 = vpop.f32.mrb[0].mxu0
        %v3631 = vadd.f32 %v3538, %v3630
        %v3632 = vpop.f32.mrb[0].mxu0
        %v3633 = vadd.f32 %v3540, %v3632
        %v3634 = vpop.f32.mrb[0].mxu0
        %v3635 = vadd.f32 %v3542, %v3634
        %v3636 = vpop.f32.mrb[0].mxu0
        %v3637 = vadd.f32 %v3544, %v3636
        %3638 = vmatprep.mubr.bf16.mxu0 %v1429
        %3639 = vmatmul.mubr.bf16.gmra.mrb[0].mxu0 %v1428
        %v3640 = vpop.f32.mrb[0].mxu0
        %v3641 = vadd.f32 %v3548, %v3640
        %v3642 = vpop.f32.mrb[0].mxu0
        %v3643 = vadd.f32 %v3550, %v3642
        %v3644 = vpop.f32.mrb[0].mxu0
        %v3645 = vadd.f32 %v3552, %v3644
        %v3646 = vpop.f32.mrb[0].mxu0
        %v3647 = vadd.f32 %v3554, %v3646
        %3648 = vmatprep.mubr.bf16.mxu0 %v1447
        %3649 = vmatmul.mubr.bf16.gmra.mrb[0].mxu0 %v1446
        %v3650 = vpop.f32.mrb[0].mxu0
        %v3651 = vadd.f32 %v3558, %v3650
        %v3652 = vpop.f32.mrb[0].mxu0
        %v3653 = vadd.f32 %v3560, %v3652
        %v3654 = vpop.f32.mrb[0].mxu0
        %v3655 = vadd.f32 %v3562, %v3654
        %v3656 = vpop.f32.mrb[0].mxu0
        %v3657 = vadd.f32 %v3564, %v3656
        %3658 = vmatprep.mubr.bf16.mxu0 %v1465
        %3659 = vmatmul.mubr.bf16.gmra.mrb[0].mxu0 %v1464
        %v3660 = vpop.f32.mrb[0].mxu0
        %v3661 = vadd.f32 %v3568, %v3660
        %v3662 = vpop.f32.mrb[0].mxu0
        %v3663 = vadd.f32 %v3570, %v3662
        %v3664 = vpop.f32.mrb[0].mxu0
        %v3665 = vadd.f32 %v3572, %v3664
        %v3666 = vpop.f32.mrb[0].mxu0
        %v3667 = vadd.f32 %v3574, %v3666
        %3668 = vdwg.mxu0
        %3669 = vmatprep.subr.bf16.mxu0 %v2667
        %3670 = vmatpush1.bf16.msra.mxu0 %v2666
        %3671 = vmatprep.subr.bf16.mxu0 %v2669
        %3672 = vmatpush1.bf16.msra.mxu0 %v2668
        %3673 = vmatprep.subr.bf16.mxu0 %v2671
        %3674 = vmatpush1.bf16.msra.mxu0 %v2670
        %3675 = vmatprep.subr.bf16.mxu0 %v2673
        %3676 = vmatpush1.bf16.msra.mxu0 %v2672
        %3677 = vmatprep.subr.bf16.mxu0 %v2675
        %3678 = vmatpush1.bf16.msra.mxu0 %v2674
        %3679 = vmatprep.subr.bf16.mxu0 %v2677
        %3680 = vmatpush1.bf16.msra.mxu0 %v2676
        %3681 = vmatprep.subr.bf16.mxu0 %v2679
        %3682 = vmatpush1.bf16.msra.mxu0 %v2678
        %3683 = vmatprep.subr.bf16.mxu0 %v2681
        %3684 = vmatpush1.bf16.msra.mxu0 %v2680
        %3685 = vmatprep.subr.bf16.mxu0 %v2683
        %3686 = vmatpush1.bf16.msra.mxu0 %v2682
        %3687 = vmatprep.subr.bf16.mxu0 %v2685
        %3688 = vmatpush1.bf16.msra.mxu0 %v2684
        %3689 = vmatprep.subr.bf16.mxu0 %v2687
        %3690 = vmatpush1.bf16.msra.mxu0 %v2686
        %3691 = vmatprep.subr.bf16.mxu0 %v2689
        %3692 = vmatpush1.bf16.msra.mxu0 %v2688
        %3693 = vmatprep.subr.bf16.mxu0 %v2691
        %3694 = vmatpush1.bf16.msra.mxu0 %v2690
        %3695 = vmatprep.subr.bf16.mxu0 %v2693
        %3696 = vmatpush1.bf16.msra.mxu0 %v2692
        %3697 = vmatprep.subr.bf16.mxu0 %v2695
        %3698 = vmatpush1.bf16.msra.mxu0 %v2694
        %3699 = vmatprep.subr.bf16.mxu0 %v2697
        %3700 = vmatpush1.bf16.msra.mxu0 %v2696
        %3701 = vmatprep.mubr.bf16.mxu0 %v1377
        %3702 = vmatmul.mubr.bf16.gmra.mrb[0].mxu0 %v1376
        %v3703 = vpop.f32.mrb[0].mxu0
        %v3704 = vadd.f32 %v3611, %v3703
        %v3705 = vpop.f32.mrb[0].mxu0
        %v3706 = vadd.f32 %v3613, %v3705
        %v3707 = vpop.f32.mrb[0].mxu0
        %v3708 = vadd.f32 %v3615, %v3707
        %v3709 = vpop.f32.mrb[0].mxu0
        %v3710 = vadd.f32 %v3617, %v3709
        %3711 = vmatprep.mubr.bf16.mxu0 %v1395
        %3712 = vmatmul.mubr.bf16.gmra.mrb[0].mxu0 %v1394
        %v3713 = vpop.f32.mrb[0].mxu0
        %v3714 = vadd.f32 %v3621, %v3713
        %v3715 = vpop.f32.mrb[0].mxu0
        %v3716 = vadd.f32 %v3623, %v3715
        %v3717 = vpop.f32.mrb[0].mxu0
        %v3718 = vadd.f32 %v3625, %v3717
        %v3719 = vpop.f32.mrb[0].mxu0
        %v3720 = vadd.f32 %v3627, %v3719
        %3721 = vmatprep.mubr.bf16.mxu0 %v1413
        %3722 = vmatmul.mubr.bf16.gmra.mrb[0].mxu0 %v1412
        %v3723 = vpop.f32.mrb[0].mxu0
        %v3724 = vadd.f32 %v3631, %v3723
        %v3725 = vpop.f32.mrb[0].mxu0
        %v3726 = vadd.f32 %v3633, %v3725
        %v3727 = vpop.f32.mrb[0].mxu0
        %v3728 = vadd.f32 %v3635, %v3727
        %v3729 = vpop.f32.mrb[0].mxu0
        %v3730 = vadd.f32 %v3637, %v3729
        %3731 = vmatprep.mubr.bf16.mxu0 %v1431
        %3732 = vmatmul.mubr.bf16.gmra.mrb[0].mxu0 %v1430
        %v3733 = vpop.f32.mrb[0].mxu0
        %v3734 = vadd.f32 %v3641, %v3733
        %v3735 = vpop.f32.mrb[0].mxu0
        %v3736 = vadd.f32 %v3643, %v3735
        %v3737 = vpop.f32.mrb[0].mxu0
        %v3738 = vadd.f32 %v3645, %v3737
        %v3739 = vpop.f32.mrb[0].mxu0
        %v3740 = vadd.f32 %v3647, %v3739
        %3741 = vmatprep.mubr.bf16.mxu0 %v1449
        %3742 = vmatmul.mubr.bf16.gmra.mrb[0].mxu0 %v1448
        %v3743 = vpop.f32.mrb[0].mxu0
        %v3744 = vadd.f32 %v3651, %v3743
        %v3745 = vpop.f32.mrb[0].mxu0
        %v3746 = vadd.f32 %v3653, %v3745
        %v3747 = vpop.f32.mrb[0].mxu0
        %v3748 = vadd.f32 %v3655, %v3747
        %v3749 = vpop.f32.mrb[0].mxu0
        %v3750 = vadd.f32 %v3657, %v3749
        %3751 = vmatprep.mubr.bf16.mxu0 %v1467
        %3752 = vmatmul.mubr.bf16.gmra.mrb[0].mxu0 %v1466
        %v3753 = vpop.f32.mrb[0].mxu0
        %v3754 = vadd.f32 %v3661, %v3753
        %v3755 = vpop.f32.mrb[0].mxu0
        %v3756 = vadd.f32 %v3663, %v3755
        %v3757 = vpop.f32.mrb[0].mxu0
        %v3758 = vadd.f32 %v3665, %v3757
        %v3759 = vpop.f32.mrb[0].mxu0
        %v3760 = vadd.f32 %v3667, %v3759
        %3761 = vdwg.mxu0
        %3762 = vmatprep.subr.bf16.mxu0 %v2699
        %3763 = vmatpush1.bf16.msra.mxu0 %v2698
        %3764 = vmatprep.subr.bf16.mxu0 %v2701
        %3765 = vmatpush1.bf16.msra.mxu0 %v2700
        %3766 = vmatprep.subr.bf16.mxu0 %v2703
        %3767 = vmatpush1.bf16.msra.mxu0 %v2702
        %3768 = vmatprep.subr.bf16.mxu0 %v2705
        %3769 = vmatpush1.bf16.msra.mxu0 %v2704
        %3770 = vmatprep.subr.bf16.mxu0 %v2707
        %3771 = vmatpush1.bf16.msra.mxu0 %v2706
        %3772 = vmatprep.subr.bf16.mxu0 %v2709
        %3773 = vmatpush1.bf16.msra.mxu0 %v2708
        %3774 = vmatprep.subr.bf16.mxu0 %v2711
        %3775 = vmatpush1.bf16.msra.mxu0 %v2710
        %3776 = vmatprep.subr.bf16.mxu0 %v2713
        %3777 = vmatpush1.bf16.msra.mxu0 %v2712
        %3778 = vmatprep.subr.bf16.mxu0 %v2715
        %3779 = vmatpush1.bf16.msra.mxu0 %v2714
        %3780 = vmatprep.subr.bf16.mxu0 %v2717
        %3781 = vmatpush1.bf16.msra.mxu0 %v2716
        %3782 = vmatprep.subr.bf16.mxu0 %v2719
        %3783 = vmatpush1.bf16.msra.mxu0 %v2718
        %3784 = vmatprep.subr.bf16.mxu0 %v2721
        %3785 = vmatpush1.bf16.msra.mxu0 %v2720
        %3786 = vmatprep.subr.bf16.mxu0 %v2723
        %3787 = vmatpush1.bf16.msra.mxu0 %v2722
        %3788 = vmatprep.subr.bf16.mxu0 %v2725
        %3789 = vmatpush1.bf16.msra.mxu0 %v2724
        %3790 = vmatprep.subr.bf16.mxu0 %v2727
        %3791 = vmatpush1.bf16.msra.mxu0 %v2726
        %3792 = vmatprep.subr.bf16.mxu0 %v2729
        %3793 = vmatpush1.bf16.msra.mxu0 %v2728
        %3794 = vmatprep.mubr.bf16.mxu0 %v1379
        %3795 = vmatmul.mubr.bf16.gmra.mrb[0].mxu0 %v1378
        %v3796 = vpop.f32.mrb[0].mxu0
        %v3797 = vadd.f32 %v3704, %v3796
        %v3798 = vpop.f32.mrb[0].mxu0
        %v3799 = vadd.f32 %v3706, %v3798
        %v3800 = vpop.f32.mrb[0].mxu0
        %v3801 = vadd.f32 %v3708, %v3800
        %v3802 = vpop.f32.mrb[0].mxu0
        %v3803 = vadd.f32 %v3710, %v3802
        %3804 = vmatprep.mubr.bf16.mxu0 %v1397
        %3805 = vmatmul.mubr.bf16.gmra.mrb[0].mxu0 %v1396
        %v3806 = vpop.f32.mrb[0].mxu0
        %v3807 = vadd.f32 %v3714, %v3806
        %v3808 = vpop.f32.mrb[0].mxu0
        %v3809 = vadd.f32 %v3716, %v3808
        %v3810 = vpop.f32.mrb[0].mxu0
        %v3811 = vadd.f32 %v3718, %v3810
        %v3812 = vpop.f32.mrb[0].mxu0
        %v3813 = vadd.f32 %v3720, %v3812
        %3814 = vmatprep.mubr.bf16.mxu0 %v1415
        %3815 = vmatmul.mubr.bf16.gmra.mrb[0].mxu0 %v1414
        %v3816 = vpop.f32.mrb[0].mxu0
        %v3817 = vadd.f32 %v3724, %v3816
        %v3818 = vpop.f32.mrb[0].mxu0
        %v3819 = vadd.f32 %v3726, %v3818
        %v3820 = vpop.f32.mrb[0].mxu0
        %v3821 = vadd.f32 %v3728, %v3820
        %v3822 = vpop.f32.mrb[0].mxu0
        %v3823 = vadd.f32 %v3730, %v3822
        %3824 = vmatprep.mubr.bf16.mxu0 %v1433
        %3825 = vmatmul.mubr.bf16.gmra.mrb[0].mxu0 %v1432
        %v3826 = vpop.f32.mrb[0].mxu0
        %v3827 = vadd.f32 %v3734, %v3826
        %v3828 = vpop.f32.mrb[0].mxu0
        %v3829 = vadd.f32 %v3736, %v3828
        %v3830 = vpop.f32.mrb[0].mxu0
        %v3831 = vadd.f32 %v3738, %v3830
        %v3832 = vpop.f32.mrb[0].mxu0
        %v3833 = vadd.f32 %v3740, %v3832
        %3834 = vmatprep.mubr.bf16.mxu0 %v1451
        %3835 = vmatmul.mubr.bf16.gmra.mrb[0].mxu0 %v1450
        %v3836 = vpop.f32.mrb[0].mxu0
        %v3837 = vadd.f32 %v3744, %v3836
        %v3838 = vpop.f32.mrb[0].mxu0
        %v3839 = vadd.f32 %v3746, %v3838
        %v3840 = vpop.f32.mrb[0].mxu0
        %v3841 = vadd.f32 %v3748, %v3840
        %v3842 = vpop.f32.mrb[0].mxu0
        %v3843 = vadd.f32 %v3750, %v3842
        %3844 = vmatprep.mubr.bf16.mxu0 %v1469
        %3845 = vmatmul.mubr.bf16.gmra.mrb[0].mxu0 %v1468
        %v3846 = vpop.f32.mrb[0].mxu0
        %v3847 = vadd.f32 %v3754, %v3846
        %v3848 = vpop.f32.mrb[0].mxu0
        %v3849 = vadd.f32 %v3756, %v3848
        %v3850 = vpop.f32.mrb[0].mxu0
        %v3851 = vadd.f32 %v3758, %v3850
        %v3852 = vpop.f32.mrb[0].mxu0
        %v3853 = vadd.f32 %v3760, %v3852
        %3854 = vdwg.mxu0
        %v3855 = vadd.f32 %v618, %v3797
        %v3856 = vadd.f32 %v619, %v3799
        %v3857 = vadd.f32 %v620, %v3801
        %v3858 = vadd.f32 %v621, %v3803
        %v3859 = vadd.f32 %v622, %v3807
        %v3860 = vadd.f32 %v623, %v3809
        %v3861 = vadd.f32 %v624, %v3811
        %v3862 = vadd.f32 %v625, %v3813
        %v3863 = vadd.f32 %v626, %v3817
        %v3864 = vadd.f32 %v627, %v3819
        %v3865 = vadd.f32 %v628, %v3821
        %v3866 = vadd.f32 %v629, %v3823
        %v3867 = vadd.f32 %v630, %v3827
        %v3868 = vadd.f32 %v631, %v3829
        %v3869 = vadd.f32 %v632, %v3831
        %v3870 = vadd.f32 %v633, %v3833
        %v3871 = vadd.f32 %v634, %v3837
        %v3872 = vadd.f32 %v635, %v3839
        %v3873 = vadd.f32 %v636, %v3841
        %v3874 = vadd.f32 %v637, %v3843
        %v3875 = vadd.f32 %v638, %v3847
        %v3876 = vadd.f32 %v639, %v3849
        %v3877 = vadd.f32 %v640, %v3851
        %v3878 = vadd.f32 %v641, %v3853
        %3879 = vst [vmem:[#allocation2] sm:$0xff] %v3855
        %3880 = vst [vmem:[#allocation2 + $0x8] sm:$0xff] %v3856
        %3881 = vst [vmem:[#allocation2 + $0x10] sm:$0xff] %v3857
        %3882 = vst [vmem:[#allocation2 + $0x18] sm:$0xff] %v3858
        %3883 = vst [vmem:[#allocation2 + $0x20] sm:$0xff] %v3859
        %3884 = vst [vmem:[#allocation2 + $0x28] sm:$0xff] %v3860
        %3885 = vst [vmem:[#allocation2 + $0x30] sm:$0xff] %v3861
        %3886 = vst [vmem:[#allocation2 + $0x38] sm:$0xff] %v3862
        %3887 = vst [vmem:[#allocation2 + $0x40] sm:$0xff] %v3863
        %3888 = vst [vmem:[#allocation2 + $0x48] sm:$0xff] %v3864
        %3889 = vst [vmem:[#allocation2 + $0x50] sm:$0xff] %v3865
        %3890 = vst [vmem:[#allocation2 + $0x58] sm:$0xff] %v3866
        %3891 = vst [vmem:[#allocation2 + $0x60] sm:$0xff] %v3867
        %3892 = vst [vmem:[#allocation2 + $0x68] sm:$0xff] %v3868
        %3893 = vst [vmem:[#allocation2 + $0x70] sm:$0xff] %v3869
        %3894 = vst [vmem:[#allocation2 + $0x78] sm:$0xff] %v3870
        %3895 = vst [vmem:[#allocation2 + $0x80] sm:$0xff] %v3871
        %3896 = vst [vmem:[#allocation2 + $0x88] sm:$0xff] %v3872
        %3897 = vst [vmem:[#allocation2 + $0x90] sm:$0xff] %v3873
        %3898 = vst [vmem:[#allocation2 + $0x98] sm:$0xff] %v3874
        %3899 = vst [vmem:[#allocation2 + $0xa0] sm:$0xff] %v3875
        %3900 = vst [vmem:[#allocation2 + $0xa8] sm:$0xff] %v3876
        %3901 = vst [vmem:[#allocation2 + $0xb0] sm:$0xff] %v3877
        %3902 = vst [vmem:[#allocation2 + $0xb8] sm:$0xff] %v3878
        %p3903 = scmp.eq.s32.totalorder %s20, 2
        // Predicated region
        $region84: #{lstm_model_forward.1} parent=74 // pred_check
          %p3904 = pneg %p3903
        $region85: #{lstm_model_forward.1} parent=74 // pred_check_branch
          %3906 = sbr.rel (%p3904) target = $region87
        $region86: #{lstm_model_forward.1} parent=74 // pred_region
          %v3907 = vld [vmem:[#allocation2] sm:$0xff]
          %v3908 = vld [vmem:[#allocation2 + $0x8] sm:$0xff]
          %v3909 = vld [vmem:[#allocation2 + $0x10] sm:$0xff]
          %v3910 = vld [vmem:[#allocation2 + $0x18] sm:$0xff]
          %v3911 = vld [vmem:[#allocation2 + $0x20] sm:$0xff]
          %v3912 = vld [vmem:[#allocation2 + $0x28] sm:$0xff]
          %v3913 = vld [vmem:[#allocation2 + $0x30] sm:$0xff]
          %v3914 = vld [vmem:[#allocation2 + $0x38] sm:$0xff]
          %v3915 = vld [vmem:[#allocation2 + $0x40] sm:$0xff]
          %v3916 = vld [vmem:[#allocation2 + $0x48] sm:$0xff]
          %v3917 = vld [vmem:[#allocation2 + $0x50] sm:$0xff]
          %v3918 = vld [vmem:[#allocation2 + $0x58] sm:$0xff]
          %v3919 = vld [vmem:[#allocation2 + $0x60] sm:$0xff]
          %v3920 = vld [vmem:[#allocation2 + $0x68] sm:$0xff]
          %v3921 = vld [vmem:[#allocation2 + $0x70] sm:$0xff]
          %v3922 = vld [vmem:[#allocation2 + $0x78] sm:$0xff]
          %v3923 = vld [vmem:[#allocation2 + $0x80] sm:$0xff]
          %v3924 = vld [vmem:[#allocation2 + $0x88] sm:$0xff]
          %v3925 = vld [vmem:[#allocation2 + $0x90] sm:$0xff]
          %v3926 = vld [vmem:[#allocation2 + $0x98] sm:$0xff]
          %v3927 = vld [vmem:[#allocation2 + $0xa0] sm:$0xff]
          %v3928 = vld [vmem:[#allocation2 + $0xa8] sm:$0xff]
          %v3929 = vld [vmem:[#allocation2 + $0xb0] sm:$0xff]
          %v3930 = vld [vmem:[#allocation2 + $0xb8] sm:$0xff]
          %v3931 = vmax.f32 %v3907, 0.0
          %v3932 = vmax.f32 %v3908, 0.0
          %v3933 = vmax.f32 %v3909, 0.0
          %v3934 = vmax.f32 %v3910, 0.0
          %v3935 = vmax.f32 %v3911, 0.0
          %v3936 = vmax.f32 %v3912, 0.0
          %v3937 = vmax.f32 %v3913, 0.0
          %v3938 = vmax.f32 %v3914, 0.0
          %v3939 = vmax.f32 %v3915, 0.0
          %v3940 = vmax.f32 %v3916, 0.0
          %v3941 = vmax.f32 %v3917, 0.0
          %v3942 = vmax.f32 %v3918, 0.0
          %v3943 = vmax.f32 %v3919, 0.0
          %v3944 = vmax.f32 %v3920, 0.0
          %v3945 = vmax.f32 %v3921, 0.0
          %v3946 = vmax.f32 %v3922, 0.0
          %v3947 = vmax.f32 %v3923, 0.0
          %v3948 = vmax.f32 %v3924, 0.0
          %v3949 = vmax.f32 %v3925, 0.0
          %v3950 = vmax.f32 %v3926, 0.0
          %v3951 = vmax.f32 %v3927, 0.0
          %v3952 = vmax.f32 %v3928, 0.0
          %v3953 = vmax.f32 %v3929, 0.0
          %v3954 = vmax.f32 %v3930, 0.0
          %v3955 = vld [vmem:[%s3] sm:$0xff]
          %v3956 = vld [vmem:[%s3 + $0x8] sm:$0xff]
          %v3957 = vld [vmem:[%s3 + $0x10] sm:$0xff]
          %v3958 = vld [vmem:[%s3 + $0x18] sm:$0xff]
          %v3959 = vld [vmem:[%s3 + $0x20] sm:$0xff]
          %v3960 = vld [vmem:[%s3 + $0x28] sm:$0xff]
          %v3961 = vld [vmem:[%s3 + $0x30] sm:$0xff]
          %v3962 = vld [vmem:[%s3 + $0x38] sm:$0xff]
          %v3963 = vld [vmem:[%s3 + $0x40] sm:$0xff]
          %v3964 = vld [vmem:[%s3 + $0x48] sm:$0xff]
          %v3965 = vld [vmem:[%s3 + $0x50] sm:$0xff]
          %v3966 = vld [vmem:[%s3 + $0x58] sm:$0xff]
          %v3967 = vld [vmem:[%s3 + $0x60] sm:$0xff]
          %v3968 = vld [vmem:[%s3 + $0x68] sm:$0xff]
          %v3969 = vld [vmem:[%s3 + $0x70] sm:$0xff]
          %v3970 = vld [vmem:[%s3 + $0x78] sm:$0xff]
          %v3971 = vld [vmem:[%s3 + $0x80] sm:$0xff]
          %v3972 = vld [vmem:[%s3 + $0x88] sm:$0xff]
          %v3973 = vld [vmem:[%s3 + $0x90] sm:$0xff]
          %v3974 = vld [vmem:[%s3 + $0x98] sm:$0xff]
          %v3975 = vld [vmem:[%s3 + $0xa0] sm:$0xff]
          %v3976 = vld [vmem:[%s3 + $0xa8] sm:$0xff]
          %v3977 = vld [vmem:[%s3 + $0xb0] sm:$0xff]
          %v3978 = vld [vmem:[%s3 + $0xb8] sm:$0xff]
          %v3979 = vld [vmem:[%s3 + $0xc0] sm:$0xff]
          %v3980 = vld [vmem:[%s3 + $0xc8] sm:$0xff]
          %v3981 = vld [vmem:[%s3 + $0xd0] sm:$0xff]
          %v3982 = vld [vmem:[%s3 + $0xd8] sm:$0xff]
          %v3983 = vld [vmem:[%s3 + $0xe0] sm:$0xff]
          %v3984 = vld [vmem:[%s3 + $0xe8] sm:$0xff]
          %v3985 = vld [vmem:[%s3 + $0xf0] sm:$0xff]
          %v3986 = vld [vmem:[%s3 + $0xf8] sm:$0xff]
          %v3987 = vld [vmem:[%s3 + $0x100] sm:$0xff]
          %v3988 = vld [vmem:[%s3 + $0x108] sm:$0xff]
          %v3989 = vld [vmem:[%s3 + $0x110] sm:$0xff]
          %v3990 = vld [vmem:[%s3 + $0x118] sm:$0xff]
          %v3991 = vld [vmem:[%s3 + $0x120] sm:$0xff]
          %v3992 = vld [vmem:[%s3 + $0x128] sm:$0xff]
          %v3993 = vld [vmem:[%s3 + $0x130] sm:$0xff]
          %v3994 = vld [vmem:[%s3 + $0x138] sm:$0xff]
          %v3995 = vld [vmem:[%s3 + $0x140] sm:$0xff]
          %v3996 = vld [vmem:[%s3 + $0x148] sm:$0xff]
          %v3997 = vld [vmem:[%s3 + $0x150] sm:$0xff]
          %v3998 = vld [vmem:[%s3 + $0x158] sm:$0xff]
          %v3999 = vld [vmem:[%s3 + $0x160] sm:$0xff]
          %v4000 = vld [vmem:[%s3 + $0x168] sm:$0xff]
          %v4001 = vld [vmem:[%s3 + $0x170] sm:$0xff]
          %v4002 = vld [vmem:[%s3 + $0x178] sm:$0xff]
          %v4003 = vld [vmem:[%s3 + $0x180] sm:$0xff]
          %v4004 = vld [vmem:[%s3 + $0x188] sm:$0xff]
          %v4005 = vld [vmem:[%s3 + $0x190] sm:$0xff]
          %v4006 = vld [vmem:[%s3 + $0x198] sm:$0xff]
          %v4007 = vld [vmem:[%s3 + $0x1a0] sm:$0xff]
          %v4008 = vld [vmem:[%s3 + $0x1a8] sm:$0xff]
          %v4009 = vld [vmem:[%s3 + $0x1b0] sm:$0xff]
          %v4010 = vld [vmem:[%s3 + $0x1b8] sm:$0xff]
          %v4011 = vld [vmem:[%s3 + $0x1c0] sm:$0xff]
          %v4012 = vld [vmem:[%s3 + $0x1c8] sm:$0xff]
          %v4013 = vld [vmem:[%s3 + $0x1d0] sm:$0xff]
          %v4014 = vld [vmem:[%s3 + $0x1d8] sm:$0xff]
          %v4015 = vld [vmem:[%s3 + $0x1e0] sm:$0xff]
          %v4016 = vld [vmem:[%s3 + $0x1e8] sm:$0xff]
          %v4017 = vld [vmem:[%s3 + $0x1f0] sm:$0xff]
          %v4018 = vld [vmem:[%s3 + $0x1f8] sm:$0xff]
          %v4019 = vld [vmem:[%s3 + $0x200] sm:$0xff]
          %v4020 = vld [vmem:[%s3 + $0x208] sm:$0xff]
          %v4021 = vld [vmem:[%s3 + $0x210] sm:$0xff]
          %v4022 = vld [vmem:[%s3 + $0x218] sm:$0xff]
          %v4023 = vld [vmem:[%s3 + $0x220] sm:$0xff]
          %v4024 = vld [vmem:[%s3 + $0x228] sm:$0xff]
          %v4025 = vld [vmem:[%s3 + $0x230] sm:$0xff]
          %v4026 = vld [vmem:[%s3 + $0x238] sm:$0xff]
          %v4027 = vld [vmem:[%s3 + $0x240] sm:$0xff]
          %v4028 = vld [vmem:[%s3 + $0x248] sm:$0xff]
          %v4029 = vld [vmem:[%s3 + $0x250] sm:$0xff]
          %v4030 = vld [vmem:[%s3 + $0x258] sm:$0xff]
          %v4031 = vld [vmem:[%s3 + $0x260] sm:$0xff]
          %v4032 = vld [vmem:[%s3 + $0x268] sm:$0xff]
          %v4033 = vld [vmem:[%s3 + $0x270] sm:$0xff]
          %v4034 = vld [vmem:[%s3 + $0x278] sm:$0xff]
          %v4035 = vld [vmem:[%s3 + $0x280] sm:$0xff]
          %v4036 = vld [vmem:[%s3 + $0x288] sm:$0xff]
          %v4037 = vld [vmem:[%s3 + $0x290] sm:$0xff]
          %v4038 = vld [vmem:[%s3 + $0x298] sm:$0xff]
          %v4039 = vld [vmem:[%s3 + $0x2a0] sm:$0xff]
          %v4040 = vld [vmem:[%s3 + $0x2a8] sm:$0xff]
          %v4041 = vld [vmem:[%s3 + $0x2b0] sm:$0xff]
          %v4042 = vld [vmem:[%s3 + $0x2b8] sm:$0xff]
          %v4043 = vld [vmem:[%s3 + $0x2c0] sm:$0xff]
          %v4044 = vld [vmem:[%s3 + $0x2c8] sm:$0xff]
          %v4045 = vld [vmem:[%s3 + $0x2d0] sm:$0xff]
          %v4046 = vld [vmem:[%s3 + $0x2d8] sm:$0xff]
          %v4047 = vld [vmem:[%s3 + $0x2e0] sm:$0xff]
          %v4048 = vld [vmem:[%s3 + $0x2e8] sm:$0xff]
          %v4049 = vld [vmem:[%s3 + $0x2f0] sm:$0xff]
          %v4050 = vld [vmem:[%s3 + $0x2f8] sm:$0xff]
          %v4051 = vld [vmem:[%s3 + $0x300] sm:$0xff]
          %v4052 = vld [vmem:[%s3 + $0x308] sm:$0xff]
          %v4053 = vld [vmem:[%s3 + $0x310] sm:$0xff]
          %v4054 = vld [vmem:[%s3 + $0x318] sm:$0xff]
          %v4055 = vld [vmem:[%s3 + $0x320] sm:$0xff]
          %v4056 = vld [vmem:[%s3 + $0x328] sm:$0xff]
          %v4057 = vld [vmem:[%s3 + $0x330] sm:$0xff]
          %v4058 = vld [vmem:[%s3 + $0x338] sm:$0xff]
          %v4059 = vld [vmem:[%s3 + $0x340] sm:$0xff]
          %v4060 = vld [vmem:[%s3 + $0x348] sm:$0xff]
          %v4061 = vld [vmem:[%s3 + $0x350] sm:$0xff]
          %v4062 = vld [vmem:[%s3 + $0x358] sm:$0xff]
          %v4063 = vld [vmem:[%s3 + $0x360] sm:$0xff]
          %v4064 = vld [vmem:[%s3 + $0x368] sm:$0xff]
          %v4065 = vld [vmem:[%s3 + $0x370] sm:$0xff]
          %v4066 = vld [vmem:[%s3 + $0x378] sm:$0xff]
          %v4067 = vld [vmem:[%s3 + $0x380] sm:$0xff]
          %v4068 = vld [vmem:[%s3 + $0x388] sm:$0xff]
          %v4069 = vld [vmem:[%s3 + $0x390] sm:$0xff]
          %v4070 = vld [vmem:[%s3 + $0x398] sm:$0xff]
          %v4071 = vld [vmem:[%s3 + $0x3a0] sm:$0xff]
          %v4072 = vld [vmem:[%s3 + $0x3a8] sm:$0xff]
          %v4073 = vld [vmem:[%s3 + $0x3b0] sm:$0xff]
          %v4074 = vld [vmem:[%s3 + $0x3b8] sm:$0xff]
          %v4075 = vld [vmem:[%s3 + $0x3c0] sm:$0xff]
          %v4076 = vld [vmem:[%s3 + $0x3c8] sm:$0xff]
          %v4077 = vld [vmem:[%s3 + $0x3d0] sm:$0xff]
          %v4078 = vld [vmem:[%s3 + $0x3d8] sm:$0xff]
          %v4079 = vld [vmem:[%s3 + $0x3e0] sm:$0xff]
          %v4080 = vld [vmem:[%s3 + $0x3e8] sm:$0xff]
          %v4081 = vld [vmem:[%s3 + $0x3f0] sm:$0xff]
          %v4082 = vld [vmem:[%s3 + $0x3f8] sm:$0xff]
          %v4083 = vld [vmem:[%s4] sm:$0xf]
          %v4085 = vlaneseq
          %v4086 = vshrl.u32 %v4085, 7
          %v4087 = vsub.s32 0, %v4086
          %v4088 = vrot.slane %v4083, %v4087
          %v4089 = vlaneseq
          %v4090 = vshrl.u32 %v4089, 7
          %v4091 = vsub.s32 1, %v4090
          %v4092 = vrot.slane %v4083, %v4091
          %v4093 = vlaneseq
          %v4094 = vshrl.u32 %v4093, 7
          %v4095 = vsub.s32 2, %v4094
          %v4096 = vrot.slane %v4083, %v4095
          %v4097 = vlaneseq
          %v4098 = vshrl.u32 %v4097, 7
          %v4099 = vsub.s32 3, %v4098
          %v4100 = vrot.slane %v4083, %v4099
          %4105 = vmatprep.subr.mxu0 %v3956
          %4106 = vmatpush1.msra.mxu0 %v3955
          %4107 = vmatprep.subr.mxu0 %v3960
          %4108 = vmatpush1.msra.mxu0 %v3959
          %4109 = vmatprep.subr.mxu0 %v3964
          %4110 = vmatpush1.msra.mxu0 %v3963
          %4111 = vmatprep.subr.mxu0 %v3968
          %4112 = vmatpush1.msra.mxu0 %v3967
          %4113 = vmatprep.subr.mxu0 %v3972
          %4114 = vmatpush1.msra.mxu0 %v3971
          %4115 = vmatprep.subr.mxu0 %v3976
          %4116 = vmatpush1.msra.mxu0 %v3975
          %4117 = vmatprep.subr.mxu0 %v3980
          %4118 = vmatpush1.msra.mxu0 %v3979
          %4119 = vmatprep.subr.mxu0 %v3984
          %4120 = vmatpush1.msra.mxu0 %v3983
          %4121 = vmatprep.subr.mxu0 %v3988
          %4122 = vmatpush1.msra.mxu0 %v3987
          %4123 = vmatprep.subr.mxu0 %v3992
          %4124 = vmatpush1.msra.mxu0 %v3991
          %4125 = vmatprep.subr.mxu0 %v3996
          %4126 = vmatpush1.msra.mxu0 %v3995
          %4127 = vmatprep.subr.mxu0 %v4000
          %4128 = vmatpush1.msra.mxu0 %v3999
          %4129 = vmatprep.subr.mxu0 %v4004
          %4130 = vmatpush1.msra.mxu0 %v4003
          %4131 = vmatprep.subr.mxu0 %v4008
          %4132 = vmatpush1.msra.mxu0 %v4007
          %4133 = vmatprep.subr.mxu0 %v4012
          %4134 = vmatpush1.msra.mxu0 %v4011
          %4135 = vmatprep.subr.mxu0 %v4016
          %4136 = vmatpush1.msra.mxu0 %v4015
          %4137 = vmatprep.subr.mxu0 %v4020
          %4138 = vmatpush1.msra.mxu0 %v4019
          %4139 = vmatprep.subr.mxu0 %v4024
          %4140 = vmatpush1.msra.mxu0 %v4023
          %4141 = vmatprep.subr.mxu0 %v4028
          %4142 = vmatpush1.msra.mxu0 %v4027
          %4143 = vmatprep.subr.mxu0 %v4032
          %4144 = vmatpush1.msra.mxu0 %v4031
          %4145 = vmatprep.subr.mxu0 %v4036
          %4146 = vmatpush1.msra.mxu0 %v4035
          %4147 = vmatprep.subr.mxu0 %v4040
          %4148 = vmatpush1.msra.mxu0 %v4039
          %4149 = vmatprep.subr.mxu0 %v4044
          %4150 = vmatpush1.msra.mxu0 %v4043
          %4151 = vmatprep.subr.mxu0 %v4048
          %4152 = vmatpush1.msra.mxu0 %v4047
          %4153 = vmatprep.subr.mxu0 %v4052
          %4154 = vmatpush1.msra.mxu0 %v4051
          %4155 = vmatprep.subr.mxu0 %v4056
          %4156 = vmatpush1.msra.mxu0 %v4055
          %4157 = vmatprep.subr.mxu0 %v4060
          %4158 = vmatpush1.msra.mxu0 %v4059
          %4159 = vmatprep.subr.mxu0 %v4064
          %4160 = vmatpush1.msra.mxu0 %v4063
          %4161 = vmatprep.subr.mxu0 %v4068
          %4162 = vmatpush1.msra.mxu0 %v4067
          %4163 = vmatprep.subr.mxu0 %v4072
          %4164 = vmatpush1.msra.mxu0 %v4071
          %4165 = vmatprep.subr.mxu0 %v4076
          %4166 = vmatpush1.msra.mxu0 %v4075
          %4167 = vmatprep.subr.mxu0 %v4080
          %4168 = vmatpush1.msra.mxu0 %v4079
          %4169 = vmatprep.mubr.f32.mxu0 %v3932
          %4170 = vmatmul.mubr.f32.gmra.mrb[0].mxu0 %v3931
          %v4171 = vpop.f32.mrb[0].mxu0
          %v4172 = vadd.f32 %v4088, %v4171
          %v4173 = vpop.f32.mrb[0].mxu0
          %v4174 = vadd.f32 %v4092, %v4173
          %4175 = vmatprep.mubr.f32.mxu0 %v3934
          %4176 = vmatmul.mubr.f32.gmra.mrb[0].mxu0 %v3933
          %v4177 = vpop.f32.mrb[0].mxu0
          %v4178 = vadd.f32 %v4088, %v4177
          %v4179 = vpop.f32.mrb[0].mxu0
          %v4180 = vadd.f32 %v4092, %v4179
          %4181 = vmatprep.mubr.f32.mxu0 %v3936
          %4182 = vmatmul.mubr.f32.gmra.mrb[0].mxu0 %v3935
          %v4183 = vpop.f32.mrb[0].mxu0
          %v4184 = vadd.f32 %v4088, %v4183
          %v4185 = vpop.f32.mrb[0].mxu0
          %v4186 = vadd.f32 %v4092, %v4185
          %4187 = vmatprep.mubr.f32.mxu0 %v3938
          %4188 = vmatmul.mubr.f32.gmra.mrb[0].mxu0 %v3937
          %v4189 = vpop.f32.mrb[0].mxu0
          %v4190 = vadd.f32 %v4088, %v4189
          %v4191 = vpop.f32.mrb[0].mxu0
          %v4192 = vadd.f32 %v4092, %v4191
          %4193 = vmatprep.mubr.f32.mxu0 %v3940
          %4194 = vmatmul.mubr.f32.gmra.mrb[0].mxu0 %v3939
          %v4195 = vpop.f32.mrb[0].mxu0
          %v4196 = vadd.f32 %v4088, %v4195
          %v4197 = vpop.f32.mrb[0].mxu0
          %v4198 = vadd.f32 %v4092, %v4197
          %4199 = vmatprep.mubr.f32.mxu0 %v3942
          %4200 = vmatmul.mubr.f32.gmra.mrb[0].mxu0 %v3941
          %v4201 = vpop.f32.mrb[0].mxu0
          %v4202 = vadd.f32 %v4088, %v4201
          %v4203 = vpop.f32.mrb[0].mxu0
          %v4204 = vadd.f32 %v4092, %v4203
          %4205 = vmatprep.mubr.f32.mxu0 %v3944
          %4206 = vmatmul.mubr.f32.gmra.mrb[0].mxu0 %v3943
          %v4207 = vpop.f32.mrb[0].mxu0
          %v4208 = vadd.f32 %v4088, %v4207
          %v4209 = vpop.f32.mrb[0].mxu0
          %v4210 = vadd.f32 %v4092, %v4209
          %4211 = vmatprep.mubr.f32.mxu0 %v3946
          %4212 = vmatmul.mubr.f32.gmra.mrb[0].mxu0 %v3945
          %v4213 = vpop.f32.mrb[0].mxu0
          %v4214 = vadd.f32 %v4088, %v4213
          %v4215 = vpop.f32.mrb[0].mxu0
          %v4216 = vadd.f32 %v4092, %v4215
          %4217 = vmatprep.mubr.f32.mxu0 %v3948
          %4218 = vmatmul.mubr.f32.gmra.mrb[0].mxu0 %v3947
          %v4219 = vpop.f32.mrb[0].mxu0
          %v4220 = vadd.f32 %v4088, %v4219
          %v4221 = vpop.f32.mrb[0].mxu0
          %v4222 = vadd.f32 %v4092, %v4221
          %4223 = vmatprep.mubr.f32.mxu0 %v3950
          %4224 = vmatmul.mubr.f32.gmra.mrb[0].mxu0 %v3949
          %v4225 = vpop.f32.mrb[0].mxu0
          %v4226 = vadd.f32 %v4088, %v4225
          %v4227 = vpop.f32.mrb[0].mxu0
          %v4228 = vadd.f32 %v4092, %v4227
          %4229 = vmatprep.mubr.f32.mxu0 %v3952
          %4230 = vmatmul.mubr.f32.gmra.mrb[0].mxu0 %v3951
          %v4231 = vpop.f32.mrb[0].mxu0
          %v4232 = vadd.f32 %v4088, %v4231
          %v4233 = vpop.f32.mrb[0].mxu0
          %v4234 = vadd.f32 %v4092, %v4233
          %4235 = vmatprep.mubr.f32.mxu0 %v3954
          %4236 = vmatmul.mubr.f32.gmra.mrb[0].mxu0 %v3953
          %v4237 = vpop.f32.mrb[0].mxu0
          %v4238 = vadd.f32 %v4088, %v4237
          %v4239 = vpop.f32.mrb[0].mxu0
          %v4240 = vadd.f32 %v4092, %v4239
          %4241 = vdwg.mxu0
          %4242 = vmatprep.subr.mxu0 %v3958
          %4243 = vmatpush1.msra.mxu0 %v3957
          %4244 = vmatprep.subr.mxu0 %v3962
          %4245 = vmatpush1.msra.mxu0 %v3961
          %4246 = vmatprep.subr.mxu0 %v3966
          %4247 = vmatpush1.msra.mxu0 %v3965
          %4248 = vmatprep.subr.mxu0 %v3970
          %4249 = vmatpush1.msra.mxu0 %v3969
          %4250 = vmatprep.subr.mxu0 %v3974
          %4251 = vmatpush1.msra.mxu0 %v3973
          %4252 = vmatprep.subr.mxu0 %v3978
          %4253 = vmatpush1.msra.mxu0 %v3977
          %4254 = vmatprep.subr.mxu0 %v3982
          %4255 = vmatpush1.msra.mxu0 %v3981
          %4256 = vmatprep.subr.mxu0 %v3986
          %4257 = vmatpush1.msra.mxu0 %v3985
          %4258 = vmatprep.subr.mxu0 %v3990
          %4259 = vmatpush1.msra.mxu0 %v3989
          %4260 = vmatprep.subr.mxu0 %v3994
          %4261 = vmatpush1.msra.mxu0 %v3993
          %4262 = vmatprep.subr.mxu0 %v3998
          %4263 = vmatpush1.msra.mxu0 %v3997
          %4264 = vmatprep.subr.mxu0 %v4002
          %4265 = vmatpush1.msra.mxu0 %v4001
          %4266 = vmatprep.subr.mxu0 %v4006
          %4267 = vmatpush1.msra.mxu0 %v4005
          %4268 = vmatprep.subr.mxu0 %v4010
          %4269 = vmatpush1.msra.mxu0 %v4009
          %4270 = vmatprep.subr.mxu0 %v4014
          %4271 = vmatpush1.msra.mxu0 %v4013
          %4272 = vmatprep.subr.mxu0 %v4018
          %4273 = vmatpush1.msra.mxu0 %v4017
          %4274 = vmatprep.subr.mxu0 %v4022
          %4275 = vmatpush1.msra.mxu0 %v4021
          %4276 = vmatprep.subr.mxu0 %v4026
          %4277 = vmatpush1.msra.mxu0 %v4025
          %4278 = vmatprep.subr.mxu0 %v4030
          %4279 = vmatpush1.msra.mxu0 %v4029
          %4280 = vmatprep.subr.mxu0 %v4034
          %4281 = vmatpush1.msra.mxu0 %v4033
          %4282 = vmatprep.subr.mxu0 %v4038
          %4283 = vmatpush1.msra.mxu0 %v4037
          %4284 = vmatprep.subr.mxu0 %v4042
          %4285 = vmatpush1.msra.mxu0 %v4041
          %4286 = vmatprep.subr.mxu0 %v4046
          %4287 = vmatpush1.msra.mxu0 %v4045
          %4288 = vmatprep.subr.mxu0 %v4050
          %4289 = vmatpush1.msra.mxu0 %v4049
          %4290 = vmatprep.subr.mxu0 %v4054
          %4291 = vmatpush1.msra.mxu0 %v4053
          %4292 = vmatprep.subr.mxu0 %v4058
          %4293 = vmatpush1.msra.mxu0 %v4057
          %4294 = vmatprep.subr.mxu0 %v4062
          %4295 = vmatpush1.msra.mxu0 %v4061
          %4296 = vmatprep.subr.mxu0 %v4066
          %4297 = vmatpush1.msra.mxu0 %v4065
          %4298 = vmatprep.subr.mxu0 %v4070
          %4299 = vmatpush1.msra.mxu0 %v4069
          %4300 = vmatprep.subr.mxu0 %v4074
          %4301 = vmatpush1.msra.mxu0 %v4073
          %4302 = vmatprep.subr.mxu0 %v4078
          %4303 = vmatpush1.msra.mxu0 %v4077
          %4304 = vmatprep.subr.mxu0 %v4082
          %4305 = vmatpush1.msra.mxu0 %v4081
          %4306 = vmatprep.mubr.f32.mxu0 %v3932
          %4307 = vmatmul.mubr.f32.gmra.mrb[0].mxu0 %v3931
          %v4308 = vpop.f32.mrb[0].mxu0
          %v4309 = vadd.f32 %v4096, %v4308
          %v4310 = vpop.f32.mrb[0].mxu0
          %v4311 = vadd.f32 %v4100, %v4310
          %4312 = vmatprep.mubr.f32.mxu0 %v3934
          %4313 = vmatmul.mubr.f32.gmra.mrb[0].mxu0 %v3933
          %v4314 = vpop.f32.mrb[0].mxu0
          %v4315 = vadd.f32 %v4096, %v4314
          %v4316 = vpop.f32.mrb[0].mxu0
          %v4317 = vadd.f32 %v4100, %v4316
          %4318 = vmatprep.mubr.f32.mxu0 %v3936
          %4319 = vmatmul.mubr.f32.gmra.mrb[0].mxu0 %v3935
          %v4320 = vpop.f32.mrb[0].mxu0
          %v4321 = vadd.f32 %v4096, %v4320
          %v4322 = vpop.f32.mrb[0].mxu0
          %v4323 = vadd.f32 %v4100, %v4322
          %4324 = vmatprep.mubr.f32.mxu0 %v3938
          %4325 = vmatmul.mubr.f32.gmra.mrb[0].mxu0 %v3937
          %v4326 = vpop.f32.mrb[0].mxu0
          %v4327 = vadd.f32 %v4096, %v4326
          %v4328 = vpop.f32.mrb[0].mxu0
          %v4329 = vadd.f32 %v4100, %v4328
          %4330 = vmatprep.mubr.f32.mxu0 %v3940
          %4331 = vmatmul.mubr.f32.gmra.mrb[0].mxu0 %v3939
          %v4332 = vpop.f32.mrb[0].mxu0
          %v4333 = vadd.f32 %v4096, %v4332
          %v4334 = vpop.f32.mrb[0].mxu0
          %v4335 = vadd.f32 %v4100, %v4334
          %4336 = vmatprep.mubr.f32.mxu0 %v3942
          %4337 = vmatmul.mubr.f32.gmra.mrb[0].mxu0 %v3941
          %v4338 = vpop.f32.mrb[0].mxu0
          %v4339 = vadd.f32 %v4096, %v4338
          %v4340 = vpop.f32.mrb[0].mxu0
          %v4341 = vadd.f32 %v4100, %v4340
          %4342 = vmatprep.mubr.f32.mxu0 %v3944
          %4343 = vmatmul.mubr.f32.gmra.mrb[0].mxu0 %v3943
          %v4344 = vpop.f32.mrb[0].mxu0
          %v4345 = vadd.f32 %v4096, %v4344
          %v4346 = vpop.f32.mrb[0].mxu0
          %v4347 = vadd.f32 %v4100, %v4346
          %4348 = vmatprep.mubr.f32.mxu0 %v3946
          %4349 = vmatmul.mubr.f32.gmra.mrb[0].mxu0 %v3945
          %v4350 = vpop.f32.mrb[0].mxu0
          %v4351 = vadd.f32 %v4096, %v4350
          %v4352 = vpop.f32.mrb[0].mxu0
          %v4353 = vadd.f32 %v4100, %v4352
          %4354 = vmatprep.mubr.f32.mxu0 %v3948
          %4355 = vmatmul.mubr.f32.gmra.mrb[0].mxu0 %v3947
          %v4356 = vpop.f32.mrb[0].mxu0
          %v4357 = vadd.f32 %v4096, %v4356
          %v4358 = vpop.f32.mrb[0].mxu0
          %v4359 = vadd.f32 %v4100, %v4358
          %4360 = vmatprep.mubr.f32.mxu0 %v3950
          %4361 = vmatmul.mubr.f32.gmra.mrb[0].mxu0 %v3949
          %v4362 = vpop.f32.mrb[0].mxu0
          %v4363 = vadd.f32 %v4096, %v4362
          %v4364 = vpop.f32.mrb[0].mxu0
          %v4365 = vadd.f32 %v4100, %v4364
          %4366 = vmatprep.mubr.f32.mxu0 %v3952
          %4367 = vmatmul.mubr.f32.gmra.mrb[0].mxu0 %v3951
          %v4368 = vpop.f32.mrb[0].mxu0
          %v4369 = vadd.f32 %v4096, %v4368
          %v4370 = vpop.f32.mrb[0].mxu0
          %v4371 = vadd.f32 %v4100, %v4370
          %4372 = vmatprep.mubr.f32.mxu0 %v3954
          %4373 = vmatmul.mubr.f32.gmra.mrb[0].mxu0 %v3953
          %v4374 = vpop.f32.mrb[0].mxu0
          %v4375 = vadd.f32 %v4096, %v4374
          %v4376 = vpop.f32.mrb[0].mxu0
          %v4377 = vadd.f32 %v4100, %v4376
          %4378 = vdwg.mxu0
          %v4379 = vld [vmem:[%s5] sm:$0xff]
          %v4380 = vld [vmem:[%s5 + $0x8] sm:$0xff]
          %v4381 = vld [vmem:[%s5 + $0x10] sm:$0xff]
          %v4382 = vld [vmem:[%s5 + $0x18] sm:$0xff]
          %v4383 = vld [vmem:[%s5 + $0x20] sm:$0xff]
          %v4384 = vld [vmem:[%s5 + $0x28] sm:$0xff]
          %v4385 = vld [vmem:[%s5 + $0x30] sm:$0xff]
          %v4386 = vld [vmem:[%s5 + $0x38] sm:$0xff]
          %v4387 = vld [vmem:[%s5 + $0x40] sm:$0xff]
          %v4388 = vld [vmem:[%s5 + $0x48] sm:$0xff]
          %v4389 = vld [vmem:[%s5 + $0x50] sm:$0xff]
          %v4390 = vld [vmem:[%s5 + $0x58] sm:$0xff]
          %v4391 = vld [vmem:[%s5 + $0x60] sm:$0xff]
          %v4392 = vld [vmem:[%s5 + $0x68] sm:$0xff]
          %v4393 = vld [vmem:[%s5 + $0x70] sm:$0xff]
          %v4394 = vld [vmem:[%s5 + $0x78] sm:$0xff]
          %v4395 = vld [vmem:[%s5 + $0x80] sm:$0xff]
          %v4396 = vld [vmem:[%s5 + $0x88] sm:$0xff]
          %v4397 = vld [vmem:[%s5 + $0x90] sm:$0xff]
          %v4398 = vld [vmem:[%s5 + $0x98] sm:$0xff]
          %v4399 = vld [vmem:[%s5 + $0xa0] sm:$0xff]
          %v4400 = vld [vmem:[%s5 + $0xa8] sm:$0xff]
          %v4401 = vld [vmem:[%s5 + $0xb0] sm:$0xff]
          %v4402 = vld [vmem:[%s5 + $0xb8] sm:$0xff]
          %v4403 = vld [vmem:[%s5 + $0xc0] sm:$0xff]
          %v4404 = vld [vmem:[%s5 + $0xc8] sm:$0xff]
          %v4405 = vld [vmem:[%s5 + $0xd0] sm:$0xff]
          %v4406 = vld [vmem:[%s5 + $0xd8] sm:$0xff]
          %v4407 = vld [vmem:[%s5 + $0xe0] sm:$0xff]
          %v4408 = vld [vmem:[%s5 + $0xe8] sm:$0xff]
          %v4409 = vld [vmem:[%s5 + $0xf0] sm:$0xff]
          %v4410 = vld [vmem:[%s5 + $0xf8] sm:$0xff]
          %v4411 = vld [vmem:[%s5 + $0x100] sm:$0xff]
          %v4412 = vld [vmem:[%s5 + $0x108] sm:$0xff]
          %v4413 = vld [vmem:[%s5 + $0x110] sm:$0xff]
          %v4414 = vld [vmem:[%s5 + $0x118] sm:$0xff]
          %v4415 = vld [vmem:[%s5 + $0x120] sm:$0xff]
          %v4416 = vld [vmem:[%s5 + $0x128] sm:$0xff]
          %v4417 = vld [vmem:[%s5 + $0x130] sm:$0xff]
          %v4418 = vld [vmem:[%s5 + $0x138] sm:$0xff]
          %v4419 = vld [vmem:[%s5 + $0x140] sm:$0xff]
          %v4420 = vld [vmem:[%s5 + $0x148] sm:$0xff]
          %v4421 = vld [vmem:[%s5 + $0x150] sm:$0xff]
          %v4422 = vld [vmem:[%s5 + $0x158] sm:$0xff]
          %v4423 = vld [vmem:[%s5 + $0x160] sm:$0xff]
          %v4424 = vld [vmem:[%s5 + $0x168] sm:$0xff]
          %v4425 = vld [vmem:[%s5 + $0x170] sm:$0xff]
          %v4426 = vld [vmem:[%s5 + $0x178] sm:$0xff]
          %v4427 = vld [vmem:[%s5 + $0x180] sm:$0xff]
          %v4428 = vld [vmem:[%s5 + $0x188] sm:$0xff]
          %v4429 = vld [vmem:[%s5 + $0x190] sm:$0xff]
          %v4430 = vld [vmem:[%s5 + $0x198] sm:$0xff]
          %v4431 = vld [vmem:[%s5 + $0x1a0] sm:$0xff]
          %v4432 = vld [vmem:[%s5 + $0x1a8] sm:$0xff]
          %v4433 = vld [vmem:[%s5 + $0x1b0] sm:$0xff]
          %v4434 = vld [vmem:[%s5 + $0x1b8] sm:$0xff]
          %v4435 = vld [vmem:[%s5 + $0x1c0] sm:$0xff]
          %v4436 = vld [vmem:[%s5 + $0x1c8] sm:$0xff]
          %v4437 = vld [vmem:[%s5 + $0x1d0] sm:$0xff]
          %v4438 = vld [vmem:[%s5 + $0x1d8] sm:$0xff]
          %v4439 = vld [vmem:[%s5 + $0x1e0] sm:$0xff]
          %v4440 = vld [vmem:[%s5 + $0x1e8] sm:$0xff]
          %v4441 = vld [vmem:[%s5 + $0x1f0] sm:$0xff]
          %v4442 = vld [vmem:[%s5 + $0x1f8] sm:$0xff]
          %v4443 = vld [vmem:[%s5 + $0x200] sm:$0xff]
          %v4444 = vld [vmem:[%s5 + $0x208] sm:$0xff]
          %v4445 = vld [vmem:[%s5 + $0x210] sm:$0xff]
          %v4446 = vld [vmem:[%s5 + $0x218] sm:$0xff]
          %v4447 = vld [vmem:[%s5 + $0x220] sm:$0xff]
          %v4448 = vld [vmem:[%s5 + $0x228] sm:$0xff]
          %v4449 = vld [vmem:[%s5 + $0x230] sm:$0xff]
          %v4450 = vld [vmem:[%s5 + $0x238] sm:$0xff]
          %v4451 = vld [vmem:[%s5 + $0x240] sm:$0xff]
          %v4452 = vld [vmem:[%s5 + $0x248] sm:$0xff]
          %v4453 = vld [vmem:[%s5 + $0x250] sm:$0xff]
          %v4454 = vld [vmem:[%s5 + $0x258] sm:$0xff]
          %v4455 = vld [vmem:[%s5 + $0x260] sm:$0xff]
          %v4456 = vld [vmem:[%s5 + $0x268] sm:$0xff]
          %v4457 = vld [vmem:[%s5 + $0x270] sm:$0xff]
          %v4458 = vld [vmem:[%s5 + $0x278] sm:$0xff]
          %v4459 = vld [vmem:[%s5 + $0x280] sm:$0xff]
          %v4460 = vld [vmem:[%s5 + $0x288] sm:$0xff]
          %v4461 = vld [vmem:[%s5 + $0x290] sm:$0xff]
          %v4462 = vld [vmem:[%s5 + $0x298] sm:$0xff]
          %v4463 = vld [vmem:[%s5 + $0x2a0] sm:$0xff]
          %v4464 = vld [vmem:[%s5 + $0x2a8] sm:$0xff]
          %v4465 = vld [vmem:[%s5 + $0x2b0] sm:$0xff]
          %v4466 = vld [vmem:[%s5 + $0x2b8] sm:$0xff]
          %v4467 = vld [vmem:[%s5 + $0x2c0] sm:$0xff]
          %v4468 = vld [vmem:[%s5 + $0x2c8] sm:$0xff]
          %v4469 = vld [vmem:[%s5 + $0x2d0] sm:$0xff]
          %v4470 = vld [vmem:[%s5 + $0x2d8] sm:$0xff]
          %v4471 = vld [vmem:[%s5 + $0x2e0] sm:$0xff]
          %v4472 = vld [vmem:[%s5 + $0x2e8] sm:$0xff]
          %v4473 = vld [vmem:[%s5 + $0x2f0] sm:$0xff]
          %v4474 = vld [vmem:[%s5 + $0x2f8] sm:$0xff]
          %v4475 = vld [vmem:[%s5 + $0x300] sm:$0xff]
          %v4476 = vld [vmem:[%s5 + $0x308] sm:$0xff]
          %v4477 = vld [vmem:[%s5 + $0x310] sm:$0xff]
          %v4478 = vld [vmem:[%s5 + $0x318] sm:$0xff]
          %v4479 = vld [vmem:[%s5 + $0x320] sm:$0xff]
          %v4480 = vld [vmem:[%s5 + $0x328] sm:$0xff]
          %v4481 = vld [vmem:[%s5 + $0x330] sm:$0xff]
          %v4482 = vld [vmem:[%s5 + $0x338] sm:$0xff]
          %v4483 = vld [vmem:[%s5 + $0x340] sm:$0xff]
          %v4484 = vld [vmem:[%s5 + $0x348] sm:$0xff]
          %v4485 = vld [vmem:[%s5 + $0x350] sm:$0xff]
          %v4486 = vld [vmem:[%s5 + $0x358] sm:$0xff]
          %v4487 = vld [vmem:[%s5 + $0x360] sm:$0xff]
          %v4488 = vld [vmem:[%s5 + $0x368] sm:$0xff]
          %v4489 = vld [vmem:[%s5 + $0x370] sm:$0xff]
          %v4490 = vld [vmem:[%s5 + $0x378] sm:$0xff]
          %v4491 = vld [vmem:[%s5 + $0x380] sm:$0xff]
          %v4492 = vld [vmem:[%s5 + $0x388] sm:$0xff]
          %v4493 = vld [vmem:[%s5 + $0x390] sm:$0xff]
          %v4494 = vld [vmem:[%s5 + $0x398] sm:$0xff]
          %v4495 = vld [vmem:[%s5 + $0x3a0] sm:$0xff]
          %v4496 = vld [vmem:[%s5 + $0x3a8] sm:$0xff]
          %v4497 = vld [vmem:[%s5 + $0x3b0] sm:$0xff]
          %v4498 = vld [vmem:[%s5 + $0x3b8] sm:$0xff]
          %v4499 = vld [vmem:[%s5 + $0x3c0] sm:$0xff]
          %v4500 = vld [vmem:[%s5 + $0x3c8] sm:$0xff]
          %v4501 = vld [vmem:[%s5 + $0x3d0] sm:$0xff]
          %v4502 = vld [vmem:[%s5 + $0x3d8] sm:$0xff]
          %v4503 = vld [vmem:[%s5 + $0x3e0] sm:$0xff]
          %v4504 = vld [vmem:[%s5 + $0x3e8] sm:$0xff]
          %v4505 = vld [vmem:[%s5 + $0x3f0] sm:$0xff]
          %v4506 = vld [vmem:[%s5 + $0x3f8] sm:$0xff]
          %v4507 = vld [vmem:[%s5 + $0x400] sm:$0xff]
          %v4508 = vld [vmem:[%s5 + $0x408] sm:$0xff]
          %v4509 = vld [vmem:[%s5 + $0x410] sm:$0xff]
          %v4510 = vld [vmem:[%s5 + $0x418] sm:$0xff]
          %v4511 = vld [vmem:[%s5 + $0x420] sm:$0xff]
          %v4512 = vld [vmem:[%s5 + $0x428] sm:$0xff]
          %v4513 = vld [vmem:[%s5 + $0x430] sm:$0xff]
          %v4514 = vld [vmem:[%s5 + $0x438] sm:$0xff]
          %v4515 = vld [vmem:[%s5 + $0x440] sm:$0xff]
          %v4516 = vld [vmem:[%s5 + $0x448] sm:$0xff]
          %v4517 = vld [vmem:[%s5 + $0x450] sm:$0xff]
          %v4518 = vld [vmem:[%s5 + $0x458] sm:$0xff]
          %v4519 = vld [vmem:[%s5 + $0x460] sm:$0xff]
          %v4520 = vld [vmem:[%s5 + $0x468] sm:$0xff]
          %v4521 = vld [vmem:[%s5 + $0x470] sm:$0xff]
          %v4522 = vld [vmem:[%s5 + $0x478] sm:$0xff]
          %v4523 = vld [vmem:[%s5 + $0x480] sm:$0xff]
          %v4524 = vld [vmem:[%s5 + $0x488] sm:$0xff]
          %v4525 = vld [vmem:[%s5 + $0x490] sm:$0xff]
          %v4526 = vld [vmem:[%s5 + $0x498] sm:$0xff]
          %v4527 = vld [vmem:[%s5 + $0x4a0] sm:$0xff]
          %v4528 = vld [vmem:[%s5 + $0x4a8] sm:$0xff]
          %v4529 = vld [vmem:[%s5 + $0x4b0] sm:$0xff]
          %v4530 = vld [vmem:[%s5 + $0x4b8] sm:$0xff]
          %v4531 = vld [vmem:[%s5 + $0x4c0] sm:$0xff]
          %v4532 = vld [vmem:[%s5 + $0x4c8] sm:$0xff]
          %v4533 = vld [vmem:[%s5 + $0x4d0] sm:$0xff]
          %v4534 = vld [vmem:[%s5 + $0x4d8] sm:$0xff]
          %v4535 = vld [vmem:[%s5 + $0x4e0] sm:$0xff]
          %v4536 = vld [vmem:[%s5 + $0x4e8] sm:$0xff]
          %v4537 = vld [vmem:[%s5 + $0x4f0] sm:$0xff]
          %v4538 = vld [vmem:[%s5 + $0x4f8] sm:$0xff]
          %v4539 = vld [vmem:[%s5 + $0x500] sm:$0xff]
          %v4540 = vld [vmem:[%s5 + $0x508] sm:$0xff]
          %v4541 = vld [vmem:[%s5 + $0x510] sm:$0xff]
          %v4542 = vld [vmem:[%s5 + $0x518] sm:$0xff]
          %v4543 = vld [vmem:[%s5 + $0x520] sm:$0xff]
          %v4544 = vld [vmem:[%s5 + $0x528] sm:$0xff]
          %v4545 = vld [vmem:[%s5 + $0x530] sm:$0xff]
          %v4546 = vld [vmem:[%s5 + $0x538] sm:$0xff]
          %v4547 = vld [vmem:[%s5 + $0x540] sm:$0xff]
          %v4548 = vld [vmem:[%s5 + $0x548] sm:$0xff]
          %v4549 = vld [vmem:[%s5 + $0x550] sm:$0xff]
          %v4550 = vld [vmem:[%s5 + $0x558] sm:$0xff]
          %v4551 = vld [vmem:[%s5 + $0x560] sm:$0xff]
          %v4552 = vld [vmem:[%s5 + $0x568] sm:$0xff]
          %v4553 = vld [vmem:[%s5 + $0x570] sm:$0xff]
          %v4554 = vld [vmem:[%s5 + $0x578] sm:$0xff]
          %v4555 = vld [vmem:[%s5 + $0x580] sm:$0xff]
          %v4556 = vld [vmem:[%s5 + $0x588] sm:$0xff]
          %v4557 = vld [vmem:[%s5 + $0x590] sm:$0xff]
          %v4558 = vld [vmem:[%s5 + $0x598] sm:$0xff]
          %v4559 = vld [vmem:[%s5 + $0x5a0] sm:$0xff]
          %v4560 = vld [vmem:[%s5 + $0x5a8] sm:$0xff]
          %v4561 = vld [vmem:[%s5 + $0x5b0] sm:$0xff]
          %v4562 = vld [vmem:[%s5 + $0x5b8] sm:$0xff]
          %v4563 = vld [vmem:[%s5 + $0x5c0] sm:$0xff]
          %v4564 = vld [vmem:[%s5 + $0x5c8] sm:$0xff]
          %v4565 = vld [vmem:[%s5 + $0x5d0] sm:$0xff]
          %v4566 = vld [vmem:[%s5 + $0x5d8] sm:$0xff]
          %v4567 = vld [vmem:[%s5 + $0x5e0] sm:$0xff]
          %v4568 = vld [vmem:[%s5 + $0x5e8] sm:$0xff]
          %v4569 = vld [vmem:[%s5 + $0x5f0] sm:$0xff]
          %v4570 = vld [vmem:[%s5 + $0x5f8] sm:$0xff]
          %v4571 = vld [vmem:[%s5 + $0x600] sm:$0xff]
          %v4572 = vld [vmem:[%s5 + $0x608] sm:$0xff]
          %v4573 = vld [vmem:[%s5 + $0x610] sm:$0xff]
          %v4574 = vld [vmem:[%s5 + $0x618] sm:$0xff]
          %v4575 = vld [vmem:[%s5 + $0x620] sm:$0xff]
          %v4576 = vld [vmem:[%s5 + $0x628] sm:$0xff]
          %v4577 = vld [vmem:[%s5 + $0x630] sm:$0xff]
          %v4578 = vld [vmem:[%s5 + $0x638] sm:$0xff]
          %v4579 = vld [vmem:[%s5 + $0x640] sm:$0xff]
          %v4580 = vld [vmem:[%s5 + $0x648] sm:$0xff]
          %v4581 = vld [vmem:[%s5 + $0x650] sm:$0xff]
          %v4582 = vld [vmem:[%s5 + $0x658] sm:$0xff]
          %v4583 = vld [vmem:[%s5 + $0x660] sm:$0xff]
          %v4584 = vld [vmem:[%s5 + $0x668] sm:$0xff]
          %v4585 = vld [vmem:[%s5 + $0x670] sm:$0xff]
          %v4586 = vld [vmem:[%s5 + $0x678] sm:$0xff]
          %v4587 = vld [vmem:[%s5 + $0x680] sm:$0xff]
          %v4588 = vld [vmem:[%s5 + $0x688] sm:$0xff]
          %v4589 = vld [vmem:[%s5 + $0x690] sm:$0xff]
          %v4590 = vld [vmem:[%s5 + $0x698] sm:$0xff]
          %v4591 = vld [vmem:[%s5 + $0x6a0] sm:$0xff]
          %v4592 = vld [vmem:[%s5 + $0x6a8] sm:$0xff]
          %v4593 = vld [vmem:[%s5 + $0x6b0] sm:$0xff]
          %v4594 = vld [vmem:[%s5 + $0x6b8] sm:$0xff]
          %v4595 = vld [vmem:[%s5 + $0x6c0] sm:$0xff]
          %v4596 = vld [vmem:[%s5 + $0x6c8] sm:$0xff]
          %v4597 = vld [vmem:[%s5 + $0x6d0] sm:$0xff]
          %v4598 = vld [vmem:[%s5 + $0x6d8] sm:$0xff]
          %v4599 = vld [vmem:[%s5 + $0x6e0] sm:$0xff]
          %v4600 = vld [vmem:[%s5 + $0x6e8] sm:$0xff]
          %v4601 = vld [vmem:[%s5 + $0x6f0] sm:$0xff]
          %v4602 = vld [vmem:[%s5 + $0x6f8] sm:$0xff]
          %v4603 = vld [vmem:[%s5 + $0x700] sm:$0xff]
          %v4604 = vld [vmem:[%s5 + $0x708] sm:$0xff]
          %v4605 = vld [vmem:[%s5 + $0x710] sm:$0xff]
          %v4606 = vld [vmem:[%s5 + $0x718] sm:$0xff]
          %v4607 = vld [vmem:[%s5 + $0x720] sm:$0xff]
          %v4608 = vld [vmem:[%s5 + $0x728] sm:$0xff]
          %v4609 = vld [vmem:[%s5 + $0x730] sm:$0xff]
          %v4610 = vld [vmem:[%s5 + $0x738] sm:$0xff]
          %v4611 = vld [vmem:[%s5 + $0x740] sm:$0xff]
          %v4612 = vld [vmem:[%s5 + $0x748] sm:$0xff]
          %v4613 = vld [vmem:[%s5 + $0x750] sm:$0xff]
          %v4614 = vld [vmem:[%s5 + $0x758] sm:$0xff]
          %v4615 = vld [vmem:[%s5 + $0x760] sm:$0xff]
          %v4616 = vld [vmem:[%s5 + $0x768] sm:$0xff]
          %v4617 = vld [vmem:[%s5 + $0x770] sm:$0xff]
          %v4618 = vld [vmem:[%s5 + $0x778] sm:$0xff]
          %v4619 = vld [vmem:[%s5 + $0x780] sm:$0xff]
          %v4620 = vld [vmem:[%s5 + $0x788] sm:$0xff]
          %v4621 = vld [vmem:[%s5 + $0x790] sm:$0xff]
          %v4622 = vld [vmem:[%s5 + $0x798] sm:$0xff]
          %v4623 = vld [vmem:[%s5 + $0x7a0] sm:$0xff]
          %v4624 = vld [vmem:[%s5 + $0x7a8] sm:$0xff]
          %v4625 = vld [vmem:[%s5 + $0x7b0] sm:$0xff]
          %v4626 = vld [vmem:[%s5 + $0x7b8] sm:$0xff]
          %v4627 = vld [vmem:[%s5 + $0x7c0] sm:$0xff]
          %v4628 = vld [vmem:[%s5 + $0x7c8] sm:$0xff]
          %v4629 = vld [vmem:[%s5 + $0x7d0] sm:$0xff]
          %v4630 = vld [vmem:[%s5 + $0x7d8] sm:$0xff]
          %v4631 = vld [vmem:[%s5 + $0x7e0] sm:$0xff]
          %v4632 = vld [vmem:[%s5 + $0x7e8] sm:$0xff]
          %v4633 = vld [vmem:[%s5 + $0x7f0] sm:$0xff]
          %v4634 = vld [vmem:[%s5 + $0x7f8] sm:$0xff]
          %v4635 = vld [vmem:[%s6] sm:$0xf]
          %v4637 = vlaneseq
          %v4638 = vshrl.u32 %v4637, 7
          %v4639 = vsub.s32 0, %v4638
          %v4640 = vrot.slane %v4635, %v4639
          %v4641 = vlaneseq
          %v4642 = vshrl.u32 %v4641, 7
          %v4643 = vsub.s32 1, %v4642
          %v4644 = vrot.slane %v4635, %v4643
          %v4645 = vlaneseq
          %v4646 = vshrl.u32 %v4645, 7
          %v4647 = vsub.s32 2, %v4646
          %v4648 = vrot.slane %v4635, %v4647
          %v4649 = vlaneseq
          %v4650 = vshrl.u32 %v4649, 7
          %v4651 = vsub.s32 3, %v4650
          %v4652 = vrot.slane %v4635, %v4651
          %v4657 = vtanh.pop %v4172
          %v4658 = vtanh.pop %v4174
          %v4659 = vtanh.pop %v4309
          %v4660 = vtanh.pop %v4311
          %v4661 = vmul.f32 %v4657, 0.5
          %v4662 = vadd.f32 %v4661, 0.5
          %v4663 = vmul.f32 %v4658, 0.5
          %v4664 = vadd.f32 %v4663, 0.5
          %v4665 = vmul.f32 %v4660, 0.5
          %v4666 = vadd.f32 %v4665, 0.5
          %v4667 = vmul.f32 %v4664, 0.0
          %v4668 = vmul.f32 %v4662, %v4659
          %v4669 = vadd.f32 %v4667, %v4668
          %v4670 = vtanh.pop %v4669
          %v4671 = vmul.f32 %v4666, %v4670
          %4672 = vmatprep.subr.mxu0 %v4380
          %4673 = vmatpush1.msra.mxu0 %v4379
          %4674 = vmatprep.subr.mxu0 %v4388
          %4675 = vmatpush1.msra.mxu0 %v4387
          %4676 = vmatprep.subr.mxu0 %v4396
          %4677 = vmatpush1.msra.mxu0 %v4395
          %4678 = vmatprep.subr.mxu0 %v4404
          %4679 = vmatpush1.msra.mxu0 %v4403
          %4680 = vmatprep.subr.mxu0 %v4412
          %4681 = vmatpush1.msra.mxu0 %v4411
          %4682 = vmatprep.subr.mxu0 %v4420
          %4683 = vmatpush1.msra.mxu0 %v4419
          %4684 = vmatprep.subr.mxu0 %v4428
          %4685 = vmatpush1.msra.mxu0 %v4427
          %4686 = vmatprep.subr.mxu0 %v4436
          %4687 = vmatpush1.msra.mxu0 %v4435
          %4688 = vmatprep.subr.mxu0 %v4444
          %4689 = vmatpush1.msra.mxu0 %v4443
          %4690 = vmatprep.subr.mxu0 %v4452
          %4691 = vmatpush1.msra.mxu0 %v4451
          %4692 = vmatprep.subr.mxu0 %v4460
          %4693 = vmatpush1.msra.mxu0 %v4459
          %4694 = vmatprep.subr.mxu0 %v4468
          %4695 = vmatpush1.msra.mxu0 %v4467
          %4696 = vmatprep.subr.mxu0 %v4476
          %4697 = vmatpush1.msra.mxu0 %v4475
          %4698 = vmatprep.subr.mxu0 %v4484
          %4699 = vmatpush1.msra.mxu0 %v4483
          %4700 = vmatprep.subr.mxu0 %v4492
          %4701 = vmatpush1.msra.mxu0 %v4491
          %4702 = vmatprep.subr.mxu0 %v4500
          %4703 = vmatpush1.msra.mxu0 %v4499
          %4704 = vmatprep.subr.mxu0 %v4508
          %4705 = vmatpush1.msra.mxu0 %v4507
          %4706 = vmatprep.subr.mxu0 %v4516
          %4707 = vmatpush1.msra.mxu0 %v4515
          %4708 = vmatprep.subr.mxu0 %v4524
          %4709 = vmatpush1.msra.mxu0 %v4523
          %4710 = vmatprep.subr.mxu0 %v4532
          %4711 = vmatpush1.msra.mxu0 %v4531
          %4712 = vmatprep.subr.mxu0 %v4540
          %4713 = vmatpush1.msra.mxu0 %v4539
          %4714 = vmatprep.subr.mxu0 %v4548
          %4715 = vmatpush1.msra.mxu0 %v4547
          %4716 = vmatprep.subr.mxu0 %v4556
          %4717 = vmatpush1.msra.mxu0 %v4555
          %4718 = vmatprep.subr.mxu0 %v4564
          %4719 = vmatpush1.msra.mxu0 %v4563
          %4720 = vmatprep.subr.mxu0 %v4572
          %4721 = vmatpush1.msra.mxu0 %v4571
          %4722 = vmatprep.subr.mxu0 %v4580
          %4723 = vmatpush1.msra.mxu0 %v4579
          %4724 = vmatprep.subr.mxu0 %v4588
          %4725 = vmatpush1.msra.mxu0 %v4587
          %4726 = vmatprep.subr.mxu0 %v4596
          %4727 = vmatpush1.msra.mxu0 %v4595
          %4728 = vmatprep.subr.mxu0 %v4604
          %4729 = vmatpush1.msra.mxu0 %v4603
          %4730 = vmatprep.subr.mxu0 %v4612
          %4731 = vmatpush1.msra.mxu0 %v4611
          %4732 = vmatprep.subr.mxu0 %v4620
          %4733 = vmatpush1.msra.mxu0 %v4619
          %4734 = vmatprep.subr.mxu0 %v4628
          %4735 = vmatpush1.msra.mxu0 %v4627
          %4736 = vmatprep.mubr.f32.mxu0 0.0
          %4737 = vmatmul.mubr.f32.gmra.mrb[0].mxu0 %v4671
          %v4738 = vpop.f32.mrb[0].mxu0
          %v4739 = vadd.f32 0.0, %v4738
          %v4740 = vpop.f32.mrb[0].mxu0
          %v4741 = vadd.f32 0.0, %v4740
          %4742 = vdwg.mxu0
          %4743 = vmatprep.subr.mxu0 %v4382
          %4744 = vmatpush1.msra.mxu0 %v4381
          %4745 = vmatprep.subr.mxu0 %v4390
          %4746 = vmatpush1.msra.mxu0 %v4389
          %4747 = vmatprep.subr.mxu0 %v4398
          %4748 = vmatpush1.msra.mxu0 %v4397
          %4749 = vmatprep.subr.mxu0 %v4406
          %4750 = vmatpush1.msra.mxu0 %v4405
          %4751 = vmatprep.subr.mxu0 %v4414
          %4752 = vmatpush1.msra.mxu0 %v4413
          %4753 = vmatprep.subr.mxu0 %v4422
          %4754 = vmatpush1.msra.mxu0 %v4421
          %4755 = vmatprep.subr.mxu0 %v4430
          %4756 = vmatpush1.msra.mxu0 %v4429
          %4757 = vmatprep.subr.mxu0 %v4438
          %4758 = vmatpush1.msra.mxu0 %v4437
          %4759 = vmatprep.subr.mxu0 %v4446
          %4760 = vmatpush1.msra.mxu0 %v4445
          %4761 = vmatprep.subr.mxu0 %v4454
          %4762 = vmatpush1.msra.mxu0 %v4453
          %4763 = vmatprep.subr.mxu0 %v4462
          %4764 = vmatpush1.msra.mxu0 %v4461
          %4765 = vmatprep.subr.mxu0 %v4470
          %4766 = vmatpush1.msra.mxu0 %v4469
          %4767 = vmatprep.subr.mxu0 %v4478
          %4768 = vmatpush1.msra.mxu0 %v4477
          %4769 = vmatprep.subr.mxu0 %v4486
          %4770 = vmatpush1.msra.mxu0 %v4485
          %4771 = vmatprep.subr.mxu0 %v4494
          %4772 = vmatpush1.msra.mxu0 %v4493
          %4773 = vmatprep.subr.mxu0 %v4502
          %4774 = vmatpush1.msra.mxu0 %v4501
          %4775 = vmatprep.subr.mxu0 %v4510
          %4776 = vmatpush1.msra.mxu0 %v4509
          %4777 = vmatprep.subr.mxu0 %v4518
          %4778 = vmatpush1.msra.mxu0 %v4517
          %4779 = vmatprep.subr.mxu0 %v4526
          %4780 = vmatpush1.msra.mxu0 %v4525
          %4781 = vmatprep.subr.mxu0 %v4534
          %4782 = vmatpush1.msra.mxu0 %v4533
          %4783 = vmatprep.subr.mxu0 %v4542
          %4784 = vmatpush1.msra.mxu0 %v4541
          %4785 = vmatprep.subr.mxu0 %v4550
          %4786 = vmatpush1.msra.mxu0 %v4549
          %4787 = vmatprep.subr.mxu0 %v4558
          %4788 = vmatpush1.msra.mxu0 %v4557
          %4789 = vmatprep.subr.mxu0 %v4566
          %4790 = vmatpush1.msra.mxu0 %v4565
          %4791 = vmatprep.subr.mxu0 %v4574
          %4792 = vmatpush1.msra.mxu0 %v4573
          %4793 = vmatprep.subr.mxu0 %v4582
          %4794 = vmatpush1.msra.mxu0 %v4581
          %4795 = vmatprep.subr.mxu0 %v4590
          %4796 = vmatpush1.msra.mxu0 %v4589
          %4797 = vmatprep.subr.mxu0 %v4598
          %4798 = vmatpush1.msra.mxu0 %v4597
          %4799 = vmatprep.subr.mxu0 %v4606
          %4800 = vmatpush1.msra.mxu0 %v4605
          %4801 = vmatprep.subr.mxu0 %v4614
          %4802 = vmatpush1.msra.mxu0 %v4613
          %4803 = vmatprep.subr.mxu0 %v4622
          %4804 = vmatpush1.msra.mxu0 %v4621
          %4805 = vmatprep.subr.mxu0 %v4630
          %4806 = vmatpush1.msra.mxu0 %v4629
          %4807 = vmatprep.mubr.f32.mxu0 0.0
          %4808 = vmatmul.mubr.f32.gmra.mrb[0].mxu0 %v4671
          %v4809 = vpop.f32.mrb[0].mxu0
          %v4810 = vadd.f32 0.0, %v4809
          %v4811 = vpop.f32.mrb[0].mxu0
          %v4812 = vadd.f32 0.0, %v4811
          %4813 = vdwg.mxu0
          %4814 = vmatprep.subr.mxu0 %v4384
          %4815 = vmatpush1.msra.mxu0 %v4383
          %4816 = vmatprep.subr.mxu0 %v4392
          %4817 = vmatpush1.msra.mxu0 %v4391
          %4818 = vmatprep.subr.mxu0 %v4400
          %4819 = vmatpush1.msra.mxu0 %v4399
          %4820 = vmatprep.subr.mxu0 %v4408
          %4821 = vmatpush1.msra.mxu0 %v4407
          %4822 = vmatprep.subr.mxu0 %v4416
          %4823 = vmatpush1.msra.mxu0 %v4415
          %4824 = vmatprep.subr.mxu0 %v4424
          %4825 = vmatpush1.msra.mxu0 %v4423
          %4826 = vmatprep.subr.mxu0 %v4432
          %4827 = vmatpush1.msra.mxu0 %v4431
          %4828 = vmatprep.subr.mxu0 %v4440
          %4829 = vmatpush1.msra.mxu0 %v4439
          %4830 = vmatprep.subr.mxu0 %v4448
          %4831 = vmatpush1.msra.mxu0 %v4447
          %4832 = vmatprep.subr.mxu0 %v4456
          %4833 = vmatpush1.msra.mxu0 %v4455
          %4834 = vmatprep.subr.mxu0 %v4464
          %4835 = vmatpush1.msra.mxu0 %v4463
          %4836 = vmatprep.subr.mxu0 %v4472
          %4837 = vmatpush1.msra.mxu0 %v4471
          %4838 = vmatprep.subr.mxu0 %v4480
          %4839 = vmatpush1.msra.mxu0 %v4479
          %4840 = vmatprep.subr.mxu0 %v4488
          %4841 = vmatpush1.msra.mxu0 %v4487
          %4842 = vmatprep.subr.mxu0 %v4496
          %4843 = vmatpush1.msra.mxu0 %v4495
          %4844 = vmatprep.subr.mxu0 %v4504
          %4845 = vmatpush1.msra.mxu0 %v4503
          %4846 = vmatprep.subr.mxu0 %v4512
          %4847 = vmatpush1.msra.mxu0 %v4511
          %4848 = vmatprep.subr.mxu0 %v4520
          %4849 = vmatpush1.msra.mxu0 %v4519
          %4850 = vmatprep.subr.mxu0 %v4528
          %4851 = vmatpush1.msra.mxu0 %v4527
          %4852 = vmatprep.subr.mxu0 %v4536
          %4853 = vmatpush1.msra.mxu0 %v4535
          %4854 = vmatprep.subr.mxu0 %v4544
          %4855 = vmatpush1.msra.mxu0 %v4543
          %4856 = vmatprep.subr.mxu0 %v4552
          %4857 = vmatpush1.msra.mxu0 %v4551
          %4858 = vmatprep.subr.mxu0 %v4560
          %4859 = vmatpush1.msra.mxu0 %v4559
          %4860 = vmatprep.subr.mxu0 %v4568
          %4861 = vmatpush1.msra.mxu0 %v4567
          %4862 = vmatprep.subr.mxu0 %v4576
          %4863 = vmatpush1.msra.mxu0 %v4575
          %4864 = vmatprep.subr.mxu0 %v4584
          %4865 = vmatpush1.msra.mxu0 %v4583
          %4866 = vmatprep.subr.mxu0 %v4592
          %4867 = vmatpush1.msra.mxu0 %v4591
          %4868 = vmatprep.subr.mxu0 %v4600
          %4869 = vmatpush1.msra.mxu0 %v4599
          %4870 = vmatprep.subr.mxu0 %v4608
          %4871 = vmatpush1.msra.mxu0 %v4607
          %4872 = vmatprep.subr.mxu0 %v4616
          %4873 = vmatpush1.msra.mxu0 %v4615
          %4874 = vmatprep.subr.mxu0 %v4624
          %4875 = vmatpush1.msra.mxu0 %v4623
          %4876 = vmatprep.subr.mxu0 %v4632
          %4877 = vmatpush1.msra.mxu0 %v4631
          %4878 = vmatprep.mubr.f32.mxu0 0.0
          %4879 = vmatmul.mubr.f32.gmra.mrb[0].mxu0 %v4671
          %v4880 = vpop.f32.mrb[0].mxu0
          %v4881 = vadd.f32 0.0, %v4880
          %v4882 = vpop.f32.mrb[0].mxu0
          %v4883 = vadd.f32 0.0, %v4882
          %4884 = vdwg.mxu0
          %4885 = vmatprep.subr.mxu0 %v4386
          %4886 = vmatpush1.msra.mxu0 %v4385
          %4887 = vmatprep.subr.mxu0 %v4394
          %4888 = vmatpush1.msra.mxu0 %v4393
          %4889 = vmatprep.subr.mxu0 %v4402
          %4890 = vmatpush1.msra.mxu0 %v4401
          %4891 = vmatprep.subr.mxu0 %v4410
          %4892 = vmatpush1.msra.mxu0 %v4409
          %4893 = vmatprep.subr.mxu0 %v4418
          %4894 = vmatpush1.msra.mxu0 %v4417
          %4895 = vmatprep.subr.mxu0 %v4426
          %4896 = vmatpush1.msra.mxu0 %v4425
          %4897 = vmatprep.subr.mxu0 %v4434
          %4898 = vmatpush1.msra.mxu0 %v4433
          %4899 = vmatprep.subr.mxu0 %v4442
          %4900 = vmatpush1.msra.mxu0 %v4441
          %4901 = vmatprep.subr.mxu0 %v4450
          %4902 = vmatpush1.msra.mxu0 %v4449
          %4903 = vmatprep.subr.mxu0 %v4458
          %4904 = vmatpush1.msra.mxu0 %v4457
          %4905 = vmatprep.subr.mxu0 %v4466
          %4906 = vmatpush1.msra.mxu0 %v4465
          %4907 = vmatprep.subr.mxu0 %v4474
          %4908 = vmatpush1.msra.mxu0 %v4473
          %4909 = vmatprep.subr.mxu0 %v4482
          %4910 = vmatpush1.msra.mxu0 %v4481
          %4911 = vmatprep.subr.mxu0 %v4490
          %4912 = vmatpush1.msra.mxu0 %v4489
          %4913 = vmatprep.subr.mxu0 %v4498
          %4914 = vmatpush1.msra.mxu0 %v4497
          %4915 = vmatprep.subr.mxu0 %v4506
          %4916 = vmatpush1.msra.mxu0 %v4505
          %4917 = vmatprep.subr.mxu0 %v4514
          %4918 = vmatpush1.msra.mxu0 %v4513
          %4919 = vmatprep.subr.mxu0 %v4522
          %4920 = vmatpush1.msra.mxu0 %v4521
          %4921 = vmatprep.subr.mxu0 %v4530
          %4922 = vmatpush1.msra.mxu0 %v4529
          %4923 = vmatprep.subr.mxu0 %v4538
          %4924 = vmatpush1.msra.mxu0 %v4537
          %4925 = vmatprep.subr.mxu0 %v4546
          %4926 = vmatpush1.msra.mxu0 %v4545
          %4927 = vmatprep.subr.mxu0 %v4554
          %4928 = vmatpush1.msra.mxu0 %v4553
          %4929 = vmatprep.subr.mxu0 %v4562
          %4930 = vmatpush1.msra.mxu0 %v4561
          %4931 = vmatprep.subr.mxu0 %v4570
          %4932 = vmatpush1.msra.mxu0 %v4569
          %4933 = vmatprep.subr.mxu0 %v4578
          %4934 = vmatpush1.msra.mxu0 %v4577
          %4935 = vmatprep.subr.mxu0 %v4586
          %4936 = vmatpush1.msra.mxu0 %v4585
          %4937 = vmatprep.subr.mxu0 %v4594
          %4938 = vmatpush1.msra.mxu0 %v4593
          %4939 = vmatprep.subr.mxu0 %v4602
          %4940 = vmatpush1.msra.mxu0 %v4601
          %4941 = vmatprep.subr.mxu0 %v4610
          %4942 = vmatpush1.msra.mxu0 %v4609
          %4943 = vmatprep.subr.mxu0 %v4618
          %4944 = vmatpush1.msra.mxu0 %v4617
          %4945 = vmatprep.subr.mxu0 %v4626
          %4946 = vmatpush1.msra.mxu0 %v4625
          %4947 = vmatprep.subr.mxu0 %v4634
          %4948 = vmatpush1.msra.mxu0 %v4633
          %4949 = vmatprep.mubr.f32.mxu0 0.0
          %4950 = vmatmul.mubr.f32.gmra.mrb[0].mxu0 %v4671
          %v4951 = vpop.f32.mrb[0].mxu0
          %v4952 = vadd.f32 0.0, %v4951
          %v4953 = vpop.f32.mrb[0].mxu0
          %v4954 = vadd.f32 0.0, %v4953
          %4955 = vdwg.mxu0
          %v4956 = vadd.f32 %v4178, %v4739
          %v4957 = vadd.f32 %v4180, %v4741
          %v4958 = vadd.f32 %v4315, %v4810
          %v4959 = vadd.f32 %v4317, %v4812
          %v4960 = vtanh.pop %v4956
          %v4961 = vtanh.pop %v4957
          %v4962 = vtanh.pop %v4958
          %v4963 = vtanh.pop %v4959
          %v4964 = vmul.f32 %v4960, 0.5
          %v4965 = vadd.f32 %v4964, 0.5
          %v4966 = vmul.f32 %v4961, 0.5
          %v4967 = vadd.f32 %v4966, 0.5
          %v4968 = vmul.f32 %v4963, 0.5
          %v4969 = vadd.f32 %v4968, 0.5
          %v4970 = vmul.f32 %v4967, %v4669
          %v4971 = vmul.f32 %v4965, %v4962
          %v4972 = vadd.f32 %v4970, %v4971
          %v4973 = vtanh.pop %v4972
          %v4974 = vmul.f32 %v4969, %v4973
          %v4975 = vadd.f32 %v4881, %v4640
          %v4976 = vadd.f32 %v4883, %v4644
          %v4977 = vadd.f32 %v4952, %v4648
          %v4978 = vadd.f32 %v4954, %v4652
          %v4979 = vtanh.pop %v4975
          %v4980 = vtanh.pop %v4976
          %v4981 = vtanh.pop %v4977
          %v4982 = vtanh.pop %v4978
          %v4983 = vmul.f32 %v4979, 0.5
          %v4984 = vadd.f32 %v4983, 0.5
          %v4985 = vmul.f32 %v4980, 0.5
          %v4986 = vadd.f32 %v4985, 0.5
          %v4987 = vmul.f32 %v4982, 0.5
          %v4988 = vadd.f32 %v4987, 0.5
          %v4989 = vmul.f32 %v4986, 0.0
          %v4990 = vmul.f32 %v4984, %v4981
          %v4991 = vadd.f32 %v4989, %v4990
          %v4992 = vtanh.pop %v4991
          %v4993 = vmul.f32 %v4988, %v4992
          %4994 = vmatprep.subr.mxu0 %v4380
          %4995 = vmatpush1.msra.mxu0 %v4379
          %4996 = vmatprep.subr.mxu0 %v4388
          %4997 = vmatpush1.msra.mxu0 %v4387
          %4998 = vmatprep.subr.mxu0 %v4396
          %4999 = vmatpush1.msra.mxu0 %v4395
          %5000 = vmatprep.subr.mxu0 %v4404
          %5001 = vmatpush1.msra.mxu0 %v4403
          %5002 = vmatprep.subr.mxu0 %v4412
          %5003 = vmatpush1.msra.mxu0 %v4411
          %5004 = vmatprep.subr.mxu0 %v4420
          %5005 = vmatpush1.msra.mxu0 %v4419
          %5006 = vmatprep.subr.mxu0 %v4428
          %5007 = vmatpush1.msra.mxu0 %v4427
          %5008 = vmatprep.subr.mxu0 %v4436
          %5009 = vmatpush1.msra.mxu0 %v4435
          %5010 = vmatprep.subr.mxu0 %v4444
          %5011 = vmatpush1.msra.mxu0 %v4443
          %5012 = vmatprep.subr.mxu0 %v4452
          %5013 = vmatpush1.msra.mxu0 %v4451
          %5014 = vmatprep.subr.mxu0 %v4460
          %5015 = vmatpush1.msra.mxu0 %v4459
          %5016 = vmatprep.subr.mxu0 %v4468
          %5017 = vmatpush1.msra.mxu0 %v4467
          %5018 = vmatprep.subr.mxu0 %v4476
          %5019 = vmatpush1.msra.mxu0 %v4475
          %5020 = vmatprep.subr.mxu0 %v4484
          %5021 = vmatpush1.msra.mxu0 %v4483
          %5022 = vmatprep.subr.mxu0 %v4492
          %5023 = vmatpush1.msra.mxu0 %v4491
          %5024 = vmatprep.subr.mxu0 %v4500
          %5025 = vmatpush1.msra.mxu0 %v4499
          %5026 = vmatprep.subr.mxu0 %v4508
          %5027 = vmatpush1.msra.mxu0 %v4507
          %5028 = vmatprep.subr.mxu0 %v4516
          %5029 = vmatpush1.msra.mxu0 %v4515
          %5030 = vmatprep.subr.mxu0 %v4524
          %5031 = vmatpush1.msra.mxu0 %v4523
          %5032 = vmatprep.subr.mxu0 %v4532
          %5033 = vmatpush1.msra.mxu0 %v4531
          %5034 = vmatprep.subr.mxu0 %v4540
          %5035 = vmatpush1.msra.mxu0 %v4539
          %5036 = vmatprep.subr.mxu0 %v4548
          %5037 = vmatpush1.msra.mxu0 %v4547
          %5038 = vmatprep.subr.mxu0 %v4556
          %5039 = vmatpush1.msra.mxu0 %v4555
          %5040 = vmatprep.subr.mxu0 %v4564
          %5041 = vmatpush1.msra.mxu0 %v4563
          %5042 = vmatprep.subr.mxu0 %v4572
          %5043 = vmatpush1.msra.mxu0 %v4571
          %5044 = vmatprep.subr.mxu0 %v4580
          %5045 = vmatpush1.msra.mxu0 %v4579
          %5046 = vmatprep.subr.mxu0 %v4588
          %5047 = vmatpush1.msra.mxu0 %v4587
          %5048 = vmatprep.subr.mxu0 %v4596
          %5049 = vmatpush1.msra.mxu0 %v4595
          %5050 = vmatprep.subr.mxu0 %v4604
          %5051 = vmatpush1.msra.mxu0 %v4603
          %5052 = vmatprep.subr.mxu0 %v4612
          %5053 = vmatpush1.msra.mxu0 %v4611
          %5054 = vmatprep.subr.mxu0 %v4620
          %5055 = vmatpush1.msra.mxu0 %v4619
          %5056 = vmatprep.subr.mxu0 %v4628
          %5057 = vmatpush1.msra.mxu0 %v4627
          %5058 = vmatprep.mubr.f32.mxu0 %v4993
          %5059 = vmatmul.mubr.f32.gmra.mrb[0].mxu0 %v4974
          %v5060 = vpop.f32.mrb[0].mxu0
          %v5061 = vadd.f32 0.0, %v5060
          %v5062 = vpop.f32.mrb[0].mxu0
          %v5063 = vadd.f32 0.0, %v5062
          %5064 = vdwg.mxu0
          %5065 = vmatprep.subr.mxu0 %v4382
          %5066 = vmatpush1.msra.mxu0 %v4381
          %5067 = vmatprep.subr.mxu0 %v4390
          %5068 = vmatpush1.msra.mxu0 %v4389
          %5069 = vmatprep.subr.mxu0 %v4398
          %5070 = vmatpush1.msra.mxu0 %v4397
          %5071 = vmatprep.subr.mxu0 %v4406
          %5072 = vmatpush1.msra.mxu0 %v4405
          %5073 = vmatprep.subr.mxu0 %v4414
          %5074 = vmatpush1.msra.mxu0 %v4413
          %5075 = vmatprep.subr.mxu0 %v4422
          %5076 = vmatpush1.msra.mxu0 %v4421
          %5077 = vmatprep.subr.mxu0 %v4430
          %5078 = vmatpush1.msra.mxu0 %v4429
          %5079 = vmatprep.subr.mxu0 %v4438
          %5080 = vmatpush1.msra.mxu0 %v4437
          %5081 = vmatprep.subr.mxu0 %v4446
          %5082 = vmatpush1.msra.mxu0 %v4445
          %5083 = vmatprep.subr.mxu0 %v4454
          %5084 = vmatpush1.msra.mxu0 %v4453
          %5085 = vmatprep.subr.mxu0 %v4462
          %5086 = vmatpush1.msra.mxu0 %v4461
          %5087 = vmatprep.subr.mxu0 %v4470
          %5088 = vmatpush1.msra.mxu0 %v4469
          %5089 = vmatprep.subr.mxu0 %v4478
          %5090 = vmatpush1.msra.mxu0 %v4477
          %5091 = vmatprep.subr.mxu0 %v4486
          %5092 = vmatpush1.msra.mxu0 %v4485
          %5093 = vmatprep.subr.mxu0 %v4494
          %5094 = vmatpush1.msra.mxu0 %v4493
          %5095 = vmatprep.subr.mxu0 %v4502
          %5096 = vmatpush1.msra.mxu0 %v4501
          %5097 = vmatprep.subr.mxu0 %v4510
          %5098 = vmatpush1.msra.mxu0 %v4509
          %5099 = vmatprep.subr.mxu0 %v4518
          %5100 = vmatpush1.msra.mxu0 %v4517
          %5101 = vmatprep.subr.mxu0 %v4526
          %5102 = vmatpush1.msra.mxu0 %v4525
          %5103 = vmatprep.subr.mxu0 %v4534
          %5104 = vmatpush1.msra.mxu0 %v4533
          %5105 = vmatprep.subr.mxu0 %v4542
          %5106 = vmatpush1.msra.mxu0 %v4541
          %5107 = vmatprep.subr.mxu0 %v4550
          %5108 = vmatpush1.msra.mxu0 %v4549
          %5109 = vmatprep.subr.mxu0 %v4558
          %5110 = vmatpush1.msra.mxu0 %v4557
          %5111 = vmatprep.subr.mxu0 %v4566
          %5112 = vmatpush1.msra.mxu0 %v4565
          %5113 = vmatprep.subr.mxu0 %v4574
          %5114 = vmatpush1.msra.mxu0 %v4573
          %5115 = vmatprep.subr.mxu0 %v4582
          %5116 = vmatpush1.msra.mxu0 %v4581
          %5117 = vmatprep.subr.mxu0 %v4590
          %5118 = vmatpush1.msra.mxu0 %v4589
          %5119 = vmatprep.subr.mxu0 %v4598
          %5120 = vmatpush1.msra.mxu0 %v4597
          %5121 = vmatprep.subr.mxu0 %v4606
          %5122 = vmatpush1.msra.mxu0 %v4605
          %5123 = vmatprep.subr.mxu0 %v4614
          %5124 = vmatpush1.msra.mxu0 %v4613
          %5125 = vmatprep.subr.mxu0 %v4622
          %5126 = vmatpush1.msra.mxu0 %v4621
          %5127 = vmatprep.subr.mxu0 %v4630
          %5128 = vmatpush1.msra.mxu0 %v4629
          %5129 = vmatprep.mubr.f32.mxu0 %v4993
          %5130 = vmatmul.mubr.f32.gmra.mrb[0].mxu0 %v4974
          %v5131 = vpop.f32.mrb[0].mxu0
          %v5132 = vadd.f32 0.0, %v5131
          %v5133 = vpop.f32.mrb[0].mxu0
          %v5134 = vadd.f32 0.0, %v5133
          %5135 = vdwg.mxu0
          %5136 = vmatprep.subr.mxu0 %v4384
          %5137 = vmatpush1.msra.mxu0 %v4383
          %5138 = vmatprep.subr.mxu0 %v4392
          %5139 = vmatpush1.msra.mxu0 %v4391
          %5140 = vmatprep.subr.mxu0 %v4400
          %5141 = vmatpush1.msra.mxu0 %v4399
          %5142 = vmatprep.subr.mxu0 %v4408
          %5143 = vmatpush1.msra.mxu0 %v4407
          %5144 = vmatprep.subr.mxu0 %v4416
          %5145 = vmatpush1.msra.mxu0 %v4415
          %5146 = vmatprep.subr.mxu0 %v4424
          %5147 = vmatpush1.msra.mxu0 %v4423
          %5148 = vmatprep.subr.mxu0 %v4432
          %5149 = vmatpush1.msra.mxu0 %v4431
          %5150 = vmatprep.subr.mxu0 %v4440
          %5151 = vmatpush1.msra.mxu0 %v4439
          %5152 = vmatprep.subr.mxu0 %v4448
          %5153 = vmatpush1.msra.mxu0 %v4447
          %5154 = vmatprep.subr.mxu0 %v4456
          %5155 = vmatpush1.msra.mxu0 %v4455
          %5156 = vmatprep.subr.mxu0 %v4464
          %5157 = vmatpush1.msra.mxu0 %v4463
          %5158 = vmatprep.subr.mxu0 %v4472
          %5159 = vmatpush1.msra.mxu0 %v4471
          %5160 = vmatprep.subr.mxu0 %v4480
          %5161 = vmatpush1.msra.mxu0 %v4479
          %5162 = vmatprep.subr.mxu0 %v4488
          %5163 = vmatpush1.msra.mxu0 %v4487
          %5164 = vmatprep.subr.mxu0 %v4496
          %5165 = vmatpush1.msra.mxu0 %v4495
          %5166 = vmatprep.subr.mxu0 %v4504
          %5167 = vmatpush1.msra.mxu0 %v4503
          %5168 = vmatprep.subr.mxu0 %v4512
          %5169 = vmatpush1.msra.mxu0 %v4511
          %5170 = vmatprep.subr.mxu0 %v4520
          %5171 = vmatpush1.msra.mxu0 %v4519
          %5172 = vmatprep.subr.mxu0 %v4528
          %5173 = vmatpush1.msra.mxu0 %v4527
          %5174 = vmatprep.subr.mxu0 %v4536
          %5175 = vmatpush1.msra.mxu0 %v4535
          %5176 = vmatprep.subr.mxu0 %v4544
          %5177 = vmatpush1.msra.mxu0 %v4543
          %5178 = vmatprep.subr.mxu0 %v4552
          %5179 = vmatpush1.msra.mxu0 %v4551
          %5180 = vmatprep.subr.mxu0 %v4560
          %5181 = vmatpush1.msra.mxu0 %v4559
          %5182 = vmatprep.subr.mxu0 %v4568
          %5183 = vmatpush1.msra.mxu0 %v4567
          %5184 = vmatprep.subr.mxu0 %v4576
          %5185 = vmatpush1.msra.mxu0 %v4575
          %5186 = vmatprep.subr.mxu0 %v4584
          %5187 = vmatpush1.msra.mxu0 %v4583
          %5188 = vmatprep.subr.mxu0 %v4592
          %5189 = vmatpush1.msra.mxu0 %v4591
          %5190 = vmatprep.subr.mxu0 %v4600
          %5191 = vmatpush1.msra.mxu0 %v4599
          %5192 = vmatprep.subr.mxu0 %v4608
          %5193 = vmatpush1.msra.mxu0 %v4607
          %5194 = vmatprep.subr.mxu0 %v4616
          %5195 = vmatpush1.msra.mxu0 %v4615
          %5196 = vmatprep.subr.mxu0 %v4624
          %5197 = vmatpush1.msra.mxu0 %v4623
          %5198 = vmatprep.subr.mxu0 %v4632
          %5199 = vmatpush1.msra.mxu0 %v4631
          %5200 = vmatprep.mubr.f32.mxu0 %v4993
          %5201 = vmatmul.mubr.f32.gmra.mrb[0].mxu0 %v4974
          %v5202 = vpop.f32.mrb[0].mxu0
          %v5203 = vadd.f32 0.0, %v5202
          %v5204 = vpop.f32.mrb[0].mxu0
          %v5205 = vadd.f32 0.0, %v5204
          %5206 = vdwg.mxu0
          %5207 = vmatprep.subr.mxu0 %v4386
          %5208 = vmatpush1.msra.mxu0 %v4385
          %5209 = vmatprep.subr.mxu0 %v4394
          %5210 = vmatpush1.msra.mxu0 %v4393
          %5211 = vmatprep.subr.mxu0 %v4402
          %5212 = vmatpush1.msra.mxu0 %v4401
          %5213 = vmatprep.subr.mxu0 %v4410
          %5214 = vmatpush1.msra.mxu0 %v4409
          %5215 = vmatprep.subr.mxu0 %v4418
          %5216 = vmatpush1.msra.mxu0 %v4417
          %5217 = vmatprep.subr.mxu0 %v4426
          %5218 = vmatpush1.msra.mxu0 %v4425
          %5219 = vmatprep.subr.mxu0 %v4434
          %5220 = vmatpush1.msra.mxu0 %v4433
          %5221 = vmatprep.subr.mxu0 %v4442
          %5222 = vmatpush1.msra.mxu0 %v4441
          %5223 = vmatprep.subr.mxu0 %v4450
          %5224 = vmatpush1.msra.mxu0 %v4449
          %5225 = vmatprep.subr.mxu0 %v4458
          %5226 = vmatpush1.msra.mxu0 %v4457
          %5227 = vmatprep.subr.mxu0 %v4466
          %5228 = vmatpush1.msra.mxu0 %v4465
          %5229 = vmatprep.subr.mxu0 %v4474
          %5230 = vmatpush1.msra.mxu0 %v4473
          %5231 = vmatprep.subr.mxu0 %v4482
          %5232 = vmatpush1.msra.mxu0 %v4481
          %5233 = vmatprep.subr.mxu0 %v4490
          %5234 = vmatpush1.msra.mxu0 %v4489
          %5235 = vmatprep.subr.mxu0 %v4498
          %5236 = vmatpush1.msra.mxu0 %v4497
          %5237 = vmatprep.subr.mxu0 %v4506
          %5238 = vmatpush1.msra.mxu0 %v4505
          %5239 = vmatprep.subr.mxu0 %v4514
          %5240 = vmatpush1.msra.mxu0 %v4513
          %5241 = vmatprep.subr.mxu0 %v4522
          %5242 = vmatpush1.msra.mxu0 %v4521
          %5243 = vmatprep.subr.mxu0 %v4530
          %5244 = vmatpush1.msra.mxu0 %v4529
          %5245 = vmatprep.subr.mxu0 %v4538
          %5246 = vmatpush1.msra.mxu0 %v4537
          %5247 = vmatprep.subr.mxu0 %v4546
          %5248 = vmatpush1.msra.mxu0 %v4545
          %5249 = vmatprep.subr.mxu0 %v4554
          %5250 = vmatpush1.msra.mxu0 %v4553
          %5251 = vmatprep.subr.mxu0 %v4562
          %5252 = vmatpush1.msra.mxu0 %v4561
          %5253 = vmatprep.subr.mxu0 %v4570
          %5254 = vmatpush1.msra.mxu0 %v4569
          %5255 = vmatprep.subr.mxu0 %v4578
          %5256 = vmatpush1.msra.mxu0 %v4577
          %5257 = vmatprep.subr.mxu0 %v4586
          %5258 = vmatpush1.msra.mxu0 %v4585
          %5259 = vmatprep.subr.mxu0 %v4594
          %5260 = vmatpush1.msra.mxu0 %v4593
          %5261 = vmatprep.subr.mxu0 %v4602
          %5262 = vmatpush1.msra.mxu0 %v4601
          %5263 = vmatprep.subr.mxu0 %v4610
          %5264 = vmatpush1.msra.mxu0 %v4609
          %5265 = vmatprep.subr.mxu0 %v4618
          %5266 = vmatpush1.msra.mxu0 %v4617
          %5267 = vmatprep.subr.mxu0 %v4626
          %5268 = vmatpush1.msra.mxu0 %v4625
          %5269 = vmatprep.subr.mxu0 %v4634
          %5270 = vmatpush1.msra.mxu0 %v4633
          %5271 = vmatprep.mubr.f32.mxu0 %v4993
          %5272 = vmatmul.mubr.f32.gmra.mrb[0].mxu0 %v4974
          %v5273 = vpop.f32.mrb[0].mxu0
          %v5274 = vadd.f32 0.0, %v5273
          %v5275 = vpop.f32.mrb[0].mxu0
          %v5276 = vadd.f32 0.0, %v5275
          %5277 = vdwg.mxu0
          %v5278 = vadd.f32 %v4184, %v5061
          %v5279 = vadd.f32 %v4186, %v5063
          %v5280 = vadd.f32 %v4321, %v5132
          %v5281 = vadd.f32 %v4323, %v5134
          %v5282 = vtanh.pop %v5278
          %v5283 = vtanh.pop %v5279
          %v5284 = vtanh.pop %v5280
          %v5285 = vtanh.pop %v5281
          %v5286 = vmul.f32 %v5282, 0.5
          %v5287 = vadd.f32 %v5286, 0.5
          %v5288 = vmul.f32 %v5283, 0.5
          %v5289 = vadd.f32 %v5288, 0.5
          %v5290 = vmul.f32 %v5285, 0.5
          %v5291 = vadd.f32 %v5290, 0.5
          %v5292 = vmul.f32 %v5289, %v4972
          %v5293 = vmul.f32 %v5287, %v5284
          %v5294 = vadd.f32 %v5292, %v5293
          %v5295 = vtanh.pop %v5294
          %v5296 = vmul.f32 %v5291, %v5295
          %v5297 = vadd.f32 %v5203, %v4640
          %v5298 = vadd.f32 %v5205, %v4644
          %v5299 = vadd.f32 %v5274, %v4648
          %v5300 = vadd.f32 %v5276, %v4652
          %v5301 = vtanh.pop %v5297
          %v5302 = vtanh.pop %v5298
          %v5303 = vtanh.pop %v5299
          %v5304 = vtanh.pop %v5300
          %v5305 = vmul.f32 %v5301, 0.5
          %v5306 = vadd.f32 %v5305, 0.5
          %v5307 = vmul.f32 %v5302, 0.5
          %v5308 = vadd.f32 %v5307, 0.5
          %v5309 = vmul.f32 %v5304, 0.5
          %v5310 = vadd.f32 %v5309, 0.5
          %v5311 = vmul.f32 %v5308, %v4991
          %v5312 = vmul.f32 %v5306, %v5303
          %v5313 = vadd.f32 %v5311, %v5312
          %v5314 = vtanh.pop %v5313
          %v5315 = vmul.f32 %v5310, %v5314
          %5316 = vmatprep.subr.mxu0 %v4380
          %5317 = vmatpush1.msra.mxu0 %v4379
          %5318 = vmatprep.subr.mxu0 %v4388
          %5319 = vmatpush1.msra.mxu0 %v4387
          %5320 = vmatprep.subr.mxu0 %v4396
          %5321 = vmatpush1.msra.mxu0 %v4395
          %5322 = vmatprep.subr.mxu0 %v4404
          %5323 = vmatpush1.msra.mxu0 %v4403
          %5324 = vmatprep.subr.mxu0 %v4412
          %5325 = vmatpush1.msra.mxu0 %v4411
          %5326 = vmatprep.subr.mxu0 %v4420
          %5327 = vmatpush1.msra.mxu0 %v4419
          %5328 = vmatprep.subr.mxu0 %v4428
          %5329 = vmatpush1.msra.mxu0 %v4427
          %5330 = vmatprep.subr.mxu0 %v4436
          %5331 = vmatpush1.msra.mxu0 %v4435
          %5332 = vmatprep.subr.mxu0 %v4444
          %5333 = vmatpush1.msra.mxu0 %v4443
          %5334 = vmatprep.subr.mxu0 %v4452
          %5335 = vmatpush1.msra.mxu0 %v4451
          %5336 = vmatprep.subr.mxu0 %v4460
          %5337 = vmatpush1.msra.mxu0 %v4459
          %5338 = vmatprep.subr.mxu0 %v4468
          %5339 = vmatpush1.msra.mxu0 %v4467
          %5340 = vmatprep.subr.mxu0 %v4476
          %5341 = vmatpush1.msra.mxu0 %v4475
          %5342 = vmatprep.subr.mxu0 %v4484
          %5343 = vmatpush1.msra.mxu0 %v4483
          %5344 = vmatprep.subr.mxu0 %v4492
          %5345 = vmatpush1.msra.mxu0 %v4491
          %5346 = vmatprep.subr.mxu0 %v4500
          %5347 = vmatpush1.msra.mxu0 %v4499
          %5348 = vmatprep.subr.mxu0 %v4508
          %5349 = vmatpush1.msra.mxu0 %v4507
          %5350 = vmatprep.subr.mxu0 %v4516
          %5351 = vmatpush1.msra.mxu0 %v4515
          %5352 = vmatprep.subr.mxu0 %v4524
          %5353 = vmatpush1.msra.mxu0 %v4523
          %5354 = vmatprep.subr.mxu0 %v4532
          %5355 = vmatpush1.msra.mxu0 %v4531
          %5356 = vmatprep.subr.mxu0 %v4540
          %5357 = vmatpush1.msra.mxu0 %v4539
          %5358 = vmatprep.subr.mxu0 %v4548
          %5359 = vmatpush1.msra.mxu0 %v4547
          %5360 = vmatprep.subr.mxu0 %v4556
          %5361 = vmatpush1.msra.mxu0 %v4555
          %5362 = vmatprep.subr.mxu0 %v4564
          %5363 = vmatpush1.msra.mxu0 %v4563
          %5364 = vmatprep.subr.mxu0 %v4572
          %5365 = vmatpush1.msra.mxu0 %v4571
          %5366 = vmatprep.subr.mxu0 %v4580
          %5367 = vmatpush1.msra.mxu0 %v4579
          %5368 = vmatprep.subr.mxu0 %v4588
          %5369 = vmatpush1.msra.mxu0 %v4587
          %5370 = vmatprep.subr.mxu0 %v4596
          %5371 = vmatpush1.msra.mxu0 %v4595
          %5372 = vmatprep.subr.mxu0 %v4604
          %5373 = vmatpush1.msra.mxu0 %v4603
          %5374 = vmatprep.subr.mxu0 %v4612
          %5375 = vmatpush1.msra.mxu0 %v4611
          %5376 = vmatprep.subr.mxu0 %v4620
          %5377 = vmatpush1.msra.mxu0 %v4619
          %5378 = vmatprep.subr.mxu0 %v4628
          %5379 = vmatpush1.msra.mxu0 %v4627
          %5380 = vmatprep.mubr.f32.mxu0 %v5315
          %5381 = vmatmul.mubr.f32.gmra.mrb[0].mxu0 %v5296
          %v5382 = vpop.f32.mrb[0].mxu0
          %v5383 = vadd.f32 0.0, %v5382
          %v5384 = vpop.f32.mrb[0].mxu0
          %v5385 = vadd.f32 0.0, %v5384
          %5386 = vdwg.mxu0
          %5387 = vmatprep.subr.mxu0 %v4382
          %5388 = vmatpush1.msra.mxu0 %v4381
          %5389 = vmatprep.subr.mxu0 %v4390
          %5390 = vmatpush1.msra.mxu0 %v4389
          %5391 = vmatprep.subr.mxu0 %v4398
          %5392 = vmatpush1.msra.mxu0 %v4397
          %5393 = vmatprep.subr.mxu0 %v4406
          %5394 = vmatpush1.msra.mxu0 %v4405
          %5395 = vmatprep.subr.mxu0 %v4414
          %5396 = vmatpush1.msra.mxu0 %v4413
          %5397 = vmatprep.subr.mxu0 %v4422
          %5398 = vmatpush1.msra.mxu0 %v4421
          %5399 = vmatprep.subr.mxu0 %v4430
          %5400 = vmatpush1.msra.mxu0 %v4429
          %5401 = vmatprep.subr.mxu0 %v4438
          %5402 = vmatpush1.msra.mxu0 %v4437
          %5403 = vmatprep.subr.mxu0 %v4446
          %5404 = vmatpush1.msra.mxu0 %v4445
          %5405 = vmatprep.subr.mxu0 %v4454
          %5406 = vmatpush1.msra.mxu0 %v4453
          %5407 = vmatprep.subr.mxu0 %v4462
          %5408 = vmatpush1.msra.mxu0 %v4461
          %5409 = vmatprep.subr.mxu0 %v4470
          %5410 = vmatpush1.msra.mxu0 %v4469
          %5411 = vmatprep.subr.mxu0 %v4478
          %5412 = vmatpush1.msra.mxu0 %v4477
          %5413 = vmatprep.subr.mxu0 %v4486
          %5414 = vmatpush1.msra.mxu0 %v4485
          %5415 = vmatprep.subr.mxu0 %v4494
          %5416 = vmatpush1.msra.mxu0 %v4493
          %5417 = vmatprep.subr.mxu0 %v4502
          %5418 = vmatpush1.msra.mxu0 %v4501
          %5419 = vmatprep.subr.mxu0 %v4510
          %5420 = vmatpush1.msra.mxu0 %v4509
          %5421 = vmatprep.subr.mxu0 %v4518
          %5422 = vmatpush1.msra.mxu0 %v4517
          %5423 = vmatprep.subr.mxu0 %v4526
          %5424 = vmatpush1.msra.mxu0 %v4525
          %5425 = vmatprep.subr.mxu0 %v4534
          %5426 = vmatpush1.msra.mxu0 %v4533
          %5427 = vmatprep.subr.mxu0 %v4542
          %5428 = vmatpush1.msra.mxu0 %v4541
          %5429 = vmatprep.subr.mxu0 %v4550
          %5430 = vmatpush1.msra.mxu0 %v4549
          %5431 = vmatprep.subr.mxu0 %v4558
          %5432 = vmatpush1.msra.mxu0 %v4557
          %5433 = vmatprep.subr.mxu0 %v4566
          %5434 = vmatpush1.msra.mxu0 %v4565
          %5435 = vmatprep.subr.mxu0 %v4574
          %5436 = vmatpush1.msra.mxu0 %v4573
          %5437 = vmatprep.subr.mxu0 %v4582
          %5438 = vmatpush1.msra.mxu0 %v4581
          %5439 = vmatprep.subr.mxu0 %v4590
          %5440 = vmatpush1.msra.mxu0 %v4589
          %5441 = vmatprep.subr.mxu0 %v4598
          %5442 = vmatpush1.msra.mxu0 %v4597
          %5443 = vmatprep.subr.mxu0 %v4606
          %5444 = vmatpush1.msra.mxu0 %v4605
          %5445 = vmatprep.subr.mxu0 %v4614
          %5446 = vmatpush1.msra.mxu0 %v4613
          %5447 = vmatprep.subr.mxu0 %v4622
          %5448 = vmatpush1.msra.mxu0 %v4621
          %5449 = vmatprep.subr.mxu0 %v4630
          %5450 = vmatpush1.msra.mxu0 %v4629
          %5451 = vmatprep.mubr.f32.mxu0 %v5315
          %5452 = vmatmul.mubr.f32.gmra.mrb[0].mxu0 %v5296
          %v5453 = vpop.f32.mrb[0].mxu0
          %v5454 = vadd.f32 0.0, %v5453
          %v5455 = vpop.f32.mrb[0].mxu0
          %v5456 = vadd.f32 0.0, %v5455
          %5457 = vdwg.mxu0
          %5458 = vmatprep.subr.mxu0 %v4384
          %5459 = vmatpush1.msra.mxu0 %v4383
          %5460 = vmatprep.subr.mxu0 %v4392
          %5461 = vmatpush1.msra.mxu0 %v4391
          %5462 = vmatprep.subr.mxu0 %v4400
          %5463 = vmatpush1.msra.mxu0 %v4399
          %5464 = vmatprep.subr.mxu0 %v4408
          %5465 = vmatpush1.msra.mxu0 %v4407
          %5466 = vmatprep.subr.mxu0 %v4416
          %5467 = vmatpush1.msra.mxu0 %v4415
          %5468 = vmatprep.subr.mxu0 %v4424
          %5469 = vmatpush1.msra.mxu0 %v4423
          %5470 = vmatprep.subr.mxu0 %v4432
          %5471 = vmatpush1.msra.mxu0 %v4431
          %5472 = vmatprep.subr.mxu0 %v4440
          %5473 = vmatpush1.msra.mxu0 %v4439
          %5474 = vmatprep.subr.mxu0 %v4448
          %5475 = vmatpush1.msra.mxu0 %v4447
          %5476 = vmatprep.subr.mxu0 %v4456
          %5477 = vmatpush1.msra.mxu0 %v4455
          %5478 = vmatprep.subr.mxu0 %v4464
          %5479 = vmatpush1.msra.mxu0 %v4463
          %5480 = vmatprep.subr.mxu0 %v4472
          %5481 = vmatpush1.msra.mxu0 %v4471
          %5482 = vmatprep.subr.mxu0 %v4480
          %5483 = vmatpush1.msra.mxu0 %v4479
          %5484 = vmatprep.subr.mxu0 %v4488
          %5485 = vmatpush1.msra.mxu0 %v4487
          %5486 = vmatprep.subr.mxu0 %v4496
          %5487 = vmatpush1.msra.mxu0 %v4495
          %5488 = vmatprep.subr.mxu0 %v4504
          %5489 = vmatpush1.msra.mxu0 %v4503
          %5490 = vmatprep.subr.mxu0 %v4512
          %5491 = vmatpush1.msra.mxu0 %v4511
          %5492 = vmatprep.subr.mxu0 %v4520
          %5493 = vmatpush1.msra.mxu0 %v4519
          %5494 = vmatprep.subr.mxu0 %v4528
          %5495 = vmatpush1.msra.mxu0 %v4527
          %5496 = vmatprep.subr.mxu0 %v4536
          %5497 = vmatpush1.msra.mxu0 %v4535
          %5498 = vmatprep.subr.mxu0 %v4544
          %5499 = vmatpush1.msra.mxu0 %v4543
          %5500 = vmatprep.subr.mxu0 %v4552
          %5501 = vmatpush1.msra.mxu0 %v4551
          %5502 = vmatprep.subr.mxu0 %v4560
          %5503 = vmatpush1.msra.mxu0 %v4559
          %5504 = vmatprep.subr.mxu0 %v4568
          %5505 = vmatpush1.msra.mxu0 %v4567
          %5506 = vmatprep.subr.mxu0 %v4576
          %5507 = vmatpush1.msra.mxu0 %v4575
          %5508 = vmatprep.subr.mxu0 %v4584
          %5509 = vmatpush1.msra.mxu0 %v4583
          %5510 = vmatprep.subr.mxu0 %v4592
          %5511 = vmatpush1.msra.mxu0 %v4591
          %5512 = vmatprep.subr.mxu0 %v4600
          %5513 = vmatpush1.msra.mxu0 %v4599
          %5514 = vmatprep.subr.mxu0 %v4608
          %5515 = vmatpush1.msra.mxu0 %v4607
          %5516 = vmatprep.subr.mxu0 %v4616
          %5517 = vmatpush1.msra.mxu0 %v4615
          %5518 = vmatprep.subr.mxu0 %v4624
          %5519 = vmatpush1.msra.mxu0 %v4623
          %5520 = vmatprep.subr.mxu0 %v4632
          %5521 = vmatpush1.msra.mxu0 %v4631
          %5522 = vmatprep.mubr.f32.mxu0 %v5315
          %5523 = vmatmul.mubr.f32.gmra.mrb[0].mxu0 %v5296
          %v5524 = vpop.f32.mrb[0].mxu0
          %v5525 = vadd.f32 0.0, %v5524
          %v5526 = vpop.f32.mrb[0].mxu0
          %v5527 = vadd.f32 0.0, %v5526
          %5528 = vdwg.mxu0
          %5529 = vmatprep.subr.mxu0 %v4386
          %5530 = vmatpush1.msra.mxu0 %v4385
          %5531 = vmatprep.subr.mxu0 %v4394
          %5532 = vmatpush1.msra.mxu0 %v4393
          %5533 = vmatprep.subr.mxu0 %v4402
          %5534 = vmatpush1.msra.mxu0 %v4401
          %5535 = vmatprep.subr.mxu0 %v4410
          %5536 = vmatpush1.msra.mxu0 %v4409
          %5537 = vmatprep.subr.mxu0 %v4418
          %5538 = vmatpush1.msra.mxu0 %v4417
          %5539 = vmatprep.subr.mxu0 %v4426
          %5540 = vmatpush1.msra.mxu0 %v4425
          %5541 = vmatprep.subr.mxu0 %v4434
          %5542 = vmatpush1.msra.mxu0 %v4433
          %5543 = vmatprep.subr.mxu0 %v4442
          %5544 = vmatpush1.msra.mxu0 %v4441
          %5545 = vmatprep.subr.mxu0 %v4450
          %5546 = vmatpush1.msra.mxu0 %v4449
          %5547 = vmatprep.subr.mxu0 %v4458
          %5548 = vmatpush1.msra.mxu0 %v4457
          %5549 = vmatprep.subr.mxu0 %v4466
          %5550 = vmatpush1.msra.mxu0 %v4465
          %5551 = vmatprep.subr.mxu0 %v4474
          %5552 = vmatpush1.msra.mxu0 %v4473
          %5553 = vmatprep.subr.mxu0 %v4482
          %5554 = vmatpush1.msra.mxu0 %v4481
          %5555 = vmatprep.subr.mxu0 %v4490
          %5556 = vmatpush1.msra.mxu0 %v4489
          %5557 = vmatprep.subr.mxu0 %v4498
          %5558 = vmatpush1.msra.mxu0 %v4497
          %5559 = vmatprep.subr.mxu0 %v4506
          %5560 = vmatpush1.msra.mxu0 %v4505
          %5561 = vmatprep.subr.mxu0 %v4514
          %5562 = vmatpush1.msra.mxu0 %v4513
          %5563 = vmatprep.subr.mxu0 %v4522
          %5564 = vmatpush1.msra.mxu0 %v4521
          %5565 = vmatprep.subr.mxu0 %v4530
          %5566 = vmatpush1.msra.mxu0 %v4529
          %5567 = vmatprep.subr.mxu0 %v4538
          %5568 = vmatpush1.msra.mxu0 %v4537
          %5569 = vmatprep.subr.mxu0 %v4546
          %5570 = vmatpush1.msra.mxu0 %v4545
          %5571 = vmatprep.subr.mxu0 %v4554
          %5572 = vmatpush1.msra.mxu0 %v4553
          %5573 = vmatprep.subr.mxu0 %v4562
          %5574 = vmatpush1.msra.mxu0 %v4561
          %5575 = vmatprep.subr.mxu0 %v4570
          %5576 = vmatpush1.msra.mxu0 %v4569
          %5577 = vmatprep.subr.mxu0 %v4578
          %5578 = vmatpush1.msra.mxu0 %v4577
          %5579 = vmatprep.subr.mxu0 %v4586
          %5580 = vmatpush1.msra.mxu0 %v4585
          %5581 = vmatprep.subr.mxu0 %v4594
          %5582 = vmatpush1.msra.mxu0 %v4593
          %5583 = vmatprep.subr.mxu0 %v4602
          %5584 = vmatpush1.msra.mxu0 %v4601
          %5585 = vmatprep.subr.mxu0 %v4610
          %5586 = vmatpush1.msra.mxu0 %v4609
          %5587 = vmatprep.subr.mxu0 %v4618
          %5588 = vmatpush1.msra.mxu0 %v4617
          %5589 = vmatprep.subr.mxu0 %v4626
          %5590 = vmatpush1.msra.mxu0 %v4625
          %5591 = vmatprep.subr.mxu0 %v4634
          %5592 = vmatpush1.msra.mxu0 %v4633
          %5593 = vmatprep.mubr.f32.mxu0 %v5315
          %5594 = vmatmul.mubr.f32.gmra.mrb[0].mxu0 %v5296
          %v5595 = vpop.f32.mrb[0].mxu0
          %v5596 = vadd.f32 0.0, %v5595
          %v5597 = vpop.f32.mrb[0].mxu0
          %v5598 = vadd.f32 0.0, %v5597
          %5599 = vdwg.mxu0
          %v5600 = vadd.f32 %v4190, %v5383
          %v5601 = vadd.f32 %v4192, %v5385
          %v5602 = vadd.f32 %v4327, %v5454
          %v5603 = vadd.f32 %v4329, %v5456
          %v5604 = vtanh.pop %v5600
          %v5605 = vtanh.pop %v5601
          %v5606 = vtanh.pop %v5602
          %v5607 = vtanh.pop %v5603
          %v5608 = vmul.f32 %v5604, 0.5
          %v5609 = vadd.f32 %v5608, 0.5
          %v5610 = vmul.f32 %v5605, 0.5
          %v5611 = vadd.f32 %v5610, 0.5
          %v5612 = vmul.f32 %v5607, 0.5
          %v5613 = vadd.f32 %v5612, 0.5
          %v5614 = vmul.f32 %v5611, %v5294
          %v5615 = vmul.f32 %v5609, %v5606
          %v5616 = vadd.f32 %v5614, %v5615
          %v5617 = vtanh.pop %v5616
          %v5618 = vmul.f32 %v5613, %v5617
          %v5619 = vadd.f32 %v5525, %v4640
          %v5620 = vadd.f32 %v5527, %v4644
          %v5621 = vadd.f32 %v5596, %v4648
          %v5622 = vadd.f32 %v5598, %v4652
          %v5623 = vtanh.pop %v5619
          %v5624 = vtanh.pop %v5620
          %v5625 = vtanh.pop %v5621
          %v5626 = vtanh.pop %v5622
          %v5627 = vmul.f32 %v5623, 0.5
          %v5628 = vadd.f32 %v5627, 0.5
          %v5629 = vmul.f32 %v5624, 0.5
          %v5630 = vadd.f32 %v5629, 0.5
          %v5631 = vmul.f32 %v5626, 0.5
          %v5632 = vadd.f32 %v5631, 0.5
          %v5633 = vmul.f32 %v5630, %v5313
          %v5634 = vmul.f32 %v5628, %v5625
          %v5635 = vadd.f32 %v5633, %v5634
          %v5636 = vtanh.pop %v5635
          %v5637 = vmul.f32 %v5632, %v5636
          %5638 = vmatprep.subr.mxu0 %v4380
          %5639 = vmatpush1.msra.mxu0 %v4379
          %5640 = vmatprep.subr.mxu0 %v4388
          %5641 = vmatpush1.msra.mxu0 %v4387
          %5642 = vmatprep.subr.mxu0 %v4396
          %5643 = vmatpush1.msra.mxu0 %v4395
          %5644 = vmatprep.subr.mxu0 %v4404
          %5645 = vmatpush1.msra.mxu0 %v4403
          %5646 = vmatprep.subr.mxu0 %v4412
          %5647 = vmatpush1.msra.mxu0 %v4411
          %5648 = vmatprep.subr.mxu0 %v4420
          %5649 = vmatpush1.msra.mxu0 %v4419
          %5650 = vmatprep.subr.mxu0 %v4428
          %5651 = vmatpush1.msra.mxu0 %v4427
          %5652 = vmatprep.subr.mxu0 %v4436
          %5653 = vmatpush1.msra.mxu0 %v4435
          %5654 = vmatprep.subr.mxu0 %v4444
          %5655 = vmatpush1.msra.mxu0 %v4443
          %5656 = vmatprep.subr.mxu0 %v4452
          %5657 = vmatpush1.msra.mxu0 %v4451
          %5658 = vmatprep.subr.mxu0 %v4460
          %5659 = vmatpush1.msra.mxu0 %v4459
          %5660 = vmatprep.subr.mxu0 %v4468
          %5661 = vmatpush1.msra.mxu0 %v4467
          %5662 = vmatprep.subr.mxu0 %v4476
          %5663 = vmatpush1.msra.mxu0 %v4475
          %5664 = vmatprep.subr.mxu0 %v4484
          %5665 = vmatpush1.msra.mxu0 %v4483
          %5666 = vmatprep.subr.mxu0 %v4492
          %5667 = vmatpush1.msra.mxu0 %v4491
          %5668 = vmatprep.subr.mxu0 %v4500
          %5669 = vmatpush1.msra.mxu0 %v4499
          %5670 = vmatprep.subr.mxu0 %v4508
          %5671 = vmatpush1.msra.mxu0 %v4507
          %5672 = vmatprep.subr.mxu0 %v4516
          %5673 = vmatpush1.msra.mxu0 %v4515
          %5674 = vmatprep.subr.mxu0 %v4524
          %5675 = vmatpush1.msra.mxu0 %v4523
          %5676 = vmatprep.subr.mxu0 %v4532
          %5677 = vmatpush1.msra.mxu0 %v4531
          %5678 = vmatprep.subr.mxu0 %v4540
          %5679 = vmatpush1.msra.mxu0 %v4539
          %5680 = vmatprep.subr.mxu0 %v4548
          %5681 = vmatpush1.msra.mxu0 %v4547
          %5682 = vmatprep.subr.mxu0 %v4556
          %5683 = vmatpush1.msra.mxu0 %v4555
          %5684 = vmatprep.subr.mxu0 %v4564
          %5685 = vmatpush1.msra.mxu0 %v4563
          %5686 = vmatprep.subr.mxu0 %v4572
          %5687 = vmatpush1.msra.mxu0 %v4571
          %5688 = vmatprep.subr.mxu0 %v4580
          %5689 = vmatpush1.msra.mxu0 %v4579
          %5690 = vmatprep.subr.mxu0 %v4588
          %5691 = vmatpush1.msra.mxu0 %v4587
          %5692 = vmatprep.subr.mxu0 %v4596
          %5693 = vmatpush1.msra.mxu0 %v4595
          %5694 = vmatprep.subr.mxu0 %v4604
          %5695 = vmatpush1.msra.mxu0 %v4603
          %5696 = vmatprep.subr.mxu0 %v4612
          %5697 = vmatpush1.msra.mxu0 %v4611
          %5698 = vmatprep.subr.mxu0 %v4620
          %5699 = vmatpush1.msra.mxu0 %v4619
          %5700 = vmatprep.subr.mxu0 %v4628
          %5701 = vmatpush1.msra.mxu0 %v4627
          %5702 = vmatprep.mubr.f32.mxu0 %v5637
          %5703 = vmatmul.mubr.f32.gmra.mrb[0].mxu0 %v5618
          %v5704 = vpop.f32.mrb[0].mxu0
          %v5705 = vadd.f32 0.0, %v5704
          %v5706 = vpop.f32.mrb[0].mxu0
          %v5707 = vadd.f32 0.0, %v5706
          %5708 = vdwg.mxu0
          %5709 = vmatprep.subr.mxu0 %v4382
          %5710 = vmatpush1.msra.mxu0 %v4381
          %5711 = vmatprep.subr.mxu0 %v4390
          %5712 = vmatpush1.msra.mxu0 %v4389
          %5713 = vmatprep.subr.mxu0 %v4398
          %5714 = vmatpush1.msra.mxu0 %v4397
          %5715 = vmatprep.subr.mxu0 %v4406
          %5716 = vmatpush1.msra.mxu0 %v4405
          %5717 = vmatprep.subr.mxu0 %v4414
          %5718 = vmatpush1.msra.mxu0 %v4413
          %5719 = vmatprep.subr.mxu0 %v4422
          %5720 = vmatpush1.msra.mxu0 %v4421
          %5721 = vmatprep.subr.mxu0 %v4430
          %5722 = vmatpush1.msra.mxu0 %v4429
          %5723 = vmatprep.subr.mxu0 %v4438
          %5724 = vmatpush1.msra.mxu0 %v4437
          %5725 = vmatprep.subr.mxu0 %v4446
          %5726 = vmatpush1.msra.mxu0 %v4445
          %5727 = vmatprep.subr.mxu0 %v4454
          %5728 = vmatpush1.msra.mxu0 %v4453
          %5729 = vmatprep.subr.mxu0 %v4462
          %5730 = vmatpush1.msra.mxu0 %v4461
          %5731 = vmatprep.subr.mxu0 %v4470
          %5732 = vmatpush1.msra.mxu0 %v4469
          %5733 = vmatprep.subr.mxu0 %v4478
          %5734 = vmatpush1.msra.mxu0 %v4477
          %5735 = vmatprep.subr.mxu0 %v4486
          %5736 = vmatpush1.msra.mxu0 %v4485
          %5737 = vmatprep.subr.mxu0 %v4494
          %5738 = vmatpush1.msra.mxu0 %v4493
          %5739 = vmatprep.subr.mxu0 %v4502
          %5740 = vmatpush1.msra.mxu0 %v4501
          %5741 = vmatprep.subr.mxu0 %v4510
          %5742 = vmatpush1.msra.mxu0 %v4509
          %5743 = vmatprep.subr.mxu0 %v4518
          %5744 = vmatpush1.msra.mxu0 %v4517
          %5745 = vmatprep.subr.mxu0 %v4526
          %5746 = vmatpush1.msra.mxu0 %v4525
          %5747 = vmatprep.subr.mxu0 %v4534
          %5748 = vmatpush1.msra.mxu0 %v4533
          %5749 = vmatprep.subr.mxu0 %v4542
          %5750 = vmatpush1.msra.mxu0 %v4541
          %5751 = vmatprep.subr.mxu0 %v4550
          %5752 = vmatpush1.msra.mxu0 %v4549
          %5753 = vmatprep.subr.mxu0 %v4558
          %5754 = vmatpush1.msra.mxu0 %v4557
          %5755 = vmatprep.subr.mxu0 %v4566
          %5756 = vmatpush1.msra.mxu0 %v4565
          %5757 = vmatprep.subr.mxu0 %v4574
          %5758 = vmatpush1.msra.mxu0 %v4573
          %5759 = vmatprep.subr.mxu0 %v4582
          %5760 = vmatpush1.msra.mxu0 %v4581
          %5761 = vmatprep.subr.mxu0 %v4590
          %5762 = vmatpush1.msra.mxu0 %v4589
          %5763 = vmatprep.subr.mxu0 %v4598
          %5764 = vmatpush1.msra.mxu0 %v4597
          %5765 = vmatprep.subr.mxu0 %v4606
          %5766 = vmatpush1.msra.mxu0 %v4605
          %5767 = vmatprep.subr.mxu0 %v4614
          %5768 = vmatpush1.msra.mxu0 %v4613
          %5769 = vmatprep.subr.mxu0 %v4622
          %5770 = vmatpush1.msra.mxu0 %v4621
          %5771 = vmatprep.subr.mxu0 %v4630
          %5772 = vmatpush1.msra.mxu0 %v4629
          %5773 = vmatprep.mubr.f32.mxu0 %v5637
          %5774 = vmatmul.mubr.f32.gmra.mrb[0].mxu0 %v5618
          %v5775 = vpop.f32.mrb[0].mxu0
          %v5776 = vadd.f32 0.0, %v5775
          %v5777 = vpop.f32.mrb[0].mxu0
          %v5778 = vadd.f32 0.0, %v5777
          %5779 = vdwg.mxu0
          %5780 = vmatprep.subr.mxu0 %v4384
          %5781 = vmatpush1.msra.mxu0 %v4383
          %5782 = vmatprep.subr.mxu0 %v4392
          %5783 = vmatpush1.msra.mxu0 %v4391
          %5784 = vmatprep.subr.mxu0 %v4400
          %5785 = vmatpush1.msra.mxu0 %v4399
          %5786 = vmatprep.subr.mxu0 %v4408
          %5787 = vmatpush1.msra.mxu0 %v4407
          %5788 = vmatprep.subr.mxu0 %v4416
          %5789 = vmatpush1.msra.mxu0 %v4415
          %5790 = vmatprep.subr.mxu0 %v4424
          %5791 = vmatpush1.msra.mxu0 %v4423
          %5792 = vmatprep.subr.mxu0 %v4432
          %5793 = vmatpush1.msra.mxu0 %v4431
          %5794 = vmatprep.subr.mxu0 %v4440
          %5795 = vmatpush1.msra.mxu0 %v4439
          %5796 = vmatprep.subr.mxu0 %v4448
          %5797 = vmatpush1.msra.mxu0 %v4447
          %5798 = vmatprep.subr.mxu0 %v4456
          %5799 = vmatpush1.msra.mxu0 %v4455
          %5800 = vmatprep.subr.mxu0 %v4464
          %5801 = vmatpush1.msra.mxu0 %v4463
          %5802 = vmatprep.subr.mxu0 %v4472
          %5803 = vmatpush1.msra.mxu0 %v4471
          %5804 = vmatprep.subr.mxu0 %v4480
          %5805 = vmatpush1.msra.mxu0 %v4479
          %5806 = vmatprep.subr.mxu0 %v4488
          %5807 = vmatpush1.msra.mxu0 %v4487
          %5808 = vmatprep.subr.mxu0 %v4496
          %5809 = vmatpush1.msra.mxu0 %v4495
          %5810 = vmatprep.subr.mxu0 %v4504
          %5811 = vmatpush1.msra.mxu0 %v4503
          %5812 = vmatprep.subr.mxu0 %v4512
          %5813 = vmatpush1.msra.mxu0 %v4511
          %5814 = vmatprep.subr.mxu0 %v4520
          %5815 = vmatpush1.msra.mxu0 %v4519
          %5816 = vmatprep.subr.mxu0 %v4528
          %5817 = vmatpush1.msra.mxu0 %v4527
          %5818 = vmatprep.subr.mxu0 %v4536
          %5819 = vmatpush1.msra.mxu0 %v4535
          %5820 = vmatprep.subr.mxu0 %v4544
          %5821 = vmatpush1.msra.mxu0 %v4543
          %5822 = vmatprep.subr.mxu0 %v4552
          %5823 = vmatpush1.msra.mxu0 %v4551
          %5824 = vmatprep.subr.mxu0 %v4560
          %5825 = vmatpush1.msra.mxu0 %v4559
          %5826 = vmatprep.subr.mxu0 %v4568
          %5827 = vmatpush1.msra.mxu0 %v4567
          %5828 = vmatprep.subr.mxu0 %v4576
          %5829 = vmatpush1.msra.mxu0 %v4575
          %5830 = vmatprep.subr.mxu0 %v4584
          %5831 = vmatpush1.msra.mxu0 %v4583
          %5832 = vmatprep.subr.mxu0 %v4592
          %5833 = vmatpush1.msra.mxu0 %v4591
          %5834 = vmatprep.subr.mxu0 %v4600
          %5835 = vmatpush1.msra.mxu0 %v4599
          %5836 = vmatprep.subr.mxu0 %v4608
          %5837 = vmatpush1.msra.mxu0 %v4607
          %5838 = vmatprep.subr.mxu0 %v4616
          %5839 = vmatpush1.msra.mxu0 %v4615
          %5840 = vmatprep.subr.mxu0 %v4624
          %5841 = vmatpush1.msra.mxu0 %v4623
          %5842 = vmatprep.subr.mxu0 %v4632
          %5843 = vmatpush1.msra.mxu0 %v4631
          %5844 = vmatprep.mubr.f32.mxu0 %v5637
          %5845 = vmatmul.mubr.f32.gmra.mrb[0].mxu0 %v5618
          %v5846 = vpop.f32.mrb[0].mxu0
          %v5847 = vadd.f32 0.0, %v5846
          %v5848 = vpop.f32.mrb[0].mxu0
          %v5849 = vadd.f32 0.0, %v5848
          %5850 = vdwg.mxu0
          %5851 = vmatprep.subr.mxu0 %v4386
          %5852 = vmatpush1.msra.mxu0 %v4385
          %5853 = vmatprep.subr.mxu0 %v4394
          %5854 = vmatpush1.msra.mxu0 %v4393
          %5855 = vmatprep.subr.mxu0 %v4402
          %5856 = vmatpush1.msra.mxu0 %v4401
          %5857 = vmatprep.subr.mxu0 %v4410
          %5858 = vmatpush1.msra.mxu0 %v4409
          %5859 = vmatprep.subr.mxu0 %v4418
          %5860 = vmatpush1.msra.mxu0 %v4417
          %5861 = vmatprep.subr.mxu0 %v4426
          %5862 = vmatpush1.msra.mxu0 %v4425
          %5863 = vmatprep.subr.mxu0 %v4434
          %5864 = vmatpush1.msra.mxu0 %v4433
          %5865 = vmatprep.subr.mxu0 %v4442
          %5866 = vmatpush1.msra.mxu0 %v4441
          %5867 = vmatprep.subr.mxu0 %v4450
          %5868 = vmatpush1.msra.mxu0 %v4449
          %5869 = vmatprep.subr.mxu0 %v4458
          %5870 = vmatpush1.msra.mxu0 %v4457
          %5871 = vmatprep.subr.mxu0 %v4466
          %5872 = vmatpush1.msra.mxu0 %v4465
          %5873 = vmatprep.subr.mxu0 %v4474
          %5874 = vmatpush1.msra.mxu0 %v4473
          %5875 = vmatprep.subr.mxu0 %v4482
          %5876 = vmatpush1.msra.mxu0 %v4481
          %5877 = vmatprep.subr.mxu0 %v4490
          %5878 = vmatpush1.msra.mxu0 %v4489
          %5879 = vmatprep.subr.mxu0 %v4498
          %5880 = vmatpush1.msra.mxu0 %v4497
          %5881 = vmatprep.subr.mxu0 %v4506
          %5882 = vmatpush1.msra.mxu0 %v4505
          %5883 = vmatprep.subr.mxu0 %v4514
          %5884 = vmatpush1.msra.mxu0 %v4513
          %5885 = vmatprep.subr.mxu0 %v4522
          %5886 = vmatpush1.msra.mxu0 %v4521
          %5887 = vmatprep.subr.mxu0 %v4530
          %5888 = vmatpush1.msra.mxu0 %v4529
          %5889 = vmatprep.subr.mxu0 %v4538
          %5890 = vmatpush1.msra.mxu0 %v4537
          %5891 = vmatprep.subr.mxu0 %v4546
          %5892 = vmatpush1.msra.mxu0 %v4545
          %5893 = vmatprep.subr.mxu0 %v4554
          %5894 = vmatpush1.msra.mxu0 %v4553
          %5895 = vmatprep.subr.mxu0 %v4562
          %5896 = vmatpush1.msra.mxu0 %v4561
          %5897 = vmatprep.subr.mxu0 %v4570
          %5898 = vmatpush1.msra.mxu0 %v4569
          %5899 = vmatprep.subr.mxu0 %v4578
          %5900 = vmatpush1.msra.mxu0 %v4577
          %5901 = vmatprep.subr.mxu0 %v4586
          %5902 = vmatpush1.msra.mxu0 %v4585
          %5903 = vmatprep.subr.mxu0 %v4594
          %5904 = vmatpush1.msra.mxu0 %v4593
          %5905 = vmatprep.subr.mxu0 %v4602
          %5906 = vmatpush1.msra.mxu0 %v4601
          %5907 = vmatprep.subr.mxu0 %v4610
          %5908 = vmatpush1.msra.mxu0 %v4609
          %5909 = vmatprep.subr.mxu0 %v4618
          %5910 = vmatpush1.msra.mxu0 %v4617
          %5911 = vmatprep.subr.mxu0 %v4626
          %5912 = vmatpush1.msra.mxu0 %v4625
          %5913 = vmatprep.subr.mxu0 %v4634
          %5914 = vmatpush1.msra.mxu0 %v4633
          %5915 = vmatprep.mubr.f32.mxu0 %v5637
          %5916 = vmatmul.mubr.f32.gmra.mrb[0].mxu0 %v5618
          %v5917 = vpop.f32.mrb[0].mxu0
          %v5918 = vadd.f32 0.0, %v5917
          %v5919 = vpop.f32.mrb[0].mxu0
          %v5920 = vadd.f32 0.0, %v5919
          %5921 = vdwg.mxu0
          %v5922 = vadd.f32 %v4196, %v5705
          %v5923 = vadd.f32 %v4198, %v5707
          %v5924 = vadd.f32 %v4333, %v5776
          %v5925 = vadd.f32 %v4335, %v5778
          %v5926 = vtanh.pop %v5922
          %v5927 = vtanh.pop %v5923
          %v5928 = vtanh.pop %v5924
          %v5929 = vtanh.pop %v5925
          %v5930 = vmul.f32 %v5926, 0.5
          %v5931 = vadd.f32 %v5930, 0.5
          %v5932 = vmul.f32 %v5927, 0.5
          %v5933 = vadd.f32 %v5932, 0.5
          %v5934 = vmul.f32 %v5929, 0.5
          %v5935 = vadd.f32 %v5934, 0.5
          %v5936 = vmul.f32 %v5933, %v5616
          %v5937 = vmul.f32 %v5931, %v5928
          %v5938 = vadd.f32 %v5936, %v5937
          %v5939 = vtanh.pop %v5938
          %v5940 = vmul.f32 %v5935, %v5939
          %v5941 = vadd.f32 %v5847, %v4640
          %v5942 = vadd.f32 %v5849, %v4644
          %v5943 = vadd.f32 %v5918, %v4648
          %v5944 = vadd.f32 %v5920, %v4652
          %v5945 = vtanh.pop %v5941
          %v5946 = vtanh.pop %v5942
          %v5947 = vtanh.pop %v5943
          %v5948 = vtanh.pop %v5944
          %v5949 = vmul.f32 %v5945, 0.5
          %v5950 = vadd.f32 %v5949, 0.5
          %v5951 = vmul.f32 %v5946, 0.5
          %v5952 = vadd.f32 %v5951, 0.5
          %v5953 = vmul.f32 %v5948, 0.5
          %v5954 = vadd.f32 %v5953, 0.5
          %v5955 = vmul.f32 %v5952, %v5635
          %v5956 = vmul.f32 %v5950, %v5947
          %v5957 = vadd.f32 %v5955, %v5956
          %v5958 = vtanh.pop %v5957
          %v5959 = vmul.f32 %v5954, %v5958
          %5960 = vmatprep.subr.mxu0 %v4380
          %5961 = vmatpush1.msra.mxu0 %v4379
          %5962 = vmatprep.subr.mxu0 %v4388
          %5963 = vmatpush1.msra.mxu0 %v4387
          %5964 = vmatprep.subr.mxu0 %v4396
          %5965 = vmatpush1.msra.mxu0 %v4395
          %5966 = vmatprep.subr.mxu0 %v4404
          %5967 = vmatpush1.msra.mxu0 %v4403
          %5968 = vmatprep.subr.mxu0 %v4412
          %5969 = vmatpush1.msra.mxu0 %v4411
          %5970 = vmatprep.subr.mxu0 %v4420
          %5971 = vmatpush1.msra.mxu0 %v4419
          %5972 = vmatprep.subr.mxu0 %v4428
          %5973 = vmatpush1.msra.mxu0 %v4427
          %5974 = vmatprep.subr.mxu0 %v4436
          %5975 = vmatpush1.msra.mxu0 %v4435
          %5976 = vmatprep.subr.mxu0 %v4444
          %5977 = vmatpush1.msra.mxu0 %v4443
          %5978 = vmatprep.subr.mxu0 %v4452
          %5979 = vmatpush1.msra.mxu0 %v4451
          %5980 = vmatprep.subr.mxu0 %v4460
          %5981 = vmatpush1.msra.mxu0 %v4459
          %5982 = vmatprep.subr.mxu0 %v4468
          %5983 = vmatpush1.msra.mxu0 %v4467
          %5984 = vmatprep.subr.mxu0 %v4476
          %5985 = vmatpush1.msra.mxu0 %v4475
          %5986 = vmatprep.subr.mxu0 %v4484
          %5987 = vmatpush1.msra.mxu0 %v4483
          %5988 = vmatprep.subr.mxu0 %v4492
          %5989 = vmatpush1.msra.mxu0 %v4491
          %5990 = vmatprep.subr.mxu0 %v4500
          %5991 = vmatpush1.msra.mxu0 %v4499
          %5992 = vmatprep.subr.mxu0 %v4508
          %5993 = vmatpush1.msra.mxu0 %v4507
          %5994 = vmatprep.subr.mxu0 %v4516
          %5995 = vmatpush1.msra.mxu0 %v4515
          %5996 = vmatprep.subr.mxu0 %v4524
          %5997 = vmatpush1.msra.mxu0 %v4523
          %5998 = vmatprep.subr.mxu0 %v4532
          %5999 = vmatpush1.msra.mxu0 %v4531
          %6000 = vmatprep.subr.mxu0 %v4540
          %6001 = vmatpush1.msra.mxu0 %v4539
          %6002 = vmatprep.subr.mxu0 %v4548
          %6003 = vmatpush1.msra.mxu0 %v4547
          %6004 = vmatprep.subr.mxu0 %v4556
          %6005 = vmatpush1.msra.mxu0 %v4555
          %6006 = vmatprep.subr.mxu0 %v4564
          %6007 = vmatpush1.msra.mxu0 %v4563
          %6008 = vmatprep.subr.mxu0 %v4572
          %6009 = vmatpush1.msra.mxu0 %v4571
          %6010 = vmatprep.subr.mxu0 %v4580
          %6011 = vmatpush1.msra.mxu0 %v4579
          %6012 = vmatprep.subr.mxu0 %v4588
          %6013 = vmatpush1.msra.mxu0 %v4587
          %6014 = vmatprep.subr.mxu0 %v4596
          %6015 = vmatpush1.msra.mxu0 %v4595
          %6016 = vmatprep.subr.mxu0 %v4604
          %6017 = vmatpush1.msra.mxu0 %v4603
          %6018 = vmatprep.subr.mxu0 %v4612
          %6019 = vmatpush1.msra.mxu0 %v4611
          %6020 = vmatprep.subr.mxu0 %v4620
          %6021 = vmatpush1.msra.mxu0 %v4619
          %6022 = vmatprep.subr.mxu0 %v4628
          %6023 = vmatpush1.msra.mxu0 %v4627
          %6024 = vmatprep.mubr.f32.mxu0 %v5959
          %6025 = vmatmul.mubr.f32.gmra.mrb[0].mxu0 %v5940
          %v6026 = vpop.f32.mrb[0].mxu0
          %v6027 = vadd.f32 0.0, %v6026
          %v6028 = vpop.f32.mrb[0].mxu0
          %v6029 = vadd.f32 0.0, %v6028
          %6030 = vdwg.mxu0
          %6031 = vmatprep.subr.mxu0 %v4382
          %6032 = vmatpush1.msra.mxu0 %v4381
          %6033 = vmatprep.subr.mxu0 %v4390
          %6034 = vmatpush1.msra.mxu0 %v4389
          %6035 = vmatprep.subr.mxu0 %v4398
          %6036 = vmatpush1.msra.mxu0 %v4397
          %6037 = vmatprep.subr.mxu0 %v4406
          %6038 = vmatpush1.msra.mxu0 %v4405
          %6039 = vmatprep.subr.mxu0 %v4414
          %6040 = vmatpush1.msra.mxu0 %v4413
          %6041 = vmatprep.subr.mxu0 %v4422
          %6042 = vmatpush1.msra.mxu0 %v4421
          %6043 = vmatprep.subr.mxu0 %v4430
          %6044 = vmatpush1.msra.mxu0 %v4429
          %6045 = vmatprep.subr.mxu0 %v4438
          %6046 = vmatpush1.msra.mxu0 %v4437
          %6047 = vmatprep.subr.mxu0 %v4446
          %6048 = vmatpush1.msra.mxu0 %v4445
          %6049 = vmatprep.subr.mxu0 %v4454
          %6050 = vmatpush1.msra.mxu0 %v4453
          %6051 = vmatprep.subr.mxu0 %v4462
          %6052 = vmatpush1.msra.mxu0 %v4461
          %6053 = vmatprep.subr.mxu0 %v4470
          %6054 = vmatpush1.msra.mxu0 %v4469
          %6055 = vmatprep.subr.mxu0 %v4478
          %6056 = vmatpush1.msra.mxu0 %v4477
          %6057 = vmatprep.subr.mxu0 %v4486
          %6058 = vmatpush1.msra.mxu0 %v4485
          %6059 = vmatprep.subr.mxu0 %v4494
          %6060 = vmatpush1.msra.mxu0 %v4493
          %6061 = vmatprep.subr.mxu0 %v4502
          %6062 = vmatpush1.msra.mxu0 %v4501
          %6063 = vmatprep.subr.mxu0 %v4510
          %6064 = vmatpush1.msra.mxu0 %v4509
          %6065 = vmatprep.subr.mxu0 %v4518
          %6066 = vmatpush1.msra.mxu0 %v4517
          %6067 = vmatprep.subr.mxu0 %v4526
          %6068 = vmatpush1.msra.mxu0 %v4525
          %6069 = vmatprep.subr.mxu0 %v4534
          %6070 = vmatpush1.msra.mxu0 %v4533
          %6071 = vmatprep.subr.mxu0 %v4542
          %6072 = vmatpush1.msra.mxu0 %v4541
          %6073 = vmatprep.subr.mxu0 %v4550
          %6074 = vmatpush1.msra.mxu0 %v4549
          %6075 = vmatprep.subr.mxu0 %v4558
          %6076 = vmatpush1.msra.mxu0 %v4557
          %6077 = vmatprep.subr.mxu0 %v4566
          %6078 = vmatpush1.msra.mxu0 %v4565
          %6079 = vmatprep.subr.mxu0 %v4574
          %6080 = vmatpush1.msra.mxu0 %v4573
          %6081 = vmatprep.subr.mxu0 %v4582
          %6082 = vmatpush1.msra.mxu0 %v4581
          %6083 = vmatprep.subr.mxu0 %v4590
          %6084 = vmatpush1.msra.mxu0 %v4589
          %6085 = vmatprep.subr.mxu0 %v4598
          %6086 = vmatpush1.msra.mxu0 %v4597
          %6087 = vmatprep.subr.mxu0 %v4606
          %6088 = vmatpush1.msra.mxu0 %v4605
          %6089 = vmatprep.subr.mxu0 %v4614
          %6090 = vmatpush1.msra.mxu0 %v4613
          %6091 = vmatprep.subr.mxu0 %v4622
          %6092 = vmatpush1.msra.mxu0 %v4621
          %6093 = vmatprep.subr.mxu0 %v4630
          %6094 = vmatpush1.msra.mxu0 %v4629
          %6095 = vmatprep.mubr.f32.mxu0 %v5959
          %6096 = vmatmul.mubr.f32.gmra.mrb[0].mxu0 %v5940
          %v6097 = vpop.f32.mrb[0].mxu0
          %v6098 = vadd.f32 0.0, %v6097
          %v6099 = vpop.f32.mrb[0].mxu0
          %v6100 = vadd.f32 0.0, %v6099
          %6101 = vdwg.mxu0
          %6102 = vmatprep.subr.mxu0 %v4384
          %6103 = vmatpush1.msra.mxu0 %v4383
          %6104 = vmatprep.subr.mxu0 %v4392
          %6105 = vmatpush1.msra.mxu0 %v4391
          %6106 = vmatprep.subr.mxu0 %v4400
          %6107 = vmatpush1.msra.mxu0 %v4399
          %6108 = vmatprep.subr.mxu0 %v4408
          %6109 = vmatpush1.msra.mxu0 %v4407
          %6110 = vmatprep.subr.mxu0 %v4416
          %6111 = vmatpush1.msra.mxu0 %v4415
          %6112 = vmatprep.subr.mxu0 %v4424
          %6113 = vmatpush1.msra.mxu0 %v4423
          %6114 = vmatprep.subr.mxu0 %v4432
          %6115 = vmatpush1.msra.mxu0 %v4431
          %6116 = vmatprep.subr.mxu0 %v4440
          %6117 = vmatpush1.msra.mxu0 %v4439
          %6118 = vmatprep.subr.mxu0 %v4448
          %6119 = vmatpush1.msra.mxu0 %v4447
          %6120 = vmatprep.subr.mxu0 %v4456
          %6121 = vmatpush1.msra.mxu0 %v4455
          %6122 = vmatprep.subr.mxu0 %v4464
          %6123 = vmatpush1.msra.mxu0 %v4463
          %6124 = vmatprep.subr.mxu0 %v4472
          %6125 = vmatpush1.msra.mxu0 %v4471
          %6126 = vmatprep.subr.mxu0 %v4480
          %6127 = vmatpush1.msra.mxu0 %v4479
          %6128 = vmatprep.subr.mxu0 %v4488
          %6129 = vmatpush1.msra.mxu0 %v4487
          %6130 = vmatprep.subr.mxu0 %v4496
          %6131 = vmatpush1.msra.mxu0 %v4495
          %6132 = vmatprep.subr.mxu0 %v4504
          %6133 = vmatpush1.msra.mxu0 %v4503
          %6134 = vmatprep.subr.mxu0 %v4512
          %6135 = vmatpush1.msra.mxu0 %v4511
          %6136 = vmatprep.subr.mxu0 %v4520
          %6137 = vmatpush1.msra.mxu0 %v4519
          %6138 = vmatprep.subr.mxu0 %v4528
          %6139 = vmatpush1.msra.mxu0 %v4527
          %6140 = vmatprep.subr.mxu0 %v4536
          %6141 = vmatpush1.msra.mxu0 %v4535
          %6142 = vmatprep.subr.mxu0 %v4544
          %6143 = vmatpush1.msra.mxu0 %v4543
          %6144 = vmatprep.subr.mxu0 %v4552
          %6145 = vmatpush1.msra.mxu0 %v4551
          %6146 = vmatprep.subr.mxu0 %v4560
          %6147 = vmatpush1.msra.mxu0 %v4559
          %6148 = vmatprep.subr.mxu0 %v4568
          %6149 = vmatpush1.msra.mxu0 %v4567
          %6150 = vmatprep.subr.mxu0 %v4576
          %6151 = vmatpush1.msra.mxu0 %v4575
          %6152 = vmatprep.subr.mxu0 %v4584
          %6153 = vmatpush1.msra.mxu0 %v4583
          %6154 = vmatprep.subr.mxu0 %v4592
          %6155 = vmatpush1.msra.mxu0 %v4591
          %6156 = vmatprep.subr.mxu0 %v4600
          %6157 = vmatpush1.msra.mxu0 %v4599
          %6158 = vmatprep.subr.mxu0 %v4608
          %6159 = vmatpush1.msra.mxu0 %v4607
          %6160 = vmatprep.subr.mxu0 %v4616
          %6161 = vmatpush1.msra.mxu0 %v4615
          %6162 = vmatprep.subr.mxu0 %v4624
          %6163 = vmatpush1.msra.mxu0 %v4623
          %6164 = vmatprep.subr.mxu0 %v4632
          %6165 = vmatpush1.msra.mxu0 %v4631
          %6166 = vmatprep.mubr.f32.mxu0 %v5959
          %6167 = vmatmul.mubr.f32.gmra.mrb[0].mxu0 %v5940
          %v6168 = vpop.f32.mrb[0].mxu0
          %v6169 = vadd.f32 0.0, %v6168
          %v6170 = vpop.f32.mrb[0].mxu0
          %v6171 = vadd.f32 0.0, %v6170
          %6172 = vdwg.mxu0
          %6173 = vmatprep.subr.mxu0 %v4386
          %6174 = vmatpush1.msra.mxu0 %v4385
          %6175 = vmatprep.subr.mxu0 %v4394
          %6176 = vmatpush1.msra.mxu0 %v4393
          %6177 = vmatprep.subr.mxu0 %v4402
          %6178 = vmatpush1.msra.mxu0 %v4401
          %6179 = vmatprep.subr.mxu0 %v4410
          %6180 = vmatpush1.msra.mxu0 %v4409
          %6181 = vmatprep.subr.mxu0 %v4418
          %6182 = vmatpush1.msra.mxu0 %v4417
          %6183 = vmatprep.subr.mxu0 %v4426
          %6184 = vmatpush1.msra.mxu0 %v4425
          %6185 = vmatprep.subr.mxu0 %v4434
          %6186 = vmatpush1.msra.mxu0 %v4433
          %6187 = vmatprep.subr.mxu0 %v4442
          %6188 = vmatpush1.msra.mxu0 %v4441
          %6189 = vmatprep.subr.mxu0 %v4450
          %6190 = vmatpush1.msra.mxu0 %v4449
          %6191 = vmatprep.subr.mxu0 %v4458
          %6192 = vmatpush1.msra.mxu0 %v4457
          %6193 = vmatprep.subr.mxu0 %v4466
          %6194 = vmatpush1.msra.mxu0 %v4465
          %6195 = vmatprep.subr.mxu0 %v4474
          %6196 = vmatpush1.msra.mxu0 %v4473
          %6197 = vmatprep.subr.mxu0 %v4482
          %6198 = vmatpush1.msra.mxu0 %v4481
          %6199 = vmatprep.subr.mxu0 %v4490
          %6200 = vmatpush1.msra.mxu0 %v4489
          %6201 = vmatprep.subr.mxu0 %v4498
          %6202 = vmatpush1.msra.mxu0 %v4497
          %6203 = vmatprep.subr.mxu0 %v4506
          %6204 = vmatpush1.msra.mxu0 %v4505
          %6205 = vmatprep.subr.mxu0 %v4514
          %6206 = vmatpush1.msra.mxu0 %v4513
          %6207 = vmatprep.subr.mxu0 %v4522
          %6208 = vmatpush1.msra.mxu0 %v4521
          %6209 = vmatprep.subr.mxu0 %v4530
          %6210 = vmatpush1.msra.mxu0 %v4529
          %6211 = vmatprep.subr.mxu0 %v4538
          %6212 = vmatpush1.msra.mxu0 %v4537
          %6213 = vmatprep.subr.mxu0 %v4546
          %6214 = vmatpush1.msra.mxu0 %v4545
          %6215 = vmatprep.subr.mxu0 %v4554
          %6216 = vmatpush1.msra.mxu0 %v4553
          %6217 = vmatprep.subr.mxu0 %v4562
          %6218 = vmatpush1.msra.mxu0 %v4561
          %6219 = vmatprep.subr.mxu0 %v4570
          %6220 = vmatpush1.msra.mxu0 %v4569
          %6221 = vmatprep.subr.mxu0 %v4578
          %6222 = vmatpush1.msra.mxu0 %v4577
          %6223 = vmatprep.subr.mxu0 %v4586
          %6224 = vmatpush1.msra.mxu0 %v4585
          %6225 = vmatprep.subr.mxu0 %v4594
          %6226 = vmatpush1.msra.mxu0 %v4593
          %6227 = vmatprep.subr.mxu0 %v4602
          %6228 = vmatpush1.msra.mxu0 %v4601
          %6229 = vmatprep.subr.mxu0 %v4610
          %6230 = vmatpush1.msra.mxu0 %v4609
          %6231 = vmatprep.subr.mxu0 %v4618
          %6232 = vmatpush1.msra.mxu0 %v4617
          %6233 = vmatprep.subr.mxu0 %v4626
          %6234 = vmatpush1.msra.mxu0 %v4625
          %6235 = vmatprep.subr.mxu0 %v4634
          %6236 = vmatpush1.msra.mxu0 %v4633
          %6237 = vmatprep.mubr.f32.mxu0 %v5959
          %6238 = vmatmul.mubr.f32.gmra.mrb[0].mxu0 %v5940
          %v6239 = vpop.f32.mrb[0].mxu0
          %v6240 = vadd.f32 0.0, %v6239
          %v6241 = vpop.f32.mrb[0].mxu0
          %v6242 = vadd.f32 0.0, %v6241
          %6243 = vdwg.mxu0
          %v6244 = vadd.f32 %v4202, %v6027
          %v6245 = vadd.f32 %v4204, %v6029
          %v6246 = vadd.f32 %v4339, %v6098
          %v6247 = vadd.f32 %v4341, %v6100
          %v6248 = vtanh.pop %v6244
          %v6249 = vtanh.pop %v6245
          %v6250 = vtanh.pop %v6246
          %v6251 = vtanh.pop %v6247
          %v6252 = vmul.f32 %v6248, 0.5
          %v6253 = vadd.f32 %v6252, 0.5
          %v6254 = vmul.f32 %v6249, 0.5
          %v6255 = vadd.f32 %v6254, 0.5
          %v6256 = vmul.f32 %v6251, 0.5
          %v6257 = vadd.f32 %v6256, 0.5
          %v6258 = vmul.f32 %v6255, %v5938
          %v6259 = vmul.f32 %v6253, %v6250
          %v6260 = vadd.f32 %v6258, %v6259
          %v6261 = vtanh.pop %v6260
          %v6262 = vmul.f32 %v6257, %v6261
          %v6263 = vadd.f32 %v6169, %v4640
          %v6264 = vadd.f32 %v6171, %v4644
          %v6265 = vadd.f32 %v6240, %v4648
          %v6266 = vadd.f32 %v6242, %v4652
          %v6267 = vtanh.pop %v6263
          %v6268 = vtanh.pop %v6264
          %v6269 = vtanh.pop %v6265
          %v6270 = vtanh.pop %v6266
          %v6271 = vmul.f32 %v6267, 0.5
          %v6272 = vadd.f32 %v6271, 0.5
          %v6273 = vmul.f32 %v6268, 0.5
          %v6274 = vadd.f32 %v6273, 0.5
          %v6275 = vmul.f32 %v6270, 0.5
          %v6276 = vadd.f32 %v6275, 0.5
          %v6277 = vmul.f32 %v6274, %v5957
          %v6278 = vmul.f32 %v6272, %v6269
          %v6279 = vadd.f32 %v6277, %v6278
          %v6280 = vtanh.pop %v6279
          %v6281 = vmul.f32 %v6276, %v6280
          %6282 = vmatprep.subr.mxu0 %v4380
          %6283 = vmatpush1.msra.mxu0 %v4379
          %6284 = vmatprep.subr.mxu0 %v4388
          %6285 = vmatpush1.msra.mxu0 %v4387
          %6286 = vmatprep.subr.mxu0 %v4396
          %6287 = vmatpush1.msra.mxu0 %v4395
          %6288 = vmatprep.subr.mxu0 %v4404
          %6289 = vmatpush1.msra.mxu0 %v4403
          %6290 = vmatprep.subr.mxu0 %v4412
          %6291 = vmatpush1.msra.mxu0 %v4411
          %6292 = vmatprep.subr.mxu0 %v4420
          %6293 = vmatpush1.msra.mxu0 %v4419
          %6294 = vmatprep.subr.mxu0 %v4428
          %6295 = vmatpush1.msra.mxu0 %v4427
          %6296 = vmatprep.subr.mxu0 %v4436
          %6297 = vmatpush1.msra.mxu0 %v4435
          %6298 = vmatprep.subr.mxu0 %v4444
          %6299 = vmatpush1.msra.mxu0 %v4443
          %6300 = vmatprep.subr.mxu0 %v4452
          %6301 = vmatpush1.msra.mxu0 %v4451
          %6302 = vmatprep.subr.mxu0 %v4460
          %6303 = vmatpush1.msra.mxu0 %v4459
          %6304 = vmatprep.subr.mxu0 %v4468
          %6305 = vmatpush1.msra.mxu0 %v4467
          %6306 = vmatprep.subr.mxu0 %v4476
          %6307 = vmatpush1.msra.mxu0 %v4475
          %6308 = vmatprep.subr.mxu0 %v4484
          %6309 = vmatpush1.msra.mxu0 %v4483
          %6310 = vmatprep.subr.mxu0 %v4492
          %6311 = vmatpush1.msra.mxu0 %v4491
          %6312 = vmatprep.subr.mxu0 %v4500
          %6313 = vmatpush1.msra.mxu0 %v4499
          %6314 = vmatprep.subr.mxu0 %v4508
          %6315 = vmatpush1.msra.mxu0 %v4507
          %6316 = vmatprep.subr.mxu0 %v4516
          %6317 = vmatpush1.msra.mxu0 %v4515
          %6318 = vmatprep.subr.mxu0 %v4524
          %6319 = vmatpush1.msra.mxu0 %v4523
          %6320 = vmatprep.subr.mxu0 %v4532
          %6321 = vmatpush1.msra.mxu0 %v4531
          %6322 = vmatprep.subr.mxu0 %v4540
          %6323 = vmatpush1.msra.mxu0 %v4539
          %6324 = vmatprep.subr.mxu0 %v4548
          %6325 = vmatpush1.msra.mxu0 %v4547
          %6326 = vmatprep.subr.mxu0 %v4556
          %6327 = vmatpush1.msra.mxu0 %v4555
          %6328 = vmatprep.subr.mxu0 %v4564
          %6329 = vmatpush1.msra.mxu0 %v4563
          %6330 = vmatprep.subr.mxu0 %v4572
          %6331 = vmatpush1.msra.mxu0 %v4571
          %6332 = vmatprep.subr.mxu0 %v4580
          %6333 = vmatpush1.msra.mxu0 %v4579
          %6334 = vmatprep.subr.mxu0 %v4588
          %6335 = vmatpush1.msra.mxu0 %v4587
          %6336 = vmatprep.subr.mxu0 %v4596
          %6337 = vmatpush1.msra.mxu0 %v4595
          %6338 = vmatprep.subr.mxu0 %v4604
          %6339 = vmatpush1.msra.mxu0 %v4603
          %6340 = vmatprep.subr.mxu0 %v4612
          %6341 = vmatpush1.msra.mxu0 %v4611
          %6342 = vmatprep.subr.mxu0 %v4620
          %6343 = vmatpush1.msra.mxu0 %v4619
          %6344 = vmatprep.subr.mxu0 %v4628
          %6345 = vmatpush1.msra.mxu0 %v4627
          %6346 = vmatprep.mubr.f32.mxu0 %v6281
          %6347 = vmatmul.mubr.f32.gmra.mrb[0].mxu0 %v6262
          %v6348 = vpop.f32.mrb[0].mxu0
          %v6349 = vadd.f32 0.0, %v6348
          %v6350 = vpop.f32.mrb[0].mxu0
          %v6351 = vadd.f32 0.0, %v6350
          %6352 = vdwg.mxu0
          %6353 = vmatprep.subr.mxu0 %v4382
          %6354 = vmatpush1.msra.mxu0 %v4381
          %6355 = vmatprep.subr.mxu0 %v4390
          %6356 = vmatpush1.msra.mxu0 %v4389
          %6357 = vmatprep.subr.mxu0 %v4398
          %6358 = vmatpush1.msra.mxu0 %v4397
          %6359 = vmatprep.subr.mxu0 %v4406
          %6360 = vmatpush1.msra.mxu0 %v4405
          %6361 = vmatprep.subr.mxu0 %v4414
          %6362 = vmatpush1.msra.mxu0 %v4413
          %6363 = vmatprep.subr.mxu0 %v4422
          %6364 = vmatpush1.msra.mxu0 %v4421
          %6365 = vmatprep.subr.mxu0 %v4430
          %6366 = vmatpush1.msra.mxu0 %v4429
          %6367 = vmatprep.subr.mxu0 %v4438
          %6368 = vmatpush1.msra.mxu0 %v4437
          %6369 = vmatprep.subr.mxu0 %v4446
          %6370 = vmatpush1.msra.mxu0 %v4445
          %6371 = vmatprep.subr.mxu0 %v4454
          %6372 = vmatpush1.msra.mxu0 %v4453
          %6373 = vmatprep.subr.mxu0 %v4462
          %6374 = vmatpush1.msra.mxu0 %v4461
          %6375 = vmatprep.subr.mxu0 %v4470
          %6376 = vmatpush1.msra.mxu0 %v4469
          %6377 = vmatprep.subr.mxu0 %v4478
          %6378 = vmatpush1.msra.mxu0 %v4477
          %6379 = vmatprep.subr.mxu0 %v4486
          %6380 = vmatpush1.msra.mxu0 %v4485
          %6381 = vmatprep.subr.mxu0 %v4494
          %6382 = vmatpush1.msra.mxu0 %v4493
          %6383 = vmatprep.subr.mxu0 %v4502
          %6384 = vmatpush1.msra.mxu0 %v4501
          %6385 = vmatprep.subr.mxu0 %v4510
          %6386 = vmatpush1.msra.mxu0 %v4509
          %6387 = vmatprep.subr.mxu0 %v4518
          %6388 = vmatpush1.msra.mxu0 %v4517
          %6389 = vmatprep.subr.mxu0 %v4526
          %6390 = vmatpush1.msra.mxu0 %v4525
          %6391 = vmatprep.subr.mxu0 %v4534
          %6392 = vmatpush1.msra.mxu0 %v4533
          %6393 = vmatprep.subr.mxu0 %v4542
          %6394 = vmatpush1.msra.mxu0 %v4541
          %6395 = vmatprep.subr.mxu0 %v4550
          %6396 = vmatpush1.msra.mxu0 %v4549
          %6397 = vmatprep.subr.mxu0 %v4558
          %6398 = vmatpush1.msra.mxu0 %v4557
          %6399 = vmatprep.subr.mxu0 %v4566
          %6400 = vmatpush1.msra.mxu0 %v4565
          %6401 = vmatprep.subr.mxu0 %v4574
          %6402 = vmatpush1.msra.mxu0 %v4573
          %6403 = vmatprep.subr.mxu0 %v4582
          %6404 = vmatpush1.msra.mxu0 %v4581
          %6405 = vmatprep.subr.mxu0 %v4590
          %6406 = vmatpush1.msra.mxu0 %v4589
          %6407 = vmatprep.subr.mxu0 %v4598
          %6408 = vmatpush1.msra.mxu0 %v4597
          %6409 = vmatprep.subr.mxu0 %v4606
          %6410 = vmatpush1.msra.mxu0 %v4605
          %6411 = vmatprep.subr.mxu0 %v4614
          %6412 = vmatpush1.msra.mxu0 %v4613
          %6413 = vmatprep.subr.mxu0 %v4622
          %6414 = vmatpush1.msra.mxu0 %v4621
          %6415 = vmatprep.subr.mxu0 %v4630
          %6416 = vmatpush1.msra.mxu0 %v4629
          %6417 = vmatprep.mubr.f32.mxu0 %v6281
          %6418 = vmatmul.mubr.f32.gmra.mrb[0].mxu0 %v6262
          %v6419 = vpop.f32.mrb[0].mxu0
          %v6420 = vadd.f32 0.0, %v6419
          %v6421 = vpop.f32.mrb[0].mxu0
          %v6422 = vadd.f32 0.0, %v6421
          %6423 = vdwg.mxu0
          %6424 = vmatprep.subr.mxu0 %v4384
          %6425 = vmatpush1.msra.mxu0 %v4383
          %6426 = vmatprep.subr.mxu0 %v4392
          %6427 = vmatpush1.msra.mxu0 %v4391
          %6428 = vmatprep.subr.mxu0 %v4400
          %6429 = vmatpush1.msra.mxu0 %v4399
          %6430 = vmatprep.subr.mxu0 %v4408
          %6431 = vmatpush1.msra.mxu0 %v4407
          %6432 = vmatprep.subr.mxu0 %v4416
          %6433 = vmatpush1.msra.mxu0 %v4415
          %6434 = vmatprep.subr.mxu0 %v4424
          %6435 = vmatpush1.msra.mxu0 %v4423
          %6436 = vmatprep.subr.mxu0 %v4432
          %6437 = vmatpush1.msra.mxu0 %v4431
          %6438 = vmatprep.subr.mxu0 %v4440
          %6439 = vmatpush1.msra.mxu0 %v4439
          %6440 = vmatprep.subr.mxu0 %v4448
          %6441 = vmatpush1.msra.mxu0 %v4447
          %6442 = vmatprep.subr.mxu0 %v4456
          %6443 = vmatpush1.msra.mxu0 %v4455
          %6444 = vmatprep.subr.mxu0 %v4464
          %6445 = vmatpush1.msra.mxu0 %v4463
          %6446 = vmatprep.subr.mxu0 %v4472
          %6447 = vmatpush1.msra.mxu0 %v4471
          %6448 = vmatprep.subr.mxu0 %v4480
          %6449 = vmatpush1.msra.mxu0 %v4479
          %6450 = vmatprep.subr.mxu0 %v4488
          %6451 = vmatpush1.msra.mxu0 %v4487
          %6452 = vmatprep.subr.mxu0 %v4496
          %6453 = vmatpush1.msra.mxu0 %v4495
          %6454 = vmatprep.subr.mxu0 %v4504
          %6455 = vmatpush1.msra.mxu0 %v4503
          %6456 = vmatprep.subr.mxu0 %v4512
          %6457 = vmatpush1.msra.mxu0 %v4511
          %6458 = vmatprep.subr.mxu0 %v4520
          %6459 = vmatpush1.msra.mxu0 %v4519
          %6460 = vmatprep.subr.mxu0 %v4528
          %6461 = vmatpush1.msra.mxu0 %v4527
          %6462 = vmatprep.subr.mxu0 %v4536
          %6463 = vmatpush1.msra.mxu0 %v4535
          %6464 = vmatprep.subr.mxu0 %v4544
          %6465 = vmatpush1.msra.mxu0 %v4543
          %6466 = vmatprep.subr.mxu0 %v4552
          %6467 = vmatpush1.msra.mxu0 %v4551
          %6468 = vmatprep.subr.mxu0 %v4560
          %6469 = vmatpush1.msra.mxu0 %v4559
          %6470 = vmatprep.subr.mxu0 %v4568
          %6471 = vmatpush1.msra.mxu0 %v4567
          %6472 = vmatprep.subr.mxu0 %v4576
          %6473 = vmatpush1.msra.mxu0 %v4575
          %6474 = vmatprep.subr.mxu0 %v4584
          %6475 = vmatpush1.msra.mxu0 %v4583
          %6476 = vmatprep.subr.mxu0 %v4592
          %6477 = vmatpush1.msra.mxu0 %v4591
          %6478 = vmatprep.subr.mxu0 %v4600
          %6479 = vmatpush1.msra.mxu0 %v4599
          %6480 = vmatprep.subr.mxu0 %v4608
          %6481 = vmatpush1.msra.mxu0 %v4607
          %6482 = vmatprep.subr.mxu0 %v4616
          %6483 = vmatpush1.msra.mxu0 %v4615
          %6484 = vmatprep.subr.mxu0 %v4624
          %6485 = vmatpush1.msra.mxu0 %v4623
          %6486 = vmatprep.subr.mxu0 %v4632
          %6487 = vmatpush1.msra.mxu0 %v4631
          %6488 = vmatprep.mubr.f32.mxu0 %v6281
          %6489 = vmatmul.mubr.f32.gmra.mrb[0].mxu0 %v6262
          %v6490 = vpop.f32.mrb[0].mxu0
          %v6491 = vadd.f32 0.0, %v6490
          %v6492 = vpop.f32.mrb[0].mxu0
          %v6493 = vadd.f32 0.0, %v6492
          %6494 = vdwg.mxu0
          %6495 = vmatprep.subr.mxu0 %v4386
          %6496 = vmatpush1.msra.mxu0 %v4385
          %6497 = vmatprep.subr.mxu0 %v4394
          %6498 = vmatpush1.msra.mxu0 %v4393
          %6499 = vmatprep.subr.mxu0 %v4402
          %6500 = vmatpush1.msra.mxu0 %v4401
          %6501 = vmatprep.subr.mxu0 %v4410
          %6502 = vmatpush1.msra.mxu0 %v4409
          %6503 = vmatprep.subr.mxu0 %v4418
          %6504 = vmatpush1.msra.mxu0 %v4417
          %6505 = vmatprep.subr.mxu0 %v4426
          %6506 = vmatpush1.msra.mxu0 %v4425
          %6507 = vmatprep.subr.mxu0 %v4434
          %6508 = vmatpush1.msra.mxu0 %v4433
          %6509 = vmatprep.subr.mxu0 %v4442
          %6510 = vmatpush1.msra.mxu0 %v4441
          %6511 = vmatprep.subr.mxu0 %v4450
          %6512 = vmatpush1.msra.mxu0 %v4449
          %6513 = vmatprep.subr.mxu0 %v4458
          %6514 = vmatpush1.msra.mxu0 %v4457
          %6515 = vmatprep.subr.mxu0 %v4466
          %6516 = vmatpush1.msra.mxu0 %v4465
          %6517 = vmatprep.subr.mxu0 %v4474
          %6518 = vmatpush1.msra.mxu0 %v4473
          %6519 = vmatprep.subr.mxu0 %v4482
          %6520 = vmatpush1.msra.mxu0 %v4481
          %6521 = vmatprep.subr.mxu0 %v4490
          %6522 = vmatpush1.msra.mxu0 %v4489
          %6523 = vmatprep.subr.mxu0 %v4498
          %6524 = vmatpush1.msra.mxu0 %v4497
          %6525 = vmatprep.subr.mxu0 %v4506
          %6526 = vmatpush1.msra.mxu0 %v4505
          %6527 = vmatprep.subr.mxu0 %v4514
          %6528 = vmatpush1.msra.mxu0 %v4513
          %6529 = vmatprep.subr.mxu0 %v4522
          %6530 = vmatpush1.msra.mxu0 %v4521
          %6531 = vmatprep.subr.mxu0 %v4530
          %6532 = vmatpush1.msra.mxu0 %v4529
          %6533 = vmatprep.subr.mxu0 %v4538
          %6534 = vmatpush1.msra.mxu0 %v4537
          %6535 = vmatprep.subr.mxu0 %v4546
          %6536 = vmatpush1.msra.mxu0 %v4545
          %6537 = vmatprep.subr.mxu0 %v4554
          %6538 = vmatpush1.msra.mxu0 %v4553
          %6539 = vmatprep.subr.mxu0 %v4562
          %6540 = vmatpush1.msra.mxu0 %v4561
          %6541 = vmatprep.subr.mxu0 %v4570
          %6542 = vmatpush1.msra.mxu0 %v4569
          %6543 = vmatprep.subr.mxu0 %v4578
          %6544 = vmatpush1.msra.mxu0 %v4577
          %6545 = vmatprep.subr.mxu0 %v4586
          %6546 = vmatpush1.msra.mxu0 %v4585
          %6547 = vmatprep.subr.mxu0 %v4594
          %6548 = vmatpush1.msra.mxu0 %v4593
          %6549 = vmatprep.subr.mxu0 %v4602
          %6550 = vmatpush1.msra.mxu0 %v4601
          %6551 = vmatprep.subr.mxu0 %v4610
          %6552 = vmatpush1.msra.mxu0 %v4609
          %6553 = vmatprep.subr.mxu0 %v4618
          %6554 = vmatpush1.msra.mxu0 %v4617
          %6555 = vmatprep.subr.mxu0 %v4626
          %6556 = vmatpush1.msra.mxu0 %v4625
          %6557 = vmatprep.subr.mxu0 %v4634
          %6558 = vmatpush1.msra.mxu0 %v4633
          %6559 = vmatprep.mubr.f32.mxu0 %v6281
          %6560 = vmatmul.mubr.f32.gmra.mrb[0].mxu0 %v6262
          %v6561 = vpop.f32.mrb[0].mxu0
          %v6562 = vadd.f32 0.0, %v6561
          %v6563 = vpop.f32.mrb[0].mxu0
          %v6564 = vadd.f32 0.0, %v6563
          %6565 = vdwg.mxu0
          %v6566 = vadd.f32 %v4208, %v6349
          %v6567 = vadd.f32 %v4210, %v6351
          %v6568 = vadd.f32 %v4345, %v6420
          %v6569 = vadd.f32 %v4347, %v6422
          %v6570 = vtanh.pop %v6566
          %v6571 = vtanh.pop %v6567
          %v6572 = vtanh.pop %v6568
          %v6573 = vtanh.pop %v6569
          %v6574 = vmul.f32 %v6570, 0.5
          %v6575 = vadd.f32 %v6574, 0.5
          %v6576 = vmul.f32 %v6571, 0.5
          %v6577 = vadd.f32 %v6576, 0.5
          %v6578 = vmul.f32 %v6573, 0.5
          %v6579 = vadd.f32 %v6578, 0.5
          %v6580 = vmul.f32 %v6577, %v6260
          %v6581 = vmul.f32 %v6575, %v6572
          %v6582 = vadd.f32 %v6580, %v6581
          %v6583 = vtanh.pop %v6582
          %v6584 = vmul.f32 %v6579, %v6583
          %v6585 = vadd.f32 %v6491, %v4640
          %v6586 = vadd.f32 %v6493, %v4644
          %v6587 = vadd.f32 %v6562, %v4648
          %v6588 = vadd.f32 %v6564, %v4652
          %v6589 = vtanh.pop %v6585
          %v6590 = vtanh.pop %v6586
          %v6591 = vtanh.pop %v6587
          %v6592 = vtanh.pop %v6588
          %v6593 = vmul.f32 %v6589, 0.5
          %v6594 = vadd.f32 %v6593, 0.5
          %v6595 = vmul.f32 %v6590, 0.5
          %v6596 = vadd.f32 %v6595, 0.5
          %v6597 = vmul.f32 %v6592, 0.5
          %v6598 = vadd.f32 %v6597, 0.5
          %v6599 = vmul.f32 %v6596, %v6279
          %v6600 = vmul.f32 %v6594, %v6591
          %v6601 = vadd.f32 %v6599, %v6600
          %v6602 = vtanh.pop %v6601
          %v6603 = vmul.f32 %v6598, %v6602
          %6604 = vmatprep.subr.mxu0 %v4380
          %6605 = vmatpush1.msra.mxu0 %v4379
          %6606 = vmatprep.subr.mxu0 %v4388
          %6607 = vmatpush1.msra.mxu0 %v4387
          %6608 = vmatprep.subr.mxu0 %v4396
          %6609 = vmatpush1.msra.mxu0 %v4395
          %6610 = vmatprep.subr.mxu0 %v4404
          %6611 = vmatpush1.msra.mxu0 %v4403
          %6612 = vmatprep.subr.mxu0 %v4412
          %6613 = vmatpush1.msra.mxu0 %v4411
          %6614 = vmatprep.subr.mxu0 %v4420
          %6615 = vmatpush1.msra.mxu0 %v4419
          %6616 = vmatprep.subr.mxu0 %v4428
          %6617 = vmatpush1.msra.mxu0 %v4427
          %6618 = vmatprep.subr.mxu0 %v4436
          %6619 = vmatpush1.msra.mxu0 %v4435
          %6620 = vmatprep.subr.mxu0 %v4444
          %6621 = vmatpush1.msra.mxu0 %v4443
          %6622 = vmatprep.subr.mxu0 %v4452
          %6623 = vmatpush1.msra.mxu0 %v4451
          %6624 = vmatprep.subr.mxu0 %v4460
          %6625 = vmatpush1.msra.mxu0 %v4459
          %6626 = vmatprep.subr.mxu0 %v4468
          %6627 = vmatpush1.msra.mxu0 %v4467
          %6628 = vmatprep.subr.mxu0 %v4476
          %6629 = vmatpush1.msra.mxu0 %v4475
          %6630 = vmatprep.subr.mxu0 %v4484
          %6631 = vmatpush1.msra.mxu0 %v4483
          %6632 = vmatprep.subr.mxu0 %v4492
          %6633 = vmatpush1.msra.mxu0 %v4491
          %6634 = vmatprep.subr.mxu0 %v4500
          %6635 = vmatpush1.msra.mxu0 %v4499
          %6636 = vmatprep.subr.mxu0 %v4508
          %6637 = vmatpush1.msra.mxu0 %v4507
          %6638 = vmatprep.subr.mxu0 %v4516
          %6639 = vmatpush1.msra.mxu0 %v4515
          %6640 = vmatprep.subr.mxu0 %v4524
          %6641 = vmatpush1.msra.mxu0 %v4523
          %6642 = vmatprep.subr.mxu0 %v4532
          %6643 = vmatpush1.msra.mxu0 %v4531
          %6644 = vmatprep.subr.mxu0 %v4540
          %6645 = vmatpush1.msra.mxu0 %v4539
          %6646 = vmatprep.subr.mxu0 %v4548
          %6647 = vmatpush1.msra.mxu0 %v4547
          %6648 = vmatprep.subr.mxu0 %v4556
          %6649 = vmatpush1.msra.mxu0 %v4555
          %6650 = vmatprep.subr.mxu0 %v4564
          %6651 = vmatpush1.msra.mxu0 %v4563
          %6652 = vmatprep.subr.mxu0 %v4572
          %6653 = vmatpush1.msra.mxu0 %v4571
          %6654 = vmatprep.subr.mxu0 %v4580
          %6655 = vmatpush1.msra.mxu0 %v4579
          %6656 = vmatprep.subr.mxu0 %v4588
          %6657 = vmatpush1.msra.mxu0 %v4587
          %6658 = vmatprep.subr.mxu0 %v4596
          %6659 = vmatpush1.msra.mxu0 %v4595
          %6660 = vmatprep.subr.mxu0 %v4604
          %6661 = vmatpush1.msra.mxu0 %v4603
          %6662 = vmatprep.subr.mxu0 %v4612
          %6663 = vmatpush1.msra.mxu0 %v4611
          %6664 = vmatprep.subr.mxu0 %v4620
          %6665 = vmatpush1.msra.mxu0 %v4619
          %6666 = vmatprep.subr.mxu0 %v4628
          %6667 = vmatpush1.msra.mxu0 %v4627
          %6668 = vmatprep.mubr.f32.mxu0 %v6603
          %6669 = vmatmul.mubr.f32.gmra.mrb[0].mxu0 %v6584
          %v6670 = vpop.f32.mrb[0].mxu0
          %v6671 = vadd.f32 0.0, %v6670
          %v6672 = vpop.f32.mrb[0].mxu0
          %v6673 = vadd.f32 0.0, %v6672
          %6674 = vdwg.mxu0
          %6675 = vmatprep.subr.mxu0 %v4382
          %6676 = vmatpush1.msra.mxu0 %v4381
          %6677 = vmatprep.subr.mxu0 %v4390
          %6678 = vmatpush1.msra.mxu0 %v4389
          %6679 = vmatprep.subr.mxu0 %v4398
          %6680 = vmatpush1.msra.mxu0 %v4397
          %6681 = vmatprep.subr.mxu0 %v4406
          %6682 = vmatpush1.msra.mxu0 %v4405
          %6683 = vmatprep.subr.mxu0 %v4414
          %6684 = vmatpush1.msra.mxu0 %v4413
          %6685 = vmatprep.subr.mxu0 %v4422
          %6686 = vmatpush1.msra.mxu0 %v4421
          %6687 = vmatprep.subr.mxu0 %v4430
          %6688 = vmatpush1.msra.mxu0 %v4429
          %6689 = vmatprep.subr.mxu0 %v4438
          %6690 = vmatpush1.msra.mxu0 %v4437
          %6691 = vmatprep.subr.mxu0 %v4446
          %6692 = vmatpush1.msra.mxu0 %v4445
          %6693 = vmatprep.subr.mxu0 %v4454
          %6694 = vmatpush1.msra.mxu0 %v4453
          %6695 = vmatprep.subr.mxu0 %v4462
          %6696 = vmatpush1.msra.mxu0 %v4461
          %6697 = vmatprep.subr.mxu0 %v4470
          %6698 = vmatpush1.msra.mxu0 %v4469
          %6699 = vmatprep.subr.mxu0 %v4478
          %6700 = vmatpush1.msra.mxu0 %v4477
          %6701 = vmatprep.subr.mxu0 %v4486
          %6702 = vmatpush1.msra.mxu0 %v4485
          %6703 = vmatprep.subr.mxu0 %v4494
          %6704 = vmatpush1.msra.mxu0 %v4493
          %6705 = vmatprep.subr.mxu0 %v4502
          %6706 = vmatpush1.msra.mxu0 %v4501
          %6707 = vmatprep.subr.mxu0 %v4510
          %6708 = vmatpush1.msra.mxu0 %v4509
          %6709 = vmatprep.subr.mxu0 %v4518
          %6710 = vmatpush1.msra.mxu0 %v4517
          %6711 = vmatprep.subr.mxu0 %v4526
          %6712 = vmatpush1.msra.mxu0 %v4525
          %6713 = vmatprep.subr.mxu0 %v4534
          %6714 = vmatpush1.msra.mxu0 %v4533
          %6715 = vmatprep.subr.mxu0 %v4542
          %6716 = vmatpush1.msra.mxu0 %v4541
          %6717 = vmatprep.subr.mxu0 %v4550
          %6718 = vmatpush1.msra.mxu0 %v4549
          %6719 = vmatprep.subr.mxu0 %v4558
          %6720 = vmatpush1.msra.mxu0 %v4557
          %6721 = vmatprep.subr.mxu0 %v4566
          %6722 = vmatpush1.msra.mxu0 %v4565
          %6723 = vmatprep.subr.mxu0 %v4574
          %6724 = vmatpush1.msra.mxu0 %v4573
          %6725 = vmatprep.subr.mxu0 %v4582
          %6726 = vmatpush1.msra.mxu0 %v4581
          %6727 = vmatprep.subr.mxu0 %v4590
          %6728 = vmatpush1.msra.mxu0 %v4589
          %6729 = vmatprep.subr.mxu0 %v4598
          %6730 = vmatpush1.msra.mxu0 %v4597
          %6731 = vmatprep.subr.mxu0 %v4606
          %6732 = vmatpush1.msra.mxu0 %v4605
          %6733 = vmatprep.subr.mxu0 %v4614
          %6734 = vmatpush1.msra.mxu0 %v4613
          %6735 = vmatprep.subr.mxu0 %v4622
          %6736 = vmatpush1.msra.mxu0 %v4621
          %6737 = vmatprep.subr.mxu0 %v4630
          %6738 = vmatpush1.msra.mxu0 %v4629
          %6739 = vmatprep.mubr.f32.mxu0 %v6603
          %6740 = vmatmul.mubr.f32.gmra.mrb[0].mxu0 %v6584
          %v6741 = vpop.f32.mrb[0].mxu0
          %v6742 = vadd.f32 0.0, %v6741
          %v6743 = vpop.f32.mrb[0].mxu0
          %v6744 = vadd.f32 0.0, %v6743
          %6745 = vdwg.mxu0
          %6746 = vmatprep.subr.mxu0 %v4384
          %6747 = vmatpush1.msra.mxu0 %v4383
          %6748 = vmatprep.subr.mxu0 %v4392
          %6749 = vmatpush1.msra.mxu0 %v4391
          %6750 = vmatprep.subr.mxu0 %v4400
          %6751 = vmatpush1.msra.mxu0 %v4399
          %6752 = vmatprep.subr.mxu0 %v4408
          %6753 = vmatpush1.msra.mxu0 %v4407
          %6754 = vmatprep.subr.mxu0 %v4416
          %6755 = vmatpush1.msra.mxu0 %v4415
          %6756 = vmatprep.subr.mxu0 %v4424
          %6757 = vmatpush1.msra.mxu0 %v4423
          %6758 = vmatprep.subr.mxu0 %v4432
          %6759 = vmatpush1.msra.mxu0 %v4431
          %6760 = vmatprep.subr.mxu0 %v4440
          %6761 = vmatpush1.msra.mxu0 %v4439
          %6762 = vmatprep.subr.mxu0 %v4448
          %6763 = vmatpush1.msra.mxu0 %v4447
          %6764 = vmatprep.subr.mxu0 %v4456
          %6765 = vmatpush1.msra.mxu0 %v4455
          %6766 = vmatprep.subr.mxu0 %v4464
          %6767 = vmatpush1.msra.mxu0 %v4463
          %6768 = vmatprep.subr.mxu0 %v4472
          %6769 = vmatpush1.msra.mxu0 %v4471
          %6770 = vmatprep.subr.mxu0 %v4480
          %6771 = vmatpush1.msra.mxu0 %v4479
          %6772 = vmatprep.subr.mxu0 %v4488
          %6773 = vmatpush1.msra.mxu0 %v4487
          %6774 = vmatprep.subr.mxu0 %v4496
          %6775 = vmatpush1.msra.mxu0 %v4495
          %6776 = vmatprep.subr.mxu0 %v4504
          %6777 = vmatpush1.msra.mxu0 %v4503
          %6778 = vmatprep.subr.mxu0 %v4512
          %6779 = vmatpush1.msra.mxu0 %v4511
          %6780 = vmatprep.subr.mxu0 %v4520
          %6781 = vmatpush1.msra.mxu0 %v4519
          %6782 = vmatprep.subr.mxu0 %v4528
          %6783 = vmatpush1.msra.mxu0 %v4527
          %6784 = vmatprep.subr.mxu0 %v4536
          %6785 = vmatpush1.msra.mxu0 %v4535
          %6786 = vmatprep.subr.mxu0 %v4544
          %6787 = vmatpush1.msra.mxu0 %v4543
          %6788 = vmatprep.subr.mxu0 %v4552
          %6789 = vmatpush1.msra.mxu0 %v4551
          %6790 = vmatprep.subr.mxu0 %v4560
          %6791 = vmatpush1.msra.mxu0 %v4559
          %6792 = vmatprep.subr.mxu0 %v4568
          %6793 = vmatpush1.msra.mxu0 %v4567
          %6794 = vmatprep.subr.mxu0 %v4576
          %6795 = vmatpush1.msra.mxu0 %v4575
          %6796 = vmatprep.subr.mxu0 %v4584
          %6797 = vmatpush1.msra.mxu0 %v4583
          %6798 = vmatprep.subr.mxu0 %v4592
          %6799 = vmatpush1.msra.mxu0 %v4591
          %6800 = vmatprep.subr.mxu0 %v4600
          %6801 = vmatpush1.msra.mxu0 %v4599
          %6802 = vmatprep.subr.mxu0 %v4608
          %6803 = vmatpush1.msra.mxu0 %v4607
          %6804 = vmatprep.subr.mxu0 %v4616
          %6805 = vmatpush1.msra.mxu0 %v4615
          %6806 = vmatprep.subr.mxu0 %v4624
          %6807 = vmatpush1.msra.mxu0 %v4623
          %6808 = vmatprep.subr.mxu0 %v4632
          %6809 = vmatpush1.msra.mxu0 %v4631
          %6810 = vmatprep.mubr.f32.mxu0 %v6603
          %6811 = vmatmul.mubr.f32.gmra.mrb[0].mxu0 %v6584
          %v6812 = vpop.f32.mrb[0].mxu0
          %v6813 = vadd.f32 0.0, %v6812
          %v6814 = vpop.f32.mrb[0].mxu0
          %v6815 = vadd.f32 0.0, %v6814
          %6816 = vdwg.mxu0
          %6817 = vmatprep.subr.mxu0 %v4386
          %6818 = vmatpush1.msra.mxu0 %v4385
          %6819 = vmatprep.subr.mxu0 %v4394
          %6820 = vmatpush1.msra.mxu0 %v4393
          %6821 = vmatprep.subr.mxu0 %v4402
          %6822 = vmatpush1.msra.mxu0 %v4401
          %6823 = vmatprep.subr.mxu0 %v4410
          %6824 = vmatpush1.msra.mxu0 %v4409
          %6825 = vmatprep.subr.mxu0 %v4418
          %6826 = vmatpush1.msra.mxu0 %v4417
          %6827 = vmatprep.subr.mxu0 %v4426
          %6828 = vmatpush1.msra.mxu0 %v4425
          %6829 = vmatprep.subr.mxu0 %v4434
          %6830 = vmatpush1.msra.mxu0 %v4433
          %6831 = vmatprep.subr.mxu0 %v4442
          %6832 = vmatpush1.msra.mxu0 %v4441
          %6833 = vmatprep.subr.mxu0 %v4450
          %6834 = vmatpush1.msra.mxu0 %v4449
          %6835 = vmatprep.subr.mxu0 %v4458
          %6836 = vmatpush1.msra.mxu0 %v4457
          %6837 = vmatprep.subr.mxu0 %v4466
          %6838 = vmatpush1.msra.mxu0 %v4465
          %6839 = vmatprep.subr.mxu0 %v4474
          %6840 = vmatpush1.msra.mxu0 %v4473
          %6841 = vmatprep.subr.mxu0 %v4482
          %6842 = vmatpush1.msra.mxu0 %v4481
          %6843 = vmatprep.subr.mxu0 %v4490
          %6844 = vmatpush1.msra.mxu0 %v4489
          %6845 = vmatprep.subr.mxu0 %v4498
          %6846 = vmatpush1.msra.mxu0 %v4497
          %6847 = vmatprep.subr.mxu0 %v4506
          %6848 = vmatpush1.msra.mxu0 %v4505
          %6849 = vmatprep.subr.mxu0 %v4514
          %6850 = vmatpush1.msra.mxu0 %v4513
          %6851 = vmatprep.subr.mxu0 %v4522
          %6852 = vmatpush1.msra.mxu0 %v4521
          %6853 = vmatprep.subr.mxu0 %v4530
          %6854 = vmatpush1.msra.mxu0 %v4529
          %6855 = vmatprep.subr.mxu0 %v4538
          %6856 = vmatpush1.msra.mxu0 %v4537
          %6857 = vmatprep.subr.mxu0 %v4546
          %6858 = vmatpush1.msra.mxu0 %v4545
          %6859 = vmatprep.subr.mxu0 %v4554
          %6860 = vmatpush1.msra.mxu0 %v4553
          %6861 = vmatprep.subr.mxu0 %v4562
          %6862 = vmatpush1.msra.mxu0 %v4561
          %6863 = vmatprep.subr.mxu0 %v4570
          %6864 = vmatpush1.msra.mxu0 %v4569
          %6865 = vmatprep.subr.mxu0 %v4578
          %6866 = vmatpush1.msra.mxu0 %v4577
          %6867 = vmatprep.subr.mxu0 %v4586
          %6868 = vmatpush1.msra.mxu0 %v4585
          %6869 = vmatprep.subr.mxu0 %v4594
          %6870 = vmatpush1.msra.mxu0 %v4593
          %6871 = vmatprep.subr.mxu0 %v4602
          %6872 = vmatpush1.msra.mxu0 %v4601
          %6873 = vmatprep.subr.mxu0 %v4610
          %6874 = vmatpush1.msra.mxu0 %v4609
          %6875 = vmatprep.subr.mxu0 %v4618
          %6876 = vmatpush1.msra.mxu0 %v4617
          %6877 = vmatprep.subr.mxu0 %v4626
          %6878 = vmatpush1.msra.mxu0 %v4625
          %6879 = vmatprep.subr.mxu0 %v4634
          %6880 = vmatpush1.msra.mxu0 %v4633
          %6881 = vmatprep.mubr.f32.mxu0 %v6603
          %6882 = vmatmul.mubr.f32.gmra.mrb[0].mxu0 %v6584
          %v6883 = vpop.f32.mrb[0].mxu0
          %v6884 = vadd.f32 0.0, %v6883
          %v6885 = vpop.f32.mrb[0].mxu0
          %v6886 = vadd.f32 0.0, %v6885
          %6887 = vdwg.mxu0
          %v6888 = vadd.f32 %v4214, %v6671
          %v6889 = vadd.f32 %v4216, %v6673
          %v6890 = vadd.f32 %v4351, %v6742
          %v6891 = vadd.f32 %v4353, %v6744
          %v6892 = vtanh.pop %v6888
          %v6893 = vtanh.pop %v6889
          %v6894 = vtanh.pop %v6890
          %v6895 = vtanh.pop %v6891
          %v6896 = vmul.f32 %v6892, 0.5
          %v6897 = vadd.f32 %v6896, 0.5
          %v6898 = vmul.f32 %v6893, 0.5
          %v6899 = vadd.f32 %v6898, 0.5
          %v6900 = vmul.f32 %v6895, 0.5
          %v6901 = vadd.f32 %v6900, 0.5
          %v6902 = vmul.f32 %v6899, %v6582
          %v6903 = vmul.f32 %v6897, %v6894
          %v6904 = vadd.f32 %v6902, %v6903
          %v6905 = vtanh.pop %v6904
          %v6906 = vmul.f32 %v6901, %v6905
          %v6907 = vadd.f32 %v6813, %v4640
          %v6908 = vadd.f32 %v6815, %v4644
          %v6909 = vadd.f32 %v6884, %v4648
          %v6910 = vadd.f32 %v6886, %v4652
          %v6911 = vtanh.pop %v6907
          %v6912 = vtanh.pop %v6908
          %v6913 = vtanh.pop %v6909
          %v6914 = vtanh.pop %v6910
          %v6915 = vmul.f32 %v6911, 0.5
          %v6916 = vadd.f32 %v6915, 0.5
          %v6917 = vmul.f32 %v6912, 0.5
          %v6918 = vadd.f32 %v6917, 0.5
          %v6919 = vmul.f32 %v6914, 0.5
          %v6920 = vadd.f32 %v6919, 0.5
          %v6921 = vmul.f32 %v6918, %v6601
          %v6922 = vmul.f32 %v6916, %v6913
          %v6923 = vadd.f32 %v6921, %v6922
          %v6924 = vtanh.pop %v6923
          %v6925 = vmul.f32 %v6920, %v6924
          %6926 = vmatprep.subr.mxu0 %v4380
          %6927 = vmatpush1.msra.mxu0 %v4379
          %6928 = vmatprep.subr.mxu0 %v4388
          %6929 = vmatpush1.msra.mxu0 %v4387
          %6930 = vmatprep.subr.mxu0 %v4396
          %6931 = vmatpush1.msra.mxu0 %v4395
          %6932 = vmatprep.subr.mxu0 %v4404
          %6933 = vmatpush1.msra.mxu0 %v4403
          %6934 = vmatprep.subr.mxu0 %v4412
          %6935 = vmatpush1.msra.mxu0 %v4411
          %6936 = vmatprep.subr.mxu0 %v4420
          %6937 = vmatpush1.msra.mxu0 %v4419
          %6938 = vmatprep.subr.mxu0 %v4428
          %6939 = vmatpush1.msra.mxu0 %v4427
          %6940 = vmatprep.subr.mxu0 %v4436
          %6941 = vmatpush1.msra.mxu0 %v4435
          %6942 = vmatprep.subr.mxu0 %v4444
          %6943 = vmatpush1.msra.mxu0 %v4443
          %6944 = vmatprep.subr.mxu0 %v4452
          %6945 = vmatpush1.msra.mxu0 %v4451
          %6946 = vmatprep.subr.mxu0 %v4460
          %6947 = vmatpush1.msra.mxu0 %v4459
          %6948 = vmatprep.subr.mxu0 %v4468
          %6949 = vmatpush1.msra.mxu0 %v4467
          %6950 = vmatprep.subr.mxu0 %v4476
          %6951 = vmatpush1.msra.mxu0 %v4475
          %6952 = vmatprep.subr.mxu0 %v4484
          %6953 = vmatpush1.msra.mxu0 %v4483
          %6954 = vmatprep.subr.mxu0 %v4492
          %6955 = vmatpush1.msra.mxu0 %v4491
          %6956 = vmatprep.subr.mxu0 %v4500
          %6957 = vmatpush1.msra.mxu0 %v4499
          %6958 = vmatprep.subr.mxu0 %v4508
          %6959 = vmatpush1.msra.mxu0 %v4507
          %6960 = vmatprep.subr.mxu0 %v4516
          %6961 = vmatpush1.msra.mxu0 %v4515
          %6962 = vmatprep.subr.mxu0 %v4524
          %6963 = vmatpush1.msra.mxu0 %v4523
          %6964 = vmatprep.subr.mxu0 %v4532
          %6965 = vmatpush1.msra.mxu0 %v4531
          %6966 = vmatprep.subr.mxu0 %v4540
          %6967 = vmatpush1.msra.mxu0 %v4539
          %6968 = vmatprep.subr.mxu0 %v4548
          %6969 = vmatpush1.msra.mxu0 %v4547
          %6970 = vmatprep.subr.mxu0 %v4556
          %6971 = vmatpush1.msra.mxu0 %v4555
          %6972 = vmatprep.subr.mxu0 %v4564
          %6973 = vmatpush1.msra.mxu0 %v4563
          %6974 = vmatprep.subr.mxu0 %v4572
          %6975 = vmatpush1.msra.mxu0 %v4571
          %6976 = vmatprep.subr.mxu0 %v4580
          %6977 = vmatpush1.msra.mxu0 %v4579
          %6978 = vmatprep.subr.mxu0 %v4588
          %6979 = vmatpush1.msra.mxu0 %v4587
          %6980 = vmatprep.subr.mxu0 %v4596
          %6981 = vmatpush1.msra.mxu0 %v4595
          %6982 = vmatprep.subr.mxu0 %v4604
          %6983 = vmatpush1.msra.mxu0 %v4603
          %6984 = vmatprep.subr.mxu0 %v4612
          %6985 = vmatpush1.msra.mxu0 %v4611
          %6986 = vmatprep.subr.mxu0 %v4620
          %6987 = vmatpush1.msra.mxu0 %v4619
          %6988 = vmatprep.subr.mxu0 %v4628
          %6989 = vmatpush1.msra.mxu0 %v4627
          %6990 = vmatprep.mubr.f32.mxu0 %v6925
          %6991 = vmatmul.mubr.f32.gmra.mrb[0].mxu0 %v6906
          %v6992 = vpop.f32.mrb[0].mxu0
          %v6993 = vadd.f32 0.0, %v6992
          %v6994 = vpop.f32.mrb[0].mxu0
          %v6995 = vadd.f32 0.0, %v6994
          %6996 = vdwg.mxu0
          %6997 = vmatprep.subr.mxu0 %v4382
          %6998 = vmatpush1.msra.mxu0 %v4381
          %6999 = vmatprep.subr.mxu0 %v4390
          %7000 = vmatpush1.msra.mxu0 %v4389
          %7001 = vmatprep.subr.mxu0 %v4398
          %7002 = vmatpush1.msra.mxu0 %v4397
          %7003 = vmatprep.subr.mxu0 %v4406
          %7004 = vmatpush1.msra.mxu0 %v4405
          %7005 = vmatprep.subr.mxu0 %v4414
          %7006 = vmatpush1.msra.mxu0 %v4413
          %7007 = vmatprep.subr.mxu0 %v4422
          %7008 = vmatpush1.msra.mxu0 %v4421
          %7009 = vmatprep.subr.mxu0 %v4430
          %7010 = vmatpush1.msra.mxu0 %v4429
          %7011 = vmatprep.subr.mxu0 %v4438
          %7012 = vmatpush1.msra.mxu0 %v4437
          %7013 = vmatprep.subr.mxu0 %v4446
          %7014 = vmatpush1.msra.mxu0 %v4445
          %7015 = vmatprep.subr.mxu0 %v4454
          %7016 = vmatpush1.msra.mxu0 %v4453
          %7017 = vmatprep.subr.mxu0 %v4462
          %7018 = vmatpush1.msra.mxu0 %v4461
          %7019 = vmatprep.subr.mxu0 %v4470
          %7020 = vmatpush1.msra.mxu0 %v4469
          %7021 = vmatprep.subr.mxu0 %v4478
          %7022 = vmatpush1.msra.mxu0 %v4477
          %7023 = vmatprep.subr.mxu0 %v4486
          %7024 = vmatpush1.msra.mxu0 %v4485
          %7025 = vmatprep.subr.mxu0 %v4494
          %7026 = vmatpush1.msra.mxu0 %v4493
          %7027 = vmatprep.subr.mxu0 %v4502
          %7028 = vmatpush1.msra.mxu0 %v4501
          %7029 = vmatprep.subr.mxu0 %v4510
          %7030 = vmatpush1.msra.mxu0 %v4509
          %7031 = vmatprep.subr.mxu0 %v4518
          %7032 = vmatpush1.msra.mxu0 %v4517
          %7033 = vmatprep.subr.mxu0 %v4526
          %7034 = vmatpush1.msra.mxu0 %v4525
          %7035 = vmatprep.subr.mxu0 %v4534
          %7036 = vmatpush1.msra.mxu0 %v4533
          %7037 = vmatprep.subr.mxu0 %v4542
          %7038 = vmatpush1.msra.mxu0 %v4541
          %7039 = vmatprep.subr.mxu0 %v4550
          %7040 = vmatpush1.msra.mxu0 %v4549
          %7041 = vmatprep.subr.mxu0 %v4558
          %7042 = vmatpush1.msra.mxu0 %v4557
          %7043 = vmatprep.subr.mxu0 %v4566
          %7044 = vmatpush1.msra.mxu0 %v4565
          %7045 = vmatprep.subr.mxu0 %v4574
          %7046 = vmatpush1.msra.mxu0 %v4573
          %7047 = vmatprep.subr.mxu0 %v4582
          %7048 = vmatpush1.msra.mxu0 %v4581
          %7049 = vmatprep.subr.mxu0 %v4590
          %7050 = vmatpush1.msra.mxu0 %v4589
          %7051 = vmatprep.subr.mxu0 %v4598
          %7052 = vmatpush1.msra.mxu0 %v4597
          %7053 = vmatprep.subr.mxu0 %v4606
          %7054 = vmatpush1.msra.mxu0 %v4605
          %7055 = vmatprep.subr.mxu0 %v4614
          %7056 = vmatpush1.msra.mxu0 %v4613
          %7057 = vmatprep.subr.mxu0 %v4622
          %7058 = vmatpush1.msra.mxu0 %v4621
          %7059 = vmatprep.subr.mxu0 %v4630
          %7060 = vmatpush1.msra.mxu0 %v4629
          %7061 = vmatprep.mubr.f32.mxu0 %v6925
          %7062 = vmatmul.mubr.f32.gmra.mrb[0].mxu0 %v6906
          %v7063 = vpop.f32.mrb[0].mxu0
          %v7064 = vadd.f32 0.0, %v7063
          %v7065 = vpop.f32.mrb[0].mxu0
          %v7066 = vadd.f32 0.0, %v7065
          %7067 = vdwg.mxu0
          %7068 = vmatprep.subr.mxu0 %v4384
          %7069 = vmatpush1.msra.mxu0 %v4383
          %7070 = vmatprep.subr.mxu0 %v4392
          %7071 = vmatpush1.msra.mxu0 %v4391
          %7072 = vmatprep.subr.mxu0 %v4400
          %7073 = vmatpush1.msra.mxu0 %v4399
          %7074 = vmatprep.subr.mxu0 %v4408
          %7075 = vmatpush1.msra.mxu0 %v4407
          %7076 = vmatprep.subr.mxu0 %v4416
          %7077 = vmatpush1.msra.mxu0 %v4415
          %7078 = vmatprep.subr.mxu0 %v4424
          %7079 = vmatpush1.msra.mxu0 %v4423
          %7080 = vmatprep.subr.mxu0 %v4432
          %7081 = vmatpush1.msra.mxu0 %v4431
          %7082 = vmatprep.subr.mxu0 %v4440
          %7083 = vmatpush1.msra.mxu0 %v4439
          %7084 = vmatprep.subr.mxu0 %v4448
          %7085 = vmatpush1.msra.mxu0 %v4447
          %7086 = vmatprep.subr.mxu0 %v4456
          %7087 = vmatpush1.msra.mxu0 %v4455
          %7088 = vmatprep.subr.mxu0 %v4464
          %7089 = vmatpush1.msra.mxu0 %v4463
          %7090 = vmatprep.subr.mxu0 %v4472
          %7091 = vmatpush1.msra.mxu0 %v4471
          %7092 = vmatprep.subr.mxu0 %v4480
          %7093 = vmatpush1.msra.mxu0 %v4479
          %7094 = vmatprep.subr.mxu0 %v4488
          %7095 = vmatpush1.msra.mxu0 %v4487
          %7096 = vmatprep.subr.mxu0 %v4496
          %7097 = vmatpush1.msra.mxu0 %v4495
          %7098 = vmatprep.subr.mxu0 %v4504
          %7099 = vmatpush1.msra.mxu0 %v4503
          %7100 = vmatprep.subr.mxu0 %v4512
          %7101 = vmatpush1.msra.mxu0 %v4511
          %7102 = vmatprep.subr.mxu0 %v4520
          %7103 = vmatpush1.msra.mxu0 %v4519
          %7104 = vmatprep.subr.mxu0 %v4528
          %7105 = vmatpush1.msra.mxu0 %v4527
          %7106 = vmatprep.subr.mxu0 %v4536
          %7107 = vmatpush1.msra.mxu0 %v4535
          %7108 = vmatprep.subr.mxu0 %v4544
          %7109 = vmatpush1.msra.mxu0 %v4543
          %7110 = vmatprep.subr.mxu0 %v4552
          %7111 = vmatpush1.msra.mxu0 %v4551
          %7112 = vmatprep.subr.mxu0 %v4560
          %7113 = vmatpush1.msra.mxu0 %v4559
          %7114 = vmatprep.subr.mxu0 %v4568
          %7115 = vmatpush1.msra.mxu0 %v4567
          %7116 = vmatprep.subr.mxu0 %v4576
          %7117 = vmatpush1.msra.mxu0 %v4575
          %7118 = vmatprep.subr.mxu0 %v4584
          %7119 = vmatpush1.msra.mxu0 %v4583
          %7120 = vmatprep.subr.mxu0 %v4592
          %7121 = vmatpush1.msra.mxu0 %v4591
          %7122 = vmatprep.subr.mxu0 %v4600
          %7123 = vmatpush1.msra.mxu0 %v4599
          %7124 = vmatprep.subr.mxu0 %v4608
          %7125 = vmatpush1.msra.mxu0 %v4607
          %7126 = vmatprep.subr.mxu0 %v4616
          %7127 = vmatpush1.msra.mxu0 %v4615
          %7128 = vmatprep.subr.mxu0 %v4624
          %7129 = vmatpush1.msra.mxu0 %v4623
          %7130 = vmatprep.subr.mxu0 %v4632
          %7131 = vmatpush1.msra.mxu0 %v4631
          %7132 = vmatprep.mubr.f32.mxu0 %v6925
          %7133 = vmatmul.mubr.f32.gmra.mrb[0].mxu0 %v6906
          %v7134 = vpop.f32.mrb[0].mxu0
          %v7135 = vadd.f32 0.0, %v7134
          %v7136 = vpop.f32.mrb[0].mxu0
          %v7137 = vadd.f32 0.0, %v7136
          %7138 = vdwg.mxu0
          %7139 = vmatprep.subr.mxu0 %v4386
          %7140 = vmatpush1.msra.mxu0 %v4385
          %7141 = vmatprep.subr.mxu0 %v4394
          %7142 = vmatpush1.msra.mxu0 %v4393
          %7143 = vmatprep.subr.mxu0 %v4402
          %7144 = vmatpush1.msra.mxu0 %v4401
          %7145 = vmatprep.subr.mxu0 %v4410
          %7146 = vmatpush1.msra.mxu0 %v4409
          %7147 = vmatprep.subr.mxu0 %v4418
          %7148 = vmatpush1.msra.mxu0 %v4417
          %7149 = vmatprep.subr.mxu0 %v4426
          %7150 = vmatpush1.msra.mxu0 %v4425
          %7151 = vmatprep.subr.mxu0 %v4434
          %7152 = vmatpush1.msra.mxu0 %v4433
          %7153 = vmatprep.subr.mxu0 %v4442
          %7154 = vmatpush1.msra.mxu0 %v4441
          %7155 = vmatprep.subr.mxu0 %v4450
          %7156 = vmatpush1.msra.mxu0 %v4449
          %7157 = vmatprep.subr.mxu0 %v4458
          %7158 = vmatpush1.msra.mxu0 %v4457
          %7159 = vmatprep.subr.mxu0 %v4466
          %7160 = vmatpush1.msra.mxu0 %v4465
          %7161 = vmatprep.subr.mxu0 %v4474
          %7162 = vmatpush1.msra.mxu0 %v4473
          %7163 = vmatprep.subr.mxu0 %v4482
          %7164 = vmatpush1.msra.mxu0 %v4481
          %7165 = vmatprep.subr.mxu0 %v4490
          %7166 = vmatpush1.msra.mxu0 %v4489
          %7167 = vmatprep.subr.mxu0 %v4498
          %7168 = vmatpush1.msra.mxu0 %v4497
          %7169 = vmatprep.subr.mxu0 %v4506
          %7170 = vmatpush1.msra.mxu0 %v4505
          %7171 = vmatprep.subr.mxu0 %v4514
          %7172 = vmatpush1.msra.mxu0 %v4513
          %7173 = vmatprep.subr.mxu0 %v4522
          %7174 = vmatpush1.msra.mxu0 %v4521
          %7175 = vmatprep.subr.mxu0 %v4530
          %7176 = vmatpush1.msra.mxu0 %v4529
          %7177 = vmatprep.subr.mxu0 %v4538
          %7178 = vmatpush1.msra.mxu0 %v4537
          %7179 = vmatprep.subr.mxu0 %v4546
          %7180 = vmatpush1.msra.mxu0 %v4545
          %7181 = vmatprep.subr.mxu0 %v4554
          %7182 = vmatpush1.msra.mxu0 %v4553
          %7183 = vmatprep.subr.mxu0 %v4562
          %7184 = vmatpush1.msra.mxu0 %v4561
          %7185 = vmatprep.subr.mxu0 %v4570
          %7186 = vmatpush1.msra.mxu0 %v4569
          %7187 = vmatprep.subr.mxu0 %v4578
          %7188 = vmatpush1.msra.mxu0 %v4577
          %7189 = vmatprep.subr.mxu0 %v4586
          %7190 = vmatpush1.msra.mxu0 %v4585
          %7191 = vmatprep.subr.mxu0 %v4594
          %7192 = vmatpush1.msra.mxu0 %v4593
          %7193 = vmatprep.subr.mxu0 %v4602
          %7194 = vmatpush1.msra.mxu0 %v4601
          %7195 = vmatprep.subr.mxu0 %v4610
          %7196 = vmatpush1.msra.mxu0 %v4609
          %7197 = vmatprep.subr.mxu0 %v4618
          %7198 = vmatpush1.msra.mxu0 %v4617
          %7199 = vmatprep.subr.mxu0 %v4626
          %7200 = vmatpush1.msra.mxu0 %v4625
          %7201 = vmatprep.subr.mxu0 %v4634
          %7202 = vmatpush1.msra.mxu0 %v4633
          %7203 = vmatprep.mubr.f32.mxu0 %v6925
          %7204 = vmatmul.mubr.f32.gmra.mrb[0].mxu0 %v6906
          %v7205 = vpop.f32.mrb[0].mxu0
          %v7206 = vadd.f32 0.0, %v7205
          %v7207 = vpop.f32.mrb[0].mxu0
          %v7208 = vadd.f32 0.0, %v7207
          %7209 = vdwg.mxu0
          %v7210 = vadd.f32 %v4220, %v6993
          %v7211 = vadd.f32 %v4222, %v6995
          %v7212 = vadd.f32 %v4357, %v7064
          %v7213 = vadd.f32 %v4359, %v7066
          %v7214 = vtanh.pop %v7210
          %v7215 = vtanh.pop %v7211
          %v7216 = vtanh.pop %v7212
          %v7217 = vtanh.pop %v7213
          %v7218 = vmul.f32 %v7214, 0.5
          %v7219 = vadd.f32 %v7218, 0.5
          %v7220 = vmul.f32 %v7215, 0.5
          %v7221 = vadd.f32 %v7220, 0.5
          %v7222 = vmul.f32 %v7217, 0.5
          %v7223 = vadd.f32 %v7222, 0.5
          %v7224 = vmul.f32 %v7221, %v6904
          %v7225 = vmul.f32 %v7219, %v7216
          %v7226 = vadd.f32 %v7224, %v7225
          %v7227 = vtanh.pop %v7226
          %v7228 = vmul.f32 %v7223, %v7227
          %v7229 = vadd.f32 %v7135, %v4640
          %v7230 = vadd.f32 %v7137, %v4644
          %v7231 = vadd.f32 %v7206, %v4648
          %v7232 = vadd.f32 %v7208, %v4652
          %v7233 = vtanh.pop %v7229
          %v7234 = vtanh.pop %v7230
          %v7235 = vtanh.pop %v7231
          %v7236 = vtanh.pop %v7232
          %v7237 = vmul.f32 %v7233, 0.5
          %v7238 = vadd.f32 %v7237, 0.5
          %v7239 = vmul.f32 %v7234, 0.5
          %v7240 = vadd.f32 %v7239, 0.5
          %v7241 = vmul.f32 %v7236, 0.5
          %v7242 = vadd.f32 %v7241, 0.5
          %v7243 = vmul.f32 %v7240, %v6923
          %v7244 = vmul.f32 %v7238, %v7235
          %v7245 = vadd.f32 %v7243, %v7244
          %v7246 = vtanh.pop %v7245
          %v7247 = vmul.f32 %v7242, %v7246
          %7248 = vmatprep.subr.mxu0 %v4380
          %7249 = vmatpush1.msra.mxu0 %v4379
          %7250 = vmatprep.subr.mxu0 %v4388
          %7251 = vmatpush1.msra.mxu0 %v4387
          %7252 = vmatprep.subr.mxu0 %v4396
          %7253 = vmatpush1.msra.mxu0 %v4395
          %7254 = vmatprep.subr.mxu0 %v4404
          %7255 = vmatpush1.msra.mxu0 %v4403
          %7256 = vmatprep.subr.mxu0 %v4412
          %7257 = vmatpush1.msra.mxu0 %v4411
          %7258 = vmatprep.subr.mxu0 %v4420
          %7259 = vmatpush1.msra.mxu0 %v4419
          %7260 = vmatprep.subr.mxu0 %v4428
          %7261 = vmatpush1.msra.mxu0 %v4427
          %7262 = vmatprep.subr.mxu0 %v4436
          %7263 = vmatpush1.msra.mxu0 %v4435
          %7264 = vmatprep.subr.mxu0 %v4444
          %7265 = vmatpush1.msra.mxu0 %v4443
          %7266 = vmatprep.subr.mxu0 %v4452
          %7267 = vmatpush1.msra.mxu0 %v4451
          %7268 = vmatprep.subr.mxu0 %v4460
          %7269 = vmatpush1.msra.mxu0 %v4459
          %7270 = vmatprep.subr.mxu0 %v4468
          %7271 = vmatpush1.msra.mxu0 %v4467
          %7272 = vmatprep.subr.mxu0 %v4476
          %7273 = vmatpush1.msra.mxu0 %v4475
          %7274 = vmatprep.subr.mxu0 %v4484
          %7275 = vmatpush1.msra.mxu0 %v4483
          %7276 = vmatprep.subr.mxu0 %v4492
          %7277 = vmatpush1.msra.mxu0 %v4491
          %7278 = vmatprep.subr.mxu0 %v4500
          %7279 = vmatpush1.msra.mxu0 %v4499
          %7280 = vmatprep.subr.mxu0 %v4508
          %7281 = vmatpush1.msra.mxu0 %v4507
          %7282 = vmatprep.subr.mxu0 %v4516
          %7283 = vmatpush1.msra.mxu0 %v4515
          %7284 = vmatprep.subr.mxu0 %v4524
          %7285 = vmatpush1.msra.mxu0 %v4523
          %7286 = vmatprep.subr.mxu0 %v4532
          %7287 = vmatpush1.msra.mxu0 %v4531
          %7288 = vmatprep.subr.mxu0 %v4540
          %7289 = vmatpush1.msra.mxu0 %v4539
          %7290 = vmatprep.subr.mxu0 %v4548
          %7291 = vmatpush1.msra.mxu0 %v4547
          %7292 = vmatprep.subr.mxu0 %v4556
          %7293 = vmatpush1.msra.mxu0 %v4555
          %7294 = vmatprep.subr.mxu0 %v4564
          %7295 = vmatpush1.msra.mxu0 %v4563
          %7296 = vmatprep.subr.mxu0 %v4572
          %7297 = vmatpush1.msra.mxu0 %v4571
          %7298 = vmatprep.subr.mxu0 %v4580
          %7299 = vmatpush1.msra.mxu0 %v4579
          %7300 = vmatprep.subr.mxu0 %v4588
          %7301 = vmatpush1.msra.mxu0 %v4587
          %7302 = vmatprep.subr.mxu0 %v4596
          %7303 = vmatpush1.msra.mxu0 %v4595
          %7304 = vmatprep.subr.mxu0 %v4604
          %7305 = vmatpush1.msra.mxu0 %v4603
          %7306 = vmatprep.subr.mxu0 %v4612
          %7307 = vmatpush1.msra.mxu0 %v4611
          %7308 = vmatprep.subr.mxu0 %v4620
          %7309 = vmatpush1.msra.mxu0 %v4619
          %7310 = vmatprep.subr.mxu0 %v4628
          %7311 = vmatpush1.msra.mxu0 %v4627
          %7312 = vmatprep.mubr.f32.mxu0 %v7247
          %7313 = vmatmul.mubr.f32.gmra.mrb[0].mxu0 %v7228
          %v7314 = vpop.f32.mrb[0].mxu0
          %v7315 = vadd.f32 0.0, %v7314
          %v7316 = vpop.f32.mrb[0].mxu0
          %v7317 = vadd.f32 0.0, %v7316
          %7318 = vdwg.mxu0
          %7319 = vmatprep.subr.mxu0 %v4382
          %7320 = vmatpush1.msra.mxu0 %v4381
          %7321 = vmatprep.subr.mxu0 %v4390
          %7322 = vmatpush1.msra.mxu0 %v4389
          %7323 = vmatprep.subr.mxu0 %v4398
          %7324 = vmatpush1.msra.mxu0 %v4397
          %7325 = vmatprep.subr.mxu0 %v4406
          %7326 = vmatpush1.msra.mxu0 %v4405
          %7327 = vmatprep.subr.mxu0 %v4414
          %7328 = vmatpush1.msra.mxu0 %v4413
          %7329 = vmatprep.subr.mxu0 %v4422
          %7330 = vmatpush1.msra.mxu0 %v4421
          %7331 = vmatprep.subr.mxu0 %v4430
          %7332 = vmatpush1.msra.mxu0 %v4429
          %7333 = vmatprep.subr.mxu0 %v4438
          %7334 = vmatpush1.msra.mxu0 %v4437
          %7335 = vmatprep.subr.mxu0 %v4446
          %7336 = vmatpush1.msra.mxu0 %v4445
          %7337 = vmatprep.subr.mxu0 %v4454
          %7338 = vmatpush1.msra.mxu0 %v4453
          %7339 = vmatprep.subr.mxu0 %v4462
          %7340 = vmatpush1.msra.mxu0 %v4461
          %7341 = vmatprep.subr.mxu0 %v4470
          %7342 = vmatpush1.msra.mxu0 %v4469
          %7343 = vmatprep.subr.mxu0 %v4478
          %7344 = vmatpush1.msra.mxu0 %v4477
          %7345 = vmatprep.subr.mxu0 %v4486
          %7346 = vmatpush1.msra.mxu0 %v4485
          %7347 = vmatprep.subr.mxu0 %v4494
          %7348 = vmatpush1.msra.mxu0 %v4493
          %7349 = vmatprep.subr.mxu0 %v4502
          %7350 = vmatpush1.msra.mxu0 %v4501
          %7351 = vmatprep.subr.mxu0 %v4510
          %7352 = vmatpush1.msra.mxu0 %v4509
          %7353 = vmatprep.subr.mxu0 %v4518
          %7354 = vmatpush1.msra.mxu0 %v4517
          %7355 = vmatprep.subr.mxu0 %v4526
          %7356 = vmatpush1.msra.mxu0 %v4525
          %7357 = vmatprep.subr.mxu0 %v4534
          %7358 = vmatpush1.msra.mxu0 %v4533
          %7359 = vmatprep.subr.mxu0 %v4542
          %7360 = vmatpush1.msra.mxu0 %v4541
          %7361 = vmatprep.subr.mxu0 %v4550
          %7362 = vmatpush1.msra.mxu0 %v4549
          %7363 = vmatprep.subr.mxu0 %v4558
          %7364 = vmatpush1.msra.mxu0 %v4557
          %7365 = vmatprep.subr.mxu0 %v4566
          %7366 = vmatpush1.msra.mxu0 %v4565
          %7367 = vmatprep.subr.mxu0 %v4574
          %7368 = vmatpush1.msra.mxu0 %v4573
          %7369 = vmatprep.subr.mxu0 %v4582
          %7370 = vmatpush1.msra.mxu0 %v4581
          %7371 = vmatprep.subr.mxu0 %v4590
          %7372 = vmatpush1.msra.mxu0 %v4589
          %7373 = vmatprep.subr.mxu0 %v4598
          %7374 = vmatpush1.msra.mxu0 %v4597
          %7375 = vmatprep.subr.mxu0 %v4606
          %7376 = vmatpush1.msra.mxu0 %v4605
          %7377 = vmatprep.subr.mxu0 %v4614
          %7378 = vmatpush1.msra.mxu0 %v4613
          %7379 = vmatprep.subr.mxu0 %v4622
          %7380 = vmatpush1.msra.mxu0 %v4621
          %7381 = vmatprep.subr.mxu0 %v4630
          %7382 = vmatpush1.msra.mxu0 %v4629
          %7383 = vmatprep.mubr.f32.mxu0 %v7247
          %7384 = vmatmul.mubr.f32.gmra.mrb[0].mxu0 %v7228
          %v7385 = vpop.f32.mrb[0].mxu0
          %v7386 = vadd.f32 0.0, %v7385
          %v7387 = vpop.f32.mrb[0].mxu0
          %v7388 = vadd.f32 0.0, %v7387
          %7389 = vdwg.mxu0
          %7390 = vmatprep.subr.mxu0 %v4384
          %7391 = vmatpush1.msra.mxu0 %v4383
          %7392 = vmatprep.subr.mxu0 %v4392
          %7393 = vmatpush1.msra.mxu0 %v4391
          %7394 = vmatprep.subr.mxu0 %v4400
          %7395 = vmatpush1.msra.mxu0 %v4399
          %7396 = vmatprep.subr.mxu0 %v4408
          %7397 = vmatpush1.msra.mxu0 %v4407
          %7398 = vmatprep.subr.mxu0 %v4416
          %7399 = vmatpush1.msra.mxu0 %v4415
          %7400 = vmatprep.subr.mxu0 %v4424
          %7401 = vmatpush1.msra.mxu0 %v4423
          %7402 = vmatprep.subr.mxu0 %v4432
          %7403 = vmatpush1.msra.mxu0 %v4431
          %7404 = vmatprep.subr.mxu0 %v4440
          %7405 = vmatpush1.msra.mxu0 %v4439
          %7406 = vmatprep.subr.mxu0 %v4448
          %7407 = vmatpush1.msra.mxu0 %v4447
          %7408 = vmatprep.subr.mxu0 %v4456
          %7409 = vmatpush1.msra.mxu0 %v4455
          %7410 = vmatprep.subr.mxu0 %v4464
          %7411 = vmatpush1.msra.mxu0 %v4463
          %7412 = vmatprep.subr.mxu0 %v4472
          %7413 = vmatpush1.msra.mxu0 %v4471
          %7414 = vmatprep.subr.mxu0 %v4480
          %7415 = vmatpush1.msra.mxu0 %v4479
          %7416 = vmatprep.subr.mxu0 %v4488
          %7417 = vmatpush1.msra.mxu0 %v4487
          %7418 = vmatprep.subr.mxu0 %v4496
          %7419 = vmatpush1.msra.mxu0 %v4495
          %7420 = vmatprep.subr.mxu0 %v4504
          %7421 = vmatpush1.msra.mxu0 %v4503
          %7422 = vmatprep.subr.mxu0 %v4512
          %7423 = vmatpush1.msra.mxu0 %v4511
          %7424 = vmatprep.subr.mxu0 %v4520
          %7425 = vmatpush1.msra.mxu0 %v4519
          %7426 = vmatprep.subr.mxu0 %v4528
          %7427 = vmatpush1.msra.mxu0 %v4527
          %7428 = vmatprep.subr.mxu0 %v4536
          %7429 = vmatpush1.msra.mxu0 %v4535
          %7430 = vmatprep.subr.mxu0 %v4544
          %7431 = vmatpush1.msra.mxu0 %v4543
          %7432 = vmatprep.subr.mxu0 %v4552
          %7433 = vmatpush1.msra.mxu0 %v4551
          %7434 = vmatprep.subr.mxu0 %v4560
          %7435 = vmatpush1.msra.mxu0 %v4559
          %7436 = vmatprep.subr.mxu0 %v4568
          %7437 = vmatpush1.msra.mxu0 %v4567
          %7438 = vmatprep.subr.mxu0 %v4576
          %7439 = vmatpush1.msra.mxu0 %v4575
          %7440 = vmatprep.subr.mxu0 %v4584
          %7441 = vmatpush1.msra.mxu0 %v4583
          %7442 = vmatprep.subr.mxu0 %v4592
          %7443 = vmatpush1.msra.mxu0 %v4591
          %7444 = vmatprep.subr.mxu0 %v4600
          %7445 = vmatpush1.msra.mxu0 %v4599
          %7446 = vmatprep.subr.mxu0 %v4608
          %7447 = vmatpush1.msra.mxu0 %v4607
          %7448 = vmatprep.subr.mxu0 %v4616
          %7449 = vmatpush1.msra.mxu0 %v4615
          %7450 = vmatprep.subr.mxu0 %v4624
          %7451 = vmatpush1.msra.mxu0 %v4623
          %7452 = vmatprep.subr.mxu0 %v4632
          %7453 = vmatpush1.msra.mxu0 %v4631
          %7454 = vmatprep.mubr.f32.mxu0 %v7247
          %7455 = vmatmul.mubr.f32.gmra.mrb[0].mxu0 %v7228
          %v7456 = vpop.f32.mrb[0].mxu0
          %v7457 = vadd.f32 0.0, %v7456
          %v7458 = vpop.f32.mrb[0].mxu0
          %v7459 = vadd.f32 0.0, %v7458
          %7460 = vdwg.mxu0
          %7461 = vmatprep.subr.mxu0 %v4386
          %7462 = vmatpush1.msra.mxu0 %v4385
          %7463 = vmatprep.subr.mxu0 %v4394
          %7464 = vmatpush1.msra.mxu0 %v4393
          %7465 = vmatprep.subr.mxu0 %v4402
          %7466 = vmatpush1.msra.mxu0 %v4401
          %7467 = vmatprep.subr.mxu0 %v4410
          %7468 = vmatpush1.msra.mxu0 %v4409
          %7469 = vmatprep.subr.mxu0 %v4418
          %7470 = vmatpush1.msra.mxu0 %v4417
          %7471 = vmatprep.subr.mxu0 %v4426
          %7472 = vmatpush1.msra.mxu0 %v4425
          %7473 = vmatprep.subr.mxu0 %v4434
          %7474 = vmatpush1.msra.mxu0 %v4433
          %7475 = vmatprep.subr.mxu0 %v4442
          %7476 = vmatpush1.msra.mxu0 %v4441
          %7477 = vmatprep.subr.mxu0 %v4450
          %7478 = vmatpush1.msra.mxu0 %v4449
          %7479 = vmatprep.subr.mxu0 %v4458
          %7480 = vmatpush1.msra.mxu0 %v4457
          %7481 = vmatprep.subr.mxu0 %v4466
          %7482 = vmatpush1.msra.mxu0 %v4465
          %7483 = vmatprep.subr.mxu0 %v4474
          %7484 = vmatpush1.msra.mxu0 %v4473
          %7485 = vmatprep.subr.mxu0 %v4482
          %7486 = vmatpush1.msra.mxu0 %v4481
          %7487 = vmatprep.subr.mxu0 %v4490
          %7488 = vmatpush1.msra.mxu0 %v4489
          %7489 = vmatprep.subr.mxu0 %v4498
          %7490 = vmatpush1.msra.mxu0 %v4497
          %7491 = vmatprep.subr.mxu0 %v4506
          %7492 = vmatpush1.msra.mxu0 %v4505
          %7493 = vmatprep.subr.mxu0 %v4514
          %7494 = vmatpush1.msra.mxu0 %v4513
          %7495 = vmatprep.subr.mxu0 %v4522
          %7496 = vmatpush1.msra.mxu0 %v4521
          %7497 = vmatprep.subr.mxu0 %v4530
          %7498 = vmatpush1.msra.mxu0 %v4529
          %7499 = vmatprep.subr.mxu0 %v4538
          %7500 = vmatpush1.msra.mxu0 %v4537
          %7501 = vmatprep.subr.mxu0 %v4546
          %7502 = vmatpush1.msra.mxu0 %v4545
          %7503 = vmatprep.subr.mxu0 %v4554
          %7504 = vmatpush1.msra.mxu0 %v4553
          %7505 = vmatprep.subr.mxu0 %v4562
          %7506 = vmatpush1.msra.mxu0 %v4561
          %7507 = vmatprep.subr.mxu0 %v4570
          %7508 = vmatpush1.msra.mxu0 %v4569
          %7509 = vmatprep.subr.mxu0 %v4578
          %7510 = vmatpush1.msra.mxu0 %v4577
          %7511 = vmatprep.subr.mxu0 %v4586
          %7512 = vmatpush1.msra.mxu0 %v4585
          %7513 = vmatprep.subr.mxu0 %v4594
          %7514 = vmatpush1.msra.mxu0 %v4593
          %7515 = vmatprep.subr.mxu0 %v4602
          %7516 = vmatpush1.msra.mxu0 %v4601
          %7517 = vmatprep.subr.mxu0 %v4610
          %7518 = vmatpush1.msra.mxu0 %v4609
          %7519 = vmatprep.subr.mxu0 %v4618
          %7520 = vmatpush1.msra.mxu0 %v4617
          %7521 = vmatprep.subr.mxu0 %v4626
          %7522 = vmatpush1.msra.mxu0 %v4625
          %7523 = vmatprep.subr.mxu0 %v4634
          %7524 = vmatpush1.msra.mxu0 %v4633
          %7525 = vmatprep.mubr.f32.mxu0 %v7247
          %7526 = vmatmul.mubr.f32.gmra.mrb[0].mxu0 %v7228
          %v7527 = vpop.f32.mrb[0].mxu0
          %v7528 = vadd.f32 0.0, %v7527
          %v7529 = vpop.f32.mrb[0].mxu0
          %v7530 = vadd.f32 0.0, %v7529
          %7531 = vdwg.mxu0
          %v7532 = vadd.f32 %v4226, %v7315
          %v7533 = vadd.f32 %v4228, %v7317
          %v7534 = vadd.f32 %v4363, %v7386
          %v7535 = vadd.f32 %v4365, %v7388
          %v7536 = vtanh.pop %v7532
          %v7537 = vtanh.pop %v7533
          %v7538 = vtanh.pop %v7534
          %v7539 = vtanh.pop %v7535
          %v7540 = vmul.f32 %v7536, 0.5
          %v7541 = vadd.f32 %v7540, 0.5
          %v7542 = vmul.f32 %v7537, 0.5
          %v7543 = vadd.f32 %v7542, 0.5
          %v7544 = vmul.f32 %v7539, 0.5
          %v7545 = vadd.f32 %v7544, 0.5
          %v7546 = vmul.f32 %v7543, %v7226
          %v7547 = vmul.f32 %v7541, %v7538
          %v7548 = vadd.f32 %v7546, %v7547
          %v7549 = vtanh.pop %v7548
          %v7550 = vmul.f32 %v7545, %v7549
          %v7551 = vadd.f32 %v7457, %v4640
          %v7552 = vadd.f32 %v7459, %v4644
          %v7553 = vadd.f32 %v7528, %v4648
          %v7554 = vadd.f32 %v7530, %v4652
          %v7555 = vtanh.pop %v7551
          %v7556 = vtanh.pop %v7552
          %v7557 = vtanh.pop %v7553
          %v7558 = vtanh.pop %v7554
          %v7559 = vmul.f32 %v7555, 0.5
          %v7560 = vadd.f32 %v7559, 0.5
          %v7561 = vmul.f32 %v7556, 0.5
          %v7562 = vadd.f32 %v7561, 0.5
          %v7563 = vmul.f32 %v7558, 0.5
          %v7564 = vadd.f32 %v7563, 0.5
          %v7565 = vmul.f32 %v7562, %v7245
          %v7566 = vmul.f32 %v7560, %v7557
          %v7567 = vadd.f32 %v7565, %v7566
          %v7568 = vtanh.pop %v7567
          %v7569 = vmul.f32 %v7564, %v7568
          %7570 = vmatprep.subr.mxu0 %v4380
          %7571 = vmatpush1.msra.mxu0 %v4379
          %7572 = vmatprep.subr.mxu0 %v4388
          %7573 = vmatpush1.msra.mxu0 %v4387
          %7574 = vmatprep.subr.mxu0 %v4396
          %7575 = vmatpush1.msra.mxu0 %v4395
          %7576 = vmatprep.subr.mxu0 %v4404
          %7577 = vmatpush1.msra.mxu0 %v4403
          %7578 = vmatprep.subr.mxu0 %v4412
          %7579 = vmatpush1.msra.mxu0 %v4411
          %7580 = vmatprep.subr.mxu0 %v4420
          %7581 = vmatpush1.msra.mxu0 %v4419
          %7582 = vmatprep.subr.mxu0 %v4428
          %7583 = vmatpush1.msra.mxu0 %v4427
          %7584 = vmatprep.subr.mxu0 %v4436
          %7585 = vmatpush1.msra.mxu0 %v4435
          %7586 = vmatprep.subr.mxu0 %v4444
          %7587 = vmatpush1.msra.mxu0 %v4443
          %7588 = vmatprep.subr.mxu0 %v4452
          %7589 = vmatpush1.msra.mxu0 %v4451
          %7590 = vmatprep.subr.mxu0 %v4460
          %7591 = vmatpush1.msra.mxu0 %v4459
          %7592 = vmatprep.subr.mxu0 %v4468
          %7593 = vmatpush1.msra.mxu0 %v4467
          %7594 = vmatprep.subr.mxu0 %v4476
          %7595 = vmatpush1.msra.mxu0 %v4475
          %7596 = vmatprep.subr.mxu0 %v4484
          %7597 = vmatpush1.msra.mxu0 %v4483
          %7598 = vmatprep.subr.mxu0 %v4492
          %7599 = vmatpush1.msra.mxu0 %v4491
          %7600 = vmatprep.subr.mxu0 %v4500
          %7601 = vmatpush1.msra.mxu0 %v4499
          %7602 = vmatprep.subr.mxu0 %v4508
          %7603 = vmatpush1.msra.mxu0 %v4507
          %7604 = vmatprep.subr.mxu0 %v4516
          %7605 = vmatpush1.msra.mxu0 %v4515
          %7606 = vmatprep.subr.mxu0 %v4524
          %7607 = vmatpush1.msra.mxu0 %v4523
          %7608 = vmatprep.subr.mxu0 %v4532
          %7609 = vmatpush1.msra.mxu0 %v4531
          %7610 = vmatprep.subr.mxu0 %v4540
          %7611 = vmatpush1.msra.mxu0 %v4539
          %7612 = vmatprep.subr.mxu0 %v4548
          %7613 = vmatpush1.msra.mxu0 %v4547
          %7614 = vmatprep.subr.mxu0 %v4556
          %7615 = vmatpush1.msra.mxu0 %v4555
          %7616 = vmatprep.subr.mxu0 %v4564
          %7617 = vmatpush1.msra.mxu0 %v4563
          %7618 = vmatprep.subr.mxu0 %v4572
          %7619 = vmatpush1.msra.mxu0 %v4571
          %7620 = vmatprep.subr.mxu0 %v4580
          %7621 = vmatpush1.msra.mxu0 %v4579
          %7622 = vmatprep.subr.mxu0 %v4588
          %7623 = vmatpush1.msra.mxu0 %v4587
          %7624 = vmatprep.subr.mxu0 %v4596
          %7625 = vmatpush1.msra.mxu0 %v4595
          %7626 = vmatprep.subr.mxu0 %v4604
          %7627 = vmatpush1.msra.mxu0 %v4603
          %7628 = vmatprep.subr.mxu0 %v4612
          %7629 = vmatpush1.msra.mxu0 %v4611
          %7630 = vmatprep.subr.mxu0 %v4620
          %7631 = vmatpush1.msra.mxu0 %v4619
          %7632 = vmatprep.subr.mxu0 %v4628
          %7633 = vmatpush1.msra.mxu0 %v4627
          %7634 = vmatprep.mubr.f32.mxu0 %v7569
          %7635 = vmatmul.mubr.f32.gmra.mrb[0].mxu0 %v7550
          %v7636 = vpop.f32.mrb[0].mxu0
          %v7637 = vadd.f32 0.0, %v7636
          %v7638 = vpop.f32.mrb[0].mxu0
          %v7639 = vadd.f32 0.0, %v7638
          %7640 = vdwg.mxu0
          %7641 = vmatprep.subr.mxu0 %v4382
          %7642 = vmatpush1.msra.mxu0 %v4381
          %7643 = vmatprep.subr.mxu0 %v4390
          %7644 = vmatpush1.msra.mxu0 %v4389
          %7645 = vmatprep.subr.mxu0 %v4398
          %7646 = vmatpush1.msra.mxu0 %v4397
          %7647 = vmatprep.subr.mxu0 %v4406
          %7648 = vmatpush1.msra.mxu0 %v4405
          %7649 = vmatprep.subr.mxu0 %v4414
          %7650 = vmatpush1.msra.mxu0 %v4413
          %7651 = vmatprep.subr.mxu0 %v4422
          %7652 = vmatpush1.msra.mxu0 %v4421
          %7653 = vmatprep.subr.mxu0 %v4430
          %7654 = vmatpush1.msra.mxu0 %v4429
          %7655 = vmatprep.subr.mxu0 %v4438
          %7656 = vmatpush1.msra.mxu0 %v4437
          %7657 = vmatprep.subr.mxu0 %v4446
          %7658 = vmatpush1.msra.mxu0 %v4445
          %7659 = vmatprep.subr.mxu0 %v4454
          %7660 = vmatpush1.msra.mxu0 %v4453
          %7661 = vmatprep.subr.mxu0 %v4462
          %7662 = vmatpush1.msra.mxu0 %v4461
          %7663 = vmatprep.subr.mxu0 %v4470
          %7664 = vmatpush1.msra.mxu0 %v4469
          %7665 = vmatprep.subr.mxu0 %v4478
          %7666 = vmatpush1.msra.mxu0 %v4477
          %7667 = vmatprep.subr.mxu0 %v4486
          %7668 = vmatpush1.msra.mxu0 %v4485
          %7669 = vmatprep.subr.mxu0 %v4494
          %7670 = vmatpush1.msra.mxu0 %v4493
          %7671 = vmatprep.subr.mxu0 %v4502
          %7672 = vmatpush1.msra.mxu0 %v4501
          %7673 = vmatprep.subr.mxu0 %v4510
          %7674 = vmatpush1.msra.mxu0 %v4509
          %7675 = vmatprep.subr.mxu0 %v4518
          %7676 = vmatpush1.msra.mxu0 %v4517
          %7677 = vmatprep.subr.mxu0 %v4526
          %7678 = vmatpush1.msra.mxu0 %v4525
          %7679 = vmatprep.subr.mxu0 %v4534
          %7680 = vmatpush1.msra.mxu0 %v4533
          %7681 = vmatprep.subr.mxu0 %v4542
          %7682 = vmatpush1.msra.mxu0 %v4541
          %7683 = vmatprep.subr.mxu0 %v4550
          %7684 = vmatpush1.msra.mxu0 %v4549
          %7685 = vmatprep.subr.mxu0 %v4558
          %7686 = vmatpush1.msra.mxu0 %v4557
          %7687 = vmatprep.subr.mxu0 %v4566
          %7688 = vmatpush1.msra.mxu0 %v4565
          %7689 = vmatprep.subr.mxu0 %v4574
          %7690 = vmatpush1.msra.mxu0 %v4573
          %7691 = vmatprep.subr.mxu0 %v4582
          %7692 = vmatpush1.msra.mxu0 %v4581
          %7693 = vmatprep.subr.mxu0 %v4590
          %7694 = vmatpush1.msra.mxu0 %v4589
          %7695 = vmatprep.subr.mxu0 %v4598
          %7696 = vmatpush1.msra.mxu0 %v4597
          %7697 = vmatprep.subr.mxu0 %v4606
          %7698 = vmatpush1.msra.mxu0 %v4605
          %7699 = vmatprep.subr.mxu0 %v4614
          %7700 = vmatpush1.msra.mxu0 %v4613
          %7701 = vmatprep.subr.mxu0 %v4622
          %7702 = vmatpush1.msra.mxu0 %v4621
          %7703 = vmatprep.subr.mxu0 %v4630
          %7704 = vmatpush1.msra.mxu0 %v4629
          %7705 = vmatprep.mubr.f32.mxu0 %v7569
          %7706 = vmatmul.mubr.f32.gmra.mrb[0].mxu0 %v7550
          %v7707 = vpop.f32.mrb[0].mxu0
          %v7708 = vadd.f32 0.0, %v7707
          %v7709 = vpop.f32.mrb[0].mxu0
          %v7710 = vadd.f32 0.0, %v7709
          %7711 = vdwg.mxu0
          %7712 = vmatprep.subr.mxu0 %v4384
          %7713 = vmatpush1.msra.mxu0 %v4383
          %7714 = vmatprep.subr.mxu0 %v4392
          %7715 = vmatpush1.msra.mxu0 %v4391
          %7716 = vmatprep.subr.mxu0 %v4400
          %7717 = vmatpush1.msra.mxu0 %v4399
          %7718 = vmatprep.subr.mxu0 %v4408
          %7719 = vmatpush1.msra.mxu0 %v4407
          %7720 = vmatprep.subr.mxu0 %v4416
          %7721 = vmatpush1.msra.mxu0 %v4415
          %7722 = vmatprep.subr.mxu0 %v4424
          %7723 = vmatpush1.msra.mxu0 %v4423
          %7724 = vmatprep.subr.mxu0 %v4432
          %7725 = vmatpush1.msra.mxu0 %v4431
          %7726 = vmatprep.subr.mxu0 %v4440
          %7727 = vmatpush1.msra.mxu0 %v4439
          %7728 = vmatprep.subr.mxu0 %v4448
          %7729 = vmatpush1.msra.mxu0 %v4447
          %7730 = vmatprep.subr.mxu0 %v4456
          %7731 = vmatpush1.msra.mxu0 %v4455
          %7732 = vmatprep.subr.mxu0 %v4464
          %7733 = vmatpush1.msra.mxu0 %v4463
          %7734 = vmatprep.subr.mxu0 %v4472
          %7735 = vmatpush1.msra.mxu0 %v4471
          %7736 = vmatprep.subr.mxu0 %v4480
          %7737 = vmatpush1.msra.mxu0 %v4479
          %7738 = vmatprep.subr.mxu0 %v4488
          %7739 = vmatpush1.msra.mxu0 %v4487
          %7740 = vmatprep.subr.mxu0 %v4496
          %7741 = vmatpush1.msra.mxu0 %v4495
          %7742 = vmatprep.subr.mxu0 %v4504
          %7743 = vmatpush1.msra.mxu0 %v4503
          %7744 = vmatprep.subr.mxu0 %v4512
          %7745 = vmatpush1.msra.mxu0 %v4511
          %7746 = vmatprep.subr.mxu0 %v4520
          %7747 = vmatpush1.msra.mxu0 %v4519
          %7748 = vmatprep.subr.mxu0 %v4528
          %7749 = vmatpush1.msra.mxu0 %v4527
          %7750 = vmatprep.subr.mxu0 %v4536
          %7751 = vmatpush1.msra.mxu0 %v4535
          %7752 = vmatprep.subr.mxu0 %v4544
          %7753 = vmatpush1.msra.mxu0 %v4543
          %7754 = vmatprep.subr.mxu0 %v4552
          %7755 = vmatpush1.msra.mxu0 %v4551
          %7756 = vmatprep.subr.mxu0 %v4560
          %7757 = vmatpush1.msra.mxu0 %v4559
          %7758 = vmatprep.subr.mxu0 %v4568
          %7759 = vmatpush1.msra.mxu0 %v4567
          %7760 = vmatprep.subr.mxu0 %v4576
          %7761 = vmatpush1.msra.mxu0 %v4575
          %7762 = vmatprep.subr.mxu0 %v4584
          %7763 = vmatpush1.msra.mxu0 %v4583
          %7764 = vmatprep.subr.mxu0 %v4592
          %7765 = vmatpush1.msra.mxu0 %v4591
          %7766 = vmatprep.subr.mxu0 %v4600
          %7767 = vmatpush1.msra.mxu0 %v4599
          %7768 = vmatprep.subr.mxu0 %v4608
          %7769 = vmatpush1.msra.mxu0 %v4607
          %7770 = vmatprep.subr.mxu0 %v4616
          %7771 = vmatpush1.msra.mxu0 %v4615
          %7772 = vmatprep.subr.mxu0 %v4624
          %7773 = vmatpush1.msra.mxu0 %v4623
          %7774 = vmatprep.subr.mxu0 %v4632
          %7775 = vmatpush1.msra.mxu0 %v4631
          %7776 = vmatprep.mubr.f32.mxu0 %v7569
          %7777 = vmatmul.mubr.f32.gmra.mrb[0].mxu0 %v7550
          %v7778 = vpop.f32.mrb[0].mxu0
          %v7779 = vadd.f32 0.0, %v7778
          %v7780 = vpop.f32.mrb[0].mxu0
          %v7781 = vadd.f32 0.0, %v7780
          %7782 = vdwg.mxu0
          %7783 = vmatprep.subr.mxu0 %v4386
          %7784 = vmatpush1.msra.mxu0 %v4385
          %7785 = vmatprep.subr.mxu0 %v4394
          %7786 = vmatpush1.msra.mxu0 %v4393
          %7787 = vmatprep.subr.mxu0 %v4402
          %7788 = vmatpush1.msra.mxu0 %v4401
          %7789 = vmatprep.subr.mxu0 %v4410
          %7790 = vmatpush1.msra.mxu0 %v4409
          %7791 = vmatprep.subr.mxu0 %v4418
          %7792 = vmatpush1.msra.mxu0 %v4417
          %7793 = vmatprep.subr.mxu0 %v4426
          %7794 = vmatpush1.msra.mxu0 %v4425
          %7795 = vmatprep.subr.mxu0 %v4434
          %7796 = vmatpush1.msra.mxu0 %v4433
          %7797 = vmatprep.subr.mxu0 %v4442
          %7798 = vmatpush1.msra.mxu0 %v4441
          %7799 = vmatprep.subr.mxu0 %v4450
          %7800 = vmatpush1.msra.mxu0 %v4449
          %7801 = vmatprep.subr.mxu0 %v4458
          %7802 = vmatpush1.msra.mxu0 %v4457
          %7803 = vmatprep.subr.mxu0 %v4466
          %7804 = vmatpush1.msra.mxu0 %v4465
          %7805 = vmatprep.subr.mxu0 %v4474
          %7806 = vmatpush1.msra.mxu0 %v4473
          %7807 = vmatprep.subr.mxu0 %v4482
          %7808 = vmatpush1.msra.mxu0 %v4481
          %7809 = vmatprep.subr.mxu0 %v4490
          %7810 = vmatpush1.msra.mxu0 %v4489
          %7811 = vmatprep.subr.mxu0 %v4498
          %7812 = vmatpush1.msra.mxu0 %v4497
          %7813 = vmatprep.subr.mxu0 %v4506
          %7814 = vmatpush1.msra.mxu0 %v4505
          %7815 = vmatprep.subr.mxu0 %v4514
          %7816 = vmatpush1.msra.mxu0 %v4513
          %7817 = vmatprep.subr.mxu0 %v4522
          %7818 = vmatpush1.msra.mxu0 %v4521
          %7819 = vmatprep.subr.mxu0 %v4530
          %7820 = vmatpush1.msra.mxu0 %v4529
          %7821 = vmatprep.subr.mxu0 %v4538
          %7822 = vmatpush1.msra.mxu0 %v4537
          %7823 = vmatprep.subr.mxu0 %v4546
          %7824 = vmatpush1.msra.mxu0 %v4545
          %7825 = vmatprep.subr.mxu0 %v4554
          %7826 = vmatpush1.msra.mxu0 %v4553
          %7827 = vmatprep.subr.mxu0 %v4562
          %7828 = vmatpush1.msra.mxu0 %v4561
          %7829 = vmatprep.subr.mxu0 %v4570
          %7830 = vmatpush1.msra.mxu0 %v4569
          %7831 = vmatprep.subr.mxu0 %v4578
          %7832 = vmatpush1.msra.mxu0 %v4577
          %7833 = vmatprep.subr.mxu0 %v4586
          %7834 = vmatpush1.msra.mxu0 %v4585
          %7835 = vmatprep.subr.mxu0 %v4594
          %7836 = vmatpush1.msra.mxu0 %v4593
          %7837 = vmatprep.subr.mxu0 %v4602
          %7838 = vmatpush1.msra.mxu0 %v4601
          %7839 = vmatprep.subr.mxu0 %v4610
          %7840 = vmatpush1.msra.mxu0 %v4609
          %7841 = vmatprep.subr.mxu0 %v4618
          %7842 = vmatpush1.msra.mxu0 %v4617
          %7843 = vmatprep.subr.mxu0 %v4626
          %7844 = vmatpush1.msra.mxu0 %v4625
          %7845 = vmatprep.subr.mxu0 %v4634
          %7846 = vmatpush1.msra.mxu0 %v4633
          %7847 = vmatprep.mubr.f32.mxu0 %v7569
          %7848 = vmatmul.mubr.f32.gmra.mrb[0].mxu0 %v7550
          %v7849 = vpop.f32.mrb[0].mxu0
          %v7850 = vadd.f32 0.0, %v7849
          %v7851 = vpop.f32.mrb[0].mxu0
          %v7852 = vadd.f32 0.0, %v7851
          %7853 = vdwg.mxu0
          %v7854 = vadd.f32 %v4232, %v7637
          %v7855 = vadd.f32 %v4234, %v7639
          %v7856 = vadd.f32 %v4369, %v7708
          %v7857 = vadd.f32 %v4371, %v7710
          %v7858 = vtanh.pop %v7854
          %v7859 = vtanh.pop %v7855
          %v7860 = vtanh.pop %v7856
          %v7861 = vtanh.pop %v7857
          %v7862 = vmul.f32 %v7858, 0.5
          %v7863 = vadd.f32 %v7862, 0.5
          %v7864 = vmul.f32 %v7859, 0.5
          %v7865 = vadd.f32 %v7864, 0.5
          %v7866 = vmul.f32 %v7861, 0.5
          %v7867 = vadd.f32 %v7866, 0.5
          %v7868 = vmul.f32 %v7865, %v7548
          %v7869 = vmul.f32 %v7863, %v7860
          %v7870 = vadd.f32 %v7868, %v7869
          %v7871 = vtanh.pop %v7870
          %v7872 = vmul.f32 %v7867, %v7871
          %v7873 = vadd.f32 %v7779, %v4640
          %v7874 = vadd.f32 %v7781, %v4644
          %v7875 = vadd.f32 %v7850, %v4648
          %v7876 = vadd.f32 %v7852, %v4652
          %v7877 = vtanh.pop %v7873
          %v7878 = vtanh.pop %v7874
          %v7879 = vtanh.pop %v7875
          %v7880 = vtanh.pop %v7876
          %v7881 = vmul.f32 %v7877, 0.5
          %v7882 = vadd.f32 %v7881, 0.5
          %v7883 = vmul.f32 %v7878, 0.5
          %v7884 = vadd.f32 %v7883, 0.5
          %v7885 = vmul.f32 %v7880, 0.5
          %v7886 = vadd.f32 %v7885, 0.5
          %v7887 = vmul.f32 %v7884, %v7567
          %v7888 = vmul.f32 %v7882, %v7879
          %v7889 = vadd.f32 %v7887, %v7888
          %v7890 = vtanh.pop %v7889
          %v7891 = vmul.f32 %v7886, %v7890
          %7892 = vmatprep.subr.mxu0 %v4380
          %7893 = vmatpush1.msra.mxu0 %v4379
          %7894 = vmatprep.subr.mxu0 %v4388
          %7895 = vmatpush1.msra.mxu0 %v4387
          %7896 = vmatprep.subr.mxu0 %v4396
          %7897 = vmatpush1.msra.mxu0 %v4395
          %7898 = vmatprep.subr.mxu0 %v4404
          %7899 = vmatpush1.msra.mxu0 %v4403
          %7900 = vmatprep.subr.mxu0 %v4412
          %7901 = vmatpush1.msra.mxu0 %v4411
          %7902 = vmatprep.subr.mxu0 %v4420
          %7903 = vmatpush1.msra.mxu0 %v4419
          %7904 = vmatprep.subr.mxu0 %v4428
          %7905 = vmatpush1.msra.mxu0 %v4427
          %7906 = vmatprep.subr.mxu0 %v4436
          %7907 = vmatpush1.msra.mxu0 %v4435
          %7908 = vmatprep.subr.mxu0 %v4444
          %7909 = vmatpush1.msra.mxu0 %v4443
          %7910 = vmatprep.subr.mxu0 %v4452
          %7911 = vmatpush1.msra.mxu0 %v4451
          %7912 = vmatprep.subr.mxu0 %v4460
          %7913 = vmatpush1.msra.mxu0 %v4459
          %7914 = vmatprep.subr.mxu0 %v4468
          %7915 = vmatpush1.msra.mxu0 %v4467
          %7916 = vmatprep.subr.mxu0 %v4476
          %7917 = vmatpush1.msra.mxu0 %v4475
          %7918 = vmatprep.subr.mxu0 %v4484
          %7919 = vmatpush1.msra.mxu0 %v4483
          %7920 = vmatprep.subr.mxu0 %v4492
          %7921 = vmatpush1.msra.mxu0 %v4491
          %7922 = vmatprep.subr.mxu0 %v4500
          %7923 = vmatpush1.msra.mxu0 %v4499
          %7924 = vmatprep.subr.mxu0 %v4508
          %7925 = vmatpush1.msra.mxu0 %v4507
          %7926 = vmatprep.subr.mxu0 %v4516
          %7927 = vmatpush1.msra.mxu0 %v4515
          %7928 = vmatprep.subr.mxu0 %v4524
          %7929 = vmatpush1.msra.mxu0 %v4523
          %7930 = vmatprep.subr.mxu0 %v4532
          %7931 = vmatpush1.msra.mxu0 %v4531
          %7932 = vmatprep.subr.mxu0 %v4540
          %7933 = vmatpush1.msra.mxu0 %v4539
          %7934 = vmatprep.subr.mxu0 %v4548
          %7935 = vmatpush1.msra.mxu0 %v4547
          %7936 = vmatprep.subr.mxu0 %v4556
          %7937 = vmatpush1.msra.mxu0 %v4555
          %7938 = vmatprep.subr.mxu0 %v4564
          %7939 = vmatpush1.msra.mxu0 %v4563
          %7940 = vmatprep.subr.mxu0 %v4572
          %7941 = vmatpush1.msra.mxu0 %v4571
          %7942 = vmatprep.subr.mxu0 %v4580
          %7943 = vmatpush1.msra.mxu0 %v4579
          %7944 = vmatprep.subr.mxu0 %v4588
          %7945 = vmatpush1.msra.mxu0 %v4587
          %7946 = vmatprep.subr.mxu0 %v4596
          %7947 = vmatpush1.msra.mxu0 %v4595
          %7948 = vmatprep.subr.mxu0 %v4604
          %7949 = vmatpush1.msra.mxu0 %v4603
          %7950 = vmatprep.subr.mxu0 %v4612
          %7951 = vmatpush1.msra.mxu0 %v4611
          %7952 = vmatprep.subr.mxu0 %v4620
          %7953 = vmatpush1.msra.mxu0 %v4619
          %7954 = vmatprep.subr.mxu0 %v4628
          %7955 = vmatpush1.msra.mxu0 %v4627
          %7956 = vmatprep.mubr.f32.mxu0 %v7891
          %7957 = vmatmul.mubr.f32.gmra.mrb[0].mxu0 %v7872
          %v7958 = vpop.f32.mrb[0].mxu0
          %v7959 = vadd.f32 0.0, %v7958
          %v7960 = vpop.f32.mrb[0].mxu0
          %v7961 = vadd.f32 0.0, %v7960
          %7962 = vdwg.mxu0
          %7963 = vmatprep.subr.mxu0 %v4382
          %7964 = vmatpush1.msra.mxu0 %v4381
          %7965 = vmatprep.subr.mxu0 %v4390
          %7966 = vmatpush1.msra.mxu0 %v4389
          %7967 = vmatprep.subr.mxu0 %v4398
          %7968 = vmatpush1.msra.mxu0 %v4397
          %7969 = vmatprep.subr.mxu0 %v4406
          %7970 = vmatpush1.msra.mxu0 %v4405
          %7971 = vmatprep.subr.mxu0 %v4414
          %7972 = vmatpush1.msra.mxu0 %v4413
          %7973 = vmatprep.subr.mxu0 %v4422
          %7974 = vmatpush1.msra.mxu0 %v4421
          %7975 = vmatprep.subr.mxu0 %v4430
          %7976 = vmatpush1.msra.mxu0 %v4429
          %7977 = vmatprep.subr.mxu0 %v4438
          %7978 = vmatpush1.msra.mxu0 %v4437
          %7979 = vmatprep.subr.mxu0 %v4446
          %7980 = vmatpush1.msra.mxu0 %v4445
          %7981 = vmatprep.subr.mxu0 %v4454
          %7982 = vmatpush1.msra.mxu0 %v4453
          %7983 = vmatprep.subr.mxu0 %v4462
          %7984 = vmatpush1.msra.mxu0 %v4461
          %7985 = vmatprep.subr.mxu0 %v4470
          %7986 = vmatpush1.msra.mxu0 %v4469
          %7987 = vmatprep.subr.mxu0 %v4478
          %7988 = vmatpush1.msra.mxu0 %v4477
          %7989 = vmatprep.subr.mxu0 %v4486
          %7990 = vmatpush1.msra.mxu0 %v4485
          %7991 = vmatprep.subr.mxu0 %v4494
          %7992 = vmatpush1.msra.mxu0 %v4493
          %7993 = vmatprep.subr.mxu0 %v4502
          %7994 = vmatpush1.msra.mxu0 %v4501
          %7995 = vmatprep.subr.mxu0 %v4510
          %7996 = vmatpush1.msra.mxu0 %v4509
          %7997 = vmatprep.subr.mxu0 %v4518
          %7998 = vmatpush1.msra.mxu0 %v4517
          %7999 = vmatprep.subr.mxu0 %v4526
          %8000 = vmatpush1.msra.mxu0 %v4525
          %8001 = vmatprep.subr.mxu0 %v4534
          %8002 = vmatpush1.msra.mxu0 %v4533
          %8003 = vmatprep.subr.mxu0 %v4542
          %8004 = vmatpush1.msra.mxu0 %v4541
          %8005 = vmatprep.subr.mxu0 %v4550
          %8006 = vmatpush1.msra.mxu0 %v4549
          %8007 = vmatprep.subr.mxu0 %v4558
          %8008 = vmatpush1.msra.mxu0 %v4557
          %8009 = vmatprep.subr.mxu0 %v4566
          %8010 = vmatpush1.msra.mxu0 %v4565
          %8011 = vmatprep.subr.mxu0 %v4574
          %8012 = vmatpush1.msra.mxu0 %v4573
          %8013 = vmatprep.subr.mxu0 %v4582
          %8014 = vmatpush1.msra.mxu0 %v4581
          %8015 = vmatprep.subr.mxu0 %v4590
          %8016 = vmatpush1.msra.mxu0 %v4589
          %8017 = vmatprep.subr.mxu0 %v4598
          %8018 = vmatpush1.msra.mxu0 %v4597
          %8019 = vmatprep.subr.mxu0 %v4606
          %8020 = vmatpush1.msra.mxu0 %v4605
          %8021 = vmatprep.subr.mxu0 %v4614
          %8022 = vmatpush1.msra.mxu0 %v4613
          %8023 = vmatprep.subr.mxu0 %v4622
          %8024 = vmatpush1.msra.mxu0 %v4621
          %8025 = vmatprep.subr.mxu0 %v4630
          %8026 = vmatpush1.msra.mxu0 %v4629
          %8027 = vmatprep.mubr.f32.mxu0 %v7891
          %8028 = vmatmul.mubr.f32.gmra.mrb[0].mxu0 %v7872
          %v8029 = vpop.f32.mrb[0].mxu0
          %v8030 = vadd.f32 0.0, %v8029
          %v8031 = vpop.f32.mrb[0].mxu0
          %v8032 = vadd.f32 0.0, %v8031
          %8033 = vdwg.mxu0
          %8034 = vmatprep.subr.mxu0 %v4384
          %8035 = vmatpush1.msra.mxu0 %v4383
          %8036 = vmatprep.subr.mxu0 %v4392
          %8037 = vmatpush1.msra.mxu0 %v4391
          %8038 = vmatprep.subr.mxu0 %v4400
          %8039 = vmatpush1.msra.mxu0 %v4399
          %8040 = vmatprep.subr.mxu0 %v4408
          %8041 = vmatpush1.msra.mxu0 %v4407
          %8042 = vmatprep.subr.mxu0 %v4416
          %8043 = vmatpush1.msra.mxu0 %v4415
          %8044 = vmatprep.subr.mxu0 %v4424
          %8045 = vmatpush1.msra.mxu0 %v4423
          %8046 = vmatprep.subr.mxu0 %v4432
          %8047 = vmatpush1.msra.mxu0 %v4431
          %8048 = vmatprep.subr.mxu0 %v4440
          %8049 = vmatpush1.msra.mxu0 %v4439
          %8050 = vmatprep.subr.mxu0 %v4448
          %8051 = vmatpush1.msra.mxu0 %v4447
          %8052 = vmatprep.subr.mxu0 %v4456
          %8053 = vmatpush1.msra.mxu0 %v4455
          %8054 = vmatprep.subr.mxu0 %v4464
          %8055 = vmatpush1.msra.mxu0 %v4463
          %8056 = vmatprep.subr.mxu0 %v4472
          %8057 = vmatpush1.msra.mxu0 %v4471
          %8058 = vmatprep.subr.mxu0 %v4480
          %8059 = vmatpush1.msra.mxu0 %v4479
          %8060 = vmatprep.subr.mxu0 %v4488
          %8061 = vmatpush1.msra.mxu0 %v4487
          %8062 = vmatprep.subr.mxu0 %v4496
          %8063 = vmatpush1.msra.mxu0 %v4495
          %8064 = vmatprep.subr.mxu0 %v4504
          %8065 = vmatpush1.msra.mxu0 %v4503
          %8066 = vmatprep.subr.mxu0 %v4512
          %8067 = vmatpush1.msra.mxu0 %v4511
          %8068 = vmatprep.subr.mxu0 %v4520
          %8069 = vmatpush1.msra.mxu0 %v4519
          %8070 = vmatprep.subr.mxu0 %v4528
          %8071 = vmatpush1.msra.mxu0 %v4527
          %8072 = vmatprep.subr.mxu0 %v4536
          %8073 = vmatpush1.msra.mxu0 %v4535
          %8074 = vmatprep.subr.mxu0 %v4544
          %8075 = vmatpush1.msra.mxu0 %v4543
          %8076 = vmatprep.subr.mxu0 %v4552
          %8077 = vmatpush1.msra.mxu0 %v4551
          %8078 = vmatprep.subr.mxu0 %v4560
          %8079 = vmatpush1.msra.mxu0 %v4559
          %8080 = vmatprep.subr.mxu0 %v4568
          %8081 = vmatpush1.msra.mxu0 %v4567
          %8082 = vmatprep.subr.mxu0 %v4576
          %8083 = vmatpush1.msra.mxu0 %v4575
          %8084 = vmatprep.subr.mxu0 %v4584
          %8085 = vmatpush1.msra.mxu0 %v4583
          %8086 = vmatprep.subr.mxu0 %v4592
          %8087 = vmatpush1.msra.mxu0 %v4591
          %8088 = vmatprep.subr.mxu0 %v4600
          %8089 = vmatpush1.msra.mxu0 %v4599
          %8090 = vmatprep.subr.mxu0 %v4608
          %8091 = vmatpush1.msra.mxu0 %v4607
          %8092 = vmatprep.subr.mxu0 %v4616
          %8093 = vmatpush1.msra.mxu0 %v4615
          %8094 = vmatprep.subr.mxu0 %v4624
          %8095 = vmatpush1.msra.mxu0 %v4623
          %8096 = vmatprep.subr.mxu0 %v4632
          %8097 = vmatpush1.msra.mxu0 %v4631
          %8098 = vmatprep.mubr.f32.mxu0 %v7891
          %8099 = vmatmul.mubr.f32.gmra.mrb[0].mxu0 %v7872
          %v8100 = vpop.f32.mrb[0].mxu0
          %v8101 = vadd.f32 0.0, %v8100
          %v8102 = vpop.f32.mrb[0].mxu0
          %v8103 = vadd.f32 0.0, %v8102
          %8104 = vdwg.mxu0
          %8105 = vmatprep.subr.mxu0 %v4386
          %8106 = vmatpush1.msra.mxu0 %v4385
          %8107 = vmatprep.subr.mxu0 %v4394
          %8108 = vmatpush1.msra.mxu0 %v4393
          %8109 = vmatprep.subr.mxu0 %v4402
          %8110 = vmatpush1.msra.mxu0 %v4401
          %8111 = vmatprep.subr.mxu0 %v4410
          %8112 = vmatpush1.msra.mxu0 %v4409
          %8113 = vmatprep.subr.mxu0 %v4418
          %8114 = vmatpush1.msra.mxu0 %v4417
          %8115 = vmatprep.subr.mxu0 %v4426
          %8116 = vmatpush1.msra.mxu0 %v4425
          %8117 = vmatprep.subr.mxu0 %v4434
          %8118 = vmatpush1.msra.mxu0 %v4433
          %8119 = vmatprep.subr.mxu0 %v4442
          %8120 = vmatpush1.msra.mxu0 %v4441
          %8121 = vmatprep.subr.mxu0 %v4450
          %8122 = vmatpush1.msra.mxu0 %v4449
          %8123 = vmatprep.subr.mxu0 %v4458
          %8124 = vmatpush1.msra.mxu0 %v4457
          %8125 = vmatprep.subr.mxu0 %v4466
          %8126 = vmatpush1.msra.mxu0 %v4465
          %8127 = vmatprep.subr.mxu0 %v4474
          %8128 = vmatpush1.msra.mxu0 %v4473
          %8129 = vmatprep.subr.mxu0 %v4482
          %8130 = vmatpush1.msra.mxu0 %v4481
          %8131 = vmatprep.subr.mxu0 %v4490
          %8132 = vmatpush1.msra.mxu0 %v4489
          %8133 = vmatprep.subr.mxu0 %v4498
          %8134 = vmatpush1.msra.mxu0 %v4497
          %8135 = vmatprep.subr.mxu0 %v4506
          %8136 = vmatpush1.msra.mxu0 %v4505
          %8137 = vmatprep.subr.mxu0 %v4514
          %8138 = vmatpush1.msra.mxu0 %v4513
          %8139 = vmatprep.subr.mxu0 %v4522
          %8140 = vmatpush1.msra.mxu0 %v4521
          %8141 = vmatprep.subr.mxu0 %v4530
          %8142 = vmatpush1.msra.mxu0 %v4529
          %8143 = vmatprep.subr.mxu0 %v4538
          %8144 = vmatpush1.msra.mxu0 %v4537
          %8145 = vmatprep.subr.mxu0 %v4546
          %8146 = vmatpush1.msra.mxu0 %v4545
          %8147 = vmatprep.subr.mxu0 %v4554
          %8148 = vmatpush1.msra.mxu0 %v4553
          %8149 = vmatprep.subr.mxu0 %v4562
          %8150 = vmatpush1.msra.mxu0 %v4561
          %8151 = vmatprep.subr.mxu0 %v4570
          %8152 = vmatpush1.msra.mxu0 %v4569
          %8153 = vmatprep.subr.mxu0 %v4578
          %8154 = vmatpush1.msra.mxu0 %v4577
          %8155 = vmatprep.subr.mxu0 %v4586
          %8156 = vmatpush1.msra.mxu0 %v4585
          %8157 = vmatprep.subr.mxu0 %v4594
          %8158 = vmatpush1.msra.mxu0 %v4593
          %8159 = vmatprep.subr.mxu0 %v4602
          %8160 = vmatpush1.msra.mxu0 %v4601
          %8161 = vmatprep.subr.mxu0 %v4610
          %8162 = vmatpush1.msra.mxu0 %v4609
          %8163 = vmatprep.subr.mxu0 %v4618
          %8164 = vmatpush1.msra.mxu0 %v4617
          %8165 = vmatprep.subr.mxu0 %v4626
          %8166 = vmatpush1.msra.mxu0 %v4625
          %8167 = vmatprep.subr.mxu0 %v4634
          %8168 = vmatpush1.msra.mxu0 %v4633
          %8169 = vmatprep.mubr.f32.mxu0 %v7891
          %8170 = vmatmul.mubr.f32.gmra.mrb[0].mxu0 %v7872
          %v8171 = vpop.f32.mrb[0].mxu0
          %v8172 = vadd.f32 0.0, %v8171
          %v8173 = vpop.f32.mrb[0].mxu0
          %v8174 = vadd.f32 0.0, %v8173
          %8175 = vdwg.mxu0
          %v8176 = vadd.f32 %v4238, %v7959
          %v8177 = vadd.f32 %v4240, %v7961
          %v8178 = vadd.f32 %v4375, %v8030
          %v8179 = vadd.f32 %v4377, %v8032
          %v8180 = vtanh.pop %v8176
          %v8181 = vtanh.pop %v8177
          %v8182 = vtanh.pop %v8178
          %v8183 = vtanh.pop %v8179
          %v8184 = vmul.f32 %v8180, 0.5
          %v8185 = vadd.f32 %v8184, 0.5
          %v8186 = vmul.f32 %v8181, 0.5
          %v8187 = vadd.f32 %v8186, 0.5
          %v8188 = vmul.f32 %v8183, 0.5
          %v8189 = vadd.f32 %v8188, 0.5
          %v8190 = vmul.f32 %v8187, %v7870
          %v8191 = vmul.f32 %v8185, %v8182
          %v8192 = vadd.f32 %v8190, %v8191
          %v8193 = vtanh.pop %v8192
          %v8194 = vmul.f32 %v8189, %v8193
          %v8195 = vadd.f32 %v8101, %v4640
          %v8196 = vadd.f32 %v8103, %v4644
          %v8197 = vadd.f32 %v8172, %v4648
          %v8198 = vadd.f32 %v8174, %v4652
          %v8199 = vtanh.pop %v8195
          %v8200 = vtanh.pop %v8196
          %v8201 = vtanh.pop %v8197
          %v8202 = vtanh.pop %v8198
          %v8203 = vmul.f32 %v8199, 0.5
          %v8204 = vadd.f32 %v8203, 0.5
          %v8205 = vmul.f32 %v8200, 0.5
          %v8206 = vadd.f32 %v8205, 0.5
          %v8207 = vmul.f32 %v8202, 0.5
          %v8208 = vadd.f32 %v8207, 0.5
          %v8209 = vmul.f32 %v8206, %v7889
          %v8210 = vmul.f32 %v8204, %v8201
          %v8211 = vadd.f32 %v8209, %v8210
          %v8212 = vtanh.pop %v8211
          %v8213 = vmul.f32 %v8208, %v8212
          %8214 = vmatprep.subr.mxu0 %v4384
          %8215 = vmatpush1.msra.mxu0 %v4383
          %8216 = vmatprep.subr.mxu0 %v4392
          %8217 = vmatpush1.msra.mxu0 %v4391
          %8218 = vmatprep.subr.mxu0 %v4400
          %8219 = vmatpush1.msra.mxu0 %v4399
          %8220 = vmatprep.subr.mxu0 %v4408
          %8221 = vmatpush1.msra.mxu0 %v4407
          %8222 = vmatprep.subr.mxu0 %v4416
          %8223 = vmatpush1.msra.mxu0 %v4415
          %8224 = vmatprep.subr.mxu0 %v4424
          %8225 = vmatpush1.msra.mxu0 %v4423
          %8226 = vmatprep.subr.mxu0 %v4432
          %8227 = vmatpush1.msra.mxu0 %v4431
          %8228 = vmatprep.subr.mxu0 %v4440
          %8229 = vmatpush1.msra.mxu0 %v4439
          %8230 = vmatprep.subr.mxu0 %v4448
          %8231 = vmatpush1.msra.mxu0 %v4447
          %8232 = vmatprep.subr.mxu0 %v4456
          %8233 = vmatpush1.msra.mxu0 %v4455
          %8234 = vmatprep.subr.mxu0 %v4464
          %8235 = vmatpush1.msra.mxu0 %v4463
          %8236 = vmatprep.subr.mxu0 %v4472
          %8237 = vmatpush1.msra.mxu0 %v4471
          %8238 = vmatprep.subr.mxu0 %v4480
          %8239 = vmatpush1.msra.mxu0 %v4479
          %8240 = vmatprep.subr.mxu0 %v4488
          %8241 = vmatpush1.msra.mxu0 %v4487
          %8242 = vmatprep.subr.mxu0 %v4496
          %8243 = vmatpush1.msra.mxu0 %v4495
          %8244 = vmatprep.subr.mxu0 %v4504
          %8245 = vmatpush1.msra.mxu0 %v4503
          %8246 = vmatprep.subr.mxu0 %v4512
          %8247 = vmatpush1.msra.mxu0 %v4511
          %8248 = vmatprep.subr.mxu0 %v4520
          %8249 = vmatpush1.msra.mxu0 %v4519
          %8250 = vmatprep.subr.mxu0 %v4528
          %8251 = vmatpush1.msra.mxu0 %v4527
          %8252 = vmatprep.subr.mxu0 %v4536
          %8253 = vmatpush1.msra.mxu0 %v4535
          %8254 = vmatprep.subr.mxu0 %v4544
          %8255 = vmatpush1.msra.mxu0 %v4543
          %8256 = vmatprep.subr.mxu0 %v4552
          %8257 = vmatpush1.msra.mxu0 %v4551
          %8258 = vmatprep.subr.mxu0 %v4560
          %8259 = vmatpush1.msra.mxu0 %v4559
          %8260 = vmatprep.subr.mxu0 %v4568
          %8261 = vmatpush1.msra.mxu0 %v4567
          %8262 = vmatprep.subr.mxu0 %v4576
          %8263 = vmatpush1.msra.mxu0 %v4575
          %8264 = vmatprep.subr.mxu0 %v4584
          %8265 = vmatpush1.msra.mxu0 %v4583
          %8266 = vmatprep.subr.mxu0 %v4592
          %8267 = vmatpush1.msra.mxu0 %v4591
          %8268 = vmatprep.subr.mxu0 %v4600
          %8269 = vmatpush1.msra.mxu0 %v4599
          %8270 = vmatprep.subr.mxu0 %v4608
          %8271 = vmatpush1.msra.mxu0 %v4607
          %8272 = vmatprep.subr.mxu0 %v4616
          %8273 = vmatpush1.msra.mxu0 %v4615
          %8274 = vmatprep.subr.mxu0 %v4624
          %8275 = vmatpush1.msra.mxu0 %v4623
          %8276 = vmatprep.subr.mxu0 %v4632
          %8277 = vmatpush1.msra.mxu0 %v4631
          %8278 = vmatprep.mubr.f32.mxu0 %v8213
          %8279 = vmatmul.mubr.f32.gmra.mrb[0].mxu0 %v8194
          %v8280 = vpop.f32.mrb[0].mxu0
          %v8281 = vadd.f32 %v4640, %v8280
          %v8282 = vpop.f32.mrb[0].mxu0
          %v8283 = vadd.f32 %v4644, %v8282
          %8284 = vdwg.mxu0
          %8285 = vmatprep.subr.mxu0 %v4386
          %8286 = vmatpush1.msra.mxu0 %v4385
          %8287 = vmatprep.subr.mxu0 %v4394
          %8288 = vmatpush1.msra.mxu0 %v4393
          %8289 = vmatprep.subr.mxu0 %v4402
          %8290 = vmatpush1.msra.mxu0 %v4401
          %8291 = vmatprep.subr.mxu0 %v4410
          %8292 = vmatpush1.msra.mxu0 %v4409
          %8293 = vmatprep.subr.mxu0 %v4418
          %8294 = vmatpush1.msra.mxu0 %v4417
          %8295 = vmatprep.subr.mxu0 %v4426
          %8296 = vmatpush1.msra.mxu0 %v4425
          %8297 = vmatprep.subr.mxu0 %v4434
          %8298 = vmatpush1.msra.mxu0 %v4433
          %8299 = vmatprep.subr.mxu0 %v4442
          %8300 = vmatpush1.msra.mxu0 %v4441
          %8301 = vmatprep.subr.mxu0 %v4450
          %8302 = vmatpush1.msra.mxu0 %v4449
          %8303 = vmatprep.subr.mxu0 %v4458
          %8304 = vmatpush1.msra.mxu0 %v4457
          %8305 = vmatprep.subr.mxu0 %v4466
          %8306 = vmatpush1.msra.mxu0 %v4465
          %8307 = vmatprep.subr.mxu0 %v4474
          %8308 = vmatpush1.msra.mxu0 %v4473
          %8309 = vmatprep.subr.mxu0 %v4482
          %8310 = vmatpush1.msra.mxu0 %v4481
          %8311 = vmatprep.subr.mxu0 %v4490
          %8312 = vmatpush1.msra.mxu0 %v4489
          %8313 = vmatprep.subr.mxu0 %v4498
          %8314 = vmatpush1.msra.mxu0 %v4497
          %8315 = vmatprep.subr.mxu0 %v4506
          %8316 = vmatpush1.msra.mxu0 %v4505
          %8317 = vmatprep.subr.mxu0 %v4514
          %8318 = vmatpush1.msra.mxu0 %v4513
          %8319 = vmatprep.subr.mxu0 %v4522
          %8320 = vmatpush1.msra.mxu0 %v4521
          %8321 = vmatprep.subr.mxu0 %v4530
          %8322 = vmatpush1.msra.mxu0 %v4529
          %8323 = vmatprep.subr.mxu0 %v4538
          %8324 = vmatpush1.msra.mxu0 %v4537
          %8325 = vmatprep.subr.mxu0 %v4546
          %8326 = vmatpush1.msra.mxu0 %v4545
          %8327 = vmatprep.subr.mxu0 %v4554
          %8328 = vmatpush1.msra.mxu0 %v4553
          %8329 = vmatprep.subr.mxu0 %v4562
          %8330 = vmatpush1.msra.mxu0 %v4561
          %8331 = vmatprep.subr.mxu0 %v4570
          %8332 = vmatpush1.msra.mxu0 %v4569
          %8333 = vmatprep.subr.mxu0 %v4578
          %8334 = vmatpush1.msra.mxu0 %v4577
          %8335 = vmatprep.subr.mxu0 %v4586
          %8336 = vmatpush1.msra.mxu0 %v4585
          %8337 = vmatprep.subr.mxu0 %v4594
          %8338 = vmatpush1.msra.mxu0 %v4593
          %8339 = vmatprep.subr.mxu0 %v4602
          %8340 = vmatpush1.msra.mxu0 %v4601
          %8341 = vmatprep.subr.mxu0 %v4610
          %8342 = vmatpush1.msra.mxu0 %v4609
          %8343 = vmatprep.subr.mxu0 %v4618
          %8344 = vmatpush1.msra.mxu0 %v4617
          %8345 = vmatprep.subr.mxu0 %v4626
          %8346 = vmatpush1.msra.mxu0 %v4625
          %8347 = vmatprep.subr.mxu0 %v4634
          %8348 = vmatpush1.msra.mxu0 %v4633
          %8349 = vmatprep.mubr.f32.mxu0 %v8213
          %8350 = vmatmul.mubr.f32.gmra.mrb[0].mxu0 %v8194
          %v8351 = vpop.f32.mrb[0].mxu0
          %v8352 = vadd.f32 %v4648, %v8351
          %v8353 = vpop.f32.mrb[0].mxu0
          %v8354 = vadd.f32 %v4652, %v8353
          %8355 = vdwg.mxu0
          %v8356 = vtanh.pop %v8281
          %v8357 = vtanh.pop %v8283
          %v8358 = vtanh.pop %v8352
          %v8359 = vtanh.pop %v8354
          %v8360 = vmul.f32 %v8356, 0.5
          %v8361 = vadd.f32 %v8360, 0.5
          %v8362 = vmul.f32 %v8357, 0.5
          %v8363 = vadd.f32 %v8362, 0.5
          %v8364 = vmul.f32 %v8359, 0.5
          %v8365 = vadd.f32 %v8364, 0.5
          %v8366 = vmul.f32 %v8363, %v8211
          %v8367 = vmul.f32 %v8361, %v8358
          %v8368 = vadd.f32 %v8366, %v8367
          %v8369 = vtanh.pop %v8368
          %v8370 = vmul.f32 %v8365, %v8369
          %v8371 = vld [vmem:[%s7] sm:$0xff]
          %v8372 = vld [vmem:[%s7 + $0x8] sm:$0xff]
          %v8373 = vld [vmem:[%s7 + $0x10] sm:$0xff]
          %v8374 = vld [vmem:[%s7 + $0x18] sm:$0xff]
          %v8375 = vld [vmem:[%s7 + $0x20] sm:$0xff]
          %v8376 = vld [vmem:[%s7 + $0x28] sm:$0xff]
          %v8377 = vld [vmem:[%s7 + $0x30] sm:$0xff]
          %v8378 = vld [vmem:[%s7 + $0x38] sm:$0xff]
          %v8379 = vld [vmem:[%s7 + $0x40] sm:$0xff]
          %v8380 = vld [vmem:[%s7 + $0x48] sm:$0xff]
          %v8381 = vld [vmem:[%s7 + $0x50] sm:$0xff]
          %v8382 = vld [vmem:[%s7 + $0x58] sm:$0xff]
          %v8383 = vld [vmem:[%s7 + $0x60] sm:$0xff]
          %v8384 = vld [vmem:[%s7 + $0x68] sm:$0xff]
          %v8385 = vld [vmem:[%s7 + $0x70] sm:$0xff]
          %v8386 = vld [vmem:[%s7 + $0x78] sm:$0xff]
          %v8387 = vld [vmem:[%s8] sm:$0x1]
          %v8389 = vlaneseq
          %v8390 = vshrl.u32 %v8389, 7
          %v8391 = vsub.s32 0, %v8390
          %v8392 = vrot.slane %v8387, %v8391
          %8394 = vmatprep.subr.mxu0 0.0
          %8395 = vmatpush1.msra.mxu0 %v8371
          %8396 = vmatprep.subr.mxu0 0.0
          %8397 = vmatpush1.msra.mxu0 %v8372
          %8398 = vmatprep.subr.mxu0 0.0
          %8399 = vmatpush1.msra.mxu0 %v8373
          %8400 = vmatprep.subr.mxu0 0.0
          %8401 = vmatpush1.msra.mxu0 %v8374
          %8402 = vmatprep.subr.mxu0 0.0
          %8403 = vmatpush1.msra.mxu0 %v8375
          %8404 = vmatprep.subr.mxu0 0.0
          %8405 = vmatpush1.msra.mxu0 %v8376
          %8406 = vmatprep.subr.mxu0 0.0
          %8407 = vmatpush1.msra.mxu0 %v8377
          %8408 = vmatprep.subr.mxu0 0.0
          %8409 = vmatpush1.msra.mxu0 %v8378
          %8410 = vmatprep.subr.mxu0 0.0
          %8411 = vmatpush1.msra.mxu0 %v8379
          %8412 = vmatprep.subr.mxu0 0.0
          %8413 = vmatpush1.msra.mxu0 %v8380
          %8414 = vmatprep.subr.mxu0 0.0
          %8415 = vmatpush1.msra.mxu0 %v8381
          %8416 = vmatprep.subr.mxu0 0.0
          %8417 = vmatpush1.msra.mxu0 %v8382
          %8418 = vmatprep.subr.mxu0 0.0
          %8419 = vmatpush1.msra.mxu0 %v8383
          %8420 = vmatprep.subr.mxu0 0.0
          %8421 = vmatpush1.msra.mxu0 %v8384
          %8422 = vmatprep.subr.mxu0 0.0
          %8423 = vmatpush1.msra.mxu0 %v8385
          %8424 = vmatprep.subr.mxu0 0.0
          %8425 = vmatpush1.msra.mxu0 %v8386
          %8426 = vmatprep.subr.mxu0 0.0
          %8427 = vmatpush1.msra.mxu0 0.0
          %8428 = vmatprep.subr.mxu0 0.0
          %8429 = vmatpush1.msra.mxu0 0.0
          %8430 = vmatprep.subr.mxu0 0.0
          %8431 = vmatpush1.msra.mxu0 0.0
          %8432 = vmatprep.subr.mxu0 0.0
          %8433 = vmatpush1.msra.mxu0 0.0
          %8434 = vmatprep.subr.mxu0 0.0
          %8435 = vmatpush1.msra.mxu0 0.0
          %8436 = vmatprep.subr.mxu0 0.0
          %8437 = vmatpush1.msra.mxu0 0.0
          %8438 = vmatprep.subr.mxu0 0.0
          %8439 = vmatpush1.msra.mxu0 0.0
          %8440 = vmatprep.subr.mxu0 0.0
          %8441 = vmatpush1.msra.mxu0 0.0
          %8442 = vmatprep.subr.mxu0 0.0
          %8443 = vmatpush1.msra.mxu0 0.0
          %8444 = vmatprep.subr.mxu0 0.0
          %8445 = vmatpush1.msra.mxu0 0.0
          %8446 = vmatprep.subr.mxu0 0.0
          %8447 = vmatpush1.msra.mxu0 0.0
          %8448 = vmatprep.subr.mxu0 0.0
          %8449 = vmatpush1.msra.mxu0 0.0
          %8450 = vmatprep.subr.mxu0 0.0
          %8451 = vmatpush1.msra.mxu0 0.0
          %8452 = vmatprep.subr.mxu0 0.0
          %8453 = vmatpush1.msra.mxu0 0.0
          %8454 = vmatprep.subr.mxu0 0.0
          %8455 = vmatpush1.msra.mxu0 0.0
          %8456 = vmatprep.subr.mxu0 0.0
          %8457 = vmatpush1.msra.mxu0 0.0
          %8458 = vmatprep.mubr.f32.mxu0 0.0
          %8459 = vmatmul.mubr.f32.gmra.mrb[0].mxu0 %v8370
          %v8460 = vpop.f32.mrb[0].mxu0
          %v8461 = vadd.f32 %v8392, %v8460
          %v8462 = vpop.f32.mrb[0].mxu0
          %8463 = vdwg.mxu0
          %vm8464 = vcmask 195584
          %8465 = vst.msk [vmem:[%s9] sm:$0xff] %vm8464, %v8461
        $region87: #{lstm_model_forward.1} parent=74 // pred_fallthru
          _
        // Predicated region
        $region88: #{lstm_model_forward.1} parent=74 // pred_check
          %p8466 = pneg %p232
        $region89: #{lstm_model_forward.1} parent=74 // pred_check_branch
          %8468 = sbr.rel (%p8466) target = $region91
        $region90: #{lstm_model_forward.1} parent=74 // pred_region
          _
        $region91: #{lstm_model_forward.1} parent=74 // pred_fallthru
          _
        // Predicated region
        $region92: #{lstm_model_forward.1} parent=74 // pred_check
          %p8469 = pneg %p232
        $region93: #{lstm_model_forward.1} parent=74 // pred_check_branch
          %8471 = sbr.rel (%p8469) target = $region95
        $region94: #{lstm_model_forward.1} parent=74 // pred_region
          _
        $region95: #{lstm_model_forward.1} parent=74 // pred_fallthru
          _
      $region75: #{lstm_model_forward.1} parent=5 // pred_fallthru
        _
      %p8472 = scmp.le.s32.totalorder 2, %s15
      // Predicated region
      $region96: #{lstm_model_forward.1} parent=5 // pred_check
        %p8473 = pneg %p8472
      $region97: #{lstm_model_forward.1} parent=5 // pred_check_branch
        %8475 = sbr.rel (%p8473) target = $region99
      $region98: #{lstm_model_forward.1} parent=5 // pred_region
        %s8476 = ssub.s32 %s15, 2
      $region99: #{lstm_model_forward.1} parent=5 // pred_fallthru
        _
    $region6: #{lstm_model_forward.1} parent=1 // loop_footer
      %s19 = sadd.s32 1, %s15
    $region7: #{lstm_model_forward.1} parent=1 // loop_footer_branch
      %14 = sbr.rel target = $region3
    $region8: #{lstm_model_forward.1} parent=1 // loop_exit
      _

</llo_original>
